<compile_context>
chip_gen: v7x
topology: tpu7x:2x2x1
jax: 0.10.0
libtpu: 0.0.40
codegen_flags: <defaults>
</compile_context>

<pallas_src>
import functools

import jax
import jax.numpy as jnp
from jax.experimental import pallas as pl
from jax.experimental.pallas import tpu as pltpu


# ---------------------------------------------------------------------------
# Fused kernel: fc -> LSTM -> num_passes x MemoryModule
# ---------------------------------------------------------------------------

def _fused_kernel(d_ref, q_ref,
                  wfc_ref, bfc_ref,
                  wih_ref, whh_ref, blstm_ref,
                  w1q_ref, w1m_ref, w1aq_ref, w1am_ref, b1_ref,
                  w2_ref, b2_ref,
                  wrw_ref, brw_ref, uru_ref, bru_ref,
                  wmm_ref, wmc_ref, wmq_ref, bmem_ref,
                  m_ref, hs_ref,
                  *, num_passes):
    D_in = d_ref[...]            # (B, S, E)
    Q_in = q_ref[...]            # (B, T, E)
    B, S, _ = D_in.shape
    T = Q_in.shape[1]
    H = whh_ref.shape[0]

    # ---- fc: Dh = D @ Wfc + b  (single batched MXU matmul) ----
    Dh = (jnp.einsum('bse,eh->bsh', D_in, wfc_ref[...],
                     preferred_element_type=jnp.float32)
          + bfc_ref[...][None, :, :])                       # (B, S, H)

    # ---- LSTM over question tokens; hoisted input projection ----
    # gate order (i, f, g, o); bias = b_ih + b_hh folded in the wrapper.
    x_gates = (jnp.einsum('bte,eg->btg', Q_in, wih_ref[...],
                          preferred_element_type=jnp.float32)
               + blstm_ref[...][None, :, :])                # (B, T, 4H)
    whh = whh_ref[...]                                      # (H, 4H)
    h = jnp.zeros((B, H), jnp.float32)
    c = jnp.zeros((B, H), jnp.float32)
    for t in range(T):                                      # static, tiny trip count
        gates = x_gates[:, t, :] + jnp.dot(h, whh, preferred_element_type=jnp.float32)
        i_g = jax.nn.sigmoid(gates[:, 0:H])
        f_g = jax.nn.sigmoid(gates[:, H:2 * H])
        g_g = jnp.tanh(gates[:, 2 * H:3 * H])
        o_g = jax.nn.sigmoid(gates[:, 3 * H:4 * H])
        c = f_g * c + i_g * g_g
        h = o_g * jnp.tanh(c)
    Qh = h                                                  # (B, H)

    # ---- pass-invariant precomputation (hoisted out of the pass loop) ----
    # AttnGRU fact projection with packed [Wr || Ww]:
    fact_proj = (jnp.einsum('bsh,hk->bsk', Dh, wrw_ref[...],
                            preferred_element_type=jnp.float32)
                 + brw_ref[...][None, :, :])                # (B, S, 2H)
    # Gate-attention terms that only depend on Q:
    Qe = Qh[:, None, :]
    gate_static = (jnp.einsum('bsh,hk->bsk', Dh * Qe, w1q_ref[...],
                              preferred_element_type=jnp.float32)
                   + jnp.einsum('bsh,hk->bsk', jnp.abs(Dh - Qe), w1aq_ref[...],
                                preferred_element_type=jnp.float32)
                   + b1_ref[...][None, :, :])               # (B, S, H)

    uru = uru_ref[...]                                      # (H, 2H) = [Ur || Uu]
    bru = bru_ref[...]                                      # (1, 2H)
    w2v = w2_ref[...].reshape(1, 1, H)                      # (1, 1, H)

    M = Qh
    for p_idx in range(num_passes):                         # static
        # --- attention gates G = softmax(W2 tanh(W1 z)) without concat/reshape ---
        Me = M[:, None, :]
        h1 = jnp.tanh(
            gate_static
            + jnp.einsum('bsh,hk->bsk', Dh * Me, w1m_ref[...],
                         preferred_element_type=jnp.float32)
            + jnp.einsum('bsh,hk->bsk', jnp.abs(Dh - Me), w1am_ref[...],
                         preferred_element_type=jnp.float32))          # (B, S, H)
        Zs = jnp.sum(h1 * w2v, axis=-1) + b2_ref[...]                   # (B, S)
        G = jax.nn.softmax(Zs, axis=1)                                  # (B, S)

        # --- AttnGRU over sentences (only hi-dependent matmul on the chain) ---
        hi = jnp.zeros((B, H), jnp.float32)
        hs_list = []
        for sen in range(S):                                # static
            h_proj = jnp.dot(hi, uru, preferred_element_type=jnp.float32) + bru
            fp = fact_proj[:, sen, :]
            r = jax.nn.sigmoid(fp[:, :H] + h_proj[:, :H])
            h_tilda = jnp.tanh(fp[:, H:] + r * h_proj[:, H:])
            g = G[:, sen][:, None]
            hi = g * h_tilda + (1.0 - g) * hi
            hs_list.append(hi)
        C = hi

        # --- memory update: relu(M@Wm + C@Wc + Q@Wq + b), no (B,3H) concat ---
        M = jax.nn.relu(
            jnp.dot(M, wmm_ref[...], preferred_element_type=jnp.float32)
            + jnp.dot(C, wmc_ref[...], preferred_element_type=jnp.float32)
            + jnp.dot(Qh, wmq_ref[...], preferred_element_type=jnp.float32)
            + bmem_ref[...])

        # hs of the LAST pass is the module output; single lane-dense store.
        if p_idx == num_passes - 1:
            hs_ref[...] = jnp.concatenate(hs_list, axis=1).astype(hs_ref.dtype)

    m_ref[...] = M.astype(m_ref.dtype)


# ---------------------------------------------------------------------------
# Wrapper: one-time weight packing + single pallas_call
# ---------------------------------------------------------------------------

def episodic_memory_forward(D, Q, params, num_passes):
    assert num_passes >= 1
    B, S, E = D.shape
    T = Q.shape[1]
    H = params['fc_w'].shape[0]

    # ---- pack / transpose weights ONCE (outside the kernel, single call) ----
    wfc = params['fc_w'].T                                   # (E, H)
    bfc = params['fc_b'].reshape(1, H)
    wih = params['w_ih'].T                                   # (E, 4H)
    whh = params['w_hh'].T                                   # (H, 4H)
    blstm = (params['b_ih'] + params['b_hh']).reshape(1, 4 * H)

    w1t = params['w1'].T                                     # (4H, H)
    w1q, w1m, w1aq, w1am = (w1t[0:H], w1t[H:2 * H],
                            w1t[2 * H:3 * H], w1t[3 * H:4 * H])
    b1 = params['b1'].reshape(1, H)
    w2 = params['w2'].reshape(1, H)
    b2 = params['b2'].reshape(1, 1)

    wrw = jnp.concatenate([params['wr'].T, params['ww'].T], axis=1)    # (H, 2H)
    brw = jnp.concatenate([params['br'], params['bw']]).reshape(1, 2 * H)
    uru = jnp.concatenate([params['ur'].T, params['uu'].T], axis=1)    # (H, 2H)
    bru = jnp.concatenate([params['bur'], params['bu']]).reshape(1, 2 * H)

    wmt = params['wmem'].T                                   # (3H, H)
    wmm, wmc, wmq = wmt[0:H], wmt[H:2 * H], wmt[2 * H:3 * H]
    bmem = params['bmem'].reshape(1, H)

    inputs = (D, Q, wfc, bfc, wih, whh, blstm,
              w1q, w1m, w1aq, w1am, b1, w2, b2,
              wrw, brw, uru, bru, wmm, wmc, wmq, bmem)

    # ---- advisory cost estimate for the XLA scheduler ----
    flops = int(
        2 * B * S * E * H                      # fc
        + 2 * B * T * E * 4 * H                # LSTM input projection
        + 2 * T * B * H * 4 * H                # LSTM recurrence
        + 2 * B * S * H * 2 * H                # GRU fact projection
        + 2 * 2 * B * S * H * H                # pass-invariant gate terms
        + num_passes * (2 * 2 * B * S * H * H  # per-pass gate terms
                        + 2 * S * B * H * 2 * H   # GRU recurrence
                        + 3 * 2 * B * H * H))     # memory update
    transcendentals = int(
        T * 5 * B * H
        + num_passes * (B * S * H + 4 * B * S + S * 2 * B * H + B * H))
    bytes_accessed = int(4 * (sum(int(a.size) for a in inputs)
                              + B * H + B * S * H))

    vmem = pl.BlockSpec(memory_space=pltpu.MemorySpace.VMEM)
    out_shape = (jax.ShapeDtypeStruct((B, H), jnp.float32),        # M
                 jax.ShapeDtypeStruct((B, S * H), jnp.float32))    # hs, lane-dense

    M, hs_flat = pl.pallas_call(
        functools.partial(_fused_kernel, num_passes=num_passes),
        out_shape=out_shape,
        in_specs=[vmem] * len(inputs),
        out_specs=(vmem, vmem),
        cost_estimate=pl.CostEstimate(flops=flops,
                                      transcendentals=transcendentals,
                                      bytes_accessed=bytes_accessed),
    )(*inputs)

    # TODO(synk): for production B, add a batch grid with
    # dimension_semantics=("parallel",) to use both TensorCores on v7x.
    return M[:, None, :], hs_flat.reshape(B, S, H)


# ---------------------------------------------------------------------------
# Pure-JAX reference (same math, no Pallas) for validation
# ---------------------------------------------------------------------------

def reference_forward(D, Q, p, num_passes):
    H = p['fc_w'].shape[0]
    Dh = jnp.einsum('bse,he->bsh', D, p['fc_w']) + p['fc_b']
    B, T, _ = Q.shape
    h = jnp.zeros((B, H)); c = jnp.zeros((B, H))
    for t in range(T):
        x = Q[:, t, :]
        gates = x @ p['w_ih'].T + p['b_ih'] + h @ p['w_hh'].T + p['b_hh']
        i = jax.nn.sigmoid(gates[:, :H]); f = jax.nn.sigmoid(gates[:, H:2 * H])
        g = jnp.tanh(gates[:, 2 * H:3 * H]); o = jax.nn.sigmoid(gates[:, 3 * H:])
        c = f * c + i * g
        h = o * jnp.tanh(c)
    Qh = h
    Bd, S, _ = Dh.shape
    M = Qh
    hs = None
    for _ in range(num_passes):
        Qe = Qh[:, None, :]; Me = M[:, None, :]
        z = jnp.concatenate([Dh * Qe, Dh * Me, jnp.abs(Dh - Qe),
                             jnp.abs(Dh - Me)], axis=2).reshape(-1, 4 * H)
        Z = (jnp.tanh(z @ p['w1'].T + p['b1']) @ p['w2'].T
             + p['b2']).reshape(Bd, S)
        G = jax.nn.softmax(Z, axis=1)
        hi = jnp.zeros((Bd, H)); hs_list = []
        for sen in range(S):
            fact = Dh[:, sen, :]; g = G[:, sen][:, None]
            r = jax.nn.sigmoid(fact @ p['wr'].T + p['br']
                               + hi @ p['ur'].T + p['bur'])
            ht = jnp.tanh(fact @ p['ww'].T + p['bw']
                          + r * (hi @ p['uu'].T + p['bu']))
            hi = g * ht + (1.0 - g) * hi
            hs_list.append(hi)
        hs = jnp.stack(hs_list, axis=1)
        concat = jnp.concatenate([M, hi, Qh], axis=1)
        M = jax.nn.relu(concat @ p['wmem'].T + p['bmem'])
    return M[:, None, :], hs


# ---------------------------------------------------------------------------
# Deterministic parameter construction
# ---------------------------------------------------------------------------

def make_params(key, E, H):
    def xavier(k, shape):
        fan_out, fan_in = shape
        std = (2.0 / (fan_in + fan_out)) ** 0.5
        return std * jax.random.normal(k, shape, jnp.float32)

    def uni(k, shape, scale):
        return jax.random.uniform(k, shape, jnp.float32, -scale, scale)

    ks = jax.random.split(key, 24)
    s = 1.0 / (H ** 0.5)
    p = {
        # EpisodicMemoryModule.fc : Linear(E, H)
        'fc_w': uni(ks[0], (H, E), s), 'fc_b': uni(ks[1], (H,), s),
        # LSTM(E, H), gate order (i, f, g, o)
        'w_ih': uni(ks[2], (4 * H, E), s), 'w_hh': uni(ks[3], (4 * H, H), s),
        'b_ih': uni(ks[4], (4 * H,), s), 'b_hh': uni(ks[5], (4 * H,), s),
        # MemoryModule
        'w1': xavier(ks[6], (H, 4 * H)), 'b1': uni(ks[7], (H,), s),
        'w2': xavier(ks[8], (1, H)), 'b2': uni(ks[9], (1,), s),
        'wmem': xavier(ks[10], (H, 3 * H)), 'bmem': uni(ks[11], (H,), s),
        # AttnGRUCell
        'wr': xavier(ks[12], (H, H)), 'br': uni(ks[13], (H,), s),
        'ur': xavier(ks[14], (H, H)), 'bur': uni(ks[15], (H,), s),
        'ww': xavier(ks[16], (H, H)), 'bw': uni(ks[17], (H,), s),
        'uu': xavier(ks[18], (H, H)), 'bu': uni(ks[19], (H,), s),
    }
    return p


# ---------------------------------------------------------------------------

if __name__ == "__main__":
    B, S, T, E, H = 2, 8, 6, 32, 32
    num_passes = 2

    key = jax.random.PRNGKey(0)
    k_d, k_q, k_p = jax.random.split(key, 3)
    D = jax.random.normal(k_d, (B, S, E), jnp.float32)   # facts
    Q = jax.random.normal(k_q, (B, T, E), jnp.float32)   # question tokens
    params = make_params(k_p, E, H)

    # question_lengths=None path (no packed sequence).
    M, hs = episodic_memory_forward(D, Q, params, num_passes)
    M = jax.block_until_ready(M)
    hs = jax.block_until_ready(hs)

    M_ref, hs_ref = reference_forward(D, Q, params, num_passes)
    assert M.shape == (B, 1, H) and hs.shape == (B, S, H)
    assert jnp.allclose(M, M_ref, atol=1e-4, rtol=1e-4)
    assert jnp.allclose(hs, hs_ref, atol=1e-4, rtol=1e-4)

    print("KERNEL_OK")
</pallas_src>

<mosaic_0001>
module attributes {stable_mosaic.version = 11 : i64} {
  func.func @_fused_kernel(%arg0: memref<2x8x32xf32, #tpu.memory_space<vmem>>, %arg1: memref<2x6x32xf32, #tpu.memory_space<vmem>>, %arg2: memref<32x32xf32, #tpu.memory_space<vmem>>, %arg3: memref<1x32xf32, #tpu.memory_space<vmem>>, %arg4: memref<32x128xf32, #tpu.memory_space<vmem>>, %arg5: memref<32x128xf32, #tpu.memory_space<vmem>>, %arg6: memref<1x128xf32, #tpu.memory_space<vmem>>, %arg7: memref<32x32xf32, #tpu.memory_space<vmem>>, %arg8: memref<32x32xf32, #tpu.memory_space<vmem>>, %arg9: memref<32x32xf32, #tpu.memory_space<vmem>>, %arg10: memref<32x32xf32, #tpu.memory_space<vmem>>, %arg11: memref<1x32xf32, #tpu.memory_space<vmem>>, %arg12: memref<1x32xf32, #tpu.memory_space<vmem>>, %arg13: memref<1x1xf32, #tpu.memory_space<vmem>>, %arg14: memref<32x64xf32, #tpu.memory_space<vmem>>, %arg15: memref<1x64xf32, #tpu.memory_space<vmem>>, %arg16: memref<32x64xf32, #tpu.memory_space<vmem>>, %arg17: memref<1x64xf32, #tpu.memory_space<vmem>>, %arg18: memref<32x32xf32, #tpu.memory_space<vmem>>, %arg19: memref<32x32xf32, #tpu.memory_space<vmem>>, %arg20: memref<32x32xf32, #tpu.memory_space<vmem>>, %arg21: memref<1x32xf32, #tpu.memory_space<vmem>>, %arg22: memref<2x32xf32, #tpu.memory_space<vmem>>, %arg23: memref<2x256xf32, #tpu.memory_space<vmem>>) attributes {dimension_semantics = [], scalar_prefetch = 0 : i64, scratch_operands = 0 : i64, tpu.core_type = #tpu.core_type<tc>} {
    %c0 = arith.constant 0 : index
    %c0_0 = arith.constant 0 : index
    %c0_1 = arith.constant 0 : index
    %0 = vector.load %arg0[%c0, %c0_0, %c0_1] : memref<2x8x32xf32, #tpu.memory_space<vmem>>, vector<2x8x32xf32>
    %c0_2 = arith.constant 0 : index
    %c0_3 = arith.constant 0 : index
    %c0_4 = arith.constant 0 : index
    %1 = vector.load %arg1[%c0_2, %c0_3, %c0_4] : memref<2x6x32xf32, #tpu.memory_space<vmem>>, vector<2x6x32xf32>
    %c0_5 = arith.constant 0 : index
    %c0_6 = arith.constant 0 : index
    %2 = vector.load %arg2[%c0_5, %c0_6] : memref<32x32xf32, #tpu.memory_space<vmem>>, vector<32x32xf32>
    "tpu.trace_start"() <{level = 10 : i32, message = "bse,eh->bsh"}> : () -> ()
    %cst = arith.constant dense<0.000000e+00> : vector<2x8x32xf32>
    %3 = tpu.matmul %0, %2, %cst {dimension_numbers = #tpu.dot_dimension_numbers<[2], [0], [0, 1], [1], [0, 0, 0, 1, 1, 1], [], []>} : vector<2x8x32xf32>, vector<32x32xf32>, vector<2x8x32xf32> -> vector<2x8x32xf32>
    "tpu.trace_stop"() : () -> ()
    %c0_7 = arith.constant 0 : index
    %c0_8 = arith.constant 0 : index
    %4 = vector.load %arg3[%c0_7, %c0_8] : memref<1x32xf32, #tpu.memory_space<vmem>>, vector<1x32xf32>
    %5 = vector.shape_cast %4 : vector<1x32xf32> to vector<1x1x32xf32>
    %6 = vector.broadcast %5 : vector<1x1x32xf32> to vector<2x8x32xf32>
    %7 = arith.addf %3, %6 : vector<2x8x32xf32>
    %c0_9 = arith.constant 0 : index
    %c0_10 = arith.constant 0 : index
    %8 = vector.load %arg4[%c0_9, %c0_10] : memref<32x128xf32, #tpu.memory_space<vmem>>, vector<32x128xf32>
    "tpu.trace_start"() <{level = 10 : i32, message = "bte,eg->btg"}> : () -> ()
    %cst_11 = arith.constant dense<0.000000e+00> : vector<2x6x128xf32>
    %9 = tpu.matmul %1, %8, %cst_11 {dimension_numbers = #tpu.dot_dimension_numbers<[2], [0], [0, 1], [1], [0, 0, 0, 1, 1, 1], [], []>} : vector<2x6x32xf32>, vector<32x128xf32>, vector<2x6x128xf32> -> vector<2x6x128xf32>
    "tpu.trace_stop"() : () -> ()
    %c0_12 = arith.constant 0 : index
    %c0_13 = arith.constant 0 : index
    %10 = vector.load %arg6[%c0_12, %c0_13] : memref<1x128xf32, #tpu.memory_space<vmem>>, vector<1x128xf32>
    %11 = vector.shape_cast %10 : vector<1x128xf32> to vector<1x1x128xf32>
    %12 = vector.broadcast %11 : vector<1x1x128xf32> to vector<2x6x128xf32>
    %13 = arith.addf %9, %12 : vector<2x6x128xf32>
    %c0_14 = arith.constant 0 : index
    %c0_15 = arith.constant 0 : index
    %14 = vector.load %arg5[%c0_14, %c0_15] : memref<32x128xf32, #tpu.memory_space<vmem>>, vector<32x128xf32>
    %cst_16 = arith.constant 0.000000e+00 : f32
    %15 = vector.broadcast %cst_16 : f32 to vector<2x32xf32>
    %cst_17 = arith.constant 0.000000e+00 : f32
    %16 = vector.broadcast %cst_17 : f32 to vector<2x32xf32>
    %17 = vector.extract_strided_slice %13 {offsets = [0, 0, 0], sizes = [2, 1, 128], strides = [1, 1, 1]} : vector<2x6x128xf32> to vector<2x1x128xf32>
    %18 = vector.shape_cast %17 : vector<2x1x128xf32> to vector<2x128xf32>
    %cst_18 = arith.constant dense<0.000000e+00> : vector<2x128xf32>
    %19 = tpu.matmul %15, %14, %cst_18 {dimension_numbers = #tpu.dot_dimension_numbers<[1], [0], [0], [1], [0, 0, 1, 1], [], []>} : vector<2x32xf32>, vector<32x128xf32>, vector<2x128xf32> -> vector<2x128xf32>
    %20 = arith.addf %18, %19 : vector<2x128xf32>
    %21 = vector.extract_strided_slice %20 {offsets = [0, 0], sizes = [2, 32], strides = [1, 1]} : vector<2x128xf32> to vector<2x32xf32>
    %22 = arith.negf %21 : vector<2x32xf32>
    %23 = math.exp %22 : vector<2x32xf32>
    %cst_19 = arith.constant 1.000000e+00 : f32
    %24 = vector.broadcast %cst_19 : f32 to vector<2x32xf32>
    %25 = arith.addf %24, %23 : vector<2x32xf32>
    %26 = arith.divf %24, %25 : vector<2x32xf32>
    %27 = vector.extract_strided_slice %20 {offsets = [0, 32], sizes = [2, 32], strides = [1, 1]} : vector<2x128xf32> to vector<2x32xf32>
    %28 = arith.negf %27 : vector<2x32xf32>
    %29 = math.exp %28 : vector<2x32xf32>
    %cst_20 = arith.constant 1.000000e+00 : f32
    %30 = vector.broadcast %cst_20 : f32 to vector<2x32xf32>
    %31 = arith.addf %30, %29 : vector<2x32xf32>
    %32 = arith.divf %30, %31 : vector<2x32xf32>
    %33 = vector.extract_strided_slice %20 {offsets = [0, 64], sizes = [2, 32], strides = [1, 1]} : vector<2x128xf32> to vector<2x32xf32>
    %34 = math.tanh %33 : vector<2x32xf32>
    %35 = vector.extract_strided_slice %20 {offsets = [0, 96], sizes = [2, 32], strides = [1, 1]} : vector<2x128xf32> to vector<2x32xf32>
    %36 = arith.negf %35 : vector<2x32xf32>
    %37 = math.exp %36 : vector<2x32xf32>
    %cst_21 = arith.constant 1.000000e+00 : f32
    %38 = vector.broadcast %cst_21 : f32 to vector<2x32xf32>
    %39 = arith.addf %38, %37 : vector<2x32xf32>
    %40 = arith.divf %38, %39 : vector<2x32xf32>
    %41 = arith.mulf %32, %16 : vector<2x32xf32>
    %42 = arith.mulf %26, %34 : vector<2x32xf32>
    %43 = arith.addf %41, %42 : vector<2x32xf32>
    %44 = math.tanh %43 : vector<2x32xf32>
    %45 = arith.mulf %40, %44 : vector<2x32xf32>
    %46 = vector.extract_strided_slice %13 {offsets = [0, 1, 0], sizes = [2, 1, 128], strides = [1, 1, 1]} : vector<2x6x128xf32> to vector<2x1x128xf32>
    %47 = vector.shape_cast %46 : vector<2x1x128xf32> to vector<2x128xf32>
    %cst_22 = arith.constant dense<0.000000e+00> : vector<2x128xf32>
    %48 = tpu.matmul %45, %14, %cst_22 {dimension_numbers = #tpu.dot_dimension_numbers<[1], [0], [0], [1], [0, 0, 1, 1], [], []>} : vector<2x32xf32>, vector<32x128xf32>, vector<2x128xf32> -> vector<2x128xf32>
    %49 = arith.addf %47, %48 : vector<2x128xf32>
    %50 = vector.extract_strided_slice %49 {offsets = [0, 0], sizes = [2, 32], strides = [1, 1]} : vector<2x128xf32> to vector<2x32xf32>
    %51 = arith.negf %50 : vector<2x32xf32>
    %52 = math.exp %51 : vector<2x32xf32>
    %cst_23 = arith.constant 1.000000e+00 : f32
    %53 = vector.broadcast %cst_23 : f32 to vector<2x32xf32>
    %54 = arith.addf %53, %52 : vector<2x32xf32>
    %55 = arith.divf %53, %54 : vector<2x32xf32>
    %56 = vector.extract_strided_slice %49 {offsets = [0, 32], sizes = [2, 32], strides = [1, 1]} : vector<2x128xf32> to vector<2x32xf32>
    %57 = arith.negf %56 : vector<2x32xf32>
    %58 = math.exp %57 : vector<2x32xf32>
    %cst_24 = arith.constant 1.000000e+00 : f32
    %59 = vector.broadcast %cst_24 : f32 to vector<2x32xf32>
    %60 = arith.addf %59, %58 : vector<2x32xf32>
    %61 = arith.divf %59, %60 : vector<2x32xf32>
    %62 = vector.extract_strided_slice %49 {offsets = [0, 64], sizes = [2, 32], strides = [1, 1]} : vector<2x128xf32> to vector<2x32xf32>
    %63 = math.tanh %62 : vector<2x32xf32>
    %64 = vector.extract_strided_slice %49 {offsets = [0, 96], sizes = [2, 32], strides = [1, 1]} : vector<2x128xf32> to vector<2x32xf32>
    %65 = arith.negf %64 : vector<2x32xf32>
    %66 = math.exp %65 : vector<2x32xf32>
    %cst_25 = arith.constant 1.000000e+00 : f32
    %67 = vector.broadcast %cst_25 : f32 to vector<2x32xf32>
    %68 = arith.addf %67, %66 : vector<2x32xf32>
    %69 = arith.divf %67, %68 : vector<2x32xf32>
    %70 = arith.mulf %61, %43 : vector<2x32xf32>
    %71 = arith.mulf %55, %63 : vector<2x32xf32>
    %72 = arith.addf %70, %71 : vector<2x32xf32>
    %73 = math.tanh %72 : vector<2x32xf32>
    %74 = arith.mulf %69, %73 : vector<2x32xf32>
    %75 = vector.extract_strided_slice %13 {offsets = [0, 2, 0], sizes = [2, 1, 128], strides = [1, 1, 1]} : vector<2x6x128xf32> to vector<2x1x128xf32>
    %76 = vector.shape_cast %75 : vector<2x1x128xf32> to vector<2x128xf32>
    %cst_26 = arith.constant dense<0.000000e+00> : vector<2x128xf32>
    %77 = tpu.matmul %74, %14, %cst_26 {dimension_numbers = #tpu.dot_dimension_numbers<[1], [0], [0], [1], [0, 0, 1, 1], [], []>} : vector<2x32xf32>, vector<32x128xf32>, vector<2x128xf32> -> vector<2x128xf32>
    %78 = arith.addf %76, %77 : vector<2x128xf32>
    %79 = vector.extract_strided_slice %78 {offsets = [0, 0], sizes = [2, 32], strides = [1, 1]} : vector<2x128xf32> to vector<2x32xf32>
    %80 = arith.negf %79 : vector<2x32xf32>
    %81 = math.exp %80 : vector<2x32xf32>
    %cst_27 = arith.constant 1.000000e+00 : f32
    %82 = vector.broadcast %cst_27 : f32 to vector<2x32xf32>
    %83 = arith.addf %82, %81 : vector<2x32xf32>
    %84 = arith.divf %82, %83 : vector<2x32xf32>
    %85 = vector.extract_strided_slice %78 {offsets = [0, 32], sizes = [2, 32], strides = [1, 1]} : vector<2x128xf32> to vector<2x32xf32>
    %86 = arith.negf %85 : vector<2x32xf32>
    %87 = math.exp %86 : vector<2x32xf32>
    %cst_28 = arith.constant 1.000000e+00 : f32
    %88 = vector.broadcast %cst_28 : f32 to vector<2x32xf32>
    %89 = arith.addf %88, %87 : vector<2x32xf32>
    %90 = arith.divf %88, %89 : vector<2x32xf32>
    %91 = vector.extract_strided_slice %78 {offsets = [0, 64], sizes = [2, 32], strides = [1, 1]} : vector<2x128xf32> to vector<2x32xf32>
    %92 = math.tanh %91 : vector<2x32xf32>
    %93 = vector.extract_strided_slice %78 {offsets = [0, 96], sizes = [2, 32], strides = [1, 1]} : vector<2x128xf32> to vector<2x32xf32>
    %94 = arith.negf %93 : vector<2x32xf32>
    %95 = math.exp %94 : vector<2x32xf32>
    %cst_29 = arith.constant 1.000000e+00 : f32
    %96 = vector.broadcast %cst_29 : f32 to vector<2x32xf32>
    %97 = arith.addf %96, %95 : vector<2x32xf32>
    %98 = arith.divf %96, %97 : vector<2x32xf32>
    %99 = arith.mulf %90, %72 : vector<2x32xf32>
    %100 = arith.mulf %84, %92 : vector<2x32xf32>
    %101 = arith.addf %99, %100 : vector<2x32xf32>
    %102 = math.tanh %101 : vector<2x32xf32>
    %103 = arith.mulf %98, %102 : vector<2x32xf32>
    %104 = vector.extract_strided_slice %13 {offsets = [0, 3, 0], sizes = [2, 1, 128], strides = [1, 1, 1]} : vector<2x6x128xf32> to vector<2x1x128xf32>
    %105 = vector.shape_cast %104 : vector<2x1x128xf32> to vector<2x128xf32>
    %cst_30 = arith.constant dense<0.000000e+00> : vector<2x128xf32>
    %106 = tpu.matmul %103, %14, %cst_30 {dimension_numbers = #tpu.dot_dimension_numbers<[1], [0], [0], [1], [0, 0, 1, 1], [], []>} : vector<2x32xf32>, vector<32x128xf32>, vector<2x128xf32> -> vector<2x128xf32>
    %107 = arith.addf %105, %106 : vector<2x128xf32>
    %108 = vector.extract_strided_slice %107 {offsets = [0, 0], sizes = [2, 32], strides = [1, 1]} : vector<2x128xf32> to vector<2x32xf32>
    %109 = arith.negf %108 : vector<2x32xf32>
    %110 = math.exp %109 : vector<2x32xf32>
    %cst_31 = arith.constant 1.000000e+00 : f32
    %111 = vector.broadcast %cst_31 : f32 to vector<2x32xf32>
    %112 = arith.addf %111, %110 : vector<2x32xf32>
    %113 = arith.divf %111, %112 : vector<2x32xf32>
    %114 = vector.extract_strided_slice %107 {offsets = [0, 32], sizes = [2, 32], strides = [1, 1]} : vector<2x128xf32> to vector<2x32xf32>
    %115 = arith.negf %114 : vector<2x32xf32>
    %116 = math.exp %115 : vector<2x32xf32>
    %cst_32 = arith.constant 1.000000e+00 : f32
    %117 = vector.broadcast %cst_32 : f32 to vector<2x32xf32>
    %118 = arith.addf %117, %116 : vector<2x32xf32>
    %119 = arith.divf %117, %118 : vector<2x32xf32>
    %120 = vector.extract_strided_slice %107 {offsets = [0, 64], sizes = [2, 32], strides = [1, 1]} : vector<2x128xf32> to vector<2x32xf32>
    %121 = math.tanh %120 : vector<2x32xf32>
    %122 = vector.extract_strided_slice %107 {offsets = [0, 96], sizes = [2, 32], strides = [1, 1]} : vector<2x128xf32> to vector<2x32xf32>
    %123 = arith.negf %122 : vector<2x32xf32>
    %124 = math.exp %123 : vector<2x32xf32>
    %cst_33 = arith.constant 1.000000e+00 : f32
    %125 = vector.broadcast %cst_33 : f32 to vector<2x32xf32>
    %126 = arith.addf %125, %124 : vector<2x32xf32>
    %127 = arith.divf %125, %126 : vector<2x32xf32>
    %128 = arith.mulf %119, %101 : vector<2x32xf32>
    %129 = arith.mulf %113, %121 : vector<2x32xf32>
    %130 = arith.addf %128, %129 : vector<2x32xf32>
    %131 = math.tanh %130 : vector<2x32xf32>
    %132 = arith.mulf %127, %131 : vector<2x32xf32>
    %133 = vector.extract_strided_slice %13 {offsets = [0, 4, 0], sizes = [2, 1, 128], strides = [1, 1, 1]} : vector<2x6x128xf32> to vector<2x1x128xf32>
    %134 = vector.shape_cast %133 : vector<2x1x128xf32> to vector<2x128xf32>
    %cst_34 = arith.constant dense<0.000000e+00> : vector<2x128xf32>
    %135 = tpu.matmul %132, %14, %cst_34 {dimension_numbers = #tpu.dot_dimension_numbers<[1], [0], [0], [1], [0, 0, 1, 1], [], []>} : vector<2x32xf32>, vector<32x128xf32>, vector<2x128xf32> -> vector<2x128xf32>
    %136 = arith.addf %134, %135 : vector<2x128xf32>
    %137 = vector.extract_strided_slice %136 {offsets = [0, 0], sizes = [2, 32], strides = [1, 1]} : vector<2x128xf32> to vector<2x32xf32>
    %138 = arith.negf %137 : vector<2x32xf32>
    %139 = math.exp %138 : vector<2x32xf32>
    %cst_35 = arith.constant 1.000000e+00 : f32
    %140 = vector.broadcast %cst_35 : f32 to vector<2x32xf32>
    %141 = arith.addf %140, %139 : vector<2x32xf32>
    %142 = arith.divf %140, %141 : vector<2x32xf32>
    %143 = vector.extract_strided_slice %136 {offsets = [0, 32], sizes = [2, 32], strides = [1, 1]} : vector<2x128xf32> to vector<2x32xf32>
    %144 = arith.negf %143 : vector<2x32xf32>
    %145 = math.exp %144 : vector<2x32xf32>
    %cst_36 = arith.constant 1.000000e+00 : f32
    %146 = vector.broadcast %cst_36 : f32 to vector<2x32xf32>
    %147 = arith.addf %146, %145 : vector<2x32xf32>
    %148 = arith.divf %146, %147 : vector<2x32xf32>
    %149 = vector.extract_strided_slice %136 {offsets = [0, 64], sizes = [2, 32], strides = [1, 1]} : vector<2x128xf32> to vector<2x32xf32>
    %150 = math.tanh %149 : vector<2x32xf32>
    %151 = vector.extract_strided_slice %136 {offsets = [0, 96], sizes = [2, 32], strides = [1, 1]} : vector<2x128xf32> to vector<2x32xf32>
    %152 = arith.negf %151 : vector<2x32xf32>
    %153 = math.exp %152 : vector<2x32xf32>
    %cst_37 = arith.constant 1.000000e+00 : f32
    %154 = vector.broadcast %cst_37 : f32 to vector<2x32xf32>
    %155 = arith.addf %154, %153 : vector<2x32xf32>
    %156 = arith.divf %154, %155 : vector<2x32xf32>
    %157 = arith.mulf %148, %130 : vector<2x32xf32>
    %158 = arith.mulf %142, %150 : vector<2x32xf32>
    %159 = arith.addf %157, %158 : vector<2x32xf32>
    %160 = math.tanh %159 : vector<2x32xf32>
    %161 = arith.mulf %156, %160 : vector<2x32xf32>
    %162 = vector.extract_strided_slice %13 {offsets = [0, 5, 0], sizes = [2, 1, 128], strides = [1, 1, 1]} : vector<2x6x128xf32> to vector<2x1x128xf32>
    %163 = vector.shape_cast %162 : vector<2x1x128xf32> to vector<2x128xf32>
    %cst_38 = arith.constant dense<0.000000e+00> : vector<2x128xf32>
    %164 = tpu.matmul %161, %14, %cst_38 {dimension_numbers = #tpu.dot_dimension_numbers<[1], [0], [0], [1], [0, 0, 1, 1], [], []>} : vector<2x32xf32>, vector<32x128xf32>, vector<2x128xf32> -> vector<2x128xf32>
    %165 = arith.addf %163, %164 : vector<2x128xf32>
    %166 = vector.extract_strided_slice %165 {offsets = [0, 0], sizes = [2, 32], strides = [1, 1]} : vector<2x128xf32> to vector<2x32xf32>
    %167 = arith.negf %166 : vector<2x32xf32>
    %168 = math.exp %167 : vector<2x32xf32>
    %cst_39 = arith.constant 1.000000e+00 : f32
    %169 = vector.broadcast %cst_39 : f32 to vector<2x32xf32>
    %170 = arith.addf %169, %168 : vector<2x32xf32>
    %171 = arith.divf %169, %170 : vector<2x32xf32>
    %172 = vector.extract_strided_slice %165 {offsets = [0, 32], sizes = [2, 32], strides = [1, 1]} : vector<2x128xf32> to vector<2x32xf32>
    %173 = arith.negf %172 : vector<2x32xf32>
    %174 = math.exp %173 : vector<2x32xf32>
    %cst_40 = arith.constant 1.000000e+00 : f32
    %175 = vector.broadcast %cst_40 : f32 to vector<2x32xf32>
    %176 = arith.addf %175, %174 : vector<2x32xf32>
    %177 = arith.divf %175, %176 : vector<2x32xf32>
    %178 = vector.extract_strided_slice %165 {offsets = [0, 64], sizes = [2, 32], strides = [1, 1]} : vector<2x128xf32> to vector<2x32xf32>
    %179 = math.tanh %178 : vector<2x32xf32>
    %180 = vector.extract_strided_slice %165 {offsets = [0, 96], sizes = [2, 32], strides = [1, 1]} : vector<2x128xf32> to vector<2x32xf32>
    %181 = arith.negf %180 : vector<2x32xf32>
    %182 = math.exp %181 : vector<2x32xf32>
    %cst_41 = arith.constant 1.000000e+00 : f32
    %183 = vector.broadcast %cst_41 : f32 to vector<2x32xf32>
    %184 = arith.addf %183, %182 : vector<2x32xf32>
    %185 = arith.divf %183, %184 : vector<2x32xf32>
    %186 = arith.mulf %177, %159 : vector<2x32xf32>
    %187 = arith.mulf %171, %179 : vector<2x32xf32>
    %188 = arith.addf %186, %187 : vector<2x32xf32>
    %189 = math.tanh %188 : vector<2x32xf32>
    %190 = arith.mulf %185, %189 : vector<2x32xf32>
    %c0_42 = arith.constant 0 : index
    %c0_43 = arith.constant 0 : index
    %191 = vector.load %arg14[%c0_42, %c0_43] : memref<32x64xf32, #tpu.memory_space<vmem>>, vector<32x64xf32>
    "tpu.trace_start"() <{level = 10 : i32, message = "bsh,hk->bsk"}> : () -> ()
    %cst_44 = arith.constant dense<0.000000e+00> : vector<2x8x64xf32>
    %192 = tpu.matmul %7, %191, %cst_44 {dimension_numbers = #tpu.dot_dimension_numbers<[2], [0], [0, 1], [1], [0, 0, 0, 1, 1, 1], [], []>} : vector<2x8x32xf32>, vector<32x64xf32>, vector<2x8x64xf32> -> vector<2x8x64xf32>
    "tpu.trace_stop"() : () -> ()
    %c0_45 = arith.constant 0 : index
    %c0_46 = arith.constant 0 : index
    %193 = vector.load %arg15[%c0_45, %c0_46] : memref<1x64xf32, #tpu.memory_space<vmem>>, vector<1x64xf32>
    %194 = vector.shape_cast %193 : vector<1x64xf32> to vector<1x1x64xf32>
    %195 = vector.broadcast %194 : vector<1x1x64xf32> to vector<2x8x64xf32>
    %196 = arith.addf %192, %195 : vector<2x8x64xf32>
    %197 = vector.shape_cast %190 : vector<2x32xf32> to vector<2x1x32xf32>
    %198 = vector.broadcast %197 : vector<2x1x32xf32> to vector<2x8x32xf32>
    %199 = arith.mulf %7, %198 : vector<2x8x32xf32>
    %c0_47 = arith.constant 0 : index
    %c0_48 = arith.constant 0 : index
    %200 = vector.load %arg7[%c0_47, %c0_48] : memref<32x32xf32, #tpu.memory_space<vmem>>, vector<32x32xf32>
    "tpu.trace_start"() <{level = 10 : i32, message = "bsh,hk->bsk"}> : () -> ()
    %cst_49 = arith.constant dense<0.000000e+00> : vector<2x8x32xf32>
    %201 = tpu.matmul %199, %200, %cst_49 {dimension_numbers = #tpu.dot_dimension_numbers<[2], [0], [0, 1], [1], [0, 0, 0, 1, 1, 1], [], []>} : vector<2x8x32xf32>, vector<32x32xf32>, vector<2x8x32xf32> -> vector<2x8x32xf32>
    "tpu.trace_stop"() : () -> ()
    %202 = vector.broadcast %197 : vector<2x1x32xf32> to vector<2x8x32xf32>
    %203 = arith.subf %7, %202 : vector<2x8x32xf32>
    %204 = math.absf %203 : vector<2x8x32xf32>
    %c0_50 = arith.constant 0 : index
    %c0_51 = arith.constant 0 : index
    %205 = vector.load %arg9[%c0_50, %c0_51] : memref<32x32xf32, #tpu.memory_space<vmem>>, vector<32x32xf32>
    "tpu.trace_start"() <{level = 10 : i32, message = "bsh,hk->bsk"}> : () -> ()
    %cst_52 = arith.constant dense<0.000000e+00> : vector<2x8x32xf32>
    %206 = tpu.matmul %204, %205, %cst_52 {dimension_numbers = #tpu.dot_dimension_numbers<[2], [0], [0, 1], [1], [0, 0, 0, 1, 1, 1], [], []>} : vector<2x8x32xf32>, vector<32x32xf32>, vector<2x8x32xf32> -> vector<2x8x32xf32>
    "tpu.trace_stop"() : () -> ()
    %207 = arith.addf %201, %206 : vector<2x8x32xf32>
    %c0_53 = arith.constant 0 : index
    %c0_54 = arith.constant 0 : index
    %208 = vector.load %arg11[%c0_53, %c0_54] : memref<1x32xf32, #tpu.memory_space<vmem>>, vector<1x32xf32>
    %209 = vector.shape_cast %208 : vector<1x32xf32> to vector<1x1x32xf32>
    %210 = vector.broadcast %209 : vector<1x1x32xf32> to vector<2x8x32xf32>
    %211 = arith.addf %207, %210 : vector<2x8x32xf32>
    %c0_55 = arith.constant 0 : index
    %c0_56 = arith.constant 0 : index
    %212 = vector.load %arg16[%c0_55, %c0_56] : memref<32x64xf32, #tpu.memory_space<vmem>>, vector<32x64xf32>
    %c0_57 = arith.constant 0 : index
    %c0_58 = arith.constant 0 : index
    %213 = vector.load %arg17[%c0_57, %c0_58] : memref<1x64xf32, #tpu.memory_space<vmem>>, vector<1x64xf32>
    %c0_59 = arith.constant 0 : index
    %c0_60 = arith.constant 0 : index
    %214 = vector.load %arg12[%c0_59, %c0_60] : memref<1x32xf32, #tpu.memory_space<vmem>>, vector<1x32xf32>
    %215 = vector.shape_cast %214 : vector<1x32xf32> to vector<1x1x32xf32>
    %216 = vector.shape_cast %190 : vector<2x32xf32> to vector<2x1x32xf32>
    %217 = vector.broadcast %216 : vector<2x1x32xf32> to vector<2x8x32xf32>
    %218 = arith.mulf %7, %217 : vector<2x8x32xf32>
    %c0_61 = arith.constant 0 : index
    %c0_62 = arith.constant 0 : index
    %219 = vector.load %arg8[%c0_61, %c0_62] : memref<32x32xf32, #tpu.memory_space<vmem>>, vector<32x32xf32>
    "tpu.trace_start"() <{level = 10 : i32, message = "bsh,hk->bsk"}> : () -> ()
    %cst_63 = arith.constant dense<0.000000e+00> : vector<2x8x32xf32>
    %220 = tpu.matmul %218, %219, %cst_63 {dimension_numbers = #tpu.dot_dimension_numbers<[2], [0], [0, 1], [1], [0, 0, 0, 1, 1, 1], [], []>} : vector<2x8x32xf32>, vector<32x32xf32>, vector<2x8x32xf32> -> vector<2x8x32xf32>
    "tpu.trace_stop"() : () -> ()
    %221 = arith.addf %211, %220 : vector<2x8x32xf32>
    %222 = vector.broadcast %216 : vector<2x1x32xf32> to vector<2x8x32xf32>
    %223 = arith.subf %7, %222 : vector<2x8x32xf32>
    %224 = math.absf %223 : vector<2x8x32xf32>
    %c0_64 = arith.constant 0 : index
    %c0_65 = arith.constant 0 : index
    %225 = vector.load %arg10[%c0_64, %c0_65] : memref<32x32xf32, #tpu.memory_space<vmem>>, vector<32x32xf32>
    "tpu.trace_start"() <{level = 10 : i32, message = "bsh,hk->bsk"}> : () -> ()
    %cst_66 = arith.constant dense<0.000000e+00> : vector<2x8x32xf32>
    %226 = tpu.matmul %224, %225, %cst_66 {dimension_numbers = #tpu.dot_dimension_numbers<[2], [0], [0, 1], [1], [0, 0, 0, 1, 1, 1], [], []>} : vector<2x8x32xf32>, vector<32x32xf32>, vector<2x8x32xf32> -> vector<2x8x32xf32>
    "tpu.trace_stop"() : () -> ()
    %227 = arith.addf %221, %226 : vector<2x8x32xf32>
    %228 = math.tanh %227 : vector<2x8x32xf32>
    %229 = vector.broadcast %215 : vector<1x1x32xf32> to vector<2x8x32xf32>
    %230 = arith.mulf %228, %229 : vector<2x8x32xf32>
    %cst_67 = arith.constant dense<0.000000e+00> : vector<2x8xf32>
    %231 = vector.multi_reduction <add>, %230, %cst_67 [2] : vector<2x8x32xf32> to vector<2x8xf32>
    %c0_68 = arith.constant 0 : index
    %c0_69 = arith.constant 0 : index
    %232 = vector.load %arg13[%c0_68, %c0_69] : memref<1x1xf32, #tpu.memory_space<vmem>>, vector<1x1xf32>
    %233 = vector.broadcast %232 : vector<1x1xf32> to vector<2x8xf32>
    %234 = arith.addf %231, %233 : vector<2x8xf32>
    %cst_70 = arith.constant dense<0xFF800000> : vector<2xf32>
    %235 = vector.multi_reduction <maximumf>, %234, %cst_70 [1] : vector<2x8xf32> to vector<2xf32>
    %cst_71 = arith.constant 0xFF800000 : f32
    %236 = vector.broadcast %cst_71 : f32 to vector<2xf32>
    %237 = arith.maximumf %236, %235 : vector<2xf32>
    %238 = vector.shape_cast %237 : vector<2xf32> to vector<2x1xf32>
    %239 = vector.broadcast %238 : vector<2x1xf32> to vector<2x8xf32>
    %240 = arith.subf %234, %239 : vector<2x8xf32>
    %241 = math.exp %240 : vector<2x8xf32>
    %cst_72 = arith.constant dense<0.000000e+00> : vector<2xf32>
    %242 = vector.multi_reduction <add>, %241, %cst_72 [1] : vector<2x8xf32> to vector<2xf32>
    %243 = vector.shape_cast %242 : vector<2xf32> to vector<2x1xf32>
    %244 = vector.broadcast %243 : vector<2x1xf32> to vector<2x8xf32>
    %245 = arith.divf %241, %244 : vector<2x8xf32>
    %cst_73 = arith.constant 0.000000e+00 : f32
    %246 = vector.broadcast %cst_73 : f32 to vector<2x32xf32>
    %cst_74 = arith.constant dense<0.000000e+00> : vector<2x64xf32>
    %247 = tpu.matmul %246, %212, %cst_74 {dimension_numbers = #tpu.dot_dimension_numbers<[1], [0], [0], [1], [0, 0, 1, 1], [], []>} : vector<2x32xf32>, vector<32x64xf32>, vector<2x64xf32> -> vector<2x64xf32>
    %248 = vector.broadcast %213 : vector<1x64xf32> to vector<2x64xf32>
    %249 = arith.addf %247, %248 : vector<2x64xf32>
    %250 = vector.extract_strided_slice %196 {offsets = [0, 0, 0], sizes = [2, 1, 64], strides = [1, 1, 1]} : vector<2x8x64xf32> to vector<2x1x64xf32>
    %251 = vector.shape_cast %250 : vector<2x1x64xf32> to vector<2x64xf32>
    %252 = vector.extract_strided_slice %251 {offsets = [0, 0], sizes = [2, 32], strides = [1, 1]} : vector<2x64xf32> to vector<2x32xf32>
    %253 = vector.extract_strided_slice %249 {offsets = [0, 0], sizes = [2, 32], strides = [1, 1]} : vector<2x64xf32> to vector<2x32xf32>
    %254 = arith.addf %252, %253 : vector<2x32xf32>
    %255 = arith.negf %254 : vector<2x32xf32>
    %256 = math.exp %255 : vector<2x32xf32>
    %cst_75 = arith.constant 1.000000e+00 : f32
    %257 = vector.broadcast %cst_75 : f32 to vector<2x32xf32>
    %258 = arith.addf %257, %256 : vector<2x32xf32>
    %259 = arith.divf %257, %258 : vector<2x32xf32>
    %260 = vector.extract_strided_slice %251 {offsets = [0, 32], sizes = [2, 32], strides = [1, 1]} : vector<2x64xf32> to vector<2x32xf32>
    %261 = vector.extract_strided_slice %249 {offsets = [0, 32], sizes = [2, 32], strides = [1, 1]} : vector<2x64xf32> to vector<2x32xf32>
    %262 = arith.mulf %259, %261 : vector<2x32xf32>
    %263 = arith.addf %260, %262 : vector<2x32xf32>
    %264 = math.tanh %263 : vector<2x32xf32>
    %265 = vector.extract_strided_slice %245 {offsets = [0, 0], sizes = [2, 1], strides = [1, 1]} : vector<2x8xf32> to vector<2x1xf32>
    %266 = vector.shape_cast %265 : vector<2x1xf32> to vector<2xf32>
    %267 = vector.shape_cast %266 : vector<2xf32> to vector<2x1xf32>
    %268 = vector.broadcast %267 : vector<2x1xf32> to vector<2x32xf32>
    %269 = arith.mulf %268, %264 : vector<2x32xf32>
    %cst_76 = arith.constant 1.000000e+00 : f32
    %270 = vector.broadcast %cst_76 : f32 to vector<2x1xf32>
    %271 = arith.subf %270, %267 : vector<2x1xf32>
    %272 = vector.broadcast %271 : vector<2x1xf32> to vector<2x32xf32>
    %273 = arith.mulf %272, %246 : vector<2x32xf32>
    %274 = arith.addf %269, %273 : vector<2x32xf32>
    %cst_77 = arith.constant dense<0.000000e+00> : vector<2x64xf32>
    %275 = tpu.matmul %274, %212, %cst_77 {dimension_numbers = #tpu.dot_dimension_numbers<[1], [0], [0], [1], [0, 0, 1, 1], [], []>} : vector<2x32xf32>, vector<32x64xf32>, vector<2x64xf32> -> vector<2x64xf32>
    %276 = vector.broadcast %213 : vector<1x64xf32> to vector<2x64xf32>
    %277 = arith.addf %275, %276 : vector<2x64xf32>
    %278 = vector.extract_strided_slice %196 {offsets = [0, 1, 0], sizes = [2, 1, 64], strides = [1, 1, 1]} : vector<2x8x64xf32> to vector<2x1x64xf32>
    %279 = vector.shape_cast %278 : vector<2x1x64xf32> to vector<2x64xf32>
    %280 = vector.extract_strided_slice %279 {offsets = [0, 0], sizes = [2, 32], strides = [1, 1]} : vector<2x64xf32> to vector<2x32xf32>
    %281 = vector.extract_strided_slice %277 {offsets = [0, 0], sizes = [2, 32], strides = [1, 1]} : vector<2x64xf32> to vector<2x32xf32>
    %282 = arith.addf %280, %281 : vector<2x32xf32>
    %283 = arith.negf %282 : vector<2x32xf32>
    %284 = math.exp %283 : vector<2x32xf32>
    %cst_78 = arith.constant 1.000000e+00 : f32
    %285 = vector.broadcast %cst_78 : f32 to vector<2x32xf32>
    %286 = arith.addf %285, %284 : vector<2x32xf32>
    %287 = arith.divf %285, %286 : vector<2x32xf32>
    %288 = vector.extract_strided_slice %279 {offsets = [0, 32], sizes = [2, 32], strides = [1, 1]} : vector<2x64xf32> to vector<2x32xf32>
    %289 = vector.extract_strided_slice %277 {offsets = [0, 32], sizes = [2, 32], strides = [1, 1]} : vector<2x64xf32> to vector<2x32xf32>
    %290 = arith.mulf %287, %289 : vector<2x32xf32>
    %291 = arith.addf %288, %290 : vector<2x32xf32>
    %292 = math.tanh %291 : vector<2x32xf32>
    %293 = vector.extract_strided_slice %245 {offsets = [0, 1], sizes = [2, 1], strides = [1, 1]} : vector<2x8xf32> to vector<2x1xf32>
    %294 = vector.shape_cast %293 : vector<2x1xf32> to vector<2xf32>
    %295 = vector.shape_cast %294 : vector<2xf32> to vector<2x1xf32>
    %296 = vector.broadcast %295 : vector<2x1xf32> to vector<2x32xf32>
    %297 = arith.mulf %296, %292 : vector<2x32xf32>
    %cst_79 = arith.constant 1.000000e+00 : f32
    %298 = vector.broadcast %cst_79 : f32 to vector<2x1xf32>
    %299 = arith.subf %298, %295 : vector<2x1xf32>
    %300 = vector.broadcast %299 : vector<2x1xf32> to vector<2x32xf32>
    %301 = arith.mulf %300, %274 : vector<2x32xf32>
    %302 = arith.addf %297, %301 : vector<2x32xf32>
    %cst_80 = arith.constant dense<0.000000e+00> : vector<2x64xf32>
    %303 = tpu.matmul %302, %212, %cst_80 {dimension_numbers = #tpu.dot_dimension_numbers<[1], [0], [0], [1], [0, 0, 1, 1], [], []>} : vector<2x32xf32>, vector<32x64xf32>, vector<2x64xf32> -> vector<2x64xf32>
    %304 = vector.broadcast %213 : vector<1x64xf32> to vector<2x64xf32>
    %305 = arith.addf %303, %304 : vector<2x64xf32>
    %306 = vector.extract_strided_slice %196 {offsets = [0, 2, 0], sizes = [2, 1, 64], strides = [1, 1, 1]} : vector<2x8x64xf32> to vector<2x1x64xf32>
    %307 = vector.shape_cast %306 : vector<2x1x64xf32> to vector<2x64xf32>
    %308 = vector.extract_strided_slice %307 {offsets = [0, 0], sizes = [2, 32], strides = [1, 1]} : vector<2x64xf32> to vector<2x32xf32>
    %309 = vector.extract_strided_slice %305 {offsets = [0, 0], sizes = [2, 32], strides = [1, 1]} : vector<2x64xf32> to vector<2x32xf32>
    %310 = arith.addf %308, %309 : vector<2x32xf32>
    %311 = arith.negf %310 : vector<2x32xf32>
    %312 = math.exp %311 : vector<2x32xf32>
    %cst_81 = arith.constant 1.000000e+00 : f32
    %313 = vector.broadcast %cst_81 : f32 to vector<2x32xf32>
    %314 = arith.addf %313, %312 : vector<2x32xf32>
    %315 = arith.divf %313, %314 : vector<2x32xf32>
    %316 = vector.extract_strided_slice %307 {offsets = [0, 32], sizes = [2, 32], strides = [1, 1]} : vector<2x64xf32> to vector<2x32xf32>
    %317 = vector.extract_strided_slice %305 {offsets = [0, 32], sizes = [2, 32], strides = [1, 1]} : vector<2x64xf32> to vector<2x32xf32>
    %318 = arith.mulf %315, %317 : vector<2x32xf32>
    %319 = arith.addf %316, %318 : vector<2x32xf32>
    %320 = math.tanh %319 : vector<2x32xf32>
    %321 = vector.extract_strided_slice %245 {offsets = [0, 2], sizes = [2, 1], strides = [1, 1]} : vector<2x8xf32> to vector<2x1xf32>
    %322 = vector.shape_cast %321 : vector<2x1xf32> to vector<2xf32>
    %323 = vector.shape_cast %322 : vector<2xf32> to vector<2x1xf32>
    %324 = vector.broadcast %323 : vector<2x1xf32> to vector<2x32xf32>
    %325 = arith.mulf %324, %320 : vector<2x32xf32>
    %cst_82 = arith.constant 1.000000e+00 : f32
    %326 = vector.broadcast %cst_82 : f32 to vector<2x1xf32>
    %327 = arith.subf %326, %323 : vector<2x1xf32>
    %328 = vector.broadcast %327 : vector<2x1xf32> to vector<2x32xf32>
    %329 = arith.mulf %328, %302 : vector<2x32xf32>
    %330 = arith.addf %325, %329 : vector<2x32xf32>
    %cst_83 = arith.constant dense<0.000000e+00> : vector<2x64xf32>
    %331 = tpu.matmul %330, %212, %cst_83 {dimension_numbers = #tpu.dot_dimension_numbers<[1], [0], [0], [1], [0, 0, 1, 1], [], []>} : vector<2x32xf32>, vector<32x64xf32>, vector<2x64xf32> -> vector<2x64xf32>
    %332 = vector.broadcast %213 : vector<1x64xf32> to vector<2x64xf32>
    %333 = arith.addf %331, %332 : vector<2x64xf32>
    %334 = vector.extract_strided_slice %196 {offsets = [0, 3, 0], sizes = [2, 1, 64], strides = [1, 1, 1]} : vector<2x8x64xf32> to vector<2x1x64xf32>
    %335 = vector.shape_cast %334 : vector<2x1x64xf32> to vector<2x64xf32>
    %336 = vector.extract_strided_slice %335 {offsets = [0, 0], sizes = [2, 32], strides = [1, 1]} : vector<2x64xf32> to vector<2x32xf32>
    %337 = vector.extract_strided_slice %333 {offsets = [0, 0], sizes = [2, 32], strides = [1, 1]} : vector<2x64xf32> to vector<2x32xf32>
    %338 = arith.addf %336, %337 : vector<2x32xf32>
    %339 = arith.negf %338 : vector<2x32xf32>
    %340 = math.exp %339 : vector<2x32xf32>
    %cst_84 = arith.constant 1.000000e+00 : f32
    %341 = vector.broadcast %cst_84 : f32 to vector<2x32xf32>
    %342 = arith.addf %341, %340 : vector<2x32xf32>
    %343 = arith.divf %341, %342 : vector<2x32xf32>
    %344 = vector.extract_strided_slice %335 {offsets = [0, 32], sizes = [2, 32], strides = [1, 1]} : vector<2x64xf32> to vector<2x32xf32>
    %345 = vector.extract_strided_slice %333 {offsets = [0, 32], sizes = [2, 32], strides = [1, 1]} : vector<2x64xf32> to vector<2x32xf32>
    %346 = arith.mulf %343, %345 : vector<2x32xf32>
    %347 = arith.addf %344, %346 : vector<2x32xf32>
    %348 = math.tanh %347 : vector<2x32xf32>
    %349 = vector.extract_strided_slice %245 {offsets = [0, 3], sizes = [2, 1], strides = [1, 1]} : vector<2x8xf32> to vector<2x1xf32>
    %350 = vector.shape_cast %349 : vector<2x1xf32> to vector<2xf32>
    %351 = vector.shape_cast %350 : vector<2xf32> to vector<2x1xf32>
    %352 = vector.broadcast %351 : vector<2x1xf32> to vector<2x32xf32>
    %353 = arith.mulf %352, %348 : vector<2x32xf32>
    %cst_85 = arith.constant 1.000000e+00 : f32
    %354 = vector.broadcast %cst_85 : f32 to vector<2x1xf32>
    %355 = arith.subf %354, %351 : vector<2x1xf32>
    %356 = vector.broadcast %355 : vector<2x1xf32> to vector<2x32xf32>
    %357 = arith.mulf %356, %330 : vector<2x32xf32>
    %358 = arith.addf %353, %357 : vector<2x32xf32>
    %cst_86 = arith.constant dense<0.000000e+00> : vector<2x64xf32>
    %359 = tpu.matmul %358, %212, %cst_86 {dimension_numbers = #tpu.dot_dimension_numbers<[1], [0], [0], [1], [0, 0, 1, 1], [], []>} : vector<2x32xf32>, vector<32x64xf32>, vector<2x64xf32> -> vector<2x64xf32>
    %360 = vector.broadcast %213 : vector<1x64xf32> to vector<2x64xf32>
    %361 = arith.addf %359, %360 : vector<2x64xf32>
    %362 = vector.extract_strided_slice %196 {offsets = [0, 4, 0], sizes = [2, 1, 64], strides = [1, 1, 1]} : vector<2x8x64xf32> to vector<2x1x64xf32>
    %363 = vector.shape_cast %362 : vector<2x1x64xf32> to vector<2x64xf32>
    %364 = vector.extract_strided_slice %363 {offsets = [0, 0], sizes = [2, 32], strides = [1, 1]} : vector<2x64xf32> to vector<2x32xf32>
    %365 = vector.extract_strided_slice %361 {offsets = [0, 0], sizes = [2, 32], strides = [1, 1]} : vector<2x64xf32> to vector<2x32xf32>
    %366 = arith.addf %364, %365 : vector<2x32xf32>
    %367 = arith.negf %366 : vector<2x32xf32>
    %368 = math.exp %367 : vector<2x32xf32>
    %cst_87 = arith.constant 1.000000e+00 : f32
    %369 = vector.broadcast %cst_87 : f32 to vector<2x32xf32>
    %370 = arith.addf %369, %368 : vector<2x32xf32>
    %371 = arith.divf %369, %370 : vector<2x32xf32>
    %372 = vector.extract_strided_slice %363 {offsets = [0, 32], sizes = [2, 32], strides = [1, 1]} : vector<2x64xf32> to vector<2x32xf32>
    %373 = vector.extract_strided_slice %361 {offsets = [0, 32], sizes = [2, 32], strides = [1, 1]} : vector<2x64xf32> to vector<2x32xf32>
    %374 = arith.mulf %371, %373 : vector<2x32xf32>
    %375 = arith.addf %372, %374 : vector<2x32xf32>
    %376 = math.tanh %375 : vector<2x32xf32>
    %377 = vector.extract_strided_slice %245 {offsets = [0, 4], sizes = [2, 1], strides = [1, 1]} : vector<2x8xf32> to vector<2x1xf32>
    %378 = vector.shape_cast %377 : vector<2x1xf32> to vector<2xf32>
    %379 = vector.shape_cast %378 : vector<2xf32> to vector<2x1xf32>
    %380 = vector.broadcast %379 : vector<2x1xf32> to vector<2x32xf32>
    %381 = arith.mulf %380, %376 : vector<2x32xf32>
    %cst_88 = arith.constant 1.000000e+00 : f32
    %382 = vector.broadcast %cst_88 : f32 to vector<2x1xf32>
    %383 = arith.subf %382, %379 : vector<2x1xf32>
    %384 = vector.broadcast %383 : vector<2x1xf32> to vector<2x32xf32>
    %385 = arith.mulf %384, %358 : vector<2x32xf32>
    %386 = arith.addf %381, %385 : vector<2x32xf32>
    %cst_89 = arith.constant dense<0.000000e+00> : vector<2x64xf32>
    %387 = tpu.matmul %386, %212, %cst_89 {dimension_numbers = #tpu.dot_dimension_numbers<[1], [0], [0], [1], [0, 0, 1, 1], [], []>} : vector<2x32xf32>, vector<32x64xf32>, vector<2x64xf32> -> vector<2x64xf32>
    %388 = vector.broadcast %213 : vector<1x64xf32> to vector<2x64xf32>
    %389 = arith.addf %387, %388 : vector<2x64xf32>
    %390 = vector.extract_strided_slice %196 {offsets = [0, 5, 0], sizes = [2, 1, 64], strides = [1, 1, 1]} : vector<2x8x64xf32> to vector<2x1x64xf32>
    %391 = vector.shape_cast %390 : vector<2x1x64xf32> to vector<2x64xf32>
    %392 = vector.extract_strided_slice %391 {offsets = [0, 0], sizes = [2, 32], strides = [1, 1]} : vector<2x64xf32> to vector<2x32xf32>
    %393 = vector.extract_strided_slice %389 {offsets = [0, 0], sizes = [2, 32], strides = [1, 1]} : vector<2x64xf32> to vector<2x32xf32>
    %394 = arith.addf %392, %393 : vector<2x32xf32>
    %395 = arith.negf %394 : vector<2x32xf32>
    %396 = math.exp %395 : vector<2x32xf32>
    %cst_90 = arith.constant 1.000000e+00 : f32
    %397 = vector.broadcast %cst_90 : f32 to vector<2x32xf32>
    %398 = arith.addf %397, %396 : vector<2x32xf32>
    %399 = arith.divf %397, %398 : vector<2x32xf32>
    %400 = vector.extract_strided_slice %391 {offsets = [0, 32], sizes = [2, 32], strides = [1, 1]} : vector<2x64xf32> to vector<2x32xf32>
    %401 = vector.extract_strided_slice %389 {offsets = [0, 32], sizes = [2, 32], strides = [1, 1]} : vector<2x64xf32> to vector<2x32xf32>
    %402 = arith.mulf %399, %401 : vector<2x32xf32>
    %403 = arith.addf %400, %402 : vector<2x32xf32>
    %404 = math.tanh %403 : vector<2x32xf32>
    %405 = vector.extract_strided_slice %245 {offsets = [0, 5], sizes = [2, 1], strides = [1, 1]} : vector<2x8xf32> to vector<2x1xf32>
    %406 = vector.shape_cast %405 : vector<2x1xf32> to vector<2xf32>
    %407 = vector.shape_cast %406 : vector<2xf32> to vector<2x1xf32>
    %408 = vector.broadcast %407 : vector<2x1xf32> to vector<2x32xf32>
    %409 = arith.mulf %408, %404 : vector<2x32xf32>
    %cst_91 = arith.constant 1.000000e+00 : f32
    %410 = vector.broadcast %cst_91 : f32 to vector<2x1xf32>
    %411 = arith.subf %410, %407 : vector<2x1xf32>
    %412 = vector.broadcast %411 : vector<2x1xf32> to vector<2x32xf32>
    %413 = arith.mulf %412, %386 : vector<2x32xf32>
    %414 = arith.addf %409, %413 : vector<2x32xf32>
    %cst_92 = arith.constant dense<0.000000e+00> : vector<2x64xf32>
    %415 = tpu.matmul %414, %212, %cst_92 {dimension_numbers = #tpu.dot_dimension_numbers<[1], [0], [0], [1], [0, 0, 1, 1], [], []>} : vector<2x32xf32>, vector<32x64xf32>, vector<2x64xf32> -> vector<2x64xf32>
    %416 = vector.broadcast %213 : vector<1x64xf32> to vector<2x64xf32>
    %417 = arith.addf %415, %416 : vector<2x64xf32>
    %418 = vector.extract_strided_slice %196 {offsets = [0, 6, 0], sizes = [2, 1, 64], strides = [1, 1, 1]} : vector<2x8x64xf32> to vector<2x1x64xf32>
    %419 = vector.shape_cast %418 : vector<2x1x64xf32> to vector<2x64xf32>
    %420 = vector.extract_strided_slice %419 {offsets = [0, 0], sizes = [2, 32], strides = [1, 1]} : vector<2x64xf32> to vector<2x32xf32>
    %421 = vector.extract_strided_slice %417 {offsets = [0, 0], sizes = [2, 32], strides = [1, 1]} : vector<2x64xf32> to vector<2x32xf32>
    %422 = arith.addf %420, %421 : vector<2x32xf32>
    %423 = arith.negf %422 : vector<2x32xf32>
    %424 = math.exp %423 : vector<2x32xf32>
    %cst_93 = arith.constant 1.000000e+00 : f32
    %425 = vector.broadcast %cst_93 : f32 to vector<2x32xf32>
    %426 = arith.addf %425, %424 : vector<2x32xf32>
    %427 = arith.divf %425, %426 : vector<2x32xf32>
    %428 = vector.extract_strided_slice %419 {offsets = [0, 32], sizes = [2, 32], strides = [1, 1]} : vector<2x64xf32> to vector<2x32xf32>
    %429 = vector.extract_strided_slice %417 {offsets = [0, 32], sizes = [2, 32], strides = [1, 1]} : vector<2x64xf32> to vector<2x32xf32>
    %430 = arith.mulf %427, %429 : vector<2x32xf32>
    %431 = arith.addf %428, %430 : vector<2x32xf32>
    %432 = math.tanh %431 : vector<2x32xf32>
    %433 = vector.extract_strided_slice %245 {offsets = [0, 6], sizes = [2, 1], strides = [1, 1]} : vector<2x8xf32> to vector<2x1xf32>
    %434 = vector.shape_cast %433 : vector<2x1xf32> to vector<2xf32>
    %435 = vector.shape_cast %434 : vector<2xf32> to vector<2x1xf32>
    %436 = vector.broadcast %435 : vector<2x1xf32> to vector<2x32xf32>
    %437 = arith.mulf %436, %432 : vector<2x32xf32>
    %cst_94 = arith.constant 1.000000e+00 : f32
    %438 = vector.broadcast %cst_94 : f32 to vector<2x1xf32>
    %439 = arith.subf %438, %435 : vector<2x1xf32>
    %440 = vector.broadcast %439 : vector<2x1xf32> to vector<2x32xf32>
    %441 = arith.mulf %440, %414 : vector<2x32xf32>
    %442 = arith.addf %437, %441 : vector<2x32xf32>
    %cst_95 = arith.constant dense<0.000000e+00> : vector<2x64xf32>
    %443 = tpu.matmul %442, %212, %cst_95 {dimension_numbers = #tpu.dot_dimension_numbers<[1], [0], [0], [1], [0, 0, 1, 1], [], []>} : vector<2x32xf32>, vector<32x64xf32>, vector<2x64xf32> -> vector<2x64xf32>
    %444 = vector.broadcast %213 : vector<1x64xf32> to vector<2x64xf32>
    %445 = arith.addf %443, %444 : vector<2x64xf32>
    %446 = vector.extract_strided_slice %196 {offsets = [0, 7, 0], sizes = [2, 1, 64], strides = [1, 1, 1]} : vector<2x8x64xf32> to vector<2x1x64xf32>
    %447 = vector.shape_cast %446 : vector<2x1x64xf32> to vector<2x64xf32>
    %448 = vector.extract_strided_slice %447 {offsets = [0, 0], sizes = [2, 32], strides = [1, 1]} : vector<2x64xf32> to vector<2x32xf32>
    %449 = vector.extract_strided_slice %445 {offsets = [0, 0], sizes = [2, 32], strides = [1, 1]} : vector<2x64xf32> to vector<2x32xf32>
    %450 = arith.addf %448, %449 : vector<2x32xf32>
    %451 = arith.negf %450 : vector<2x32xf32>
    %452 = math.exp %451 : vector<2x32xf32>
    %cst_96 = arith.constant 1.000000e+00 : f32
    %453 = vector.broadcast %cst_96 : f32 to vector<2x32xf32>
    %454 = arith.addf %453, %452 : vector<2x32xf32>
    %455 = arith.divf %453, %454 : vector<2x32xf32>
    %456 = vector.extract_strided_slice %447 {offsets = [0, 32], sizes = [2, 32], strides = [1, 1]} : vector<2x64xf32> to vector<2x32xf32>
    %457 = vector.extract_strided_slice %445 {offsets = [0, 32], sizes = [2, 32], strides = [1, 1]} : vector<2x64xf32> to vector<2x32xf32>
    %458 = arith.mulf %455, %457 : vector<2x32xf32>
    %459 = arith.addf %456, %458 : vector<2x32xf32>
    %460 = math.tanh %459 : vector<2x32xf32>
    %461 = vector.extract_strided_slice %245 {offsets = [0, 7], sizes = [2, 1], strides = [1, 1]} : vector<2x8xf32> to vector<2x1xf32>
    %462 = vector.shape_cast %461 : vector<2x1xf32> to vector<2xf32>
    %463 = vector.shape_cast %462 : vector<2xf32> to vector<2x1xf32>
    %464 = vector.broadcast %463 : vector<2x1xf32> to vector<2x32xf32>
    %465 = arith.mulf %464, %460 : vector<2x32xf32>
    %cst_97 = arith.constant 1.000000e+00 : f32
    %466 = vector.broadcast %cst_97 : f32 to vector<2x1xf32>
    %467 = arith.subf %466, %463 : vector<2x1xf32>
    %468 = vector.broadcast %467 : vector<2x1xf32> to vector<2x32xf32>
    %469 = arith.mulf %468, %442 : vector<2x32xf32>
    %470 = arith.addf %465, %469 : vector<2x32xf32>
    %c0_98 = arith.constant 0 : index
    %c0_99 = arith.constant 0 : index
    %471 = vector.load %arg18[%c0_98, %c0_99] : memref<32x32xf32, #tpu.memory_space<vmem>>, vector<32x32xf32>
    %cst_100 = arith.constant dense<0.000000e+00> : vector<2x32xf32>
    %472 = tpu.matmul %190, %471, %cst_100 {dimension_numbers = #tpu.dot_dimension_numbers<[1], [0], [0], [1], [0, 0, 1, 1], [], []>} : vector<2x32xf32>, vector<32x32xf32>, vector<2x32xf32> -> vector<2x32xf32>
    %c0_101 = arith.constant 0 : index
    %c0_102 = arith.constant 0 : index
    %473 = vector.load %arg19[%c0_101, %c0_102] : memref<32x32xf32, #tpu.memory_space<vmem>>, vector<32x32xf32>
    %cst_103 = arith.constant dense<0.000000e+00> : vector<2x32xf32>
    %474 = tpu.matmul %470, %473, %cst_103 {dimension_numbers = #tpu.dot_dimension_numbers<[1], [0], [0], [1], [0, 0, 1, 1], [], []>} : vector<2x32xf32>, vector<32x32xf32>, vector<2x32xf32> -> vector<2x32xf32>
    %475 = arith.addf %472, %474 : vector<2x32xf32>
    %c0_104 = arith.constant 0 : index
    %c0_105 = arith.constant 0 : index
    %476 = vector.load %arg20[%c0_104, %c0_105] : memref<32x32xf32, #tpu.memory_space<vmem>>, vector<32x32xf32>
    %cst_106 = arith.constant dense<0.000000e+00> : vector<2x32xf32>
    %477 = tpu.matmul %190, %476, %cst_106 {dimension_numbers = #tpu.dot_dimension_numbers<[1], [0], [0], [1], [0, 0, 1, 1], [], []>} : vector<2x32xf32>, vector<32x32xf32>, vector<2x32xf32> -> vector<2x32xf32>
    %478 = arith.addf %475, %477 : vector<2x32xf32>
    %c0_107 = arith.constant 0 : index
    %c0_108 = arith.constant 0 : index
    %479 = vector.load %arg21[%c0_107, %c0_108] : memref<1x32xf32, #tpu.memory_space<vmem>>, vector<1x32xf32>
    %480 = vector.broadcast %479 : vector<1x32xf32> to vector<2x32xf32>
    %481 = arith.addf %478, %480 : vector<2x32xf32>
    %cst_109 = arith.constant 0.000000e+00 : f32
    %482 = vector.broadcast %cst_109 : f32 to vector<2x32xf32>
    %483 = arith.maximumf %481, %482 : vector<2x32xf32>
    %484 = vector.shape_cast %483 : vector<2x32xf32> to vector<2x1x32xf32>
    %485 = vector.broadcast %484 : vector<2x1x32xf32> to vector<2x8x32xf32>
    %486 = arith.mulf %7, %485 : vector<2x8x32xf32>
    %c0_110 = arith.constant 0 : index
    %c0_111 = arith.constant 0 : index
    %487 = vector.load %arg8[%c0_110, %c0_111] : memref<32x32xf32, #tpu.memory_space<vmem>>, vector<32x32xf32>
    "tpu.trace_start"() <{level = 10 : i32, message = "bsh,hk->bsk"}> : () -> ()
    %cst_112 = arith.constant dense<0.000000e+00> : vector<2x8x32xf32>
    %488 = tpu.matmul %486, %487, %cst_112 {dimension_numbers = #tpu.dot_dimension_numbers<[2], [0], [0, 1], [1], [0, 0, 0, 1, 1, 1], [], []>} : vector<2x8x32xf32>, vector<32x32xf32>, vector<2x8x32xf32> -> vector<2x8x32xf32>
    "tpu.trace_stop"() : () -> ()
    %489 = arith.addf %211, %488 : vector<2x8x32xf32>
    %490 = vector.broadcast %484 : vector<2x1x32xf32> to vector<2x8x32xf32>
    %491 = arith.subf %7, %490 : vector<2x8x32xf32>
    %492 = math.absf %491 : vector<2x8x32xf32>
    %c0_113 = arith.constant 0 : index
    %c0_114 = arith.constant 0 : index
    %493 = vector.load %arg10[%c0_113, %c0_114] : memref<32x32xf32, #tpu.memory_space<vmem>>, vector<32x32xf32>
    "tpu.trace_start"() <{level = 10 : i32, message = "bsh,hk->bsk"}> : () -> ()
    %cst_115 = arith.constant dense<0.000000e+00> : vector<2x8x32xf32>
    %494 = tpu.matmul %492, %493, %cst_115 {dimension_numbers = #tpu.dot_dimension_numbers<[2], [0], [0, 1], [1], [0, 0, 0, 1, 1, 1], [], []>} : vector<2x8x32xf32>, vector<32x32xf32>, vector<2x8x32xf32> -> vector<2x8x32xf32>
    "tpu.trace_stop"() : () -> ()
    %495 = arith.addf %489, %494 : vector<2x8x32xf32>
    %496 = math.tanh %495 : vector<2x8x32xf32>
    %497 = vector.broadcast %215 : vector<1x1x32xf32> to vector<2x8x32xf32>
    %498 = arith.mulf %496, %497 : vector<2x8x32xf32>
    %cst_116 = arith.constant dense<0.000000e+00> : vector<2x8xf32>
    %499 = vector.multi_reduction <add>, %498, %cst_116 [2] : vector<2x8x32xf32> to vector<2x8xf32>
    %c0_117 = arith.constant 0 : index
    %c0_118 = arith.constant 0 : index
    %500 = vector.load %arg13[%c0_117, %c0_118] : memref<1x1xf32, #tpu.memory_space<vmem>>, vector<1x1xf32>
    %501 = vector.broadcast %500 : vector<1x1xf32> to vector<2x8xf32>
    %502 = arith.addf %499, %501 : vector<2x8xf32>
    %cst_119 = arith.constant dense<0xFF800000> : vector<2xf32>
    %503 = vector.multi_reduction <maximumf>, %502, %cst_119 [1] : vector<2x8xf32> to vector<2xf32>
    %cst_120 = arith.constant 0xFF800000 : f32
    %504 = vector.broadcast %cst_120 : f32 to vector<2xf32>
    %505 = arith.maximumf %504, %503 : vector<2xf32>
    %506 = vector.shape_cast %505 : vector<2xf32> to vector<2x1xf32>
    %507 = vector.broadcast %506 : vector<2x1xf32> to vector<2x8xf32>
    %508 = arith.subf %502, %507 : vector<2x8xf32>
    %509 = math.exp %508 : vector<2x8xf32>
    %cst_121 = arith.constant dense<0.000000e+00> : vector<2xf32>
    %510 = vector.multi_reduction <add>, %509, %cst_121 [1] : vector<2x8xf32> to vector<2xf32>
    %511 = vector.shape_cast %510 : vector<2xf32> to vector<2x1xf32>
    %512 = vector.broadcast %511 : vector<2x1xf32> to vector<2x8xf32>
    %513 = arith.divf %509, %512 : vector<2x8xf32>
    %cst_122 = arith.constant 0.000000e+00 : f32
    %514 = vector.broadcast %cst_122 : f32 to vector<2x32xf32>
    %cst_123 = arith.constant dense<0.000000e+00> : vector<2x64xf32>
    %515 = tpu.matmul %514, %212, %cst_123 {dimension_numbers = #tpu.dot_dimension_numbers<[1], [0], [0], [1], [0, 0, 1, 1], [], []>} : vector<2x32xf32>, vector<32x64xf32>, vector<2x64xf32> -> vector<2x64xf32>
    %516 = vector.broadcast %213 : vector<1x64xf32> to vector<2x64xf32>
    %517 = arith.addf %515, %516 : vector<2x64xf32>
    %518 = vector.extract_strided_slice %196 {offsets = [0, 0, 0], sizes = [2, 1, 64], strides = [1, 1, 1]} : vector<2x8x64xf32> to vector<2x1x64xf32>
    %519 = vector.shape_cast %518 : vector<2x1x64xf32> to vector<2x64xf32>
    %520 = vector.extract_strided_slice %519 {offsets = [0, 0], sizes = [2, 32], strides = [1, 1]} : vector<2x64xf32> to vector<2x32xf32>
    %521 = vector.extract_strided_slice %517 {offsets = [0, 0], sizes = [2, 32], strides = [1, 1]} : vector<2x64xf32> to vector<2x32xf32>
    %522 = arith.addf %520, %521 : vector<2x32xf32>
    %523 = arith.negf %522 : vector<2x32xf32>
    %524 = math.exp %523 : vector<2x32xf32>
    %cst_124 = arith.constant 1.000000e+00 : f32
    %525 = vector.broadcast %cst_124 : f32 to vector<2x32xf32>
    %526 = arith.addf %525, %524 : vector<2x32xf32>
    %527 = arith.divf %525, %526 : vector<2x32xf32>
    %528 = vector.extract_strided_slice %519 {offsets = [0, 32], sizes = [2, 32], strides = [1, 1]} : vector<2x64xf32> to vector<2x32xf32>
    %529 = vector.extract_strided_slice %517 {offsets = [0, 32], sizes = [2, 32], strides = [1, 1]} : vector<2x64xf32> to vector<2x32xf32>
    %530 = arith.mulf %527, %529 : vector<2x32xf32>
    %531 = arith.addf %528, %530 : vector<2x32xf32>
    %532 = math.tanh %531 : vector<2x32xf32>
    %533 = vector.extract_strided_slice %513 {offsets = [0, 0], sizes = [2, 1], strides = [1, 1]} : vector<2x8xf32> to vector<2x1xf32>
    %534 = vector.shape_cast %533 : vector<2x1xf32> to vector<2xf32>
    %535 = vector.shape_cast %534 : vector<2xf32> to vector<2x1xf32>
    %536 = vector.broadcast %535 : vector<2x1xf32> to vector<2x32xf32>
    %537 = arith.mulf %536, %532 : vector<2x32xf32>
    %cst_125 = arith.constant 1.000000e+00 : f32
    %538 = vector.broadcast %cst_125 : f32 to vector<2x1xf32>
    %539 = arith.subf %538, %535 : vector<2x1xf32>
    %540 = vector.broadcast %539 : vector<2x1xf32> to vector<2x32xf32>
    %541 = arith.mulf %540, %514 : vector<2x32xf32>
    %542 = arith.addf %537, %541 : vector<2x32xf32>
    %cst_126 = arith.constant dense<0.000000e+00> : vector<2x64xf32>
    %543 = tpu.matmul %542, %212, %cst_126 {dimension_numbers = #tpu.dot_dimension_numbers<[1], [0], [0], [1], [0, 0, 1, 1], [], []>} : vector<2x32xf32>, vector<32x64xf32>, vector<2x64xf32> -> vector<2x64xf32>
    %544 = vector.broadcast %213 : vector<1x64xf32> to vector<2x64xf32>
    %545 = arith.addf %543, %544 : vector<2x64xf32>
    %546 = vector.extract_strided_slice %196 {offsets = [0, 1, 0], sizes = [2, 1, 64], strides = [1, 1, 1]} : vector<2x8x64xf32> to vector<2x1x64xf32>
    %547 = vector.shape_cast %546 : vector<2x1x64xf32> to vector<2x64xf32>
    %548 = vector.extract_strided_slice %547 {offsets = [0, 0], sizes = [2, 32], strides = [1, 1]} : vector<2x64xf32> to vector<2x32xf32>
    %549 = vector.extract_strided_slice %545 {offsets = [0, 0], sizes = [2, 32], strides = [1, 1]} : vector<2x64xf32> to vector<2x32xf32>
    %550 = arith.addf %548, %549 : vector<2x32xf32>
    %551 = arith.negf %550 : vector<2x32xf32>
    %552 = math.exp %551 : vector<2x32xf32>
    %cst_127 = arith.constant 1.000000e+00 : f32
    %553 = vector.broadcast %cst_127 : f32 to vector<2x32xf32>
    %554 = arith.addf %553, %552 : vector<2x32xf32>
    %555 = arith.divf %553, %554 : vector<2x32xf32>
    %556 = vector.extract_strided_slice %547 {offsets = [0, 32], sizes = [2, 32], strides = [1, 1]} : vector<2x64xf32> to vector<2x32xf32>
    %557 = vector.extract_strided_slice %545 {offsets = [0, 32], sizes = [2, 32], strides = [1, 1]} : vector<2x64xf32> to vector<2x32xf32>
    %558 = arith.mulf %555, %557 : vector<2x32xf32>
    %559 = arith.addf %556, %558 : vector<2x32xf32>
    %560 = math.tanh %559 : vector<2x32xf32>
    %561 = vector.extract_strided_slice %513 {offsets = [0, 1], sizes = [2, 1], strides = [1, 1]} : vector<2x8xf32> to vector<2x1xf32>
    %562 = vector.shape_cast %561 : vector<2x1xf32> to vector<2xf32>
    %563 = vector.shape_cast %562 : vector<2xf32> to vector<2x1xf32>
    %564 = vector.broadcast %563 : vector<2x1xf32> to vector<2x32xf32>
    %565 = arith.mulf %564, %560 : vector<2x32xf32>
    %cst_128 = arith.constant 1.000000e+00 : f32
    %566 = vector.broadcast %cst_128 : f32 to vector<2x1xf32>
    %567 = arith.subf %566, %563 : vector<2x1xf32>
    %568 = vector.broadcast %567 : vector<2x1xf32> to vector<2x32xf32>
    %569 = arith.mulf %568, %542 : vector<2x32xf32>
    %570 = arith.addf %565, %569 : vector<2x32xf32>
    %cst_129 = arith.constant dense<0.000000e+00> : vector<2x64xf32>
    %571 = tpu.matmul %570, %212, %cst_129 {dimension_numbers = #tpu.dot_dimension_numbers<[1], [0], [0], [1], [0, 0, 1, 1], [], []>} : vector<2x32xf32>, vector<32x64xf32>, vector<2x64xf32> -> vector<2x64xf32>
    %572 = vector.broadcast %213 : vector<1x64xf32> to vector<2x64xf32>
    %573 = arith.addf %571, %572 : vector<2x64xf32>
    %574 = vector.extract_strided_slice %196 {offsets = [0, 2, 0], sizes = [2, 1, 64], strides = [1, 1, 1]} : vector<2x8x64xf32> to vector<2x1x64xf32>
    %575 = vector.shape_cast %574 : vector<2x1x64xf32> to vector<2x64xf32>
    %576 = vector.extract_strided_slice %575 {offsets = [0, 0], sizes = [2, 32], strides = [1, 1]} : vector<2x64xf32> to vector<2x32xf32>
    %577 = vector.extract_strided_slice %573 {offsets = [0, 0], sizes = [2, 32], strides = [1, 1]} : vector<2x64xf32> to vector<2x32xf32>
    %578 = arith.addf %576, %577 : vector<2x32xf32>
    %579 = arith.negf %578 : vector<2x32xf32>
    %580 = math.exp %579 : vector<2x32xf32>
    %cst_130 = arith.constant 1.000000e+00 : f32
    %581 = vector.broadcast %cst_130 : f32 to vector<2x32xf32>
    %582 = arith.addf %581, %580 : vector<2x32xf32>
    %583 = arith.divf %581, %582 : vector<2x32xf32>
    %584 = vector.extract_strided_slice %575 {offsets = [0, 32], sizes = [2, 32], strides = [1, 1]} : vector<2x64xf32> to vector<2x32xf32>
    %585 = vector.extract_strided_slice %573 {offsets = [0, 32], sizes = [2, 32], strides = [1, 1]} : vector<2x64xf32> to vector<2x32xf32>
    %586 = arith.mulf %583, %585 : vector<2x32xf32>
    %587 = arith.addf %584, %586 : vector<2x32xf32>
    %588 = math.tanh %587 : vector<2x32xf32>
    %589 = vector.extract_strided_slice %513 {offsets = [0, 2], sizes = [2, 1], strides = [1, 1]} : vector<2x8xf32> to vector<2x1xf32>
    %590 = vector.shape_cast %589 : vector<2x1xf32> to vector<2xf32>
    %591 = vector.shape_cast %590 : vector<2xf32> to vector<2x1xf32>
    %592 = vector.broadcast %591 : vector<2x1xf32> to vector<2x32xf32>
    %593 = arith.mulf %592, %588 : vector<2x32xf32>
    %cst_131 = arith.constant 1.000000e+00 : f32
    %594 = vector.broadcast %cst_131 : f32 to vector<2x1xf32>
    %595 = arith.subf %594, %591 : vector<2x1xf32>
    %596 = vector.broadcast %595 : vector<2x1xf32> to vector<2x32xf32>
    %597 = arith.mulf %596, %570 : vector<2x32xf32>
    %598 = arith.addf %593, %597 : vector<2x32xf32>
    %cst_132 = arith.constant dense<0.000000e+00> : vector<2x64xf32>
    %599 = tpu.matmul %598, %212, %cst_132 {dimension_numbers = #tpu.dot_dimension_numbers<[1], [0], [0], [1], [0, 0, 1, 1], [], []>} : vector<2x32xf32>, vector<32x64xf32>, vector<2x64xf32> -> vector<2x64xf32>
    %600 = vector.broadcast %213 : vector<1x64xf32> to vector<2x64xf32>
    %601 = arith.addf %599, %600 : vector<2x64xf32>
    %602 = vector.extract_strided_slice %196 {offsets = [0, 3, 0], sizes = [2, 1, 64], strides = [1, 1, 1]} : vector<2x8x64xf32> to vector<2x1x64xf32>
    %603 = vector.shape_cast %602 : vector<2x1x64xf32> to vector<2x64xf32>
    %604 = vector.extract_strided_slice %603 {offsets = [0, 0], sizes = [2, 32], strides = [1, 1]} : vector<2x64xf32> to vector<2x32xf32>
    %605 = vector.extract_strided_slice %601 {offsets = [0, 0], sizes = [2, 32], strides = [1, 1]} : vector<2x64xf32> to vector<2x32xf32>
    %606 = arith.addf %604, %605 : vector<2x32xf32>
    %607 = arith.negf %606 : vector<2x32xf32>
    %608 = math.exp %607 : vector<2x32xf32>
    %cst_133 = arith.constant 1.000000e+00 : f32
    %609 = vector.broadcast %cst_133 : f32 to vector<2x32xf32>
    %610 = arith.addf %609, %608 : vector<2x32xf32>
    %611 = arith.divf %609, %610 : vector<2x32xf32>
    %612 = vector.extract_strided_slice %603 {offsets = [0, 32], sizes = [2, 32], strides = [1, 1]} : vector<2x64xf32> to vector<2x32xf32>
    %613 = vector.extract_strided_slice %601 {offsets = [0, 32], sizes = [2, 32], strides = [1, 1]} : vector<2x64xf32> to vector<2x32xf32>
    %614 = arith.mulf %611, %613 : vector<2x32xf32>
    %615 = arith.addf %612, %614 : vector<2x32xf32>
    %616 = math.tanh %615 : vector<2x32xf32>
    %617 = vector.extract_strided_slice %513 {offsets = [0, 3], sizes = [2, 1], strides = [1, 1]} : vector<2x8xf32> to vector<2x1xf32>
    %618 = vector.shape_cast %617 : vector<2x1xf32> to vector<2xf32>
    %619 = vector.shape_cast %618 : vector<2xf32> to vector<2x1xf32>
    %620 = vector.broadcast %619 : vector<2x1xf32> to vector<2x32xf32>
    %621 = arith.mulf %620, %616 : vector<2x32xf32>
    %cst_134 = arith.constant 1.000000e+00 : f32
    %622 = vector.broadcast %cst_134 : f32 to vector<2x1xf32>
    %623 = arith.subf %622, %619 : vector<2x1xf32>
    %624 = vector.broadcast %623 : vector<2x1xf32> to vector<2x32xf32>
    %625 = arith.mulf %624, %598 : vector<2x32xf32>
    %626 = arith.addf %621, %625 : vector<2x32xf32>
    %cst_135 = arith.constant dense<0.000000e+00> : vector<2x64xf32>
    %627 = tpu.matmul %626, %212, %cst_135 {dimension_numbers = #tpu.dot_dimension_numbers<[1], [0], [0], [1], [0, 0, 1, 1], [], []>} : vector<2x32xf32>, vector<32x64xf32>, vector<2x64xf32> -> vector<2x64xf32>
    %628 = vector.broadcast %213 : vector<1x64xf32> to vector<2x64xf32>
    %629 = arith.addf %627, %628 : vector<2x64xf32>
    %630 = vector.extract_strided_slice %196 {offsets = [0, 4, 0], sizes = [2, 1, 64], strides = [1, 1, 1]} : vector<2x8x64xf32> to vector<2x1x64xf32>
    %631 = vector.shape_cast %630 : vector<2x1x64xf32> to vector<2x64xf32>
    %632 = vector.extract_strided_slice %631 {offsets = [0, 0], sizes = [2, 32], strides = [1, 1]} : vector<2x64xf32> to vector<2x32xf32>
    %633 = vector.extract_strided_slice %629 {offsets = [0, 0], sizes = [2, 32], strides = [1, 1]} : vector<2x64xf32> to vector<2x32xf32>
    %634 = arith.addf %632, %633 : vector<2x32xf32>
    %635 = arith.negf %634 : vector<2x32xf32>
    %636 = math.exp %635 : vector<2x32xf32>
    %cst_136 = arith.constant 1.000000e+00 : f32
    %637 = vector.broadcast %cst_136 : f32 to vector<2x32xf32>
    %638 = arith.addf %637, %636 : vector<2x32xf32>
    %639 = arith.divf %637, %638 : vector<2x32xf32>
    %640 = vector.extract_strided_slice %631 {offsets = [0, 32], sizes = [2, 32], strides = [1, 1]} : vector<2x64xf32> to vector<2x32xf32>
    %641 = vector.extract_strided_slice %629 {offsets = [0, 32], sizes = [2, 32], strides = [1, 1]} : vector<2x64xf32> to vector<2x32xf32>
    %642 = arith.mulf %639, %641 : vector<2x32xf32>
    %643 = arith.addf %640, %642 : vector<2x32xf32>
    %644 = math.tanh %643 : vector<2x32xf32>
    %645 = vector.extract_strided_slice %513 {offsets = [0, 4], sizes = [2, 1], strides = [1, 1]} : vector<2x8xf32> to vector<2x1xf32>
    %646 = vector.shape_cast %645 : vector<2x1xf32> to vector<2xf32>
    %647 = vector.shape_cast %646 : vector<2xf32> to vector<2x1xf32>
    %648 = vector.broadcast %647 : vector<2x1xf32> to vector<2x32xf32>
    %649 = arith.mulf %648, %644 : vector<2x32xf32>
    %cst_137 = arith.constant 1.000000e+00 : f32
    %650 = vector.broadcast %cst_137 : f32 to vector<2x1xf32>
    %651 = arith.subf %650, %647 : vector<2x1xf32>
    %652 = vector.broadcast %651 : vector<2x1xf32> to vector<2x32xf32>
    %653 = arith.mulf %652, %626 : vector<2x32xf32>
    %654 = arith.addf %649, %653 : vector<2x32xf32>
    %cst_138 = arith.constant dense<0.000000e+00> : vector<2x64xf32>
    %655 = tpu.matmul %654, %212, %cst_138 {dimension_numbers = #tpu.dot_dimension_numbers<[1], [0], [0], [1], [0, 0, 1, 1], [], []>} : vector<2x32xf32>, vector<32x64xf32>, vector<2x64xf32> -> vector<2x64xf32>
    %656 = vector.broadcast %213 : vector<1x64xf32> to vector<2x64xf32>
    %657 = arith.addf %655, %656 : vector<2x64xf32>
    %658 = vector.extract_strided_slice %196 {offsets = [0, 5, 0], sizes = [2, 1, 64], strides = [1, 1, 1]} : vector<2x8x64xf32> to vector<2x1x64xf32>
    %659 = vector.shape_cast %658 : vector<2x1x64xf32> to vector<2x64xf32>
    %660 = vector.extract_strided_slice %659 {offsets = [0, 0], sizes = [2, 32], strides = [1, 1]} : vector<2x64xf32> to vector<2x32xf32>
    %661 = vector.extract_strided_slice %657 {offsets = [0, 0], sizes = [2, 32], strides = [1, 1]} : vector<2x64xf32> to vector<2x32xf32>
    %662 = arith.addf %660, %661 : vector<2x32xf32>
    %663 = arith.negf %662 : vector<2x32xf32>
    %664 = math.exp %663 : vector<2x32xf32>
    %cst_139 = arith.constant 1.000000e+00 : f32
    %665 = vector.broadcast %cst_139 : f32 to vector<2x32xf32>
    %666 = arith.addf %665, %664 : vector<2x32xf32>
    %667 = arith.divf %665, %666 : vector<2x32xf32>
    %668 = vector.extract_strided_slice %659 {offsets = [0, 32], sizes = [2, 32], strides = [1, 1]} : vector<2x64xf32> to vector<2x32xf32>
    %669 = vector.extract_strided_slice %657 {offsets = [0, 32], sizes = [2, 32], strides = [1, 1]} : vector<2x64xf32> to vector<2x32xf32>
    %670 = arith.mulf %667, %669 : vector<2x32xf32>
    %671 = arith.addf %668, %670 : vector<2x32xf32>
    %672 = math.tanh %671 : vector<2x32xf32>
    %673 = vector.extract_strided_slice %513 {offsets = [0, 5], sizes = [2, 1], strides = [1, 1]} : vector<2x8xf32> to vector<2x1xf32>
    %674 = vector.shape_cast %673 : vector<2x1xf32> to vector<2xf32>
    %675 = vector.shape_cast %674 : vector<2xf32> to vector<2x1xf32>
    %676 = vector.broadcast %675 : vector<2x1xf32> to vector<2x32xf32>
    %677 = arith.mulf %676, %672 : vector<2x32xf32>
    %cst_140 = arith.constant 1.000000e+00 : f32
    %678 = vector.broadcast %cst_140 : f32 to vector<2x1xf32>
    %679 = arith.subf %678, %675 : vector<2x1xf32>
    %680 = vector.broadcast %679 : vector<2x1xf32> to vector<2x32xf32>
    %681 = arith.mulf %680, %654 : vector<2x32xf32>
    %682 = arith.addf %677, %681 : vector<2x32xf32>
    %cst_141 = arith.constant dense<0.000000e+00> : vector<2x64xf32>
    %683 = tpu.matmul %682, %212, %cst_141 {dimension_numbers = #tpu.dot_dimension_numbers<[1], [0], [0], [1], [0, 0, 1, 1], [], []>} : vector<2x32xf32>, vector<32x64xf32>, vector<2x64xf32> -> vector<2x64xf32>
    %684 = vector.broadcast %213 : vector<1x64xf32> to vector<2x64xf32>
    %685 = arith.addf %683, %684 : vector<2x64xf32>
    %686 = vector.extract_strided_slice %196 {offsets = [0, 6, 0], sizes = [2, 1, 64], strides = [1, 1, 1]} : vector<2x8x64xf32> to vector<2x1x64xf32>
    %687 = vector.shape_cast %686 : vector<2x1x64xf32> to vector<2x64xf32>
    %688 = vector.extract_strided_slice %687 {offsets = [0, 0], sizes = [2, 32], strides = [1, 1]} : vector<2x64xf32> to vector<2x32xf32>
    %689 = vector.extract_strided_slice %685 {offsets = [0, 0], sizes = [2, 32], strides = [1, 1]} : vector<2x64xf32> to vector<2x32xf32>
    %690 = arith.addf %688, %689 : vector<2x32xf32>
    %691 = arith.negf %690 : vector<2x32xf32>
    %692 = math.exp %691 : vector<2x32xf32>
    %cst_142 = arith.constant 1.000000e+00 : f32
    %693 = vector.broadcast %cst_142 : f32 to vector<2x32xf32>
    %694 = arith.addf %693, %692 : vector<2x32xf32>
    %695 = arith.divf %693, %694 : vector<2x32xf32>
    %696 = vector.extract_strided_slice %687 {offsets = [0, 32], sizes = [2, 32], strides = [1, 1]} : vector<2x64xf32> to vector<2x32xf32>
    %697 = vector.extract_strided_slice %685 {offsets = [0, 32], sizes = [2, 32], strides = [1, 1]} : vector<2x64xf32> to vector<2x32xf32>
    %698 = arith.mulf %695, %697 : vector<2x32xf32>
    %699 = arith.addf %696, %698 : vector<2x32xf32>
    %700 = math.tanh %699 : vector<2x32xf32>
    %701 = vector.extract_strided_slice %513 {offsets = [0, 6], sizes = [2, 1], strides = [1, 1]} : vector<2x8xf32> to vector<2x1xf32>
    %702 = vector.shape_cast %701 : vector<2x1xf32> to vector<2xf32>
    %703 = vector.shape_cast %702 : vector<2xf32> to vector<2x1xf32>
    %704 = vector.broadcast %703 : vector<2x1xf32> to vector<2x32xf32>
    %705 = arith.mulf %704, %700 : vector<2x32xf32>
    %cst_143 = arith.constant 1.000000e+00 : f32
    %706 = vector.broadcast %cst_143 : f32 to vector<2x1xf32>
    %707 = arith.subf %706, %703 : vector<2x1xf32>
    %708 = vector.broadcast %707 : vector<2x1xf32> to vector<2x32xf32>
    %709 = arith.mulf %708, %682 : vector<2x32xf32>
    %710 = arith.addf %705, %709 : vector<2x32xf32>
    %cst_144 = arith.constant dense<0.000000e+00> : vector<2x64xf32>
    %711 = tpu.matmul %710, %212, %cst_144 {dimension_numbers = #tpu.dot_dimension_numbers<[1], [0], [0], [1], [0, 0, 1, 1], [], []>} : vector<2x32xf32>, vector<32x64xf32>, vector<2x64xf32> -> vector<2x64xf32>
    %712 = vector.broadcast %213 : vector<1x64xf32> to vector<2x64xf32>
    %713 = arith.addf %711, %712 : vector<2x64xf32>
    %714 = vector.extract_strided_slice %196 {offsets = [0, 7, 0], sizes = [2, 1, 64], strides = [1, 1, 1]} : vector<2x8x64xf32> to vector<2x1x64xf32>
    %715 = vector.shape_cast %714 : vector<2x1x64xf32> to vector<2x64xf32>
    %716 = vector.extract_strided_slice %715 {offsets = [0, 0], sizes = [2, 32], strides = [1, 1]} : vector<2x64xf32> to vector<2x32xf32>
    %717 = vector.extract_strided_slice %713 {offsets = [0, 0], sizes = [2, 32], strides = [1, 1]} : vector<2x64xf32> to vector<2x32xf32>
    %718 = arith.addf %716, %717 : vector<2x32xf32>
    %719 = arith.negf %718 : vector<2x32xf32>
    %720 = math.exp %719 : vector<2x32xf32>
    %cst_145 = arith.constant 1.000000e+00 : f32
    %721 = vector.broadcast %cst_145 : f32 to vector<2x32xf32>
    %722 = arith.addf %721, %720 : vector<2x32xf32>
    %723 = arith.divf %721, %722 : vector<2x32xf32>
    %724 = vector.extract_strided_slice %715 {offsets = [0, 32], sizes = [2, 32], strides = [1, 1]} : vector<2x64xf32> to vector<2x32xf32>
    %725 = vector.extract_strided_slice %713 {offsets = [0, 32], sizes = [2, 32], strides = [1, 1]} : vector<2x64xf32> to vector<2x32xf32>
    %726 = arith.mulf %723, %725 : vector<2x32xf32>
    %727 = arith.addf %724, %726 : vector<2x32xf32>
    %728 = math.tanh %727 : vector<2x32xf32>
    %729 = vector.extract_strided_slice %513 {offsets = [0, 7], sizes = [2, 1], strides = [1, 1]} : vector<2x8xf32> to vector<2x1xf32>
    %730 = vector.shape_cast %729 : vector<2x1xf32> to vector<2xf32>
    %731 = vector.shape_cast %730 : vector<2xf32> to vector<2x1xf32>
    %732 = vector.broadcast %731 : vector<2x1xf32> to vector<2x32xf32>
    %733 = arith.mulf %732, %728 : vector<2x32xf32>
    %cst_146 = arith.constant 1.000000e+00 : f32
    %734 = vector.broadcast %cst_146 : f32 to vector<2x1xf32>
    %735 = arith.subf %734, %731 : vector<2x1xf32>
    %736 = vector.broadcast %735 : vector<2x1xf32> to vector<2x32xf32>
    %737 = arith.mulf %736, %710 : vector<2x32xf32>
    %738 = arith.addf %733, %737 : vector<2x32xf32>
    %c0_147 = arith.constant 0 : index
    %c0_148 = arith.constant 0 : index
    %739 = vector.load %arg18[%c0_147, %c0_148] : memref<32x32xf32, #tpu.memory_space<vmem>>, vector<32x32xf32>
    %cst_149 = arith.constant dense<0.000000e+00> : vector<2x32xf32>
    %740 = tpu.matmul %483, %739, %cst_149 {dimension_numbers = #tpu.dot_dimension_numbers<[1], [0], [0], [1], [0, 0, 1, 1], [], []>} : vector<2x32xf32>, vector<32x32xf32>, vector<2x32xf32> -> vector<2x32xf32>
    %c0_150 = arith.constant 0 : index
    %c0_151 = arith.constant 0 : index
    %741 = vector.load %arg19[%c0_150, %c0_151] : memref<32x32xf32, #tpu.memory_space<vmem>>, vector<32x32xf32>
    %cst_152 = arith.constant dense<0.000000e+00> : vector<2x32xf32>
    %742 = tpu.matmul %738, %741, %cst_152 {dimension_numbers = #tpu.dot_dimension_numbers<[1], [0], [0], [1], [0, 0, 1, 1], [], []>} : vector<2x32xf32>, vector<32x32xf32>, vector<2x32xf32> -> vector<2x32xf32>
    %743 = arith.addf %740, %742 : vector<2x32xf32>
    %c0_153 = arith.constant 0 : index
    %c0_154 = arith.constant 0 : index
    %744 = vector.load %arg20[%c0_153, %c0_154] : memref<32x32xf32, #tpu.memory_space<vmem>>, vector<32x32xf32>
    %cst_155 = arith.constant dense<0.000000e+00> : vector<2x32xf32>
    %745 = tpu.matmul %190, %744, %cst_155 {dimension_numbers = #tpu.dot_dimension_numbers<[1], [0], [0], [1], [0, 0, 1, 1], [], []>} : vector<2x32xf32>, vector<32x32xf32>, vector<2x32xf32> -> vector<2x32xf32>
    %746 = arith.addf %743, %745 : vector<2x32xf32>
    %c0_156 = arith.constant 0 : index
    %c0_157 = arith.constant 0 : index
    %747 = vector.load %arg21[%c0_156, %c0_157] : memref<1x32xf32, #tpu.memory_space<vmem>>, vector<1x32xf32>
    %748 = vector.broadcast %747 : vector<1x32xf32> to vector<2x32xf32>
    %749 = arith.addf %746, %748 : vector<2x32xf32>
    %cst_158 = arith.constant 0.000000e+00 : f32
    %750 = vector.broadcast %cst_158 : f32 to vector<2x32xf32>
    %751 = arith.maximumf %749, %750 : vector<2x32xf32>
    %752 = tpu.concatenate %542, %570, %598, %626, %654, %682, %710, %738 in 1 : vector<2x32xf32>, vector<2x32xf32>, vector<2x32xf32>, vector<2x32xf32>, vector<2x32xf32>, vector<2x32xf32>, vector<2x32xf32>, vector<2x32xf32> -> vector<2x256xf32>
    %c0_159 = arith.constant 0 : index
    %c0_160 = arith.constant 0 : index
    %753 = vector.load %arg23[%c0_159, %c0_160] : memref<2x256xf32, #tpu.memory_space<vmem>>, vector<2x256xf32>
    tpu.vector_store %arg23[%c0_159, %c0_160], %752 {strides = array<i32>} : memref<2x256xf32, #tpu.memory_space<vmem>>, vector<2x256xf32>,
    %c0_161 = arith.constant 0 : index
    %c0_162 = arith.constant 0 : index
    %754 = vector.load %arg22[%c0_161, %c0_162] : memref<2x32xf32, #tpu.memory_space<vmem>>, vector<2x32xf32>
    tpu.vector_store %arg22[%c0_161, %c0_162], %751 {strides = array<i32>} : memref<2x32xf32, #tpu.memory_space<vmem>>, vector<2x32xf32>,
    return
  }
}

</mosaic_0001>

<llo_original>
// kernel: tpu_custom_call.1
$region0: #{tpu_custom_call.1}
  #allocation0 [shape = 'u32[]', space=smem, size = 0x4, offset = 0x4, fixed_abs, tag = 'smem constant byte address 0x4 - core index']
  #allocation1 [shape = 'u32[144,128]{1,0:T(1,128)}', space=vmem, size = 0x12000, scoped, tag = 'internal scratch']
  #allocation2 [shape = 'f32[1,1]{1,0:T(1,128)S(1)}', space=vmem, size = 0x200, scoped, tag = 'scoped memory for tpu_custom_call.1']
  %s0 = inlined_call_operand.hbm [shape: f32[2,8,32], index: 0, kind: input, shape index: {}]
  %s1 = inlined_call_operand.vmem [shape: f32[2,6,32], index: 1, kind: input, shape index: {}]
  %s2 = inlined_call_operand.vmem [shape: f32[32,32], index: 2, kind: input, shape index: {}]
  %s3 = inlined_call_operand.hbm [shape: f32[1,32], index: 3, kind: input, shape index: {}]
  %s4 = inlined_call_operand.hbm [shape: f32[32,128], index: 4, kind: input, shape index: {}]
  %s5 = inlined_call_operand.hbm [shape: f32[32,128], index: 5, kind: input, shape index: {}]
  %s6 = inlined_call_operand.hbm [shape: f32[1,128], index: 6, kind: input, shape index: {}]
  %s7 = inlined_call_operand.hbm [shape: f32[32,32], index: 7, kind: input, shape index: {}]
  %s8 = inlined_call_operand.hbm [shape: f32[32,32], index: 8, kind: input, shape index: {}]
  %s9 = inlined_call_operand.vmem [shape: f32[32,32], index: 9, kind: input, shape index: {}]
  %s10 = inlined_call_operand.hbm [shape: f32[32,32], index: 10, kind: input, shape index: {}]
  %s11 = inlined_call_operand.hbm [shape: f32[1,32], index: 11, kind: input, shape index: {}]
  %s12 = inlined_call_operand.hbm [shape: f32[1,32], index: 12, kind: input, shape index: {}]
  %s13 = inlined_call_operand.<no memory space> [shape: f32[1,1], index: 13, kind: input, shape index: {}]
  %s14 = inlined_call_operand.hbm [shape: f32[32,64], index: 14, kind: input, shape index: {}]
  %s15 = inlined_call_operand.hbm [shape: f32[1,64], index: 15, kind: input, shape index: {}]
  %s16 = inlined_call_operand.hbm [shape: f32[32,64], index: 16, kind: input, shape index: {}]
  %s17 = inlined_call_operand.hbm [shape: f32[1,64], index: 17, kind: input, shape index: {}]
  %s18 = inlined_call_operand.vmem [shape: f32[32,32], index: 18, kind: input, shape index: {}]
  %s19 = inlined_call_operand.hbm [shape: f32[32,32], index: 19, kind: input, shape index: {}]
  %s20 = inlined_call_operand.hbm [shape: f32[32,32], index: 20, kind: input, shape index: {}]
  %s21 = inlined_call_operand.vmem [shape: f32[1,32], index: 21, kind: input, shape index: {}]
  %s22 = inlined_call_operand.hbm [shape: f32[2,32], index: 22, kind: output, shape index: {0}]
  %s23 = inlined_call_operand.hbm [shape: f32[2,256], index: 23, kind: output, shape index: {1}]
  %24 = xla_tuple %s22, %s23
  %s25 = sld [smem:[#allocation0]]
  $region170: #{tpu_custom_call.1} parent=0
    _
  %s27 = ssub.s32 1, %s25
  %s28 = scalar_select 0, %s27, %s25
  %v29 = vstv %s13
  %30 = vst [vmem:[#allocation2] sm:$0x1] %v29
  $region1: #{tpu_custom_call.1} parent=0
    #allocation3 [shape = 'u8[8192]{0}', space=vmem, size = 0x2000, scoped, tag = 'input window, operand 0, single buffered']
    #allocation4 [shape = 's32[1]{0}', space=sflag, size = 0x4, scoped, tag = 'scoped memory for tpu_custom_call.1']
    #allocation5 [shape = 's32[1]{0}', space=sflag, size = 0x4, scoped, tag = 'scoped memory for tpu_custom_call.1']
    #allocation6 [shape = 'u8[512]{0}', space=vmem, size = 0x400, scoped, tag = 'input window, operand 3, single buffered']
    #allocation7 [shape = 's32[1]{0}', space=sflag, size = 0x4, scoped, tag = 'scoped memory for tpu_custom_call.1']
    #allocation8 [shape = 'u8[16384]{0}', space=vmem, size = 0x4000, scoped, tag = 'input window, operand 4, single buffered']
    #allocation9 [shape = 'u8[16384]{0}', space=vmem, size = 0x4000, scoped, tag = 'input window, operand 5, single buffered']
    #allocation10 [shape = 's32[1]{0}', space=sflag, size = 0x4, scoped, tag = 'scoped memory for tpu_custom_call.1']
    #allocation11 [shape = 'u8[512]{0}', space=vmem, size = 0x400, scoped, tag = 'input window, operand 6, single buffered']
    #allocation12 [shape = 'u8[16384]{0}', space=vmem, size = 0x4000, scoped, tag = 'input window, operand 7, single buffered']
    #allocation13 [shape = 's32[1]{0}', space=sflag, size = 0x4, scoped, tag = 'scoped memory for tpu_custom_call.1']
    #allocation14 [shape = 'u8[16384]{0}', space=vmem, size = 0x4000, scoped, tag = 'input window, operand 8, single buffered']
    #allocation15 [shape = 'u8[16384]{0}', space=vmem, size = 0x4000, scoped, tag = 'input window, operand 10, single buffered']
    #allocation16 [shape = 's32[1]{0}', space=sflag, size = 0x4, scoped, tag = 'scoped memory for tpu_custom_call.1']
    #allocation17 [shape = 'u8[512]{0}', space=vmem, size = 0x400, scoped, tag = 'input window, operand 11, single buffered']
    #allocation18 [shape = 'u8[512]{0}', space=vmem, size = 0x400, scoped, tag = 'input window, operand 12, single buffered']
    #allocation19 [shape = 's32[1]{0}', space=sflag, size = 0x4, scoped, tag = 'scoped memory for tpu_custom_call.1']
    #allocation20 [shape = 'u8[16384]{0}', space=vmem, size = 0x4000, scoped, tag = 'input window, operand 14, single buffered']
    #allocation21 [shape = 'u8[512]{0}', space=vmem, size = 0x400, scoped, tag = 'input window, operand 15, single buffered']
    #allocation22 [shape = 's32[1]{0}', space=sflag, size = 0x4, scoped, tag = 'scoped memory for tpu_custom_call.1']
    #allocation23 [shape = 'u8[16384]{0}', space=vmem, size = 0x4000, scoped, tag = 'input window, operand 16, single buffered']
    #allocation24 [shape = 'u8[512]{0}', space=vmem, size = 0x400, scoped, tag = 'input window, operand 17, single buffered']
    #allocation25 [shape = 's32[1]{0}', space=sflag, size = 0x4, scoped, tag = 'scoped memory for tpu_custom_call.1']
    #allocation26 [shape = 'u8[16384]{0}', space=vmem, size = 0x4000, scoped, tag = 'input window, operand 19, single buffered']
    #allocation27 [shape = 'u8[16384]{0}', space=vmem, size = 0x4000, scoped, tag = 'input window, operand 20, single buffered']
    #allocation28 [shape = 's32[1]{0}', space=sflag, size = 0x4, scoped, tag = 'scoped memory for tpu_custom_call.1']
    #allocation29 [shape = 'u8[1024]{0}', space=vmem, size = 0x400, scoped, tag = 'output window, operand 0, single buffered']
    #allocation30 [shape = 'u8[2048]{0}', space=vmem, size = 0x800, scoped, tag = 'output window, operand 1, single buffered']
    #allocation31 [shape = 's32[1]{0}', space=sflag, size = 0x4, scoped, tag = 'scoped memory for tpu_custom_call.1']
    %31 = vsyncpa [#allocation4], 0
    %32 = vsyncpa [#allocation7], 0
    %33 = vsyncpa [#allocation10], 0
    %34 = vsyncpa [#allocation13], 0
    %35 = vsyncpa [#allocation16], 0
    %36 = vsyncpa [#allocation19], 0
    %37 = vsyncpa [#allocation22], 0
    %38 = vsyncpa [#allocation25], 0
    %39 = vsyncpa [#allocation28], 0
    %40 = vsyncpa [#allocation5], 0
    %41 = vsyncpa [#allocation31], 0
    // Predicated region
    $region2: #{tpu_custom_call.1} parent=1 // pred_check
      _
    $region3: #{tpu_custom_call.1} parent=1 // pred_check_branch
      %43 = sbr.rel (0) target = $region5
    $region4: #{tpu_custom_call.1} parent=1 // pred_region
      %s45 = ssub.s32 256, 256
      %46 = vsyncadd [#allocation4], %s45
      %s47 = sshll.u32 [#allocation3], 4
      %s48 = int_to_ptr.vmem [resolvable:$true] %s47
      %53 = dma.hbm_to_vmem [thread:$0]  %s0, 256, %s48, [#allocation4], 128, 128, 8
    $region5: #{tpu_custom_call.1} parent=1 // pred_fallthru
      _
    // Predicated region
    $region6: #{tpu_custom_call.1} parent=1 // pred_check
      _
    $region7: #{tpu_custom_call.1} parent=1 // pred_check_branch
      %55 = sbr.rel (0) target = $region9
    $region8: #{tpu_custom_call.1} parent=1 // pred_region
      _
    $region9: #{tpu_custom_call.1} parent=1 // pred_fallthru
      _
    // Predicated region
    $region10: #{tpu_custom_call.1} parent=1 // pred_check
      _
    $region11: #{tpu_custom_call.1} parent=1 // pred_check_branch
      %57 = sbr.rel (0) target = $region13
    $region12: #{tpu_custom_call.1} parent=1 // pred_region
      _
    $region13: #{tpu_custom_call.1} parent=1 // pred_fallthru
      _
    // Predicated region
    $region14: #{tpu_custom_call.1} parent=1 // pred_check
      _
    $region15: #{tpu_custom_call.1} parent=1 // pred_check_branch
      %59 = sbr.rel (0) target = $region17
    $region16: #{tpu_custom_call.1} parent=1 // pred_region
      %s61 = ssub.s32 16, 16
      %62 = vsyncadd [#allocation7], %s61
      %s64 = sshll.u32 [#allocation6], 4
      %s65 = int_to_ptr.vmem [resolvable:$true] %s64
      %67 = dma.hbm_to_vmem [thread:$0]  %s3, 16, %s65, [#allocation7]
    $region17: #{tpu_custom_call.1} parent=1 // pred_fallthru
      _
    // Predicated region
    $region18: #{tpu_custom_call.1} parent=1 // pred_check
      _
    $region19: #{tpu_custom_call.1} parent=1 // pred_check_branch
      %69 = sbr.rel (0) target = $region21
    $region20: #{tpu_custom_call.1} parent=1 // pred_region
      %s71 = ssub.s32 512, 512
      %72 = vsyncadd [#allocation7], %s71
      %s73 = sshll.u32 [#allocation8], 4
      %s74 = int_to_ptr.vmem [resolvable:$true] %s73
      %79 = dma.hbm_to_vmem [thread:$0]  %s4, 512, %s74, [#allocation7], 128, 128, 8
    $region21: #{tpu_custom_call.1} parent=1 // pred_fallthru
      _
    // Predicated region
    $region22: #{tpu_custom_call.1} parent=1 // pred_check
      _
    $region23: #{tpu_custom_call.1} parent=1 // pred_check_branch
      %81 = sbr.rel (0) target = $region25
    $region24: #{tpu_custom_call.1} parent=1 // pred_region
      %s83 = ssub.s32 512, 512
      %84 = vsyncadd [#allocation10], %s83
      %s85 = sshll.u32 [#allocation9], 4
      %s86 = int_to_ptr.vmem [resolvable:$true] %s85
      %91 = dma.hbm_to_vmem [thread:$0]  %s5, 512, %s86, [#allocation10], 128, 128, 8
    $region25: #{tpu_custom_call.1} parent=1 // pred_fallthru
      _
    // Predicated region
    $region26: #{tpu_custom_call.1} parent=1 // pred_check
      _
    $region27: #{tpu_custom_call.1} parent=1 // pred_check_branch
      %93 = sbr.rel (0) target = $region29
    $region28: #{tpu_custom_call.1} parent=1 // pred_region
      %s95 = ssub.s32 16, 16
      %96 = vsyncadd [#allocation10], %s95
      %s98 = sshll.u32 [#allocation11], 4
      %s99 = int_to_ptr.vmem [resolvable:$true] %s98
      %101 = dma.hbm_to_vmem [thread:$0]  %s6, 16, %s99, [#allocation10]
    $region29: #{tpu_custom_call.1} parent=1 // pred_fallthru
      _
    // Predicated region
    $region30: #{tpu_custom_call.1} parent=1 // pred_check
      _
    $region31: #{tpu_custom_call.1} parent=1 // pred_check_branch
      %103 = sbr.rel (0) target = $region33
    $region32: #{tpu_custom_call.1} parent=1 // pred_region
      %s105 = ssub.s32 512, 512
      %106 = vsyncadd [#allocation13], %s105
      %s107 = sshll.u32 [#allocation12], 4
      %s108 = int_to_ptr.vmem [resolvable:$true] %s107
      %113 = dma.hbm_to_vmem [thread:$0]  %s7, 512, %s108, [#allocation13], 128, 128, 8
    $region33: #{tpu_custom_call.1} parent=1 // pred_fallthru
      _
    // Predicated region
    $region34: #{tpu_custom_call.1} parent=1 // pred_check
      _
    $region35: #{tpu_custom_call.1} parent=1 // pred_check_branch
      %115 = sbr.rel (0) target = $region37
    $region36: #{tpu_custom_call.1} parent=1 // pred_region
      %s117 = ssub.s32 512, 512
      %118 = vsyncadd [#allocation13], %s117
      %s119 = sshll.u32 [#allocation14], 4
      %s120 = int_to_ptr.vmem [resolvable:$true] %s119
      %125 = dma.hbm_to_vmem [thread:$0]  %s8, 512, %s120, [#allocation13], 128, 128, 8
    $region37: #{tpu_custom_call.1} parent=1 // pred_fallthru
      _
    // Predicated region
    $region38: #{tpu_custom_call.1} parent=1 // pred_check
      _
    $region39: #{tpu_custom_call.1} parent=1 // pred_check_branch
      %127 = sbr.rel (0) target = $region41
    $region40: #{tpu_custom_call.1} parent=1 // pred_region
      _
    $region41: #{tpu_custom_call.1} parent=1 // pred_fallthru
      _
    // Predicated region
    $region42: #{tpu_custom_call.1} parent=1 // pred_check
      _
    $region43: #{tpu_custom_call.1} parent=1 // pred_check_branch
      %129 = sbr.rel (0) target = $region45
    $region44: #{tpu_custom_call.1} parent=1 // pred_region
      %s131 = ssub.s32 512, 512
      %132 = vsyncadd [#allocation16], %s131
      %s133 = sshll.u32 [#allocation15], 4
      %s134 = int_to_ptr.vmem [resolvable:$true] %s133
      %139 = dma.hbm_to_vmem [thread:$0]  %s10, 512, %s134, [#allocation16], 128, 128, 8
    $region45: #{tpu_custom_call.1} parent=1 // pred_fallthru
      _
    // Predicated region
    $region46: #{tpu_custom_call.1} parent=1 // pred_check
      _
    $region47: #{tpu_custom_call.1} parent=1 // pred_check_branch
      %141 = sbr.rel (0) target = $region49
    $region48: #{tpu_custom_call.1} parent=1 // pred_region
      %s143 = ssub.s32 16, 16
      %144 = vsyncadd [#allocation16], %s143
      %s146 = sshll.u32 [#allocation17], 4
      %s147 = int_to_ptr.vmem [resolvable:$true] %s146
      %149 = dma.hbm_to_vmem [thread:$0]  %s11, 16, %s147, [#allocation16]
    $region49: #{tpu_custom_call.1} parent=1 // pred_fallthru
      _
    // Predicated region
    $region50: #{tpu_custom_call.1} parent=1 // pred_check
      _
    $region51: #{tpu_custom_call.1} parent=1 // pred_check_branch
      %151 = sbr.rel (0) target = $region53
    $region52: #{tpu_custom_call.1} parent=1 // pred_region
      %s153 = ssub.s32 16, 16
      %154 = vsyncadd [#allocation19], %s153
      %s156 = sshll.u32 [#allocation18], 4
      %s157 = int_to_ptr.vmem [resolvable:$true] %s156
      %159 = dma.hbm_to_vmem [thread:$0]  %s12, 16, %s157, [#allocation19]
    $region53: #{tpu_custom_call.1} parent=1 // pred_fallthru
      _
    // Predicated region
    $region54: #{tpu_custom_call.1} parent=1 // pred_check
      _
    $region55: #{tpu_custom_call.1} parent=1 // pred_check_branch
      %161 = sbr.rel (0) target = $region57
    $region56: #{tpu_custom_call.1} parent=1 // pred_region
      _
    $region57: #{tpu_custom_call.1} parent=1 // pred_fallthru
      _
    // Predicated region
    $region58: #{tpu_custom_call.1} parent=1 // pred_check
      _
    $region59: #{tpu_custom_call.1} parent=1 // pred_check_branch
      %163 = sbr.rel (0) target = $region61
    $region60: #{tpu_custom_call.1} parent=1 // pred_region
      %s165 = ssub.s32 512, 512
      %166 = vsyncadd [#allocation19], %s165
      %s167 = sshll.u32 [#allocation20], 4
      %s168 = int_to_ptr.vmem [resolvable:$true] %s167
      %173 = dma.hbm_to_vmem [thread:$0]  %s14, 512, %s168, [#allocation19], 128, 128, 8
    $region61: #{tpu_custom_call.1} parent=1 // pred_fallthru
      _
    // Predicated region
    $region62: #{tpu_custom_call.1} parent=1 // pred_check
      _
    $region63: #{tpu_custom_call.1} parent=1 // pred_check_branch
      %175 = sbr.rel (0) target = $region65
    $region64: #{tpu_custom_call.1} parent=1 // pred_region
      %s177 = ssub.s32 16, 16
      %178 = vsyncadd [#allocation22], %s177
      %s180 = sshll.u32 [#allocation21], 4
      %s181 = int_to_ptr.vmem [resolvable:$true] %s180
      %183 = dma.hbm_to_vmem [thread:$0]  %s15, 16, %s181, [#allocation22]
    $region65: #{tpu_custom_call.1} parent=1 // pred_fallthru
      _
    // Predicated region
    $region66: #{tpu_custom_call.1} parent=1 // pred_check
      _
    $region67: #{tpu_custom_call.1} parent=1 // pred_check_branch
      %185 = sbr.rel (0) target = $region69
    $region68: #{tpu_custom_call.1} parent=1 // pred_region
      %s187 = ssub.s32 512, 512
      %188 = vsyncadd [#allocation22], %s187
      %s189 = sshll.u32 [#allocation23], 4
      %s190 = int_to_ptr.vmem [resolvable:$true] %s189
      %195 = dma.hbm_to_vmem [thread:$0]  %s16, 512, %s190, [#allocation22], 128, 128, 8
    $region69: #{tpu_custom_call.1} parent=1 // pred_fallthru
      _
    // Predicated region
    $region70: #{tpu_custom_call.1} parent=1 // pred_check
      _
    $region71: #{tpu_custom_call.1} parent=1 // pred_check_branch
      %197 = sbr.rel (0) target = $region73
    $region72: #{tpu_custom_call.1} parent=1 // pred_region
      %s199 = ssub.s32 16, 16
      %200 = vsyncadd [#allocation25], %s199
      %s202 = sshll.u32 [#allocation24], 4
      %s203 = int_to_ptr.vmem [resolvable:$true] %s202
      %205 = dma.hbm_to_vmem [thread:$0]  %s17, 16, %s203, [#allocation25]
    $region73: #{tpu_custom_call.1} parent=1 // pred_fallthru
      _
    // Predicated region
    $region74: #{tpu_custom_call.1} parent=1 // pred_check
      _
    $region75: #{tpu_custom_call.1} parent=1 // pred_check_branch
      %207 = sbr.rel (0) target = $region77
    $region76: #{tpu_custom_call.1} parent=1 // pred_region
      _
    $region77: #{tpu_custom_call.1} parent=1 // pred_fallthru
      _
    // Predicated region
    $region78: #{tpu_custom_call.1} parent=1 // pred_check
      _
    $region79: #{tpu_custom_call.1} parent=1 // pred_check_branch
      %209 = sbr.rel (0) target = $region81
    $region80: #{tpu_custom_call.1} parent=1 // pred_region
      %s211 = ssub.s32 512, 512
      %212 = vsyncadd [#allocation25], %s211
      %s213 = sshll.u32 [#allocation26], 4
      %s214 = int_to_ptr.vmem [resolvable:$true] %s213
      %219 = dma.hbm_to_vmem [thread:$0]  %s19, 512, %s214, [#allocation25], 128, 128, 8
    $region81: #{tpu_custom_call.1} parent=1 // pred_fallthru
      _
    // Predicated region
    $region82: #{tpu_custom_call.1} parent=1 // pred_check
      _
    $region83: #{tpu_custom_call.1} parent=1 // pred_check_branch
      %221 = sbr.rel (0) target = $region85
    $region84: #{tpu_custom_call.1} parent=1 // pred_region
      %s223 = ssub.s32 512, 512
      %224 = vsyncadd [#allocation28], %s223
      %s225 = sshll.u32 [#allocation27], 4
      %s226 = int_to_ptr.vmem [resolvable:$true] %s225
      %231 = dma.hbm_to_vmem [thread:$0]  %s20, 512, %s226, [#allocation28], 128, 128, 8
    $region85: #{tpu_custom_call.1} parent=1 // pred_fallthru
      _
    // Predicated region
    $region86: #{tpu_custom_call.1} parent=1 // pred_check
      _
    $region87: #{tpu_custom_call.1} parent=1 // pred_check_branch
      %233 = sbr.rel (0) target = $region89
    $region88: #{tpu_custom_call.1} parent=1 // pred_region
      _
    $region89: #{tpu_custom_call.1} parent=1 // pred_fallthru
      _
    // Predicated region
    $region90: #{tpu_custom_call.1} parent=1 // pred_check
      _
    $region91: #{tpu_custom_call.1} parent=1 // pred_check_branch
      %235 = sbr.rel (0) target = $region93
    $region92: #{tpu_custom_call.1} parent=1 // pred_region
      %236 = dma.done [#allocation4], 256
    $region93: #{tpu_custom_call.1} parent=1 // pred_fallthru
      _
    // Predicated region
    $region94: #{tpu_custom_call.1} parent=1 // pred_check
      _
    $region95: #{tpu_custom_call.1} parent=1 // pred_check_branch
      %238 = sbr.rel (0) target = $region97
    $region96: #{tpu_custom_call.1} parent=1 // pred_region
      %239 = dma.done [#allocation7], 16
    $region97: #{tpu_custom_call.1} parent=1 // pred_fallthru
      _
    // Predicated region
    $region98: #{tpu_custom_call.1} parent=1 // pred_check
      _
    $region99: #{tpu_custom_call.1} parent=1 // pred_check_branch
      %241 = sbr.rel (0) target = $region101
    $region100: #{tpu_custom_call.1} parent=1 // pred_region
      %242 = dma.done [#allocation7], 512
    $region101: #{tpu_custom_call.1} parent=1 // pred_fallthru
      _
    // Predicated region
    $region102: #{tpu_custom_call.1} parent=1 // pred_check
      _
    $region103: #{tpu_custom_call.1} parent=1 // pred_check_branch
      %244 = sbr.rel (0) target = $region105
    $region104: #{tpu_custom_call.1} parent=1 // pred_region
      %245 = dma.done [#allocation10], 512
    $region105: #{tpu_custom_call.1} parent=1 // pred_fallthru
      _
    // Predicated region
    $region106: #{tpu_custom_call.1} parent=1 // pred_check
      _
    $region107: #{tpu_custom_call.1} parent=1 // pred_check_branch
      %247 = sbr.rel (0) target = $region109
    $region108: #{tpu_custom_call.1} parent=1 // pred_region
      %248 = dma.done [#allocation10], 16
    $region109: #{tpu_custom_call.1} parent=1 // pred_fallthru
      _
    // Predicated region
    $region110: #{tpu_custom_call.1} parent=1 // pred_check
      _
    $region111: #{tpu_custom_call.1} parent=1 // pred_check_branch
      %250 = sbr.rel (0) target = $region113
    $region112: #{tpu_custom_call.1} parent=1 // pred_region
      %251 = dma.done [#allocation13], 512
    $region113: #{tpu_custom_call.1} parent=1 // pred_fallthru
      _
    // Predicated region
    $region114: #{tpu_custom_call.1} parent=1 // pred_check
      _
    $region115: #{tpu_custom_call.1} parent=1 // pred_check_branch
      %253 = sbr.rel (0) target = $region117
    $region116: #{tpu_custom_call.1} parent=1 // pred_region
      %254 = dma.done [#allocation13], 512
    $region117: #{tpu_custom_call.1} parent=1 // pred_fallthru
      _
    // Predicated region
    $region118: #{tpu_custom_call.1} parent=1 // pred_check
      _
    $region119: #{tpu_custom_call.1} parent=1 // pred_check_branch
      %256 = sbr.rel (0) target = $region121
    $region120: #{tpu_custom_call.1} parent=1 // pred_region
      %257 = dma.done [#allocation16], 512
    $region121: #{tpu_custom_call.1} parent=1 // pred_fallthru
      _
    // Predicated region
    $region122: #{tpu_custom_call.1} parent=1 // pred_check
      _
    $region123: #{tpu_custom_call.1} parent=1 // pred_check_branch
      %259 = sbr.rel (0) target = $region125
    $region124: #{tpu_custom_call.1} parent=1 // pred_region
      %260 = dma.done [#allocation16], 16
    $region125: #{tpu_custom_call.1} parent=1 // pred_fallthru
      _
    // Predicated region
    $region126: #{tpu_custom_call.1} parent=1 // pred_check
      _
    $region127: #{tpu_custom_call.1} parent=1 // pred_check_branch
      %262 = sbr.rel (0) target = $region129
    $region128: #{tpu_custom_call.1} parent=1 // pred_region
      %263 = dma.done [#allocation19], 16
    $region129: #{tpu_custom_call.1} parent=1 // pred_fallthru
      _
    // Predicated region
    $region130: #{tpu_custom_call.1} parent=1 // pred_check
      _
    $region131: #{tpu_custom_call.1} parent=1 // pred_check_branch
      %265 = sbr.rel (0) target = $region133
    $region132: #{tpu_custom_call.1} parent=1 // pred_region
      %266 = dma.done [#allocation19], 512
    $region133: #{tpu_custom_call.1} parent=1 // pred_fallthru
      _
    // Predicated region
    $region134: #{tpu_custom_call.1} parent=1 // pred_check
      _
    $region135: #{tpu_custom_call.1} parent=1 // pred_check_branch
      %268 = sbr.rel (0) target = $region137
    $region136: #{tpu_custom_call.1} parent=1 // pred_region
      %269 = dma.done [#allocation22], 16
    $region137: #{tpu_custom_call.1} parent=1 // pred_fallthru
      _
    // Predicated region
    $region138: #{tpu_custom_call.1} parent=1 // pred_check
      _
    $region139: #{tpu_custom_call.1} parent=1 // pred_check_branch
      %271 = sbr.rel (0) target = $region141
    $region140: #{tpu_custom_call.1} parent=1 // pred_region
      %272 = dma.done [#allocation22], 512
    $region141: #{tpu_custom_call.1} parent=1 // pred_fallthru
      _
    // Predicated region
    $region142: #{tpu_custom_call.1} parent=1 // pred_check
      _
    $region143: #{tpu_custom_call.1} parent=1 // pred_check_branch
      %274 = sbr.rel (0) target = $region145
    $region144: #{tpu_custom_call.1} parent=1 // pred_region
      %275 = dma.done [#allocation25], 16
    $region145: #{tpu_custom_call.1} parent=1 // pred_fallthru
      _
    // Predicated region
    $region146: #{tpu_custom_call.1} parent=1 // pred_check
      _
    $region147: #{tpu_custom_call.1} parent=1 // pred_check_branch
      %277 = sbr.rel (0) target = $region149
    $region148: #{tpu_custom_call.1} parent=1 // pred_region
      %278 = dma.done [#allocation25], 512
    $region149: #{tpu_custom_call.1} parent=1 // pred_fallthru
      _
    // Predicated region
    $region150: #{tpu_custom_call.1} parent=1 // pred_check
      _
    $region151: #{tpu_custom_call.1} parent=1 // pred_check_branch
      %280 = sbr.rel (0) target = $region153
    $region152: #{tpu_custom_call.1} parent=1 // pred_region
      %281 = dma.done [#allocation28], 512
    $region153: #{tpu_custom_call.1} parent=1 // pred_fallthru
      _
    %v282 = vld [vmem:[#allocation3] sm:$0xff]
    %v283 = vld [vmem:[#allocation3 + $0x8] sm:$0xff]
    %v284 = vld [vmem:[%s1] sm:$0x3f]
    %v285 = vld [vmem:[%s1 + $0x8] sm:$0x3f]
    %v286 = vld [vmem:[%s2] sm:$0xff]
    %v287 = vld [vmem:[%s2 + $0x8] sm:$0xff]
    %v288 = vld [vmem:[%s2 + $0x10] sm:$0xff]
    %v289 = vld [vmem:[%s2 + $0x18] sm:$0xff]
    %v290 = vld [vmem:[#allocation6] sm:$0x1]
    %v292 = vlaneseq
    %v293 = vshrl.u32 %v292, 7
    %v294 = vsub.s32 0, %v293
    %v295 = vrot.slane %v290, %v294
    %vm297 = vcmask 261120
    %v299 = vsel %vm297, %v282, 0
    %v302 = vsel %vm297, %v283, 0
    %304 = vmatprep.subr.mxu0 0.0
    %305 = vmatpush1.msra.mxu0 %v286
    %306 = vmatprep.subr.mxu0 0.0
    %307 = vmatpush1.msra.mxu0 %v287
    %308 = vmatprep.subr.mxu0 0.0
    %309 = vmatpush1.msra.mxu0 %v288
    %310 = vmatprep.subr.mxu0 0.0
    %311 = vmatpush1.msra.mxu0 %v289
    %312 = vmatprep.subr.mxu0 0.0
    %313 = vmatpush1.msra.mxu0 0.0
    %314 = vmatprep.subr.mxu0 0.0
    %315 = vmatpush1.msra.mxu0 0.0
    %316 = vmatprep.subr.mxu0 0.0
    %317 = vmatpush1.msra.mxu0 0.0
    %318 = vmatprep.subr.mxu0 0.0
    %319 = vmatpush1.msra.mxu0 0.0
    %320 = vmatprep.subr.mxu0 0.0
    %321 = vmatpush1.msra.mxu0 0.0
    %322 = vmatprep.subr.mxu0 0.0
    %323 = vmatpush1.msra.mxu0 0.0
    %324 = vmatprep.subr.mxu0 0.0
    %325 = vmatpush1.msra.mxu0 0.0
    %326 = vmatprep.subr.mxu0 0.0
    %327 = vmatpush1.msra.mxu0 0.0
    %328 = vmatprep.subr.mxu0 0.0
    %329 = vmatpush1.msra.mxu0 0.0
    %330 = vmatprep.subr.mxu0 0.0
    %331 = vmatpush1.msra.mxu0 0.0
    %332 = vmatprep.subr.mxu0 0.0
    %333 = vmatpush1.msra.mxu0 0.0
    %334 = vmatprep.subr.mxu0 0.0
    %335 = vmatpush1.msra.mxu0 0.0
    %336 = vmatprep.subr.mxu0 0.0
    %337 = vmatpush1.msra.mxu0 0.0
    %338 = vmatprep.subr.mxu0 0.0
    %339 = vmatpush1.msra.mxu0 0.0
    %340 = vmatprep.subr.mxu0 0.0
    %341 = vmatpush1.msra.mxu0 0.0
    %342 = vmatprep.subr.mxu0 0.0
    %343 = vmatpush1.msra.mxu0 0.0
    %344 = vmatprep.subr.mxu0 0.0
    %345 = vmatpush1.msra.mxu0 0.0
    %346 = vmatprep.subr.mxu0 0.0
    %347 = vmatpush1.msra.mxu0 0.0
    %348 = vmatprep.subr.mxu0 0.0
    %349 = vmatpush1.msra.mxu0 0.0
    %350 = vmatprep.subr.mxu0 0.0
    %351 = vmatpush1.msra.mxu0 0.0
    %352 = vmatprep.subr.mxu0 0.0
    %353 = vmatpush1.msra.mxu0 0.0
    %354 = vmatprep.subr.mxu0 0.0
    %355 = vmatpush1.msra.mxu0 0.0
    %356 = vmatprep.subr.mxu0 0.0
    %357 = vmatpush1.msra.mxu0 0.0
    %358 = vmatprep.subr.mxu0 0.0
    %359 = vmatpush1.msra.mxu0 0.0
    %360 = vmatprep.subr.mxu0 0.0
    %361 = vmatpush1.msra.mxu0 0.0
    %362 = vmatprep.subr.mxu0 0.0
    %363 = vmatpush1.msra.mxu0 0.0
    %364 = vmatprep.subr.mxu0 0.0
    %365 = vmatpush1.msra.mxu0 0.0
    %366 = vmatprep.subr.mxu0 0.0
    %367 = vmatpush1.msra.mxu0 0.0
    %368 = vmatprep.mubr.f32.mxu0 0.0
    %369 = vmatmul.mubr.f32.gmra.mrb[0].mxu0 %v299
    %v370 = vpop.f32.mrb[0].mxu0
    %v371 = vadd.f32 %v295, %v370
    %v372 = vpop.f32.mrb[0].mxu0
    %373 = vmatprep.mubr.f32.mxu0 0.0
    %374 = vmatmul.mubr.f32.gmra.mrb[0].mxu0 %v302
    %v375 = vpop.f32.mrb[0].mxu0
    %v376 = vadd.f32 %v295, %v375
    %v377 = vpop.f32.mrb[0].mxu0
    %378 = vdwg.mxu0
    %v379 = vld [vmem:[#allocation8] sm:$0xff]
    %v380 = vld [vmem:[#allocation8 + $0x8] sm:$0xff]
    %v381 = vld [vmem:[#allocation8 + $0x10] sm:$0xff]
    %v382 = vld [vmem:[#allocation8 + $0x18] sm:$0xff]
    %v383 = vld [vmem:[#allocation11] sm:$0x1]
    %v385 = vlaneseq
    %v386 = vshrl.u32 %v385, 7
    %v387 = vsub.s32 0, %v386
    %v388 = vrot.slane %v383, %v387
    %v391 = vcombine.high %v284, %v284
    %v393 = vunpack.c.l.s4 1983009808
    %v394 = vunpack.c.0.s8 %v393
    %v395 = vlaneseq
    %v396 = vshrl.u32 %v395, 7
    %v397 = vsub.s32 %v394, %v396
    %v398 = vrot.slane %v284, %v397
    %v400 = vunpack.c.l.s4 1983009808
    %v401 = vunpack.c.0.s8 %v400
    %v402 = vlaneseq
    %v403 = vshrl.u32 %v402, 7
    %v404 = vsub.s32 %v401, %v403
    %v405 = vrot.slane %v391, %v404
    %v406 = vcombine.high %v398, %v398
    %v407 = vcombine.high %v285, %v285
    %v409 = vunpack.c.l.s4 1983009808
    %v410 = vunpack.c.0.s8 %v409
    %v411 = vlaneseq
    %v412 = vshrl.u32 %v411, 7
    %v413 = vsub.s32 %v410, %v412
    %v414 = vrot.slane %v285, %v413
    %v416 = vunpack.c.l.s4 1983009808
    %v417 = vunpack.c.0.s8 %v416
    %v418 = vlaneseq
    %v419 = vshrl.u32 %v418, 7
    %v420 = vsub.s32 %v417, %v419
    %v421 = vrot.slane %v407, %v420
    %v422 = vcombine.high %v414, %v414
    %v423 = vcombine.high %v388, %v388
    %v425 = vunpack.c.l.s4 1983009808
    %v426 = vunpack.c.0.s8 %v425
    %v427 = vlaneseq
    %v428 = vshrl.u32 %v427, 7
    %v429 = vsub.s32 %v426, %v428
    %v430 = vrot.slane %v388, %v429
    %v432 = vunpack.c.l.s4 1983009808
    %v433 = vunpack.c.0.s8 %v432
    %v434 = vlaneseq
    %v435 = vshrl.u32 %v434, 7
    %v436 = vsub.s32 %v433, %v435
    %v437 = vrot.slane %v423, %v436
    %v438 = vcombine.high %v430, %v430
    %v439 = vcombine.low %v398, %v406
    %v440 = vcombine.low %v405, %v414
    %v442 = vunpack.c.l.s4 1983009808
    %v443 = vunpack.c.0.s8 %v442
    %v444 = vlaneseq
    %v445 = vshrl.u32 %v444, 7
    %v446 = vsub.s32 %v443, %v445
    %v447 = vrot.slane %v439, %v446
    %v449 = vunpack.c.l.s4 1983009808
    %v450 = vunpack.c.0.s8 %v449
    %v451 = vlaneseq
    %v452 = vshrl.u32 %v451, 7
    %v453 = vsub.s32 %v450, %v452
    %v454 = vrot.slane %v440, %v453
    %v455 = vcombine.low %v447, %v454
    %v456 = vcombine.low %v422, %v421
    %v458 = vunpack.c.l.s4 1983009808
    %v459 = vunpack.c.0.s8 %v458
    %v460 = vlaneseq
    %v461 = vshrl.u32 %v460, 7
    %v462 = vsub.s32 %v459, %v461
    %v463 = vrot.slane %v456, %v462
    %v464 = vcombine.low %v430, %v438
    %v465 = vcombine.low %v437, %v430
    %v467 = vunpack.c.l.s4 1983009808
    %v468 = vunpack.c.0.s8 %v467
    %v469 = vlaneseq
    %v470 = vshrl.u32 %v469, 7
    %v471 = vsub.s32 %v468, %v470
    %v472 = vrot.slane %v464, %v471
    %v474 = vunpack.c.l.s4 1983009808
    %v475 = vunpack.c.0.s8 %v474
    %v476 = vlaneseq
    %v477 = vshrl.u32 %v476, 7
    %v478 = vsub.s32 %v475, %v477
    %v479 = vrot.slane %v465, %v478
    %v480 = vcombine.low %v472, %v479
    %v481 = vcombine.low %v438, %v437
    %v483 = vunpack.c.l.s4 1983009808
    %v484 = vunpack.c.0.s8 %v483
    %v485 = vlaneseq
    %v486 = vshrl.u32 %v485, 7
    %v487 = vsub.s32 %v484, %v486
    %v488 = vrot.slane %v481, %v487
    %v491 = vsel %vm297, %v455, 0
    %v493 = vsel %vm297, %v463, 0
    %495 = vmatprep.subr.mxu0 0.0
    %496 = vmatpush1.msra.mxu0 %v379
    %497 = vmatprep.subr.mxu0 0.0
    %498 = vmatpush1.msra.mxu0 %v380
    %499 = vmatprep.subr.mxu0 0.0
    %500 = vmatpush1.msra.mxu0 %v381
    %501 = vmatprep.subr.mxu0 0.0
    %502 = vmatpush1.msra.mxu0 %v382
    %503 = vmatprep.subr.mxu0 0.0
    %504 = vmatpush1.msra.mxu0 0.0
    %505 = vmatprep.subr.mxu0 0.0
    %506 = vmatpush1.msra.mxu0 0.0
    %507 = vmatprep.subr.mxu0 0.0
    %508 = vmatpush1.msra.mxu0 0.0
    %509 = vmatprep.subr.mxu0 0.0
    %510 = vmatpush1.msra.mxu0 0.0
    %511 = vmatprep.subr.mxu0 0.0
    %512 = vmatpush1.msra.mxu0 0.0
    %513 = vmatprep.subr.mxu0 0.0
    %514 = vmatpush1.msra.mxu0 0.0
    %515 = vmatprep.subr.mxu0 0.0
    %516 = vmatpush1.msra.mxu0 0.0
    %517 = vmatprep.subr.mxu0 0.0
    %518 = vmatpush1.msra.mxu0 0.0
    %519 = vmatprep.subr.mxu0 0.0
    %520 = vmatpush1.msra.mxu0 0.0
    %521 = vmatprep.subr.mxu0 0.0
    %522 = vmatpush1.msra.mxu0 0.0
    %523 = vmatprep.subr.mxu0 0.0
    %524 = vmatpush1.msra.mxu0 0.0
    %525 = vmatprep.subr.mxu0 0.0
    %526 = vmatpush1.msra.mxu0 0.0
    %527 = vmatprep.subr.mxu0 0.0
    %528 = vmatpush1.msra.mxu0 0.0
    %529 = vmatprep.subr.mxu0 0.0
    %530 = vmatpush1.msra.mxu0 0.0
    %531 = vmatprep.subr.mxu0 0.0
    %532 = vmatpush1.msra.mxu0 0.0
    %533 = vmatprep.subr.mxu0 0.0
    %534 = vmatpush1.msra.mxu0 0.0
    %535 = vmatprep.subr.mxu0 0.0
    %536 = vmatpush1.msra.mxu0 0.0
    %537 = vmatprep.subr.mxu0 0.0
    %538 = vmatpush1.msra.mxu0 0.0
    %539 = vmatprep.subr.mxu0 0.0
    %540 = vmatpush1.msra.mxu0 0.0
    %541 = vmatprep.subr.mxu0 0.0
    %542 = vmatpush1.msra.mxu0 0.0
    %543 = vmatprep.subr.mxu0 0.0
    %544 = vmatpush1.msra.mxu0 0.0
    %545 = vmatprep.subr.mxu0 0.0
    %546 = vmatpush1.msra.mxu0 0.0
    %547 = vmatprep.subr.mxu0 0.0
    %548 = vmatpush1.msra.mxu0 0.0
    %549 = vmatprep.subr.mxu0 0.0
    %550 = vmatpush1.msra.mxu0 0.0
    %551 = vmatprep.subr.mxu0 0.0
    %552 = vmatpush1.msra.mxu0 0.0
    %553 = vmatprep.subr.mxu0 0.0
    %554 = vmatpush1.msra.mxu0 0.0
    %555 = vmatprep.subr.mxu0 0.0
    %556 = vmatpush1.msra.mxu0 0.0
    %557 = vmatprep.subr.mxu0 0.0
    %558 = vmatpush1.msra.mxu0 0.0
    %559 = vmatprep.mubr.f32.mxu0 0.0
    %560 = vmatmul.mubr.f32.gmra.mrb[0].mxu0 %v491
    %v561 = vpop.f32.mrb[0].mxu0
    %v562 = vadd.f32 %v480, %v561
    %v563 = vpop.f32.mrb[0].mxu0
    %564 = vmatprep.mubr.f32.mxu0 0.0
    %565 = vmatmul.mubr.f32.gmra.mrb[0].mxu0 %v493
    %v566 = vpop.f32.mrb[0].mxu0
    %v567 = vadd.f32 %v488, %v566
    %v568 = vpop.f32.mrb[0].mxu0
    %569 = vdwg.mxu0
    %v572 = vcombine.high %v562, %v562
    %v574 = vunpack.c.l.s4 1983009808
    %v575 = vunpack.c.0.s8 %v574
    %v576 = vlaneseq
    %v577 = vshrl.u32 %v576, 7
    %v578 = vsub.s32 %v575, %v577
    %v579 = vrot.slane %v562, %v578
    %v581 = vunpack.c.l.s4 1983009808
    %v582 = vunpack.c.0.s8 %v581
    %v583 = vlaneseq
    %v584 = vshrl.u32 %v583, 7
    %v585 = vsub.s32 %v582, %v584
    %v586 = vrot.slane %v572, %v585
    %v587 = vcombine.high %v579, %v579
    %v588 = vcombine.high %v586, %v586
    %v590 = vunpack.c.l.s4 1983009808
    %v591 = vunpack.c.0.s8 %v590
    %v592 = vlaneseq
    %v593 = vshrl.u32 %v592, 7
    %v594 = vsub.s32 %v591, %v593
    %v595 = vrot.slane %v567, %v594
    %v596 = vcombine.high %v595, %v595
    %v603 = vld [vmem:[#allocation9] sm:$0xff]
    %v604 = vld [vmem:[#allocation9 + $0x8] sm:$0xff]
    %v605 = vld [vmem:[#allocation9 + $0x10] sm:$0xff]
    %v606 = vld [vmem:[#allocation9 + $0x18] sm:$0xff]
    %v608 = vsel %vm297, 0.0, 0
    %610 = vmatprep.subr.mxu0 0.0
    %611 = vmatpush1.msra.mxu0 %v603
    %612 = vmatprep.subr.mxu0 0.0
    %613 = vmatpush1.msra.mxu0 %v604
    %614 = vmatprep.subr.mxu0 0.0
    %615 = vmatpush1.msra.mxu0 %v605
    %616 = vmatprep.subr.mxu0 0.0
    %617 = vmatpush1.msra.mxu0 %v606
    %618 = vmatprep.subr.mxu0 0.0
    %619 = vmatpush1.msra.mxu0 0.0
    %620 = vmatprep.subr.mxu0 0.0
    %621 = vmatpush1.msra.mxu0 0.0
    %622 = vmatprep.subr.mxu0 0.0
    %623 = vmatpush1.msra.mxu0 0.0
    %624 = vmatprep.subr.mxu0 0.0
    %625 = vmatpush1.msra.mxu0 0.0
    %626 = vmatprep.subr.mxu0 0.0
    %627 = vmatpush1.msra.mxu0 0.0
    %628 = vmatprep.subr.mxu0 0.0
    %629 = vmatpush1.msra.mxu0 0.0
    %630 = vmatprep.subr.mxu0 0.0
    %631 = vmatpush1.msra.mxu0 0.0
    %632 = vmatprep.subr.mxu0 0.0
    %633 = vmatpush1.msra.mxu0 0.0
    %634 = vmatprep.subr.mxu0 0.0
    %635 = vmatpush1.msra.mxu0 0.0
    %636 = vmatprep.subr.mxu0 0.0
    %637 = vmatpush1.msra.mxu0 0.0
    %638 = vmatprep.subr.mxu0 0.0
    %639 = vmatpush1.msra.mxu0 0.0
    %640 = vmatprep.subr.mxu0 0.0
    %641 = vmatpush1.msra.mxu0 0.0
    %642 = vmatprep.subr.mxu0 0.0
    %643 = vmatpush1.msra.mxu0 0.0
    %644 = vmatprep.subr.mxu0 0.0
    %645 = vmatpush1.msra.mxu0 0.0
    %646 = vmatprep.subr.mxu0 0.0
    %647 = vmatpush1.msra.mxu0 0.0
    %648 = vmatprep.subr.mxu0 0.0
    %649 = vmatpush1.msra.mxu0 0.0
    %650 = vmatprep.subr.mxu0 0.0
    %651 = vmatpush1.msra.mxu0 0.0
    %652 = vmatprep.subr.mxu0 0.0
    %653 = vmatpush1.msra.mxu0 0.0
    %654 = vmatprep.subr.mxu0 0.0
    %655 = vmatpush1.msra.mxu0 0.0
    %656 = vmatprep.subr.mxu0 0.0
    %657 = vmatpush1.msra.mxu0 0.0
    %658 = vmatprep.subr.mxu0 0.0
    %659 = vmatpush1.msra.mxu0 0.0
    %660 = vmatprep.subr.mxu0 0.0
    %661 = vmatpush1.msra.mxu0 0.0
    %662 = vmatprep.subr.mxu0 0.0
    %663 = vmatpush1.msra.mxu0 0.0
    %664 = vmatprep.subr.mxu0 0.0
    %665 = vmatpush1.msra.mxu0 0.0
    %666 = vmatprep.subr.mxu0 0.0
    %667 = vmatpush1.msra.mxu0 0.0
    %668 = vmatprep.subr.mxu0 0.0
    %669 = vmatpush1.msra.mxu0 0.0
    %670 = vmatprep.subr.mxu0 0.0
    %671 = vmatpush1.msra.mxu0 0.0
    %672 = vmatprep.subr.mxu0 0.0
    %673 = vmatpush1.msra.mxu0 0.0
    %674 = vmatprep.mubr.f32.mxu0 0.0
    %675 = vmatmul.mubr.f32.gmra.mrb[0].mxu0 %v608
    %v676 = vpop.f32.mrb[0].mxu0
    %v677 = vadd.f32 0.0, %v676
    %v678 = vpop.f32.mrb[0].mxu0
    %679 = vdwg.mxu0
    %v682 = vunpack.c.l.s4 1983009808
    %v683 = vunpack.c.0.s8 %v682
    %v684 = vlaneseq
    %v685 = vshrl.u32 %v684, 7
    %v686 = vsub.s32 %v683, %v685
    %v687 = vrot.slane %v677, %v686
    %v688 = vrot.slane %v687, 1
    %v691 = vadd.f32 %v579, %v687
    %v692 = vadd.f32 %v588, %v688
    %v693 = vxor.u32 %v691, 2147483648
    %v694 = vxor.u32 %v692, 2147483648
    %v695 = vmul.f32 %v693, 1.442695
    %v696 = vpow.pop %v695
    %v697 = vmul.f32 %v694, 1.442695
    %v698 = vpow.pop %v697
    %v699 = vadd.f32 %v696, 1.0
    %v700 = vadd.f32 %v698, 1.0
    %v701 = vrcp.pop %v699
    %v702 = vmul.f32 1.0, %v701
    %v703 = vrcp.pop %v700
    %v704 = vmul.f32 1.0, %v703
    %v705 = vtanh.pop %v691
    %v706 = vtanh.pop %v692
    %v707 = vmul.f32 %v702, 0.0
    %v708 = vmul.f32 %v704, 0.0
    %711 = vrot.lane.b32.xlu0 %v705, 64
    %v712 = vpop.permute.xlu0 %711
    %713 = vrot.lane.b32.xlu0 %v706, 64
    %v714 = vpop.permute.xlu0 %713
    %v717 = vmul.f32 %v702, %v712
    %v718 = vmul.f32 %v704, %v714
    %721 = vrot.lane.b32.xlu0 %v717, 32
    %v722 = vpop.permute.xlu0 %721
    %723 = vrot.lane.b32.xlu0 %v718, 32
    %v724 = vpop.permute.xlu0 %723
    %v727 = vadd.f32 %v707, %v722
    %v728 = vadd.f32 %v708, %v724
    %v729 = vtanh.pop %v727
    %v730 = vtanh.pop %v728
    %733 = vrot.lane.b32.xlu0 %v729, 64
    %v734 = vpop.permute.xlu0 %733
    %735 = vrot.lane.b32.xlu0 %v730, 64
    %v736 = vpop.permute.xlu0 %735
    %v739 = vmul.f32 %v702, %v734
    %v740 = vmul.f32 %v704, %v736
    %v743 = vlaneseq
    %v744 = vshrl.u32 %v743, 7
    %v745 = vsub.s32 0, %v744
    %v746 = vrot.slane %v739, %v745
    %v747 = vlaneseq
    %v748 = vshrl.u32 %v747, 7
    %v749 = vsub.s32 0, %v748
    %v750 = vrot.slane %v740, %v749
    %vm751 = vcmask 1041409
    %v752 = vsel %vm751, %v750, %v746
    %753 = vrot.lane.b32.xlu0 %v752, 32
    %v754 = vpop.permute.xlu0 %753
    %v755 = vsel %vm297, %v754, 0
    %757 = vmatprep.subr.mxu0 0.0
    %758 = vmatpush1.msra.mxu0 %v603
    %759 = vmatprep.subr.mxu0 0.0
    %760 = vmatpush1.msra.mxu0 %v604
    %761 = vmatprep.subr.mxu0 0.0
    %762 = vmatpush1.msra.mxu0 %v605
    %763 = vmatprep.subr.mxu0 0.0
    %764 = vmatpush1.msra.mxu0 %v606
    %765 = vmatprep.subr.mxu0 0.0
    %766 = vmatpush1.msra.mxu0 0.0
    %767 = vmatprep.subr.mxu0 0.0
    %768 = vmatpush1.msra.mxu0 0.0
    %769 = vmatprep.subr.mxu0 0.0
    %770 = vmatpush1.msra.mxu0 0.0
    %771 = vmatprep.subr.mxu0 0.0
    %772 = vmatpush1.msra.mxu0 0.0
    %773 = vmatprep.subr.mxu0 0.0
    %774 = vmatpush1.msra.mxu0 0.0
    %775 = vmatprep.subr.mxu0 0.0
    %776 = vmatpush1.msra.mxu0 0.0
    %777 = vmatprep.subr.mxu0 0.0
    %778 = vmatpush1.msra.mxu0 0.0
    %779 = vmatprep.subr.mxu0 0.0
    %780 = vmatpush1.msra.mxu0 0.0
    %781 = vmatprep.subr.mxu0 0.0
    %782 = vmatpush1.msra.mxu0 0.0
    %783 = vmatprep.subr.mxu0 0.0
    %784 = vmatpush1.msra.mxu0 0.0
    %785 = vmatprep.subr.mxu0 0.0
    %786 = vmatpush1.msra.mxu0 0.0
    %787 = vmatprep.subr.mxu0 0.0
    %788 = vmatpush1.msra.mxu0 0.0
    %789 = vmatprep.subr.mxu0 0.0
    %790 = vmatpush1.msra.mxu0 0.0
    %791 = vmatprep.subr.mxu0 0.0
    %792 = vmatpush1.msra.mxu0 0.0
    %793 = vmatprep.subr.mxu0 0.0
    %794 = vmatpush1.msra.mxu0 0.0
    %795 = vmatprep.subr.mxu0 0.0
    %796 = vmatpush1.msra.mxu0 0.0
    %797 = vmatprep.subr.mxu0 0.0
    %798 = vmatpush1.msra.mxu0 0.0
    %799 = vmatprep.subr.mxu0 0.0
    %800 = vmatpush1.msra.mxu0 0.0
    %801 = vmatprep.subr.mxu0 0.0
    %802 = vmatpush1.msra.mxu0 0.0
    %803 = vmatprep.subr.mxu0 0.0
    %804 = vmatpush1.msra.mxu0 0.0
    %805 = vmatprep.subr.mxu0 0.0
    %806 = vmatpush1.msra.mxu0 0.0
    %807 = vmatprep.subr.mxu0 0.0
    %808 = vmatpush1.msra.mxu0 0.0
    %809 = vmatprep.subr.mxu0 0.0
    %810 = vmatpush1.msra.mxu0 0.0
    %811 = vmatprep.subr.mxu0 0.0
    %812 = vmatpush1.msra.mxu0 0.0
    %813 = vmatprep.subr.mxu0 0.0
    %814 = vmatpush1.msra.mxu0 0.0
    %815 = vmatprep.subr.mxu0 0.0
    %816 = vmatpush1.msra.mxu0 0.0
    %817 = vmatprep.subr.mxu0 0.0
    %818 = vmatpush1.msra.mxu0 0.0
    %819 = vmatprep.subr.mxu0 0.0
    %820 = vmatpush1.msra.mxu0 0.0
    %821 = vmatprep.mubr.f32.mxu0 0.0
    %822 = vmatmul.mubr.f32.gmra.mrb[0].mxu0 %v755
    %v823 = vpop.f32.mrb[0].mxu0
    %v824 = vadd.f32 0.0, %v823
    %v825 = vpop.f32.mrb[0].mxu0
    %826 = vdwg.mxu0
    %v829 = vunpack.c.l.s4 1983009808
    %v830 = vunpack.c.0.s8 %v829
    %v831 = vlaneseq
    %v832 = vshrl.u32 %v831, 7
    %v833 = vsub.s32 %v830, %v832
    %v834 = vrot.slane %v824, %v833
    %v835 = vrot.slane %v834, 7
    %v838 = vadd.f32 %v579, %v835
    %v839 = vadd.f32 %v588, %v834
    %v840 = vxor.u32 %v838, 2147483648
    %v841 = vxor.u32 %v839, 2147483648
    %v842 = vmul.f32 %v840, 1.442695
    %v843 = vpow.pop %v842
    %v844 = vmul.f32 %v841, 1.442695
    %v845 = vpow.pop %v844
    %v846 = vadd.f32 %v843, 1.0
    %v847 = vadd.f32 %v845, 1.0
    %v848 = vrcp.pop %v846
    %v849 = vmul.f32 1.0, %v848
    %v850 = vrcp.pop %v847
    %v851 = vmul.f32 1.0, %v850
    %v852 = vtanh.pop %v838
    %v853 = vtanh.pop %v839
    %v856 = vrot.slane %v727, 7
    %v857 = vrot.slane %v728, 7
    %v860 = vmul.f32 %v849, %v856
    %v861 = vmul.f32 %v851, %v857
    %864 = vrot.lane.b32.xlu0 %v852, 64
    %v865 = vpop.permute.xlu0 %864
    %866 = vrot.lane.b32.xlu0 %v853, 64
    %v867 = vpop.permute.xlu0 %866
    %v870 = vmul.f32 %v849, %v865
    %v871 = vmul.f32 %v851, %v867
    %874 = vrot.lane.b32.xlu0 %v870, 32
    %v875 = vpop.permute.xlu0 %874
    %876 = vrot.lane.b32.xlu0 %v871, 32
    %v877 = vpop.permute.xlu0 %876
    %v880 = vadd.f32 %v860, %v875
    %v881 = vadd.f32 %v861, %v877
    %v882 = vtanh.pop %v880
    %v883 = vtanh.pop %v881
    %886 = vrot.lane.b32.xlu0 %v882, 64
    %v887 = vpop.permute.xlu0 %886
    %888 = vrot.lane.b32.xlu0 %v883, 64
    %v889 = vpop.permute.xlu0 %888
    %v892 = vmul.f32 %v849, %v887
    %v893 = vmul.f32 %v851, %v889
    %v896 = vlaneseq
    %v897 = vshrl.u32 %v896, 7
    %v898 = vsub.s32 1, %v897
    %v899 = vrot.slane %v892, %v898
    %v900 = vlaneseq
    %v901 = vshrl.u32 %v900, 7
    %v902 = vsub.s32 1, %v901
    %v903 = vrot.slane %v893, %v902
    %v904 = vsel %vm751, %v903, %v899
    %905 = vrot.lane.b32.xlu0 %v904, 32
    %v906 = vpop.permute.xlu0 %905
    %v907 = vsel %vm297, %v906, 0
    %909 = vmatprep.subr.mxu0 0.0
    %910 = vmatpush1.msra.mxu0 %v603
    %911 = vmatprep.subr.mxu0 0.0
    %912 = vmatpush1.msra.mxu0 %v604
    %913 = vmatprep.subr.mxu0 0.0
    %914 = vmatpush1.msra.mxu0 %v605
    %915 = vmatprep.subr.mxu0 0.0
    %916 = vmatpush1.msra.mxu0 %v606
    %917 = vmatprep.subr.mxu0 0.0
    %918 = vmatpush1.msra.mxu0 0.0
    %919 = vmatprep.subr.mxu0 0.0
    %920 = vmatpush1.msra.mxu0 0.0
    %921 = vmatprep.subr.mxu0 0.0
    %922 = vmatpush1.msra.mxu0 0.0
    %923 = vmatprep.subr.mxu0 0.0
    %924 = vmatpush1.msra.mxu0 0.0
    %925 = vmatprep.subr.mxu0 0.0
    %926 = vmatpush1.msra.mxu0 0.0
    %927 = vmatprep.subr.mxu0 0.0
    %928 = vmatpush1.msra.mxu0 0.0
    %929 = vmatprep.subr.mxu0 0.0
    %930 = vmatpush1.msra.mxu0 0.0
    %931 = vmatprep.subr.mxu0 0.0
    %932 = vmatpush1.msra.mxu0 0.0
    %933 = vmatprep.subr.mxu0 0.0
    %934 = vmatpush1.msra.mxu0 0.0
    %935 = vmatprep.subr.mxu0 0.0
    %936 = vmatpush1.msra.mxu0 0.0
    %937 = vmatprep.subr.mxu0 0.0
    %938 = vmatpush1.msra.mxu0 0.0
    %939 = vmatprep.subr.mxu0 0.0
    %940 = vmatpush1.msra.mxu0 0.0
    %941 = vmatprep.subr.mxu0 0.0
    %942 = vmatpush1.msra.mxu0 0.0
    %943 = vmatprep.subr.mxu0 0.0
    %944 = vmatpush1.msra.mxu0 0.0
    %945 = vmatprep.subr.mxu0 0.0
    %946 = vmatpush1.msra.mxu0 0.0
    %947 = vmatprep.subr.mxu0 0.0
    %948 = vmatpush1.msra.mxu0 0.0
    %949 = vmatprep.subr.mxu0 0.0
    %950 = vmatpush1.msra.mxu0 0.0
    %951 = vmatprep.subr.mxu0 0.0
    %952 = vmatpush1.msra.mxu0 0.0
    %953 = vmatprep.subr.mxu0 0.0
    %954 = vmatpush1.msra.mxu0 0.0
    %955 = vmatprep.subr.mxu0 0.0
    %956 = vmatpush1.msra.mxu0 0.0
    %957 = vmatprep.subr.mxu0 0.0
    %958 = vmatpush1.msra.mxu0 0.0
    %959 = vmatprep.subr.mxu0 0.0
    %960 = vmatpush1.msra.mxu0 0.0
    %961 = vmatprep.subr.mxu0 0.0
    %962 = vmatpush1.msra.mxu0 0.0
    %963 = vmatprep.subr.mxu0 0.0
    %964 = vmatpush1.msra.mxu0 0.0
    %965 = vmatprep.subr.mxu0 0.0
    %966 = vmatpush1.msra.mxu0 0.0
    %967 = vmatprep.subr.mxu0 0.0
    %968 = vmatpush1.msra.mxu0 0.0
    %969 = vmatprep.subr.mxu0 0.0
    %970 = vmatpush1.msra.mxu0 0.0
    %971 = vmatprep.subr.mxu0 0.0
    %972 = vmatpush1.msra.mxu0 0.0
    %973 = vmatprep.mubr.f32.mxu0 0.0
    %974 = vmatmul.mubr.f32.gmra.mrb[0].mxu0 %v907
    %v975 = vpop.f32.mrb[0].mxu0
    %v976 = vadd.f32 0.0, %v975
    %v977 = vpop.f32.mrb[0].mxu0
    %978 = vdwg.mxu0
    %v981 = vunpack.c.l.s4 1983009808
    %v982 = vunpack.c.0.s8 %v981
    %v983 = vlaneseq
    %v984 = vshrl.u32 %v983, 7
    %v985 = vsub.s32 %v982, %v984
    %v986 = vrot.slane %v976, %v985
    %v987 = vrot.slane %v986, 1
    %v990 = vadd.f32 %v587, %v986
    %v991 = vadd.f32 %v595, %v987
    %v992 = vxor.u32 %v990, 2147483648
    %v993 = vxor.u32 %v991, 2147483648
    %v994 = vmul.f32 %v992, 1.442695
    %v995 = vpow.pop %v994
    %v996 = vmul.f32 %v993, 1.442695
    %v997 = vpow.pop %v996
    %v998 = vadd.f32 %v995, 1.0
    %v999 = vadd.f32 %v997, 1.0
    %v1000 = vrcp.pop %v998
    %v1001 = vmul.f32 1.0, %v1000
    %v1002 = vrcp.pop %v999
    %v1003 = vmul.f32 1.0, %v1002
    %v1004 = vtanh.pop %v990
    %v1005 = vtanh.pop %v991
    %v1008 = vrot.slane %v880, 7
    %v1009 = vrot.slane %v1008, 2
    %v1010 = vrot.slane %v881, 7
    %v1011 = vrot.slane %v1010, 2
    %v1014 = vmul.f32 %v1001, %v1009
    %v1015 = vmul.f32 %v1003, %v1011
    %1018 = vrot.lane.b32.xlu0 %v1004, 64
    %v1019 = vpop.permute.xlu0 %1018
    %1020 = vrot.lane.b32.xlu0 %v1005, 64
    %v1021 = vpop.permute.xlu0 %1020
    %v1024 = vmul.f32 %v1001, %v1019
    %v1025 = vmul.f32 %v1003, %v1021
    %1028 = vrot.lane.b32.xlu0 %v1024, 32
    %v1029 = vpop.permute.xlu0 %1028
    %1030 = vrot.lane.b32.xlu0 %v1025, 32
    %v1031 = vpop.permute.xlu0 %1030
    %v1034 = vadd.f32 %v1014, %v1029
    %v1035 = vadd.f32 %v1015, %v1031
    %v1036 = vtanh.pop %v1034
    %v1037 = vtanh.pop %v1035
    %1040 = vrot.lane.b32.xlu0 %v1036, 64
    %v1041 = vpop.permute.xlu0 %1040
    %1042 = vrot.lane.b32.xlu0 %v1037, 64
    %v1043 = vpop.permute.xlu0 %1042
    %v1046 = vmul.f32 %v1001, %v1041
    %v1047 = vmul.f32 %v1003, %v1043
    %v1050 = vlaneseq
    %v1051 = vshrl.u32 %v1050, 7
    %v1052 = vsub.s32 0, %v1051
    %v1053 = vrot.slane %v1046, %v1052
    %v1054 = vlaneseq
    %v1055 = vshrl.u32 %v1054, 7
    %v1056 = vsub.s32 0, %v1055
    %v1057 = vrot.slane %v1047, %v1056
    %v1058 = vsel %vm751, %v1057, %v1053
    %1059 = vrot.lane.b32.xlu0 %v1058, 32
    %v1060 = vpop.permute.xlu0 %1059
    %v1061 = vsel %vm297, %v1060, 0
    %1063 = vmatprep.subr.mxu0 0.0
    %1064 = vmatpush1.msra.mxu0 %v603
    %1065 = vmatprep.subr.mxu0 0.0
    %1066 = vmatpush1.msra.mxu0 %v604
    %1067 = vmatprep.subr.mxu0 0.0
    %1068 = vmatpush1.msra.mxu0 %v605
    %1069 = vmatprep.subr.mxu0 0.0
    %1070 = vmatpush1.msra.mxu0 %v606
    %1071 = vmatprep.subr.mxu0 0.0
    %1072 = vmatpush1.msra.mxu0 0.0
    %1073 = vmatprep.subr.mxu0 0.0
    %1074 = vmatpush1.msra.mxu0 0.0
    %1075 = vmatprep.subr.mxu0 0.0
    %1076 = vmatpush1.msra.mxu0 0.0
    %1077 = vmatprep.subr.mxu0 0.0
    %1078 = vmatpush1.msra.mxu0 0.0
    %1079 = vmatprep.subr.mxu0 0.0
    %1080 = vmatpush1.msra.mxu0 0.0
    %1081 = vmatprep.subr.mxu0 0.0
    %1082 = vmatpush1.msra.mxu0 0.0
    %1083 = vmatprep.subr.mxu0 0.0
    %1084 = vmatpush1.msra.mxu0 0.0
    %1085 = vmatprep.subr.mxu0 0.0
    %1086 = vmatpush1.msra.mxu0 0.0
    %1087 = vmatprep.subr.mxu0 0.0
    %1088 = vmatpush1.msra.mxu0 0.0
    %1089 = vmatprep.subr.mxu0 0.0
    %1090 = vmatpush1.msra.mxu0 0.0
    %1091 = vmatprep.subr.mxu0 0.0
    %1092 = vmatpush1.msra.mxu0 0.0
    %1093 = vmatprep.subr.mxu0 0.0
    %1094 = vmatpush1.msra.mxu0 0.0
    %1095 = vmatprep.subr.mxu0 0.0
    %1096 = vmatpush1.msra.mxu0 0.0
    %1097 = vmatprep.subr.mxu0 0.0
    %1098 = vmatpush1.msra.mxu0 0.0
    %1099 = vmatprep.subr.mxu0 0.0
    %1100 = vmatpush1.msra.mxu0 0.0
    %1101 = vmatprep.subr.mxu0 0.0
    %1102 = vmatpush1.msra.mxu0 0.0
    %1103 = vmatprep.subr.mxu0 0.0
    %1104 = vmatpush1.msra.mxu0 0.0
    %1105 = vmatprep.subr.mxu0 0.0
    %1106 = vmatpush1.msra.mxu0 0.0
    %1107 = vmatprep.subr.mxu0 0.0
    %1108 = vmatpush1.msra.mxu0 0.0
    %1109 = vmatprep.subr.mxu0 0.0
    %1110 = vmatpush1.msra.mxu0 0.0
    %1111 = vmatprep.subr.mxu0 0.0
    %1112 = vmatpush1.msra.mxu0 0.0
    %1113 = vmatprep.subr.mxu0 0.0
    %1114 = vmatpush1.msra.mxu0 0.0
    %1115 = vmatprep.subr.mxu0 0.0
    %1116 = vmatpush1.msra.mxu0 0.0
    %1117 = vmatprep.subr.mxu0 0.0
    %1118 = vmatpush1.msra.mxu0 0.0
    %1119 = vmatprep.subr.mxu0 0.0
    %1120 = vmatpush1.msra.mxu0 0.0
    %1121 = vmatprep.subr.mxu0 0.0
    %1122 = vmatpush1.msra.mxu0 0.0
    %1123 = vmatprep.subr.mxu0 0.0
    %1124 = vmatpush1.msra.mxu0 0.0
    %1125 = vmatprep.subr.mxu0 0.0
    %1126 = vmatpush1.msra.mxu0 0.0
    %1127 = vmatprep.mubr.f32.mxu0 0.0
    %1128 = vmatmul.mubr.f32.gmra.mrb[0].mxu0 %v1061
    %v1129 = vpop.f32.mrb[0].mxu0
    %v1130 = vadd.f32 0.0, %v1129
    %v1131 = vpop.f32.mrb[0].mxu0
    %1132 = vdwg.mxu0
    %v1135 = vunpack.c.l.s4 1983009808
    %v1136 = vunpack.c.0.s8 %v1135
    %v1137 = vlaneseq
    %v1138 = vshrl.u32 %v1137, 7
    %v1139 = vsub.s32 %v1136, %v1138
    %v1140 = vrot.slane %v1130, %v1139
    %v1141 = vrot.slane %v1140, 7
    %v1144 = vadd.f32 %v587, %v1141
    %v1145 = vadd.f32 %v595, %v1140
    %v1146 = vxor.u32 %v1144, 2147483648
    %v1147 = vxor.u32 %v1145, 2147483648
    %v1148 = vmul.f32 %v1146, 1.442695
    %v1149 = vpow.pop %v1148
    %v1150 = vmul.f32 %v1147, 1.442695
    %v1151 = vpow.pop %v1150
    %v1152 = vadd.f32 %v1149, 1.0
    %v1153 = vadd.f32 %v1151, 1.0
    %v1154 = vrcp.pop %v1152
    %v1155 = vmul.f32 1.0, %v1154
    %v1156 = vrcp.pop %v1153
    %v1157 = vmul.f32 1.0, %v1156
    %v1158 = vtanh.pop %v1144
    %v1159 = vtanh.pop %v1145
    %v1162 = vrot.slane %v1034, 7
    %v1163 = vrot.slane %v1035, 7
    %v1166 = vmul.f32 %v1155, %v1162
    %v1167 = vmul.f32 %v1157, %v1163
    %1170 = vrot.lane.b32.xlu0 %v1158, 64
    %v1171 = vpop.permute.xlu0 %1170
    %1172 = vrot.lane.b32.xlu0 %v1159, 64
    %v1173 = vpop.permute.xlu0 %1172
    %v1176 = vmul.f32 %v1155, %v1171
    %v1177 = vmul.f32 %v1157, %v1173
    %1180 = vrot.lane.b32.xlu0 %v1176, 32
    %v1181 = vpop.permute.xlu0 %1180
    %1182 = vrot.lane.b32.xlu0 %v1177, 32
    %v1183 = vpop.permute.xlu0 %1182
    %v1186 = vadd.f32 %v1166, %v1181
    %v1187 = vadd.f32 %v1167, %v1183
    %v1188 = vtanh.pop %v1186
    %v1189 = vtanh.pop %v1187
    %1192 = vrot.lane.b32.xlu0 %v1188, 64
    %v1193 = vpop.permute.xlu0 %1192
    %1194 = vrot.lane.b32.xlu0 %v1189, 64
    %v1195 = vpop.permute.xlu0 %1194
    %v1198 = vmul.f32 %v1155, %v1193
    %v1199 = vmul.f32 %v1157, %v1195
    %v1202 = vlaneseq
    %v1203 = vshrl.u32 %v1202, 7
    %v1204 = vsub.s32 1, %v1203
    %v1205 = vrot.slane %v1198, %v1204
    %v1206 = vlaneseq
    %v1207 = vshrl.u32 %v1206, 7
    %v1208 = vsub.s32 1, %v1207
    %v1209 = vrot.slane %v1199, %v1208
    %v1210 = vsel %vm751, %v1209, %v1205
    %1211 = vrot.lane.b32.xlu0 %v1210, 32
    %v1212 = vpop.permute.xlu0 %1211
    %v1213 = vsel %vm297, %v1212, 0
    %1215 = vmatprep.subr.mxu0 0.0
    %1216 = vmatpush1.msra.mxu0 %v603
    %1217 = vmatprep.subr.mxu0 0.0
    %1218 = vmatpush1.msra.mxu0 %v604
    %1219 = vmatprep.subr.mxu0 0.0
    %1220 = vmatpush1.msra.mxu0 %v605
    %1221 = vmatprep.subr.mxu0 0.0
    %1222 = vmatpush1.msra.mxu0 %v606
    %1223 = vmatprep.subr.mxu0 0.0
    %1224 = vmatpush1.msra.mxu0 0.0
    %1225 = vmatprep.subr.mxu0 0.0
    %1226 = vmatpush1.msra.mxu0 0.0
    %1227 = vmatprep.subr.mxu0 0.0
    %1228 = vmatpush1.msra.mxu0 0.0
    %1229 = vmatprep.subr.mxu0 0.0
    %1230 = vmatpush1.msra.mxu0 0.0
    %1231 = vmatprep.subr.mxu0 0.0
    %1232 = vmatpush1.msra.mxu0 0.0
    %1233 = vmatprep.subr.mxu0 0.0
    %1234 = vmatpush1.msra.mxu0 0.0
    %1235 = vmatprep.subr.mxu0 0.0
    %1236 = vmatpush1.msra.mxu0 0.0
    %1237 = vmatprep.subr.mxu0 0.0
    %1238 = vmatpush1.msra.mxu0 0.0
    %1239 = vmatprep.subr.mxu0 0.0
    %1240 = vmatpush1.msra.mxu0 0.0
    %1241 = vmatprep.subr.mxu0 0.0
    %1242 = vmatpush1.msra.mxu0 0.0
    %1243 = vmatprep.subr.mxu0 0.0
    %1244 = vmatpush1.msra.mxu0 0.0
    %1245 = vmatprep.subr.mxu0 0.0
    %1246 = vmatpush1.msra.mxu0 0.0
    %1247 = vmatprep.subr.mxu0 0.0
    %1248 = vmatpush1.msra.mxu0 0.0
    %1249 = vmatprep.subr.mxu0 0.0
    %1250 = vmatpush1.msra.mxu0 0.0
    %1251 = vmatprep.subr.mxu0 0.0
    %1252 = vmatpush1.msra.mxu0 0.0
    %1253 = vmatprep.subr.mxu0 0.0
    %1254 = vmatpush1.msra.mxu0 0.0
    %1255 = vmatprep.subr.mxu0 0.0
    %1256 = vmatpush1.msra.mxu0 0.0
    %1257 = vmatprep.subr.mxu0 0.0
    %1258 = vmatpush1.msra.mxu0 0.0
    %1259 = vmatprep.subr.mxu0 0.0
    %1260 = vmatpush1.msra.mxu0 0.0
    %1261 = vmatprep.subr.mxu0 0.0
    %1262 = vmatpush1.msra.mxu0 0.0
    %1263 = vmatprep.subr.mxu0 0.0
    %1264 = vmatpush1.msra.mxu0 0.0
    %1265 = vmatprep.subr.mxu0 0.0
    %1266 = vmatpush1.msra.mxu0 0.0
    %1267 = vmatprep.subr.mxu0 0.0
    %1268 = vmatpush1.msra.mxu0 0.0
    %1269 = vmatprep.subr.mxu0 0.0
    %1270 = vmatpush1.msra.mxu0 0.0
    %1271 = vmatprep.subr.mxu0 0.0
    %1272 = vmatpush1.msra.mxu0 0.0
    %1273 = vmatprep.subr.mxu0 0.0
    %1274 = vmatpush1.msra.mxu0 0.0
    %1275 = vmatprep.subr.mxu0 0.0
    %1276 = vmatpush1.msra.mxu0 0.0
    %1277 = vmatprep.subr.mxu0 0.0
    %1278 = vmatpush1.msra.mxu0 0.0
    %1279 = vmatprep.mubr.f32.mxu0 0.0
    %1280 = vmatmul.mubr.f32.gmra.mrb[0].mxu0 %v1213
    %v1281 = vpop.f32.mrb[0].mxu0
    %v1282 = vadd.f32 0.0, %v1281
    %v1283 = vpop.f32.mrb[0].mxu0
    %1284 = vdwg.mxu0
    %v1287 = vunpack.c.l.s4 1983009808
    %v1288 = vunpack.c.0.s8 %v1287
    %v1289 = vlaneseq
    %v1290 = vshrl.u32 %v1289, 7
    %v1291 = vsub.s32 %v1288, %v1290
    %v1292 = vrot.slane %v1282, %v1291
    %v1293 = vrot.slane %v1292, 1
    %v1296 = vadd.f32 %v586, %v1292
    %v1297 = vadd.f32 %v596, %v1293
    %v1298 = vxor.u32 %v1296, 2147483648
    %v1299 = vxor.u32 %v1297, 2147483648
    %v1300 = vmul.f32 %v1298, 1.442695
    %v1301 = vpow.pop %v1300
    %v1302 = vmul.f32 %v1299, 1.442695
    %v1303 = vpow.pop %v1302
    %v1304 = vadd.f32 %v1301, 1.0
    %v1305 = vadd.f32 %v1303, 1.0
    %v1306 = vrcp.pop %v1304
    %v1307 = vmul.f32 1.0, %v1306
    %v1308 = vrcp.pop %v1305
    %v1309 = vmul.f32 1.0, %v1308
    %v1310 = vtanh.pop %v1296
    %v1311 = vtanh.pop %v1297
    %v1314 = vrot.slane %v1186, 7
    %v1315 = vrot.slane %v1314, 2
    %v1316 = vrot.slane %v1187, 7
    %v1317 = vrot.slane %v1316, 2
    %v1320 = vmul.f32 %v1307, %v1315
    %v1321 = vmul.f32 %v1309, %v1317
    %1324 = vrot.lane.b32.xlu0 %v1310, 64
    %v1325 = vpop.permute.xlu0 %1324
    %1326 = vrot.lane.b32.xlu0 %v1311, 64
    %v1327 = vpop.permute.xlu0 %1326
    %v1330 = vmul.f32 %v1307, %v1325
    %v1331 = vmul.f32 %v1309, %v1327
    %1334 = vrot.lane.b32.xlu0 %v1330, 32
    %v1335 = vpop.permute.xlu0 %1334
    %1336 = vrot.lane.b32.xlu0 %v1331, 32
    %v1337 = vpop.permute.xlu0 %1336
    %v1340 = vadd.f32 %v1320, %v1335
    %v1341 = vadd.f32 %v1321, %v1337
    %v1342 = vtanh.pop %v1340
    %v1343 = vtanh.pop %v1341
    %1346 = vrot.lane.b32.xlu0 %v1342, 64
    %v1347 = vpop.permute.xlu0 %1346
    %1348 = vrot.lane.b32.xlu0 %v1343, 64
    %v1349 = vpop.permute.xlu0 %1348
    %v1352 = vmul.f32 %v1307, %v1347
    %v1353 = vmul.f32 %v1309, %v1349
    %v1356 = vlaneseq
    %v1357 = vshrl.u32 %v1356, 7
    %v1358 = vsub.s32 0, %v1357
    %v1359 = vrot.slane %v1352, %v1358
    %v1360 = vlaneseq
    %v1361 = vshrl.u32 %v1360, 7
    %v1362 = vsub.s32 0, %v1361
    %v1363 = vrot.slane %v1353, %v1362
    %v1364 = vsel %vm751, %v1363, %v1359
    %1365 = vrot.lane.b32.xlu0 %v1364, 32
    %v1366 = vpop.permute.xlu0 %1365
    %v1367 = vsel %vm297, %v1366, 0
    %1369 = vmatprep.subr.mxu0 0.0
    %1370 = vmatpush1.msra.mxu0 %v603
    %1371 = vmatprep.subr.mxu0 0.0
    %1372 = vmatpush1.msra.mxu0 %v604
    %1373 = vmatprep.subr.mxu0 0.0
    %1374 = vmatpush1.msra.mxu0 %v605
    %1375 = vmatprep.subr.mxu0 0.0
    %1376 = vmatpush1.msra.mxu0 %v606
    %1377 = vmatprep.subr.mxu0 0.0
    %1378 = vmatpush1.msra.mxu0 0.0
    %1379 = vmatprep.subr.mxu0 0.0
    %1380 = vmatpush1.msra.mxu0 0.0
    %1381 = vmatprep.subr.mxu0 0.0
    %1382 = vmatpush1.msra.mxu0 0.0
    %1383 = vmatprep.subr.mxu0 0.0
    %1384 = vmatpush1.msra.mxu0 0.0
    %1385 = vmatprep.subr.mxu0 0.0
    %1386 = vmatpush1.msra.mxu0 0.0
    %1387 = vmatprep.subr.mxu0 0.0
    %1388 = vmatpush1.msra.mxu0 0.0
    %1389 = vmatprep.subr.mxu0 0.0
    %1390 = vmatpush1.msra.mxu0 0.0
    %1391 = vmatprep.subr.mxu0 0.0
    %1392 = vmatpush1.msra.mxu0 0.0
    %1393 = vmatprep.subr.mxu0 0.0
    %1394 = vmatpush1.msra.mxu0 0.0
    %1395 = vmatprep.subr.mxu0 0.0
    %1396 = vmatpush1.msra.mxu0 0.0
    %1397 = vmatprep.subr.mxu0 0.0
    %1398 = vmatpush1.msra.mxu0 0.0
    %1399 = vmatprep.subr.mxu0 0.0
    %1400 = vmatpush1.msra.mxu0 0.0
    %1401 = vmatprep.subr.mxu0 0.0
    %1402 = vmatpush1.msra.mxu0 0.0
    %1403 = vmatprep.subr.mxu0 0.0
    %1404 = vmatpush1.msra.mxu0 0.0
    %1405 = vmatprep.subr.mxu0 0.0
    %1406 = vmatpush1.msra.mxu0 0.0
    %1407 = vmatprep.subr.mxu0 0.0
    %1408 = vmatpush1.msra.mxu0 0.0
    %1409 = vmatprep.subr.mxu0 0.0
    %1410 = vmatpush1.msra.mxu0 0.0
    %1411 = vmatprep.subr.mxu0 0.0
    %1412 = vmatpush1.msra.mxu0 0.0
    %1413 = vmatprep.subr.mxu0 0.0
    %1414 = vmatpush1.msra.mxu0 0.0
    %1415 = vmatprep.subr.mxu0 0.0
    %1416 = vmatpush1.msra.mxu0 0.0
    %1417 = vmatprep.subr.mxu0 0.0
    %1418 = vmatpush1.msra.mxu0 0.0
    %1419 = vmatprep.subr.mxu0 0.0
    %1420 = vmatpush1.msra.mxu0 0.0
    %1421 = vmatprep.subr.mxu0 0.0
    %1422 = vmatpush1.msra.mxu0 0.0
    %1423 = vmatprep.subr.mxu0 0.0
    %1424 = vmatpush1.msra.mxu0 0.0
    %1425 = vmatprep.subr.mxu0 0.0
    %1426 = vmatpush1.msra.mxu0 0.0
    %1427 = vmatprep.subr.mxu0 0.0
    %1428 = vmatpush1.msra.mxu0 0.0
    %1429 = vmatprep.subr.mxu0 0.0
    %1430 = vmatpush1.msra.mxu0 0.0
    %1431 = vmatprep.subr.mxu0 0.0
    %1432 = vmatpush1.msra.mxu0 0.0
    %1433 = vmatprep.mubr.f32.mxu0 0.0
    %1434 = vmatmul.mubr.f32.gmra.mrb[0].mxu0 %v1367
    %v1435 = vpop.f32.mrb[0].mxu0
    %v1436 = vadd.f32 0.0, %v1435
    %v1437 = vpop.f32.mrb[0].mxu0
    %1438 = vdwg.mxu0
    %v1441 = vunpack.c.l.s4 1983009808
    %v1442 = vunpack.c.0.s8 %v1441
    %v1443 = vlaneseq
    %v1444 = vshrl.u32 %v1443, 7
    %v1445 = vsub.s32 %v1442, %v1444
    %v1446 = vrot.slane %v1436, %v1445
    %v1447 = vrot.slane %v1446, 7
    %v1450 = vadd.f32 %v586, %v1447
    %v1451 = vadd.f32 %v596, %v1446
    %v1452 = vxor.u32 %v1450, 2147483648
    %v1453 = vxor.u32 %v1451, 2147483648
    %v1454 = vmul.f32 %v1452, 1.442695
    %v1455 = vpow.pop %v1454
    %v1456 = vmul.f32 %v1453, 1.442695
    %v1457 = vpow.pop %v1456
    %v1458 = vadd.f32 %v1455, 1.0
    %v1459 = vadd.f32 %v1457, 1.0
    %v1460 = vrcp.pop %v1458
    %v1461 = vmul.f32 1.0, %v1460
    %v1462 = vrcp.pop %v1459
    %v1463 = vmul.f32 1.0, %v1462
    %v1464 = vtanh.pop %v1450
    %v1465 = vtanh.pop %v1451
    %v1468 = vrot.slane %v1340, 7
    %v1469 = vrot.slane %v1341, 7
    %v1472 = vmul.f32 %v1461, %v1468
    %v1473 = vmul.f32 %v1463, %v1469
    %1476 = vrot.lane.b32.xlu0 %v1464, 64
    %v1477 = vpop.permute.xlu0 %1476
    %1478 = vrot.lane.b32.xlu0 %v1465, 64
    %v1479 = vpop.permute.xlu0 %1478
    %v1482 = vmul.f32 %v1461, %v1477
    %v1483 = vmul.f32 %v1463, %v1479
    %1486 = vrot.lane.b32.xlu0 %v1482, 32
    %v1487 = vpop.permute.xlu0 %1486
    %1488 = vrot.lane.b32.xlu0 %v1483, 32
    %v1489 = vpop.permute.xlu0 %1488
    %v1492 = vadd.f32 %v1472, %v1487
    %v1493 = vadd.f32 %v1473, %v1489
    %v1494 = vtanh.pop %v1492
    %v1495 = vtanh.pop %v1493
    %1498 = vrot.lane.b32.xlu0 %v1494, 64
    %v1499 = vpop.permute.xlu0 %1498
    %1500 = vrot.lane.b32.xlu0 %v1495, 64
    %v1501 = vpop.permute.xlu0 %1500
    %v1504 = vmul.f32 %v1461, %v1499
    %v1505 = vmul.f32 %v1463, %v1501
    %v1506 = vld [vmem:[#allocation20] sm:$0xff]
    %v1507 = vld [vmem:[#allocation20 + $0x8] sm:$0xff]
    %v1508 = vld [vmem:[#allocation20 + $0x10] sm:$0xff]
    %v1509 = vld [vmem:[#allocation20 + $0x18] sm:$0xff]
    %v1510 = vld [vmem:[#allocation21] sm:$0x1]
    %v1512 = vlaneseq
    %v1513 = vshrl.u32 %v1512, 7
    %v1514 = vsub.s32 0, %v1513
    %v1515 = vrot.slane %v1510, %v1514
    %v1518 = vsel %vm297, %v371, 0
    %v1521 = vsel %vm297, %v376, 0
    %1523 = vmatprep.subr.mxu0 0.0
    %1524 = vmatpush1.msra.mxu0 %v1506
    %1525 = vmatprep.subr.mxu0 0.0
    %1526 = vmatpush1.msra.mxu0 %v1507
    %1527 = vmatprep.subr.mxu0 0.0
    %1528 = vmatpush1.msra.mxu0 %v1508
    %1529 = vmatprep.subr.mxu0 0.0
    %1530 = vmatpush1.msra.mxu0 %v1509
    %1531 = vmatprep.subr.mxu0 0.0
    %1532 = vmatpush1.msra.mxu0 0.0
    %1533 = vmatprep.subr.mxu0 0.0
    %1534 = vmatpush1.msra.mxu0 0.0
    %1535 = vmatprep.subr.mxu0 0.0
    %1536 = vmatpush1.msra.mxu0 0.0
    %1537 = vmatprep.subr.mxu0 0.0
    %1538 = vmatpush1.msra.mxu0 0.0
    %1539 = vmatprep.subr.mxu0 0.0
    %1540 = vmatpush1.msra.mxu0 0.0
    %1541 = vmatprep.subr.mxu0 0.0
    %1542 = vmatpush1.msra.mxu0 0.0
    %1543 = vmatprep.subr.mxu0 0.0
    %1544 = vmatpush1.msra.mxu0 0.0
    %1545 = vmatprep.subr.mxu0 0.0
    %1546 = vmatpush1.msra.mxu0 0.0
    %1547 = vmatprep.subr.mxu0 0.0
    %1548 = vmatpush1.msra.mxu0 0.0
    %1549 = vmatprep.subr.mxu0 0.0
    %1550 = vmatpush1.msra.mxu0 0.0
    %1551 = vmatprep.subr.mxu0 0.0
    %1552 = vmatpush1.msra.mxu0 0.0
    %1553 = vmatprep.subr.mxu0 0.0
    %1554 = vmatpush1.msra.mxu0 0.0
    %1555 = vmatprep.subr.mxu0 0.0
    %1556 = vmatpush1.msra.mxu0 0.0
    %1557 = vmatprep.subr.mxu0 0.0
    %1558 = vmatpush1.msra.mxu0 0.0
    %1559 = vmatprep.subr.mxu0 0.0
    %1560 = vmatpush1.msra.mxu0 0.0
    %1561 = vmatprep.subr.mxu0 0.0
    %1562 = vmatpush1.msra.mxu0 0.0
    %1563 = vmatprep.subr.mxu0 0.0
    %1564 = vmatpush1.msra.mxu0 0.0
    %1565 = vmatprep.subr.mxu0 0.0
    %1566 = vmatpush1.msra.mxu0 0.0
    %1567 = vmatprep.subr.mxu0 0.0
    %1568 = vmatpush1.msra.mxu0 0.0
    %1569 = vmatprep.subr.mxu0 0.0
    %1570 = vmatpush1.msra.mxu0 0.0
    %1571 = vmatprep.subr.mxu0 0.0
    %1572 = vmatpush1.msra.mxu0 0.0
    %1573 = vmatprep.subr.mxu0 0.0
    %1574 = vmatpush1.msra.mxu0 0.0
    %1575 = vmatprep.subr.mxu0 0.0
    %1576 = vmatpush1.msra.mxu0 0.0
    %1577 = vmatprep.subr.mxu0 0.0
    %1578 = vmatpush1.msra.mxu0 0.0
    %1579 = vmatprep.subr.mxu0 0.0
    %1580 = vmatpush1.msra.mxu0 0.0
    %1581 = vmatprep.subr.mxu0 0.0
    %1582 = vmatpush1.msra.mxu0 0.0
    %1583 = vmatprep.subr.mxu0 0.0
    %1584 = vmatpush1.msra.mxu0 0.0
    %1585 = vmatprep.subr.mxu0 0.0
    %1586 = vmatpush1.msra.mxu0 0.0
    %1587 = vmatprep.mubr.f32.mxu0 0.0
    %1588 = vmatmul.mubr.f32.gmra.mrb[0].mxu0 %v1518
    %v1589 = vpop.f32.mrb[0].mxu0
    %v1590 = vadd.f32 %v1515, %v1589
    %v1591 = vpop.f32.mrb[0].mxu0
    %1592 = vmatprep.mubr.f32.mxu0 0.0
    %1593 = vmatmul.mubr.f32.gmra.mrb[0].mxu0 %v1521
    %v1594 = vpop.f32.mrb[0].mxu0
    %v1595 = vadd.f32 %v1515, %v1594
    %v1596 = vpop.f32.mrb[0].mxu0
    %1597 = vdwg.mxu0
    %v1598 = vlaneseq
    %v1599 = vshrl.u32 %v1598, 7
    %v1600 = vsub.s32 1, %v1599
    %v1601 = vrot.slane %v1504, %v1600
    %v1602 = vlaneseq
    %v1603 = vshrl.u32 %v1602, 7
    %v1604 = vsub.s32 1, %v1603
    %v1605 = vrot.slane %v1505, %v1604
    %1608 = vrot.lane.b32.xlu0 %v1601, 32
    %v1609 = vpop.permute.xlu0 %1608
    %1610 = vrot.lane.b32.xlu0 %v1605, 32
    %v1611 = vpop.permute.xlu0 %1610
    %v1614 = vmul.f32 %v371, %v1609
    %v1615 = vmul.f32 %v376, %v1611
    %v1616 = vld [vmem:[#allocation12] sm:$0xff]
    %v1617 = vld [vmem:[#allocation12 + $0x8] sm:$0xff]
    %v1618 = vld [vmem:[#allocation12 + $0x10] sm:$0xff]
    %v1619 = vld [vmem:[#allocation12 + $0x18] sm:$0xff]
    %v1620 = vsub.f32 %v371, %v1609
    %v1621 = vsub.f32 %v376, %v1611
    %v1622 = vand.u32 2147483647, %v1620
    %v1623 = vand.u32 2147483647, %v1621
    %v1624 = vld [vmem:[%s9] sm:$0xff]
    %v1625 = vld [vmem:[%s9 + $0x8] sm:$0xff]
    %v1626 = vld [vmem:[%s9 + $0x10] sm:$0xff]
    %v1627 = vld [vmem:[%s9 + $0x18] sm:$0xff]
    %v1629 = vsel %vm297, %v1622, 0
    %v1632 = vsel %vm297, %v1623, 0
    %1634 = vmatprep.subr.mxu0 0.0
    %1635 = vmatpush1.msra.mxu0 %v1624
    %1636 = vmatprep.subr.mxu0 0.0
    %1637 = vmatpush1.msra.mxu0 %v1625
    %1638 = vmatprep.subr.mxu0 0.0
    %1639 = vmatpush1.msra.mxu0 %v1626
    %1640 = vmatprep.subr.mxu0 0.0
    %1641 = vmatpush1.msra.mxu0 %v1627
    %1642 = vmatprep.subr.mxu0 0.0
    %1643 = vmatpush1.msra.mxu0 0.0
    %1644 = vmatprep.subr.mxu0 0.0
    %1645 = vmatpush1.msra.mxu0 0.0
    %1646 = vmatprep.subr.mxu0 0.0
    %1647 = vmatpush1.msra.mxu0 0.0
    %1648 = vmatprep.subr.mxu0 0.0
    %1649 = vmatpush1.msra.mxu0 0.0
    %1650 = vmatprep.subr.mxu0 0.0
    %1651 = vmatpush1.msra.mxu0 0.0
    %1652 = vmatprep.subr.mxu0 0.0
    %1653 = vmatpush1.msra.mxu0 0.0
    %1654 = vmatprep.subr.mxu0 0.0
    %1655 = vmatpush1.msra.mxu0 0.0
    %1656 = vmatprep.subr.mxu0 0.0
    %1657 = vmatpush1.msra.mxu0 0.0
    %1658 = vmatprep.subr.mxu0 0.0
    %1659 = vmatpush1.msra.mxu0 0.0
    %1660 = vmatprep.subr.mxu0 0.0
    %1661 = vmatpush1.msra.mxu0 0.0
    %1662 = vmatprep.subr.mxu0 0.0
    %1663 = vmatpush1.msra.mxu0 0.0
    %1664 = vmatprep.subr.mxu0 0.0
    %1665 = vmatpush1.msra.mxu0 0.0
    %1666 = vmatprep.subr.mxu0 0.0
    %1667 = vmatpush1.msra.mxu0 0.0
    %1668 = vmatprep.subr.mxu0 0.0
    %1669 = vmatpush1.msra.mxu0 0.0
    %1670 = vmatprep.subr.mxu0 0.0
    %1671 = vmatpush1.msra.mxu0 0.0
    %1672 = vmatprep.subr.mxu0 0.0
    %1673 = vmatpush1.msra.mxu0 0.0
    %1674 = vmatprep.subr.mxu0 0.0
    %1675 = vmatpush1.msra.mxu0 0.0
    %1676 = vmatprep.subr.mxu0 0.0
    %1677 = vmatpush1.msra.mxu0 0.0
    %1678 = vmatprep.subr.mxu0 0.0
    %1679 = vmatpush1.msra.mxu0 0.0
    %1680 = vmatprep.subr.mxu0 0.0
    %1681 = vmatpush1.msra.mxu0 0.0
    %1682 = vmatprep.subr.mxu0 0.0
    %1683 = vmatpush1.msra.mxu0 0.0
    %1684 = vmatprep.subr.mxu0 0.0
    %1685 = vmatpush1.msra.mxu0 0.0
    %1686 = vmatprep.subr.mxu0 0.0
    %1687 = vmatpush1.msra.mxu0 0.0
    %1688 = vmatprep.subr.mxu0 0.0
    %1689 = vmatpush1.msra.mxu0 0.0
    %1690 = vmatprep.subr.mxu0 0.0
    %1691 = vmatpush1.msra.mxu0 0.0
    %1692 = vmatprep.subr.mxu0 0.0
    %1693 = vmatpush1.msra.mxu0 0.0
    %1694 = vmatprep.subr.mxu0 0.0
    %1695 = vmatpush1.msra.mxu0 0.0
    %1696 = vmatprep.subr.mxu0 0.0
    %1697 = vmatpush1.msra.mxu0 0.0
    %1698 = vmatprep.mubr.f32.mxu0 0.0
    %1699 = vmatmul.mubr.f32.gmra.mrb[0].mxu0 %v1629
    %v1700 = vpop.f32.mrb[0].mxu0
    %v1701 = vadd.f32 0.0, %v1700
    %v1702 = vpop.f32.mrb[0].mxu0
    %1703 = vmatprep.mubr.f32.mxu0 0.0
    %1704 = vmatmul.mubr.f32.gmra.mrb[0].mxu0 %v1632
    %v1705 = vpop.f32.mrb[0].mxu0
    %v1706 = vadd.f32 0.0, %v1705
    %v1707 = vpop.f32.mrb[0].mxu0
    %1708 = vdwg.mxu0
    %v1710 = vsel %vm297, %v1614, 0
    %v1713 = vsel %vm297, %v1615, 0
    %1715 = vmatprep.subr.mxu0 0.0
    %1716 = vmatpush1.msra.mxu0 %v1616
    %1717 = vmatprep.subr.mxu0 0.0
    %1718 = vmatpush1.msra.mxu0 %v1617
    %1719 = vmatprep.subr.mxu0 0.0
    %1720 = vmatpush1.msra.mxu0 %v1618
    %1721 = vmatprep.subr.mxu0 0.0
    %1722 = vmatpush1.msra.mxu0 %v1619
    %1723 = vmatprep.subr.mxu0 0.0
    %1724 = vmatpush1.msra.mxu0 0.0
    %1725 = vmatprep.subr.mxu0 0.0
    %1726 = vmatpush1.msra.mxu0 0.0
    %1727 = vmatprep.subr.mxu0 0.0
    %1728 = vmatpush1.msra.mxu0 0.0
    %1729 = vmatprep.subr.mxu0 0.0
    %1730 = vmatpush1.msra.mxu0 0.0
    %1731 = vmatprep.subr.mxu0 0.0
    %1732 = vmatpush1.msra.mxu0 0.0
    %1733 = vmatprep.subr.mxu0 0.0
    %1734 = vmatpush1.msra.mxu0 0.0
    %1735 = vmatprep.subr.mxu0 0.0
    %1736 = vmatpush1.msra.mxu0 0.0
    %1737 = vmatprep.subr.mxu0 0.0
    %1738 = vmatpush1.msra.mxu0 0.0
    %1739 = vmatprep.subr.mxu0 0.0
    %1740 = vmatpush1.msra.mxu0 0.0
    %1741 = vmatprep.subr.mxu0 0.0
    %1742 = vmatpush1.msra.mxu0 0.0
    %1743 = vmatprep.subr.mxu0 0.0
    %1744 = vmatpush1.msra.mxu0 0.0
    %1745 = vmatprep.subr.mxu0 0.0
    %1746 = vmatpush1.msra.mxu0 0.0
    %1747 = vmatprep.subr.mxu0 0.0
    %1748 = vmatpush1.msra.mxu0 0.0
    %1749 = vmatprep.subr.mxu0 0.0
    %1750 = vmatpush1.msra.mxu0 0.0
    %1751 = vmatprep.subr.mxu0 0.0
    %1752 = vmatpush1.msra.mxu0 0.0
    %1753 = vmatprep.subr.mxu0 0.0
    %1754 = vmatpush1.msra.mxu0 0.0
    %1755 = vmatprep.subr.mxu0 0.0
    %1756 = vmatpush1.msra.mxu0 0.0
    %1757 = vmatprep.subr.mxu0 0.0
    %1758 = vmatpush1.msra.mxu0 0.0
    %1759 = vmatprep.subr.mxu0 0.0
    %1760 = vmatpush1.msra.mxu0 0.0
    %1761 = vmatprep.subr.mxu0 0.0
    %1762 = vmatpush1.msra.mxu0 0.0
    %1763 = vmatprep.subr.mxu0 0.0
    %1764 = vmatpush1.msra.mxu0 0.0
    %1765 = vmatprep.subr.mxu0 0.0
    %1766 = vmatpush1.msra.mxu0 0.0
    %1767 = vmatprep.subr.mxu0 0.0
    %1768 = vmatpush1.msra.mxu0 0.0
    %1769 = vmatprep.subr.mxu0 0.0
    %1770 = vmatpush1.msra.mxu0 0.0
    %1771 = vmatprep.subr.mxu0 0.0
    %1772 = vmatpush1.msra.mxu0 0.0
    %1773 = vmatprep.subr.mxu0 0.0
    %1774 = vmatpush1.msra.mxu0 0.0
    %1775 = vmatprep.subr.mxu0 0.0
    %1776 = vmatpush1.msra.mxu0 0.0
    %1777 = vmatprep.subr.mxu0 0.0
    %1778 = vmatpush1.msra.mxu0 0.0
    %1779 = vmatprep.mubr.f32.mxu0 0.0
    %1780 = vmatmul.mubr.f32.gmra.mrb[0].mxu0 %v1710
    %v1781 = vpop.f32.mrb[0].mxu0
    %v1782 = vadd.f32 %v1701, %v1781
    %v1783 = vpop.f32.mrb[0].mxu0
    %1784 = vmatprep.mubr.f32.mxu0 0.0
    %1785 = vmatmul.mubr.f32.gmra.mrb[0].mxu0 %v1713
    %v1786 = vpop.f32.mrb[0].mxu0
    %v1787 = vadd.f32 %v1706, %v1786
    %v1788 = vpop.f32.mrb[0].mxu0
    %1789 = vdwg.mxu0
    %v1790 = vld [vmem:[#allocation17] sm:$0x1]
    %v1792 = vlaneseq
    %v1793 = vshrl.u32 %v1792, 7
    %v1794 = vsub.s32 0, %v1793
    %v1795 = vrot.slane %v1790, %v1794
    %v1797 = vadd.f32 %v1782, %v1795
    %v1798 = vadd.f32 %v1787, %v1795
    %v1799 = vld [vmem:[#allocation23] sm:$0xff]
    %v1800 = vld [vmem:[#allocation23 + $0x8] sm:$0xff]
    %v1801 = vld [vmem:[#allocation23 + $0x10] sm:$0xff]
    %v1802 = vld [vmem:[#allocation23 + $0x18] sm:$0xff]
    %v1803 = vld [vmem:[#allocation24] sm:$0x1]
    %v1804 = vld [vmem:[#allocation18] sm:$0x1]
    %v1805 = vld [vmem:[#allocation14] sm:$0xff]
    %v1806 = vld [vmem:[#allocation14 + $0x8] sm:$0xff]
    %v1807 = vld [vmem:[#allocation14 + $0x10] sm:$0xff]
    %v1808 = vld [vmem:[#allocation14 + $0x18] sm:$0xff]
    %1809 = vmatprep.subr.mxu0 0.0
    %1810 = vmatpush1.msra.mxu0 %v1805
    %1811 = vmatprep.subr.mxu0 0.0
    %1812 = vmatpush1.msra.mxu0 %v1806
    %1813 = vmatprep.subr.mxu0 0.0
    %1814 = vmatpush1.msra.mxu0 %v1807
    %1815 = vmatprep.subr.mxu0 0.0
    %1816 = vmatpush1.msra.mxu0 %v1808
    %1817 = vmatprep.subr.mxu0 0.0
    %1818 = vmatpush1.msra.mxu0 0.0
    %1819 = vmatprep.subr.mxu0 0.0
    %1820 = vmatpush1.msra.mxu0 0.0
    %1821 = vmatprep.subr.mxu0 0.0
    %1822 = vmatpush1.msra.mxu0 0.0
    %1823 = vmatprep.subr.mxu0 0.0
    %1824 = vmatpush1.msra.mxu0 0.0
    %1825 = vmatprep.subr.mxu0 0.0
    %1826 = vmatpush1.msra.mxu0 0.0
    %1827 = vmatprep.subr.mxu0 0.0
    %1828 = vmatpush1.msra.mxu0 0.0
    %1829 = vmatprep.subr.mxu0 0.0
    %1830 = vmatpush1.msra.mxu0 0.0
    %1831 = vmatprep.subr.mxu0 0.0
    %1832 = vmatpush1.msra.mxu0 0.0
    %1833 = vmatprep.subr.mxu0 0.0
    %1834 = vmatpush1.msra.mxu0 0.0
    %1835 = vmatprep.subr.mxu0 0.0
    %1836 = vmatpush1.msra.mxu0 0.0
    %1837 = vmatprep.subr.mxu0 0.0
    %1838 = vmatpush1.msra.mxu0 0.0
    %1839 = vmatprep.subr.mxu0 0.0
    %1840 = vmatpush1.msra.mxu0 0.0
    %1841 = vmatprep.subr.mxu0 0.0
    %1842 = vmatpush1.msra.mxu0 0.0
    %1843 = vmatprep.subr.mxu0 0.0
    %1844 = vmatpush1.msra.mxu0 0.0
    %1845 = vmatprep.subr.mxu0 0.0
    %1846 = vmatpush1.msra.mxu0 0.0
    %1847 = vmatprep.subr.mxu0 0.0
    %1848 = vmatpush1.msra.mxu0 0.0
    %1849 = vmatprep.subr.mxu0 0.0
    %1850 = vmatpush1.msra.mxu0 0.0
    %1851 = vmatprep.subr.mxu0 0.0
    %1852 = vmatpush1.msra.mxu0 0.0
    %1853 = vmatprep.subr.mxu0 0.0
    %1854 = vmatpush1.msra.mxu0 0.0
    %1855 = vmatprep.subr.mxu0 0.0
    %1856 = vmatpush1.msra.mxu0 0.0
    %1857 = vmatprep.subr.mxu0 0.0
    %1858 = vmatpush1.msra.mxu0 0.0
    %1859 = vmatprep.subr.mxu0 0.0
    %1860 = vmatpush1.msra.mxu0 0.0
    %1861 = vmatprep.subr.mxu0 0.0
    %1862 = vmatpush1.msra.mxu0 0.0
    %1863 = vmatprep.subr.mxu0 0.0
    %1864 = vmatpush1.msra.mxu0 0.0
    %1865 = vmatprep.subr.mxu0 0.0
    %1866 = vmatpush1.msra.mxu0 0.0
    %1867 = vmatprep.subr.mxu0 0.0
    %1868 = vmatpush1.msra.mxu0 0.0
    %1869 = vmatprep.subr.mxu0 0.0
    %1870 = vmatpush1.msra.mxu0 0.0
    %1871 = vmatprep.subr.mxu0 0.0
    %1872 = vmatpush1.msra.mxu0 0.0
    %1873 = vmatprep.mubr.f32.mxu0 0.0
    %1874 = vmatmul.mubr.f32.gmra.mrb[0].mxu0 %v1710
    %v1875 = vpop.f32.mrb[0].mxu0
    %v1876 = vadd.f32 0.0, %v1875
    %v1877 = vpop.f32.mrb[0].mxu0
    %1878 = vmatprep.mubr.f32.mxu0 0.0
    %1879 = vmatmul.mubr.f32.gmra.mrb[0].mxu0 %v1713
    %v1880 = vpop.f32.mrb[0].mxu0
    %v1881 = vadd.f32 0.0, %v1880
    %v1882 = vpop.f32.mrb[0].mxu0
    %1883 = vdwg.mxu0
    %v1884 = vadd.f32 %v1797, %v1876
    %v1885 = vadd.f32 %v1798, %v1881
    %v1886 = vld [vmem:[#allocation15] sm:$0xff]
    %v1887 = vld [vmem:[#allocation15 + $0x8] sm:$0xff]
    %v1888 = vld [vmem:[#allocation15 + $0x10] sm:$0xff]
    %v1889 = vld [vmem:[#allocation15 + $0x18] sm:$0xff]
    %1890 = vmatprep.subr.mxu0 0.0
    %1891 = vmatpush1.msra.mxu0 %v1886
    %1892 = vmatprep.subr.mxu0 0.0
    %1893 = vmatpush1.msra.mxu0 %v1887
    %1894 = vmatprep.subr.mxu0 0.0
    %1895 = vmatpush1.msra.mxu0 %v1888
    %1896 = vmatprep.subr.mxu0 0.0
    %1897 = vmatpush1.msra.mxu0 %v1889
    %1898 = vmatprep.subr.mxu0 0.0
    %1899 = vmatpush1.msra.mxu0 0.0
    %1900 = vmatprep.subr.mxu0 0.0
    %1901 = vmatpush1.msra.mxu0 0.0
    %1902 = vmatprep.subr.mxu0 0.0
    %1903 = vmatpush1.msra.mxu0 0.0
    %1904 = vmatprep.subr.mxu0 0.0
    %1905 = vmatpush1.msra.mxu0 0.0
    %1906 = vmatprep.subr.mxu0 0.0
    %1907 = vmatpush1.msra.mxu0 0.0
    %1908 = vmatprep.subr.mxu0 0.0
    %1909 = vmatpush1.msra.mxu0 0.0
    %1910 = vmatprep.subr.mxu0 0.0
    %1911 = vmatpush1.msra.mxu0 0.0
    %1912 = vmatprep.subr.mxu0 0.0
    %1913 = vmatpush1.msra.mxu0 0.0
    %1914 = vmatprep.subr.mxu0 0.0
    %1915 = vmatpush1.msra.mxu0 0.0
    %1916 = vmatprep.subr.mxu0 0.0
    %1917 = vmatpush1.msra.mxu0 0.0
    %1918 = vmatprep.subr.mxu0 0.0
    %1919 = vmatpush1.msra.mxu0 0.0
    %1920 = vmatprep.subr.mxu0 0.0
    %1921 = vmatpush1.msra.mxu0 0.0
    %1922 = vmatprep.subr.mxu0 0.0
    %1923 = vmatpush1.msra.mxu0 0.0
    %1924 = vmatprep.subr.mxu0 0.0
    %1925 = vmatpush1.msra.mxu0 0.0
    %1926 = vmatprep.subr.mxu0 0.0
    %1927 = vmatpush1.msra.mxu0 0.0
    %1928 = vmatprep.subr.mxu0 0.0
    %1929 = vmatpush1.msra.mxu0 0.0
    %1930 = vmatprep.subr.mxu0 0.0
    %1931 = vmatpush1.msra.mxu0 0.0
    %1932 = vmatprep.subr.mxu0 0.0
    %1933 = vmatpush1.msra.mxu0 0.0
    %1934 = vmatprep.subr.mxu0 0.0
    %1935 = vmatpush1.msra.mxu0 0.0
    %1936 = vmatprep.subr.mxu0 0.0
    %1937 = vmatpush1.msra.mxu0 0.0
    %1938 = vmatprep.subr.mxu0 0.0
    %1939 = vmatpush1.msra.mxu0 0.0
    %1940 = vmatprep.subr.mxu0 0.0
    %1941 = vmatpush1.msra.mxu0 0.0
    %1942 = vmatprep.subr.mxu0 0.0
    %1943 = vmatpush1.msra.mxu0 0.0
    %1944 = vmatprep.subr.mxu0 0.0
    %1945 = vmatpush1.msra.mxu0 0.0
    %1946 = vmatprep.subr.mxu0 0.0
    %1947 = vmatpush1.msra.mxu0 0.0
    %1948 = vmatprep.subr.mxu0 0.0
    %1949 = vmatpush1.msra.mxu0 0.0
    %1950 = vmatprep.subr.mxu0 0.0
    %1951 = vmatpush1.msra.mxu0 0.0
    %1952 = vmatprep.subr.mxu0 0.0
    %1953 = vmatpush1.msra.mxu0 0.0
    %1954 = vmatprep.mubr.f32.mxu0 0.0
    %1955 = vmatmul.mubr.f32.gmra.mrb[0].mxu0 %v1629
    %v1956 = vpop.f32.mrb[0].mxu0
    %v1957 = vadd.f32 0.0, %v1956
    %v1958 = vpop.f32.mrb[0].mxu0
    %1959 = vmatprep.mubr.f32.mxu0 0.0
    %1960 = vmatmul.mubr.f32.gmra.mrb[0].mxu0 %v1632
    %v1961 = vpop.f32.mrb[0].mxu0
    %v1962 = vadd.f32 0.0, %v1961
    %v1963 = vpop.f32.mrb[0].mxu0
    %1964 = vdwg.mxu0
    %v1965 = vadd.f32 %v1884, %v1957
    %v1966 = vadd.f32 %v1885, %v1962
    %v1967 = vtanh.pop %v1965
    %v1968 = vtanh.pop %v1966
    %v1970 = vlaneseq
    %v1971 = vshrl.u32 %v1970, 7
    %v1972 = vsub.s32 0, %v1971
    %v1973 = vrot.slane %v1804, %v1972
    %v1975 = vmul.f32 %v1967, %v1973
    %v1976 = vmul.f32 %v1968, %v1973
    %v1977 = vsel %vm297, %v1975, 0.0
    %1978 = vadd.xlane.f32.xlu0 %v1977
    %v1979 = vpop.xlane.xlu0 %1978
    %v1980 = vsel %vm297, %v1976, 0.0
    %1981 = vadd.xlane.f32.xlu0 %v1980
    %v1982 = vpop.xlane.xlu0 %1981
    %v1983 = vld [vmem:[#allocation2] sm:$0x1]
    %v1985 = vlaneseq
    %v1986 = vshrl.u32 %v1985, 7
    %v1987 = vsub.s32 0, %v1986
    %v1988 = vrot.slane %v1983, %v1987
    %1989 = vset.pattern.permute.xlu0 0
    %1990 = vperm.xlu0 %1989, %v1988
    %v1991 = vpop.permute.xlu0 %1990
    %v1993 = vadd.f32 %v1979, %v1991
    %v1994 = vadd.f32 %v1982, %v1991
    %v1997 = vlaneseq
    %v1998 = vand.u32 %v1997, 127
    %v1999 = vlaneseq
    %v2000 = vshrl.u32 %v1999, 7
    %v2001 = vsub.s32 %v1998, %v2000
    %v2002 = vrot.slane %v1993, %v2001
    %v2003 = vlaneseq
    %v2004 = vshrl.u32 %v2003, 7
    %v2005 = vsub.s32 %v1998, %v2004
    %v2006 = vrot.slane %v1994, %v2005
    %v2007 = vsel %vm751, %v2006, %v2002
    %vm2009 = vcmask 58368
    %v2010 = vsel %vm2009, %v2007, -inf
    %2011 = vmax.xlane.f32.xlu0 %v2010
    %v2012 = vpop.xlane.xlu0 %2011
    %v2014 = vlaneseq
    %v2015 = vshrl.u32 %v2014, 7
    %v2016 = vsub.s32 0, %v2015
    %v2017 = vrot.slane %v2012, %v2016
    %v2018 = vlaneseq
    %v2019 = vshrl.u32 %v2018, 7
    %v2020 = vsub.s32 1, %v2019
    %v2021 = vrot.slane %v2012, %v2020
    %v2024 = vsub.f32 %v1993, %v2017
    %v2025 = vsub.f32 %v1994, %v2021
    %v2026 = vmul.f32 %v2024, 1.442695
    %v2027 = vpow.pop %v2026
    %v2028 = vmul.f32 %v2025, 1.442695
    %v2029 = vpow.pop %v2028
    %2032 = vset.pattern.permute.xlu0 0
    %2033 = vperm.xlu0 %2032, %v2027
    %v2034 = vpop.permute.xlu0 %2033
    %2035 = vset.pattern.permute.xlu0 0
    %2036 = vperm.xlu0 %2035, %v2029
    %v2037 = vpop.permute.xlu0 %2036
    %v2038 = vlaneseq
    %v2039 = vshrl.u32 %v2038, 7
    %v2040 = vsub.s32 %v1998, %v2039
    %v2041 = vrot.slane %v2034, %v2040
    %v2042 = vlaneseq
    %v2043 = vshrl.u32 %v2042, 7
    %v2044 = vsub.s32 %v1998, %v2043
    %v2045 = vrot.slane %v2037, %v2044
    %v2046 = vsel %vm751, %v2045, %v2041
    %v2048 = vsel %vm2009, %v2046, 0.0
    %2049 = vadd.xlane.f32.xlu0 %v2048
    %v2050 = vpop.xlane.xlu0 %2049
    %v2052 = vlaneseq
    %v2053 = vshrl.u32 %v2052, 7
    %v2054 = vsub.s32 0, %v2053
    %v2055 = vrot.slane %v2050, %v2054
    %v2056 = vlaneseq
    %v2057 = vshrl.u32 %v2056, 7
    %v2058 = vsub.s32 1, %v2057
    %v2059 = vrot.slane %v2050, %v2058
    %v2062 = vrcp.pop %v2055
    %v2063 = vmul.f32 %v2027, %v2062
    %v2064 = vrcp.pop %v2059
    %v2065 = vmul.f32 %v2029, %v2064
    %v2067 = vlaneseq
    %v2068 = vshrl.u32 %v2067, 7
    %v2069 = vsub.s32 0, %v2068
    %v2070 = vrot.slane %v1803, %v2069
    %2072 = vmatprep.subr.mxu0 0.0
    %2073 = vmatpush1.msra.mxu0 %v1799
    %2074 = vmatprep.subr.mxu0 0.0
    %2075 = vmatpush1.msra.mxu0 %v1800
    %2076 = vmatprep.subr.mxu0 0.0
    %2077 = vmatpush1.msra.mxu0 %v1801
    %2078 = vmatprep.subr.mxu0 0.0
    %2079 = vmatpush1.msra.mxu0 %v1802
    %2080 = vmatprep.subr.mxu0 0.0
    %2081 = vmatpush1.msra.mxu0 0.0
    %2082 = vmatprep.subr.mxu0 0.0
    %2083 = vmatpush1.msra.mxu0 0.0
    %2084 = vmatprep.subr.mxu0 0.0
    %2085 = vmatpush1.msra.mxu0 0.0
    %2086 = vmatprep.subr.mxu0 0.0
    %2087 = vmatpush1.msra.mxu0 0.0
    %2088 = vmatprep.subr.mxu0 0.0
    %2089 = vmatpush1.msra.mxu0 0.0
    %2090 = vmatprep.subr.mxu0 0.0
    %2091 = vmatpush1.msra.mxu0 0.0
    %2092 = vmatprep.subr.mxu0 0.0
    %2093 = vmatpush1.msra.mxu0 0.0
    %2094 = vmatprep.subr.mxu0 0.0
    %2095 = vmatpush1.msra.mxu0 0.0
    %2096 = vmatprep.subr.mxu0 0.0
    %2097 = vmatpush1.msra.mxu0 0.0
    %2098 = vmatprep.subr.mxu0 0.0
    %2099 = vmatpush1.msra.mxu0 0.0
    %2100 = vmatprep.subr.mxu0 0.0
    %2101 = vmatpush1.msra.mxu0 0.0
    %2102 = vmatprep.subr.mxu0 0.0
    %2103 = vmatpush1.msra.mxu0 0.0
    %2104 = vmatprep.subr.mxu0 0.0
    %2105 = vmatpush1.msra.mxu0 0.0
    %2106 = vmatprep.subr.mxu0 0.0
    %2107 = vmatpush1.msra.mxu0 0.0
    %2108 = vmatprep.subr.mxu0 0.0
    %2109 = vmatpush1.msra.mxu0 0.0
    %2110 = vmatprep.subr.mxu0 0.0
    %2111 = vmatpush1.msra.mxu0 0.0
    %2112 = vmatprep.subr.mxu0 0.0
    %2113 = vmatpush1.msra.mxu0 0.0
    %2114 = vmatprep.subr.mxu0 0.0
    %2115 = vmatpush1.msra.mxu0 0.0
    %2116 = vmatprep.subr.mxu0 0.0
    %2117 = vmatpush1.msra.mxu0 0.0
    %2118 = vmatprep.subr.mxu0 0.0
    %2119 = vmatpush1.msra.mxu0 0.0
    %2120 = vmatprep.subr.mxu0 0.0
    %2121 = vmatpush1.msra.mxu0 0.0
    %2122 = vmatprep.subr.mxu0 0.0
    %2123 = vmatpush1.msra.mxu0 0.0
    %2124 = vmatprep.subr.mxu0 0.0
    %2125 = vmatpush1.msra.mxu0 0.0
    %2126 = vmatprep.subr.mxu0 0.0
    %2127 = vmatpush1.msra.mxu0 0.0
    %2128 = vmatprep.subr.mxu0 0.0
    %2129 = vmatpush1.msra.mxu0 0.0
    %2130 = vmatprep.subr.mxu0 0.0
    %2131 = vmatpush1.msra.mxu0 0.0
    %2132 = vmatprep.subr.mxu0 0.0
    %2133 = vmatpush1.msra.mxu0 0.0
    %2134 = vmatprep.subr.mxu0 0.0
    %2135 = vmatpush1.msra.mxu0 0.0
    %2136 = vmatprep.mubr.f32.mxu0 0.0
    %2137 = vmatmul.mubr.f32.gmra.mrb[0].mxu0 %v608
    %v2138 = vpop.f32.mrb[0].mxu0
    %v2139 = vadd.f32 %v2070, %v2138
    %v2140 = vpop.f32.mrb[0].mxu0
    %2141 = vdwg.mxu0
    %v2143 = vrot.slane %v2139, 1
    %v2146 = vadd.f32 %v1590, %v2139
    %v2147 = vadd.f32 %v1595, %v2143
    %v2148 = vxor.u32 %v2146, 2147483648
    %v2149 = vxor.u32 %v2147, 2147483648
    %v2150 = vmul.f32 %v2148, 1.442695
    %v2151 = vpow.pop %v2150
    %v2152 = vmul.f32 %v2149, 1.442695
    %v2153 = vpow.pop %v2152
    %v2154 = vadd.f32 %v2151, 1.0
    %v2155 = vadd.f32 %v2153, 1.0
    %v2156 = vrcp.pop %v2154
    %v2157 = vmul.f32 1.0, %v2156
    %v2158 = vrcp.pop %v2155
    %v2159 = vmul.f32 1.0, %v2158
    %2160 = vrot.lane.b32.xlu0 %v2139, 96
    %v2161 = vpop.permute.xlu0 %2160
    %2162 = vrot.lane.b32.xlu0 %v2143, 96
    %v2163 = vpop.permute.xlu0 %2162
    %v2166 = vmul.f32 %v2157, %v2161
    %v2167 = vmul.f32 %v2159, %v2163
    %2170 = vrot.lane.b32.xlu0 %v2166, 32
    %v2171 = vpop.permute.xlu0 %2170
    %2172 = vrot.lane.b32.xlu0 %v2167, 32
    %v2173 = vpop.permute.xlu0 %2172
    %v2176 = vadd.f32 %v1590, %v2171
    %v2177 = vadd.f32 %v1595, %v2173
    %v2178 = vtanh.pop %v2176
    %v2179 = vtanh.pop %v2177
    %v2180 = vlaneseq
    %v2181 = vshrl.u32 %v2180, 7
    %v2182 = vsub.s32 0, %v2181
    %v2183 = vrot.slane %v2063, %v2182
    %v2184 = vlaneseq
    %v2185 = vshrl.u32 %v2184, 7
    %v2186 = vsub.s32 0, %v2185
    %v2187 = vrot.slane %v2065, %v2186
    %v2190 = vlaneseq
    %v2191 = vshrl.u32 %v2190, 7
    %v2192 = vsub.s32 0, %v2191
    %v2193 = vrot.slane %v2178, %v2192
    %s2195 = sor.u32 256, 32
    %2196 = vbcast.lane.b32.xlu0 %v2193, %s2195
    %v2197 = vpop.permute.xlu0 %2196
    %s2199 = sor.u32 256, 40
    %2200 = vbcast.lane.b32.xlu0 %v2193, %s2199
    %v2201 = vpop.permute.xlu0 %2200
    %s2203 = sor.u32 256, 48
    %2204 = vbcast.lane.b32.xlu0 %v2193, %s2203
    %v2205 = vpop.permute.xlu0 %2204
    %s2207 = sor.u32 256, 56
    %2208 = vbcast.lane.b32.xlu0 %v2193, %s2207
    %v2209 = vpop.permute.xlu0 %2208
    %v2210 = vlaneseq
    %v2211 = vshrl.u32 %v2210, 7
    %v2212 = vsub.s32 0, %v2211
    %v2213 = vrot.slane %v2179, %v2212
    %s2215 = sor.u32 256, 32
    %2216 = vbcast.lane.b32.xlu0 %v2213, %s2215
    %v2217 = vpop.permute.xlu0 %2216
    %s2219 = sor.u32 256, 40
    %2220 = vbcast.lane.b32.xlu0 %v2213, %s2219
    %v2221 = vpop.permute.xlu0 %2220
    %s2223 = sor.u32 256, 48
    %2224 = vbcast.lane.b32.xlu0 %v2213, %s2223
    %v2225 = vpop.permute.xlu0 %2224
    %s2227 = sor.u32 256, 56
    %2228 = vbcast.lane.b32.xlu0 %v2213, %s2227
    %v2229 = vpop.permute.xlu0 %2228
    %v2238 = vmul.f32 %v2183, %v2197
    %v2239 = vmul.f32 %v2183, %v2201
    %v2240 = vmul.f32 %v2183, %v2205
    %v2241 = vmul.f32 %v2183, %v2209
    %v2242 = vmul.f32 %v2187, %v2217
    %v2243 = vmul.f32 %v2187, %v2221
    %v2244 = vmul.f32 %v2187, %v2225
    %v2245 = vmul.f32 %v2187, %v2229
    %v2246 = vsub.f32 1.0, %v2063
    %v2247 = vsub.f32 1.0, %v2065
    %v2248 = vlaneseq
    %v2249 = vshrl.u32 %v2248, 7
    %v2250 = vsub.s32 0, %v2249
    %v2251 = vrot.slane %v2246, %v2250
    %v2252 = vlaneseq
    %v2253 = vshrl.u32 %v2252, 7
    %v2254 = vsub.s32 0, %v2253
    %v2255 = vrot.slane %v2247, %v2254
    %v2256 = vmul.f32 %v2251, 0.0
    %v2257 = vmul.f32 %v2255, 0.0
    %v2258 = vadd.f32 %v2238, %v2256
    %v2259 = vadd.f32 %v2239, %v2256
    %v2260 = vadd.f32 %v2240, %v2256
    %v2261 = vadd.f32 %v2241, %v2256
    %v2262 = vadd.f32 %v2242, %v2257
    %v2263 = vadd.f32 %v2243, %v2257
    %v2264 = vadd.f32 %v2244, %v2257
    %v2265 = vadd.f32 %v2245, %v2257
    %2274 = vset.pattern.permute.xlu0 0
    %2275 = vperm.xlu0 %2274, %v2258
    %v2276 = vpop.permute.xlu0 %2275
    %2277 = vset.pattern.permute.xlu0 0
    %2278 = vperm.xlu0 %2277, %v2259
    %v2279 = vpop.permute.xlu0 %2278
    %2280 = vset.pattern.permute.xlu0 0
    %2281 = vperm.xlu0 %2280, %v2260
    %v2282 = vpop.permute.xlu0 %2281
    %2283 = vset.pattern.permute.xlu0 0
    %2284 = vperm.xlu0 %2283, %v2261
    %v2285 = vpop.permute.xlu0 %2284
    %2286 = vset.pattern.permute.xlu0 0
    %2287 = vperm.xlu0 %2286, %v2262
    %v2288 = vpop.permute.xlu0 %2287
    %2289 = vset.pattern.permute.xlu0 0
    %2290 = vperm.xlu0 %2289, %v2263
    %v2291 = vpop.permute.xlu0 %2290
    %2292 = vset.pattern.permute.xlu0 0
    %2293 = vperm.xlu0 %2292, %v2264
    %v2294 = vpop.permute.xlu0 %2293
    %2295 = vset.pattern.permute.xlu0 0
    %2296 = vperm.xlu0 %2295, %v2265
    %v2297 = vpop.permute.xlu0 %2296
    %v2298 = vlaneseq
    %v2299 = vshrl.u32 %v2298, 7
    %v2300 = vsub.s32 %v1998, %v2299
    %v2301 = vrot.slane %v2276, %v2300
    %v2302 = vadd.s32 %v1998, 4294967288
    %v2303 = vlaneseq
    %v2304 = vshrl.u32 %v2303, 7
    %v2305 = vsub.s32 %v2302, %v2304
    %v2306 = vrot.slane %v2279, %v2305
    %vm2307 = vcmask 130112
    %v2308 = vsel %vm2307, %v2306, %v2301
    %v2309 = vadd.s32 %v1998, 4294967280
    %v2310 = vlaneseq
    %v2311 = vshrl.u32 %v2310, 7
    %v2312 = vsub.s32 %v2309, %v2311
    %v2313 = vrot.slane %v2282, %v2312
    %vm2314 = vcmask 195712
    %v2315 = vsel %vm2314, %v2313, %v2308
    %v2316 = vadd.s32 %v1998, 4294967272
    %v2317 = vlaneseq
    %v2318 = vshrl.u32 %v2317, 7
    %v2319 = vsub.s32 %v2316, %v2318
    %v2320 = vrot.slane %v2285, %v2319
    %vm2321 = vcmask 261312
    %v2322 = vsel %vm2321, %v2320, %v2315
    %v2323 = vlaneseq
    %v2324 = vshrl.u32 %v2323, 7
    %v2325 = vsub.s32 %v1998, %v2324
    %v2326 = vrot.slane %v2288, %v2325
    %v2327 = vlaneseq
    %v2328 = vshrl.u32 %v2327, 7
    %v2329 = vsub.s32 %v2302, %v2328
    %v2330 = vrot.slane %v2291, %v2329
    %v2331 = vsel %vm2307, %v2330, %v2326
    %v2332 = vlaneseq
    %v2333 = vshrl.u32 %v2332, 7
    %v2334 = vsub.s32 %v2309, %v2333
    %v2335 = vrot.slane %v2294, %v2334
    %v2336 = vsel %vm2314, %v2335, %v2331
    %v2337 = vlaneseq
    %v2338 = vshrl.u32 %v2337, 7
    %v2339 = vsub.s32 %v2316, %v2338
    %v2340 = vrot.slane %v2297, %v2339
    %v2341 = vsel %vm2321, %v2340, %v2336
    %v2342 = vsel %vm751, %v2341, %v2322
    %v2343 = vsel %vm297, %v2342, 0
    %2345 = vmatprep.subr.mxu0 0.0
    %2346 = vmatpush1.msra.mxu0 %v1799
    %2347 = vmatprep.subr.mxu0 0.0
    %2348 = vmatpush1.msra.mxu0 %v1800
    %2349 = vmatprep.subr.mxu0 0.0
    %2350 = vmatpush1.msra.mxu0 %v1801
    %2351 = vmatprep.subr.mxu0 0.0
    %2352 = vmatpush1.msra.mxu0 %v1802
    %2353 = vmatprep.subr.mxu0 0.0
    %2354 = vmatpush1.msra.mxu0 0.0
    %2355 = vmatprep.subr.mxu0 0.0
    %2356 = vmatpush1.msra.mxu0 0.0
    %2357 = vmatprep.subr.mxu0 0.0
    %2358 = vmatpush1.msra.mxu0 0.0
    %2359 = vmatprep.subr.mxu0 0.0
    %2360 = vmatpush1.msra.mxu0 0.0
    %2361 = vmatprep.subr.mxu0 0.0
    %2362 = vmatpush1.msra.mxu0 0.0
    %2363 = vmatprep.subr.mxu0 0.0
    %2364 = vmatpush1.msra.mxu0 0.0
    %2365 = vmatprep.subr.mxu0 0.0
    %2366 = vmatpush1.msra.mxu0 0.0
    %2367 = vmatprep.subr.mxu0 0.0
    %2368 = vmatpush1.msra.mxu0 0.0
    %2369 = vmatprep.subr.mxu0 0.0
    %2370 = vmatpush1.msra.mxu0 0.0
    %2371 = vmatprep.subr.mxu0 0.0
    %2372 = vmatpush1.msra.mxu0 0.0
    %2373 = vmatprep.subr.mxu0 0.0
    %2374 = vmatpush1.msra.mxu0 0.0
    %2375 = vmatprep.subr.mxu0 0.0
    %2376 = vmatpush1.msra.mxu0 0.0
    %2377 = vmatprep.subr.mxu0 0.0
    %2378 = vmatpush1.msra.mxu0 0.0
    %2379 = vmatprep.subr.mxu0 0.0
    %2380 = vmatpush1.msra.mxu0 0.0
    %2381 = vmatprep.subr.mxu0 0.0
    %2382 = vmatpush1.msra.mxu0 0.0
    %2383 = vmatprep.subr.mxu0 0.0
    %2384 = vmatpush1.msra.mxu0 0.0
    %2385 = vmatprep.subr.mxu0 0.0
    %2386 = vmatpush1.msra.mxu0 0.0
    %2387 = vmatprep.subr.mxu0 0.0
    %2388 = vmatpush1.msra.mxu0 0.0
    %2389 = vmatprep.subr.mxu0 0.0
    %2390 = vmatpush1.msra.mxu0 0.0
    %2391 = vmatprep.subr.mxu0 0.0
    %2392 = vmatpush1.msra.mxu0 0.0
    %2393 = vmatprep.subr.mxu0 0.0
    %2394 = vmatpush1.msra.mxu0 0.0
    %2395 = vmatprep.subr.mxu0 0.0
    %2396 = vmatpush1.msra.mxu0 0.0
    %2397 = vmatprep.subr.mxu0 0.0
    %2398 = vmatpush1.msra.mxu0 0.0
    %2399 = vmatprep.subr.mxu0 0.0
    %2400 = vmatpush1.msra.mxu0 0.0
    %2401 = vmatprep.subr.mxu0 0.0
    %2402 = vmatpush1.msra.mxu0 0.0
    %2403 = vmatprep.subr.mxu0 0.0
    %2404 = vmatpush1.msra.mxu0 0.0
    %2405 = vmatprep.subr.mxu0 0.0
    %2406 = vmatpush1.msra.mxu0 0.0
    %2407 = vmatprep.subr.mxu0 0.0
    %2408 = vmatpush1.msra.mxu0 0.0
    %2409 = vmatprep.mubr.f32.mxu0 0.0
    %2410 = vmatmul.mubr.f32.gmra.mrb[0].mxu0 %v2343
    %v2411 = vpop.f32.mrb[0].mxu0
    %v2412 = vadd.f32 %v2070, %v2411
    %v2413 = vpop.f32.mrb[0].mxu0
    %2414 = vdwg.mxu0
    %v2416 = vrot.slane %v2412, 7
    %v2419 = vadd.f32 %v1590, %v2416
    %v2420 = vadd.f32 %v1595, %v2412
    %v2421 = vxor.u32 %v2419, 2147483648
    %v2422 = vxor.u32 %v2420, 2147483648
    %v2423 = vmul.f32 %v2421, 1.442695
    %v2424 = vpow.pop %v2423
    %v2425 = vmul.f32 %v2422, 1.442695
    %v2426 = vpow.pop %v2425
    %v2427 = vadd.f32 %v2424, 1.0
    %v2428 = vadd.f32 %v2426, 1.0
    %v2429 = vrcp.pop %v2427
    %v2430 = vmul.f32 1.0, %v2429
    %v2431 = vrcp.pop %v2428
    %v2432 = vmul.f32 1.0, %v2431
    %2433 = vrot.lane.b32.xlu0 %v2416, 96
    %v2434 = vpop.permute.xlu0 %2433
    %2435 = vrot.lane.b32.xlu0 %v2412, 96
    %v2436 = vpop.permute.xlu0 %2435
    %v2439 = vmul.f32 %v2430, %v2434
    %v2440 = vmul.f32 %v2432, %v2436
    %2443 = vrot.lane.b32.xlu0 %v2439, 32
    %v2444 = vpop.permute.xlu0 %2443
    %2445 = vrot.lane.b32.xlu0 %v2440, 32
    %v2446 = vpop.permute.xlu0 %2445
    %v2449 = vadd.f32 %v1590, %v2444
    %v2450 = vadd.f32 %v1595, %v2446
    %v2451 = vtanh.pop %v2449
    %v2452 = vtanh.pop %v2450
    %v2453 = vlaneseq
    %v2454 = vshrl.u32 %v2453, 7
    %v2455 = vsub.s32 1, %v2454
    %v2456 = vrot.slane %v2063, %v2455
    %v2457 = vlaneseq
    %v2458 = vshrl.u32 %v2457, 7
    %v2459 = vsub.s32 1, %v2458
    %v2460 = vrot.slane %v2065, %v2459
    %v2463 = vlaneseq
    %v2464 = vshrl.u32 %v2463, 7
    %v2465 = vsub.s32 1, %v2464
    %v2466 = vrot.slane %v2451, %v2465
    %s2468 = sor.u32 256, 32
    %2469 = vbcast.lane.b32.xlu0 %v2466, %s2468
    %v2470 = vpop.permute.xlu0 %2469
    %s2472 = sor.u32 256, 40
    %2473 = vbcast.lane.b32.xlu0 %v2466, %s2472
    %v2474 = vpop.permute.xlu0 %2473
    %s2476 = sor.u32 256, 48
    %2477 = vbcast.lane.b32.xlu0 %v2466, %s2476
    %v2478 = vpop.permute.xlu0 %2477
    %s2480 = sor.u32 256, 56
    %2481 = vbcast.lane.b32.xlu0 %v2466, %s2480
    %v2482 = vpop.permute.xlu0 %2481
    %v2483 = vlaneseq
    %v2484 = vshrl.u32 %v2483, 7
    %v2485 = vsub.s32 1, %v2484
    %v2486 = vrot.slane %v2452, %v2485
    %s2488 = sor.u32 256, 32
    %2489 = vbcast.lane.b32.xlu0 %v2486, %s2488
    %v2490 = vpop.permute.xlu0 %2489
    %s2492 = sor.u32 256, 40
    %2493 = vbcast.lane.b32.xlu0 %v2486, %s2492
    %v2494 = vpop.permute.xlu0 %2493
    %s2496 = sor.u32 256, 48
    %2497 = vbcast.lane.b32.xlu0 %v2486, %s2496
    %v2498 = vpop.permute.xlu0 %2497
    %s2500 = sor.u32 256, 56
    %2501 = vbcast.lane.b32.xlu0 %v2486, %s2500
    %v2502 = vpop.permute.xlu0 %2501
    %v2511 = vmul.f32 %v2456, %v2470
    %v2512 = vmul.f32 %v2456, %v2474
    %v2513 = vmul.f32 %v2456, %v2478
    %v2514 = vmul.f32 %v2456, %v2482
    %v2515 = vmul.f32 %v2460, %v2490
    %v2516 = vmul.f32 %v2460, %v2494
    %v2517 = vmul.f32 %v2460, %v2498
    %v2518 = vmul.f32 %v2460, %v2502
    %v2519 = vlaneseq
    %v2520 = vshrl.u32 %v2519, 7
    %v2521 = vsub.s32 1, %v2520
    %v2522 = vrot.slane %v2246, %v2521
    %v2523 = vlaneseq
    %v2524 = vshrl.u32 %v2523, 7
    %v2525 = vsub.s32 1, %v2524
    %v2526 = vrot.slane %v2247, %v2525
    %v2527 = vmul.f32 %v2522, %v2258
    %v2528 = vmul.f32 %v2522, %v2259
    %v2529 = vmul.f32 %v2522, %v2260
    %v2530 = vmul.f32 %v2522, %v2261
    %v2531 = vmul.f32 %v2526, %v2262
    %v2532 = vmul.f32 %v2526, %v2263
    %v2533 = vmul.f32 %v2526, %v2264
    %v2534 = vmul.f32 %v2526, %v2265
    %v2535 = vadd.f32 %v2511, %v2527
    %v2536 = vadd.f32 %v2512, %v2528
    %v2537 = vadd.f32 %v2513, %v2529
    %v2538 = vadd.f32 %v2514, %v2530
    %v2539 = vadd.f32 %v2515, %v2531
    %v2540 = vadd.f32 %v2516, %v2532
    %v2541 = vadd.f32 %v2517, %v2533
    %v2542 = vadd.f32 %v2518, %v2534
    %2551 = vset.pattern.permute.xlu0 0
    %2552 = vperm.xlu0 %2551, %v2535
    %v2553 = vpop.permute.xlu0 %2552
    %2554 = vset.pattern.permute.xlu0 0
    %2555 = vperm.xlu0 %2554, %v2536
    %v2556 = vpop.permute.xlu0 %2555
    %2557 = vset.pattern.permute.xlu0 0
    %2558 = vperm.xlu0 %2557, %v2537
    %v2559 = vpop.permute.xlu0 %2558
    %2560 = vset.pattern.permute.xlu0 0
    %2561 = vperm.xlu0 %2560, %v2538
    %v2562 = vpop.permute.xlu0 %2561
    %2563 = vset.pattern.permute.xlu0 0
    %2564 = vperm.xlu0 %2563, %v2539
    %v2565 = vpop.permute.xlu0 %2564
    %2566 = vset.pattern.permute.xlu0 0
    %2567 = vperm.xlu0 %2566, %v2540
    %v2568 = vpop.permute.xlu0 %2567
    %2569 = vset.pattern.permute.xlu0 0
    %2570 = vperm.xlu0 %2569, %v2541
    %v2571 = vpop.permute.xlu0 %2570
    %2572 = vset.pattern.permute.xlu0 0
    %2573 = vperm.xlu0 %2572, %v2542
    %v2574 = vpop.permute.xlu0 %2573
    %v2575 = vlaneseq
    %v2576 = vshrl.u32 %v2575, 7
    %v2577 = vsub.s32 %v1998, %v2576
    %v2578 = vrot.slane %v2553, %v2577
    %v2579 = vlaneseq
    %v2580 = vshrl.u32 %v2579, 7
    %v2581 = vsub.s32 %v2302, %v2580
    %v2582 = vrot.slane %v2556, %v2581
    %v2583 = vsel %vm2307, %v2582, %v2578
    %v2584 = vlaneseq
    %v2585 = vshrl.u32 %v2584, 7
    %v2586 = vsub.s32 %v2309, %v2585
    %v2587 = vrot.slane %v2559, %v2586
    %v2588 = vsel %vm2314, %v2587, %v2583
    %v2589 = vlaneseq
    %v2590 = vshrl.u32 %v2589, 7
    %v2591 = vsub.s32 %v2316, %v2590
    %v2592 = vrot.slane %v2562, %v2591
    %v2593 = vsel %vm2321, %v2592, %v2588
    %v2594 = vlaneseq
    %v2595 = vshrl.u32 %v2594, 7
    %v2596 = vsub.s32 %v1998, %v2595
    %v2597 = vrot.slane %v2565, %v2596
    %v2598 = vlaneseq
    %v2599 = vshrl.u32 %v2598, 7
    %v2600 = vsub.s32 %v2302, %v2599
    %v2601 = vrot.slane %v2568, %v2600
    %v2602 = vsel %vm2307, %v2601, %v2597
    %v2603 = vlaneseq
    %v2604 = vshrl.u32 %v2603, 7
    %v2605 = vsub.s32 %v2309, %v2604
    %v2606 = vrot.slane %v2571, %v2605
    %v2607 = vsel %vm2314, %v2606, %v2602
    %v2608 = vlaneseq
    %v2609 = vshrl.u32 %v2608, 7
    %v2610 = vsub.s32 %v2316, %v2609
    %v2611 = vrot.slane %v2574, %v2610
    %v2612 = vsel %vm2321, %v2611, %v2607
    %v2613 = vsel %vm751, %v2612, %v2593
    %v2614 = vsel %vm297, %v2613, 0
    %2616 = vmatprep.subr.mxu0 0.0
    %2617 = vmatpush1.msra.mxu0 %v1799
    %2618 = vmatprep.subr.mxu0 0.0
    %2619 = vmatpush1.msra.mxu0 %v1800
    %2620 = vmatprep.subr.mxu0 0.0
    %2621 = vmatpush1.msra.mxu0 %v1801
    %2622 = vmatprep.subr.mxu0 0.0
    %2623 = vmatpush1.msra.mxu0 %v1802
    %2624 = vmatprep.subr.mxu0 0.0
    %2625 = vmatpush1.msra.mxu0 0.0
    %2626 = vmatprep.subr.mxu0 0.0
    %2627 = vmatpush1.msra.mxu0 0.0
    %2628 = vmatprep.subr.mxu0 0.0
    %2629 = vmatpush1.msra.mxu0 0.0
    %2630 = vmatprep.subr.mxu0 0.0
    %2631 = vmatpush1.msra.mxu0 0.0
    %2632 = vmatprep.subr.mxu0 0.0
    %2633 = vmatpush1.msra.mxu0 0.0
    %2634 = vmatprep.subr.mxu0 0.0
    %2635 = vmatpush1.msra.mxu0 0.0
    %2636 = vmatprep.subr.mxu0 0.0
    %2637 = vmatpush1.msra.mxu0 0.0
    %2638 = vmatprep.subr.mxu0 0.0
    %2639 = vmatpush1.msra.mxu0 0.0
    %2640 = vmatprep.subr.mxu0 0.0
    %2641 = vmatpush1.msra.mxu0 0.0
    %2642 = vmatprep.subr.mxu0 0.0
    %2643 = vmatpush1.msra.mxu0 0.0
    %2644 = vmatprep.subr.mxu0 0.0
    %2645 = vmatpush1.msra.mxu0 0.0
    %2646 = vmatprep.subr.mxu0 0.0
    %2647 = vmatpush1.msra.mxu0 0.0
    %2648 = vmatprep.subr.mxu0 0.0
    %2649 = vmatpush1.msra.mxu0 0.0
    %2650 = vmatprep.subr.mxu0 0.0
    %2651 = vmatpush1.msra.mxu0 0.0
    %2652 = vmatprep.subr.mxu0 0.0
    %2653 = vmatpush1.msra.mxu0 0.0
    %2654 = vmatprep.subr.mxu0 0.0
    %2655 = vmatpush1.msra.mxu0 0.0
    %2656 = vmatprep.subr.mxu0 0.0
    %2657 = vmatpush1.msra.mxu0 0.0
    %2658 = vmatprep.subr.mxu0 0.0
    %2659 = vmatpush1.msra.mxu0 0.0
    %2660 = vmatprep.subr.mxu0 0.0
    %2661 = vmatpush1.msra.mxu0 0.0
    %2662 = vmatprep.subr.mxu0 0.0
    %2663 = vmatpush1.msra.mxu0 0.0
    %2664 = vmatprep.subr.mxu0 0.0
    %2665 = vmatpush1.msra.mxu0 0.0
    %2666 = vmatprep.subr.mxu0 0.0
    %2667 = vmatpush1.msra.mxu0 0.0
    %2668 = vmatprep.subr.mxu0 0.0
    %2669 = vmatpush1.msra.mxu0 0.0
    %2670 = vmatprep.subr.mxu0 0.0
    %2671 = vmatpush1.msra.mxu0 0.0
    %2672 = vmatprep.subr.mxu0 0.0
    %2673 = vmatpush1.msra.mxu0 0.0
    %2674 = vmatprep.subr.mxu0 0.0
    %2675 = vmatpush1.msra.mxu0 0.0
    %2676 = vmatprep.subr.mxu0 0.0
    %2677 = vmatpush1.msra.mxu0 0.0
    %2678 = vmatprep.subr.mxu0 0.0
    %2679 = vmatpush1.msra.mxu0 0.0
    %2680 = vmatprep.mubr.f32.mxu0 0.0
    %2681 = vmatmul.mubr.f32.gmra.mrb[0].mxu0 %v2614
    %v2682 = vpop.f32.mrb[0].mxu0
    %v2683 = vadd.f32 %v2070, %v2682
    %v2684 = vpop.f32.mrb[0].mxu0
    %2685 = vdwg.mxu0
    %v2687 = vrot.slane %v2683, 6
    %v2688 = vrot.slane %v2683, 7
    %v2691 = vadd.f32 %v1590, %v2687
    %v2692 = vadd.f32 %v1595, %v2688
    %v2693 = vxor.u32 %v2691, 2147483648
    %v2694 = vxor.u32 %v2692, 2147483648
    %v2695 = vmul.f32 %v2693, 1.442695
    %v2696 = vpow.pop %v2695
    %v2697 = vmul.f32 %v2694, 1.442695
    %v2698 = vpow.pop %v2697
    %v2699 = vadd.f32 %v2696, 1.0
    %v2700 = vadd.f32 %v2698, 1.0
    %v2701 = vrcp.pop %v2699
    %v2702 = vmul.f32 1.0, %v2701
    %v2703 = vrcp.pop %v2700
    %v2704 = vmul.f32 1.0, %v2703
    %2705 = vrot.lane.b32.xlu0 %v2687, 96
    %v2706 = vpop.permute.xlu0 %2705
    %2707 = vrot.lane.b32.xlu0 %v2688, 96
    %v2708 = vpop.permute.xlu0 %2707
    %v2711 = vmul.f32 %v2702, %v2706
    %v2712 = vmul.f32 %v2704, %v2708
    %2715 = vrot.lane.b32.xlu0 %v2711, 32
    %v2716 = vpop.permute.xlu0 %2715
    %2717 = vrot.lane.b32.xlu0 %v2712, 32
    %v2718 = vpop.permute.xlu0 %2717
    %v2721 = vadd.f32 %v1590, %v2716
    %v2722 = vadd.f32 %v1595, %v2718
    %v2723 = vtanh.pop %v2721
    %v2724 = vtanh.pop %v2722
    %v2725 = vlaneseq
    %v2726 = vshrl.u32 %v2725, 7
    %v2727 = vsub.s32 2, %v2726
    %v2728 = vrot.slane %v2063, %v2727
    %v2729 = vlaneseq
    %v2730 = vshrl.u32 %v2729, 7
    %v2731 = vsub.s32 2, %v2730
    %v2732 = vrot.slane %v2065, %v2731
    %v2735 = vlaneseq
    %v2736 = vshrl.u32 %v2735, 7
    %v2737 = vsub.s32 2, %v2736
    %v2738 = vrot.slane %v2723, %v2737
    %s2740 = sor.u32 256, 32
    %2741 = vbcast.lane.b32.xlu0 %v2738, %s2740
    %v2742 = vpop.permute.xlu0 %2741
    %s2744 = sor.u32 256, 40
    %2745 = vbcast.lane.b32.xlu0 %v2738, %s2744
    %v2746 = vpop.permute.xlu0 %2745
    %s2748 = sor.u32 256, 48
    %2749 = vbcast.lane.b32.xlu0 %v2738, %s2748
    %v2750 = vpop.permute.xlu0 %2749
    %s2752 = sor.u32 256, 56
    %2753 = vbcast.lane.b32.xlu0 %v2738, %s2752
    %v2754 = vpop.permute.xlu0 %2753
    %v2755 = vlaneseq
    %v2756 = vshrl.u32 %v2755, 7
    %v2757 = vsub.s32 2, %v2756
    %v2758 = vrot.slane %v2724, %v2757
    %s2760 = sor.u32 256, 32
    %2761 = vbcast.lane.b32.xlu0 %v2758, %s2760
    %v2762 = vpop.permute.xlu0 %2761
    %s2764 = sor.u32 256, 40
    %2765 = vbcast.lane.b32.xlu0 %v2758, %s2764
    %v2766 = vpop.permute.xlu0 %2765
    %s2768 = sor.u32 256, 48
    %2769 = vbcast.lane.b32.xlu0 %v2758, %s2768
    %v2770 = vpop.permute.xlu0 %2769
    %s2772 = sor.u32 256, 56
    %2773 = vbcast.lane.b32.xlu0 %v2758, %s2772
    %v2774 = vpop.permute.xlu0 %2773
    %v2783 = vmul.f32 %v2728, %v2742
    %v2784 = vmul.f32 %v2728, %v2746
    %v2785 = vmul.f32 %v2728, %v2750
    %v2786 = vmul.f32 %v2728, %v2754
    %v2787 = vmul.f32 %v2732, %v2762
    %v2788 = vmul.f32 %v2732, %v2766
    %v2789 = vmul.f32 %v2732, %v2770
    %v2790 = vmul.f32 %v2732, %v2774
    %v2791 = vlaneseq
    %v2792 = vshrl.u32 %v2791, 7
    %v2793 = vsub.s32 2, %v2792
    %v2794 = vrot.slane %v2246, %v2793
    %v2795 = vlaneseq
    %v2796 = vshrl.u32 %v2795, 7
    %v2797 = vsub.s32 2, %v2796
    %v2798 = vrot.slane %v2247, %v2797
    %v2799 = vmul.f32 %v2794, %v2535
    %v2800 = vmul.f32 %v2794, %v2536
    %v2801 = vmul.f32 %v2794, %v2537
    %v2802 = vmul.f32 %v2794, %v2538
    %v2803 = vmul.f32 %v2798, %v2539
    %v2804 = vmul.f32 %v2798, %v2540
    %v2805 = vmul.f32 %v2798, %v2541
    %v2806 = vmul.f32 %v2798, %v2542
    %v2807 = vadd.f32 %v2783, %v2799
    %v2808 = vadd.f32 %v2784, %v2800
    %v2809 = vadd.f32 %v2785, %v2801
    %v2810 = vadd.f32 %v2786, %v2802
    %v2811 = vadd.f32 %v2787, %v2803
    %v2812 = vadd.f32 %v2788, %v2804
    %v2813 = vadd.f32 %v2789, %v2805
    %v2814 = vadd.f32 %v2790, %v2806
    %2823 = vset.pattern.permute.xlu0 0
    %2824 = vperm.xlu0 %2823, %v2807
    %v2825 = vpop.permute.xlu0 %2824
    %2826 = vset.pattern.permute.xlu0 0
    %2827 = vperm.xlu0 %2826, %v2808
    %v2828 = vpop.permute.xlu0 %2827
    %2829 = vset.pattern.permute.xlu0 0
    %2830 = vperm.xlu0 %2829, %v2809
    %v2831 = vpop.permute.xlu0 %2830
    %2832 = vset.pattern.permute.xlu0 0
    %2833 = vperm.xlu0 %2832, %v2810
    %v2834 = vpop.permute.xlu0 %2833
    %2835 = vset.pattern.permute.xlu0 0
    %2836 = vperm.xlu0 %2835, %v2811
    %v2837 = vpop.permute.xlu0 %2836
    %2838 = vset.pattern.permute.xlu0 0
    %2839 = vperm.xlu0 %2838, %v2812
    %v2840 = vpop.permute.xlu0 %2839
    %2841 = vset.pattern.permute.xlu0 0
    %2842 = vperm.xlu0 %2841, %v2813
    %v2843 = vpop.permute.xlu0 %2842
    %2844 = vset.pattern.permute.xlu0 0
    %2845 = vperm.xlu0 %2844, %v2814
    %v2846 = vpop.permute.xlu0 %2845
    %v2847 = vlaneseq
    %v2848 = vshrl.u32 %v2847, 7
    %v2849 = vsub.s32 %v1998, %v2848
    %v2850 = vrot.slane %v2825, %v2849
    %v2851 = vlaneseq
    %v2852 = vshrl.u32 %v2851, 7
    %v2853 = vsub.s32 %v2302, %v2852
    %v2854 = vrot.slane %v2828, %v2853
    %v2855 = vsel %vm2307, %v2854, %v2850
    %v2856 = vlaneseq
    %v2857 = vshrl.u32 %v2856, 7
    %v2858 = vsub.s32 %v2309, %v2857
    %v2859 = vrot.slane %v2831, %v2858
    %v2860 = vsel %vm2314, %v2859, %v2855
    %v2861 = vlaneseq
    %v2862 = vshrl.u32 %v2861, 7
    %v2863 = vsub.s32 %v2316, %v2862
    %v2864 = vrot.slane %v2834, %v2863
    %v2865 = vsel %vm2321, %v2864, %v2860
    %v2866 = vlaneseq
    %v2867 = vshrl.u32 %v2866, 7
    %v2868 = vsub.s32 %v1998, %v2867
    %v2869 = vrot.slane %v2837, %v2868
    %v2870 = vlaneseq
    %v2871 = vshrl.u32 %v2870, 7
    %v2872 = vsub.s32 %v2302, %v2871
    %v2873 = vrot.slane %v2840, %v2872
    %v2874 = vsel %vm2307, %v2873, %v2869
    %v2875 = vlaneseq
    %v2876 = vshrl.u32 %v2875, 7
    %v2877 = vsub.s32 %v2309, %v2876
    %v2878 = vrot.slane %v2843, %v2877
    %v2879 = vsel %vm2314, %v2878, %v2874
    %v2880 = vlaneseq
    %v2881 = vshrl.u32 %v2880, 7
    %v2882 = vsub.s32 %v2316, %v2881
    %v2883 = vrot.slane %v2846, %v2882
    %v2884 = vsel %vm2321, %v2883, %v2879
    %v2885 = vsel %vm751, %v2884, %v2865
    %v2886 = vsel %vm297, %v2885, 0
    %2888 = vmatprep.subr.mxu0 0.0
    %2889 = vmatpush1.msra.mxu0 %v1799
    %2890 = vmatprep.subr.mxu0 0.0
    %2891 = vmatpush1.msra.mxu0 %v1800
    %2892 = vmatprep.subr.mxu0 0.0
    %2893 = vmatpush1.msra.mxu0 %v1801
    %2894 = vmatprep.subr.mxu0 0.0
    %2895 = vmatpush1.msra.mxu0 %v1802
    %2896 = vmatprep.subr.mxu0 0.0
    %2897 = vmatpush1.msra.mxu0 0.0
    %2898 = vmatprep.subr.mxu0 0.0
    %2899 = vmatpush1.msra.mxu0 0.0
    %2900 = vmatprep.subr.mxu0 0.0
    %2901 = vmatpush1.msra.mxu0 0.0
    %2902 = vmatprep.subr.mxu0 0.0
    %2903 = vmatpush1.msra.mxu0 0.0
    %2904 = vmatprep.subr.mxu0 0.0
    %2905 = vmatpush1.msra.mxu0 0.0
    %2906 = vmatprep.subr.mxu0 0.0
    %2907 = vmatpush1.msra.mxu0 0.0
    %2908 = vmatprep.subr.mxu0 0.0
    %2909 = vmatpush1.msra.mxu0 0.0
    %2910 = vmatprep.subr.mxu0 0.0
    %2911 = vmatpush1.msra.mxu0 0.0
    %2912 = vmatprep.subr.mxu0 0.0
    %2913 = vmatpush1.msra.mxu0 0.0
    %2914 = vmatprep.subr.mxu0 0.0
    %2915 = vmatpush1.msra.mxu0 0.0
    %2916 = vmatprep.subr.mxu0 0.0
    %2917 = vmatpush1.msra.mxu0 0.0
    %2918 = vmatprep.subr.mxu0 0.0
    %2919 = vmatpush1.msra.mxu0 0.0
    %2920 = vmatprep.subr.mxu0 0.0
    %2921 = vmatpush1.msra.mxu0 0.0
    %2922 = vmatprep.subr.mxu0 0.0
    %2923 = vmatpush1.msra.mxu0 0.0
    %2924 = vmatprep.subr.mxu0 0.0
    %2925 = vmatpush1.msra.mxu0 0.0
    %2926 = vmatprep.subr.mxu0 0.0
    %2927 = vmatpush1.msra.mxu0 0.0
    %2928 = vmatprep.subr.mxu0 0.0
    %2929 = vmatpush1.msra.mxu0 0.0
    %2930 = vmatprep.subr.mxu0 0.0
    %2931 = vmatpush1.msra.mxu0 0.0
    %2932 = vmatprep.subr.mxu0 0.0
    %2933 = vmatpush1.msra.mxu0 0.0
    %2934 = vmatprep.subr.mxu0 0.0
    %2935 = vmatpush1.msra.mxu0 0.0
    %2936 = vmatprep.subr.mxu0 0.0
    %2937 = vmatpush1.msra.mxu0 0.0
    %2938 = vmatprep.subr.mxu0 0.0
    %2939 = vmatpush1.msra.mxu0 0.0
    %2940 = vmatprep.subr.mxu0 0.0
    %2941 = vmatpush1.msra.mxu0 0.0
    %2942 = vmatprep.subr.mxu0 0.0
    %2943 = vmatpush1.msra.mxu0 0.0
    %2944 = vmatprep.subr.mxu0 0.0
    %2945 = vmatpush1.msra.mxu0 0.0
    %2946 = vmatprep.subr.mxu0 0.0
    %2947 = vmatpush1.msra.mxu0 0.0
    %2948 = vmatprep.subr.mxu0 0.0
    %2949 = vmatpush1.msra.mxu0 0.0
    %2950 = vmatprep.subr.mxu0 0.0
    %2951 = vmatpush1.msra.mxu0 0.0
    %2952 = vmatprep.mubr.f32.mxu0 0.0
    %2953 = vmatmul.mubr.f32.gmra.mrb[0].mxu0 %v2886
    %v2954 = vpop.f32.mrb[0].mxu0
    %v2955 = vadd.f32 %v2070, %v2954
    %v2956 = vpop.f32.mrb[0].mxu0
    %2957 = vdwg.mxu0
    %v2959 = vrot.slane %v2955, 5
    %v2960 = vrot.slane %v2955, 6
    %v2963 = vadd.f32 %v1590, %v2959
    %v2964 = vadd.f32 %v1595, %v2960
    %v2965 = vxor.u32 %v2963, 2147483648
    %v2966 = vxor.u32 %v2964, 2147483648
    %v2967 = vmul.f32 %v2965, 1.442695
    %v2968 = vpow.pop %v2967
    %v2969 = vmul.f32 %v2966, 1.442695
    %v2970 = vpow.pop %v2969
    %v2971 = vadd.f32 %v2968, 1.0
    %v2972 = vadd.f32 %v2970, 1.0
    %v2973 = vrcp.pop %v2971
    %v2974 = vmul.f32 1.0, %v2973
    %v2975 = vrcp.pop %v2972
    %v2976 = vmul.f32 1.0, %v2975
    %2977 = vrot.lane.b32.xlu0 %v2959, 96
    %v2978 = vpop.permute.xlu0 %2977
    %2979 = vrot.lane.b32.xlu0 %v2960, 96
    %v2980 = vpop.permute.xlu0 %2979
    %v2983 = vmul.f32 %v2974, %v2978
    %v2984 = vmul.f32 %v2976, %v2980
    %2987 = vrot.lane.b32.xlu0 %v2983, 32
    %v2988 = vpop.permute.xlu0 %2987
    %2989 = vrot.lane.b32.xlu0 %v2984, 32
    %v2990 = vpop.permute.xlu0 %2989
    %v2993 = vadd.f32 %v1590, %v2988
    %v2994 = vadd.f32 %v1595, %v2990
    %v2995 = vtanh.pop %v2993
    %v2996 = vtanh.pop %v2994
    %v2997 = vlaneseq
    %v2998 = vshrl.u32 %v2997, 7
    %v2999 = vsub.s32 3, %v2998
    %v3000 = vrot.slane %v2063, %v2999
    %v3001 = vlaneseq
    %v3002 = vshrl.u32 %v3001, 7
    %v3003 = vsub.s32 3, %v3002
    %v3004 = vrot.slane %v2065, %v3003
    %v3007 = vlaneseq
    %v3008 = vshrl.u32 %v3007, 7
    %v3009 = vsub.s32 3, %v3008
    %v3010 = vrot.slane %v2995, %v3009
    %s3012 = sor.u32 256, 32
    %3013 = vbcast.lane.b32.xlu0 %v3010, %s3012
    %v3014 = vpop.permute.xlu0 %3013
    %s3016 = sor.u32 256, 40
    %3017 = vbcast.lane.b32.xlu0 %v3010, %s3016
    %v3018 = vpop.permute.xlu0 %3017
    %s3020 = sor.u32 256, 48
    %3021 = vbcast.lane.b32.xlu0 %v3010, %s3020
    %v3022 = vpop.permute.xlu0 %3021
    %s3024 = sor.u32 256, 56
    %3025 = vbcast.lane.b32.xlu0 %v3010, %s3024
    %v3026 = vpop.permute.xlu0 %3025
    %v3027 = vlaneseq
    %v3028 = vshrl.u32 %v3027, 7
    %v3029 = vsub.s32 3, %v3028
    %v3030 = vrot.slane %v2996, %v3029
    %s3032 = sor.u32 256, 32
    %3033 = vbcast.lane.b32.xlu0 %v3030, %s3032
    %v3034 = vpop.permute.xlu0 %3033
    %s3036 = sor.u32 256, 40
    %3037 = vbcast.lane.b32.xlu0 %v3030, %s3036
    %v3038 = vpop.permute.xlu0 %3037
    %s3040 = sor.u32 256, 48
    %3041 = vbcast.lane.b32.xlu0 %v3030, %s3040
    %v3042 = vpop.permute.xlu0 %3041
    %s3044 = sor.u32 256, 56
    %3045 = vbcast.lane.b32.xlu0 %v3030, %s3044
    %v3046 = vpop.permute.xlu0 %3045
    %v3055 = vmul.f32 %v3000, %v3014
    %v3056 = vmul.f32 %v3000, %v3018
    %v3057 = vmul.f32 %v3000, %v3022
    %v3058 = vmul.f32 %v3000, %v3026
    %v3059 = vmul.f32 %v3004, %v3034
    %v3060 = vmul.f32 %v3004, %v3038
    %v3061 = vmul.f32 %v3004, %v3042
    %v3062 = vmul.f32 %v3004, %v3046
    %v3063 = vlaneseq
    %v3064 = vshrl.u32 %v3063, 7
    %v3065 = vsub.s32 3, %v3064
    %v3066 = vrot.slane %v2246, %v3065
    %v3067 = vlaneseq
    %v3068 = vshrl.u32 %v3067, 7
    %v3069 = vsub.s32 3, %v3068
    %v3070 = vrot.slane %v2247, %v3069
    %v3071 = vmul.f32 %v3066, %v2807
    %v3072 = vmul.f32 %v3066, %v2808
    %v3073 = vmul.f32 %v3066, %v2809
    %v3074 = vmul.f32 %v3066, %v2810
    %v3075 = vmul.f32 %v3070, %v2811
    %v3076 = vmul.f32 %v3070, %v2812
    %v3077 = vmul.f32 %v3070, %v2813
    %v3078 = vmul.f32 %v3070, %v2814
    %v3079 = vadd.f32 %v3055, %v3071
    %v3080 = vadd.f32 %v3056, %v3072
    %v3081 = vadd.f32 %v3057, %v3073
    %v3082 = vadd.f32 %v3058, %v3074
    %v3083 = vadd.f32 %v3059, %v3075
    %v3084 = vadd.f32 %v3060, %v3076
    %v3085 = vadd.f32 %v3061, %v3077
    %v3086 = vadd.f32 %v3062, %v3078
    %3095 = vset.pattern.permute.xlu0 0
    %3096 = vperm.xlu0 %3095, %v3079
    %v3097 = vpop.permute.xlu0 %3096
    %3098 = vset.pattern.permute.xlu0 0
    %3099 = vperm.xlu0 %3098, %v3080
    %v3100 = vpop.permute.xlu0 %3099
    %3101 = vset.pattern.permute.xlu0 0
    %3102 = vperm.xlu0 %3101, %v3081
    %v3103 = vpop.permute.xlu0 %3102
    %3104 = vset.pattern.permute.xlu0 0
    %3105 = vperm.xlu0 %3104, %v3082
    %v3106 = vpop.permute.xlu0 %3105
    %3107 = vset.pattern.permute.xlu0 0
    %3108 = vperm.xlu0 %3107, %v3083
    %v3109 = vpop.permute.xlu0 %3108
    %3110 = vset.pattern.permute.xlu0 0
    %3111 = vperm.xlu0 %3110, %v3084
    %v3112 = vpop.permute.xlu0 %3111
    %3113 = vset.pattern.permute.xlu0 0
    %3114 = vperm.xlu0 %3113, %v3085
    %v3115 = vpop.permute.xlu0 %3114
    %3116 = vset.pattern.permute.xlu0 0
    %3117 = vperm.xlu0 %3116, %v3086
    %v3118 = vpop.permute.xlu0 %3117
    %v3119 = vlaneseq
    %v3120 = vshrl.u32 %v3119, 7
    %v3121 = vsub.s32 %v1998, %v3120
    %v3122 = vrot.slane %v3097, %v3121
    %v3123 = vlaneseq
    %v3124 = vshrl.u32 %v3123, 7
    %v3125 = vsub.s32 %v2302, %v3124
    %v3126 = vrot.slane %v3100, %v3125
    %v3127 = vsel %vm2307, %v3126, %v3122
    %v3128 = vlaneseq
    %v3129 = vshrl.u32 %v3128, 7
    %v3130 = vsub.s32 %v2309, %v3129
    %v3131 = vrot.slane %v3103, %v3130
    %v3132 = vsel %vm2314, %v3131, %v3127
    %v3133 = vlaneseq
    %v3134 = vshrl.u32 %v3133, 7
    %v3135 = vsub.s32 %v2316, %v3134
    %v3136 = vrot.slane %v3106, %v3135
    %v3137 = vsel %vm2321, %v3136, %v3132
    %v3138 = vlaneseq
    %v3139 = vshrl.u32 %v3138, 7
    %v3140 = vsub.s32 %v1998, %v3139
    %v3141 = vrot.slane %v3109, %v3140
    %v3142 = vlaneseq
    %v3143 = vshrl.u32 %v3142, 7
    %v3144 = vsub.s32 %v2302, %v3143
    %v3145 = vrot.slane %v3112, %v3144
    %v3146 = vsel %vm2307, %v3145, %v3141
    %v3147 = vlaneseq
    %v3148 = vshrl.u32 %v3147, 7
    %v3149 = vsub.s32 %v2309, %v3148
    %v3150 = vrot.slane %v3115, %v3149
    %v3151 = vsel %vm2314, %v3150, %v3146
    %v3152 = vlaneseq
    %v3153 = vshrl.u32 %v3152, 7
    %v3154 = vsub.s32 %v2316, %v3153
    %v3155 = vrot.slane %v3118, %v3154
    %v3156 = vsel %vm2321, %v3155, %v3151
    %v3157 = vsel %vm751, %v3156, %v3137
    %v3158 = vsel %vm297, %v3157, 0
    %3160 = vmatprep.subr.mxu0 0.0
    %3161 = vmatpush1.msra.mxu0 %v1799
    %3162 = vmatprep.subr.mxu0 0.0
    %3163 = vmatpush1.msra.mxu0 %v1800
    %3164 = vmatprep.subr.mxu0 0.0
    %3165 = vmatpush1.msra.mxu0 %v1801
    %3166 = vmatprep.subr.mxu0 0.0
    %3167 = vmatpush1.msra.mxu0 %v1802
    %3168 = vmatprep.subr.mxu0 0.0
    %3169 = vmatpush1.msra.mxu0 0.0
    %3170 = vmatprep.subr.mxu0 0.0
    %3171 = vmatpush1.msra.mxu0 0.0
    %3172 = vmatprep.subr.mxu0 0.0
    %3173 = vmatpush1.msra.mxu0 0.0
    %3174 = vmatprep.subr.mxu0 0.0
    %3175 = vmatpush1.msra.mxu0 0.0
    %3176 = vmatprep.subr.mxu0 0.0
    %3177 = vmatpush1.msra.mxu0 0.0
    %3178 = vmatprep.subr.mxu0 0.0
    %3179 = vmatpush1.msra.mxu0 0.0
    %3180 = vmatprep.subr.mxu0 0.0
    %3181 = vmatpush1.msra.mxu0 0.0
    %3182 = vmatprep.subr.mxu0 0.0
    %3183 = vmatpush1.msra.mxu0 0.0
    %3184 = vmatprep.subr.mxu0 0.0
    %3185 = vmatpush1.msra.mxu0 0.0
    %3186 = vmatprep.subr.mxu0 0.0
    %3187 = vmatpush1.msra.mxu0 0.0
    %3188 = vmatprep.subr.mxu0 0.0
    %3189 = vmatpush1.msra.mxu0 0.0
    %3190 = vmatprep.subr.mxu0 0.0
    %3191 = vmatpush1.msra.mxu0 0.0
    %3192 = vmatprep.subr.mxu0 0.0
    %3193 = vmatpush1.msra.mxu0 0.0
    %3194 = vmatprep.subr.mxu0 0.0
    %3195 = vmatpush1.msra.mxu0 0.0
    %3196 = vmatprep.subr.mxu0 0.0
    %3197 = vmatpush1.msra.mxu0 0.0
    %3198 = vmatprep.subr.mxu0 0.0
    %3199 = vmatpush1.msra.mxu0 0.0
    %3200 = vmatprep.subr.mxu0 0.0
    %3201 = vmatpush1.msra.mxu0 0.0
    %3202 = vmatprep.subr.mxu0 0.0
    %3203 = vmatpush1.msra.mxu0 0.0
    %3204 = vmatprep.subr.mxu0 0.0
    %3205 = vmatpush1.msra.mxu0 0.0
    %3206 = vmatprep.subr.mxu0 0.0
    %3207 = vmatpush1.msra.mxu0 0.0
    %3208 = vmatprep.subr.mxu0 0.0
    %3209 = vmatpush1.msra.mxu0 0.0
    %3210 = vmatprep.subr.mxu0 0.0
    %3211 = vmatpush1.msra.mxu0 0.0
    %3212 = vmatprep.subr.mxu0 0.0
    %3213 = vmatpush1.msra.mxu0 0.0
    %3214 = vmatprep.subr.mxu0 0.0
    %3215 = vmatpush1.msra.mxu0 0.0
    %3216 = vmatprep.subr.mxu0 0.0
    %3217 = vmatpush1.msra.mxu0 0.0
    %3218 = vmatprep.subr.mxu0 0.0
    %3219 = vmatpush1.msra.mxu0 0.0
    %3220 = vmatprep.subr.mxu0 0.0
    %3221 = vmatpush1.msra.mxu0 0.0
    %3222 = vmatprep.subr.mxu0 0.0
    %3223 = vmatpush1.msra.mxu0 0.0
    %3224 = vmatprep.mubr.f32.mxu0 0.0
    %3225 = vmatmul.mubr.f32.gmra.mrb[0].mxu0 %v3158
    %v3226 = vpop.f32.mrb[0].mxu0
    %v3227 = vadd.f32 %v2070, %v3226
    %v3228 = vpop.f32.mrb[0].mxu0
    %3229 = vdwg.mxu0
    %v3231 = vrot.slane %v3227, 4
    %v3232 = vrot.slane %v3227, 5
    %v3235 = vadd.f32 %v1590, %v3231
    %v3236 = vadd.f32 %v1595, %v3232
    %v3237 = vxor.u32 %v3235, 2147483648
    %v3238 = vxor.u32 %v3236, 2147483648
    %v3239 = vmul.f32 %v3237, 1.442695
    %v3240 = vpow.pop %v3239
    %v3241 = vmul.f32 %v3238, 1.442695
    %v3242 = vpow.pop %v3241
    %v3243 = vadd.f32 %v3240, 1.0
    %v3244 = vadd.f32 %v3242, 1.0
    %v3245 = vrcp.pop %v3243
    %v3246 = vmul.f32 1.0, %v3245
    %v3247 = vrcp.pop %v3244
    %v3248 = vmul.f32 1.0, %v3247
    %3249 = vrot.lane.b32.xlu0 %v3231, 96
    %v3250 = vpop.permute.xlu0 %3249
    %3251 = vrot.lane.b32.xlu0 %v3232, 96
    %v3252 = vpop.permute.xlu0 %3251
    %v3255 = vmul.f32 %v3246, %v3250
    %v3256 = vmul.f32 %v3248, %v3252
    %3259 = vrot.lane.b32.xlu0 %v3255, 32
    %v3260 = vpop.permute.xlu0 %3259
    %3261 = vrot.lane.b32.xlu0 %v3256, 32
    %v3262 = vpop.permute.xlu0 %3261
    %v3265 = vadd.f32 %v1590, %v3260
    %v3266 = vadd.f32 %v1595, %v3262
    %v3267 = vtanh.pop %v3265
    %v3268 = vtanh.pop %v3266
    %v3269 = vlaneseq
    %v3270 = vshrl.u32 %v3269, 7
    %v3271 = vsub.s32 4, %v3270
    %v3272 = vrot.slane %v2063, %v3271
    %v3273 = vlaneseq
    %v3274 = vshrl.u32 %v3273, 7
    %v3275 = vsub.s32 4, %v3274
    %v3276 = vrot.slane %v2065, %v3275
    %v3279 = vlaneseq
    %v3280 = vshrl.u32 %v3279, 7
    %v3281 = vsub.s32 4, %v3280
    %v3282 = vrot.slane %v3267, %v3281
    %s3284 = sor.u32 256, 32
    %3285 = vbcast.lane.b32.xlu0 %v3282, %s3284
    %v3286 = vpop.permute.xlu0 %3285
    %s3288 = sor.u32 256, 40
    %3289 = vbcast.lane.b32.xlu0 %v3282, %s3288
    %v3290 = vpop.permute.xlu0 %3289
    %s3292 = sor.u32 256, 48
    %3293 = vbcast.lane.b32.xlu0 %v3282, %s3292
    %v3294 = vpop.permute.xlu0 %3293
    %s3296 = sor.u32 256, 56
    %3297 = vbcast.lane.b32.xlu0 %v3282, %s3296
    %v3298 = vpop.permute.xlu0 %3297
    %v3299 = vlaneseq
    %v3300 = vshrl.u32 %v3299, 7
    %v3301 = vsub.s32 4, %v3300
    %v3302 = vrot.slane %v3268, %v3301
    %s3304 = sor.u32 256, 32
    %3305 = vbcast.lane.b32.xlu0 %v3302, %s3304
    %v3306 = vpop.permute.xlu0 %3305
    %s3308 = sor.u32 256, 40
    %3309 = vbcast.lane.b32.xlu0 %v3302, %s3308
    %v3310 = vpop.permute.xlu0 %3309
    %s3312 = sor.u32 256, 48
    %3313 = vbcast.lane.b32.xlu0 %v3302, %s3312
    %v3314 = vpop.permute.xlu0 %3313
    %s3316 = sor.u32 256, 56
    %3317 = vbcast.lane.b32.xlu0 %v3302, %s3316
    %v3318 = vpop.permute.xlu0 %3317
    %v3327 = vmul.f32 %v3272, %v3286
    %v3328 = vmul.f32 %v3272, %v3290
    %v3329 = vmul.f32 %v3272, %v3294
    %v3330 = vmul.f32 %v3272, %v3298
    %v3331 = vmul.f32 %v3276, %v3306
    %v3332 = vmul.f32 %v3276, %v3310
    %v3333 = vmul.f32 %v3276, %v3314
    %v3334 = vmul.f32 %v3276, %v3318
    %v3335 = vlaneseq
    %v3336 = vshrl.u32 %v3335, 7
    %v3337 = vsub.s32 4, %v3336
    %v3338 = vrot.slane %v2246, %v3337
    %v3339 = vlaneseq
    %v3340 = vshrl.u32 %v3339, 7
    %v3341 = vsub.s32 4, %v3340
    %v3342 = vrot.slane %v2247, %v3341
    %v3343 = vmul.f32 %v3338, %v3079
    %v3344 = vmul.f32 %v3338, %v3080
    %v3345 = vmul.f32 %v3338, %v3081
    %v3346 = vmul.f32 %v3338, %v3082
    %v3347 = vmul.f32 %v3342, %v3083
    %v3348 = vmul.f32 %v3342, %v3084
    %v3349 = vmul.f32 %v3342, %v3085
    %v3350 = vmul.f32 %v3342, %v3086
    %v3351 = vadd.f32 %v3327, %v3343
    %v3352 = vadd.f32 %v3328, %v3344
    %v3353 = vadd.f32 %v3329, %v3345
    %v3354 = vadd.f32 %v3330, %v3346
    %v3355 = vadd.f32 %v3331, %v3347
    %v3356 = vadd.f32 %v3332, %v3348
    %v3357 = vadd.f32 %v3333, %v3349
    %v3358 = vadd.f32 %v3334, %v3350
    %3367 = vset.pattern.permute.xlu0 0
    %3368 = vperm.xlu0 %3367, %v3351
    %v3369 = vpop.permute.xlu0 %3368
    %3370 = vset.pattern.permute.xlu0 0
    %3371 = vperm.xlu0 %3370, %v3352
    %v3372 = vpop.permute.xlu0 %3371
    %3373 = vset.pattern.permute.xlu0 0
    %3374 = vperm.xlu0 %3373, %v3353
    %v3375 = vpop.permute.xlu0 %3374
    %3376 = vset.pattern.permute.xlu0 0
    %3377 = vperm.xlu0 %3376, %v3354
    %v3378 = vpop.permute.xlu0 %3377
    %3379 = vset.pattern.permute.xlu0 0
    %3380 = vperm.xlu0 %3379, %v3355
    %v3381 = vpop.permute.xlu0 %3380
    %3382 = vset.pattern.permute.xlu0 0
    %3383 = vperm.xlu0 %3382, %v3356
    %v3384 = vpop.permute.xlu0 %3383
    %3385 = vset.pattern.permute.xlu0 0
    %3386 = vperm.xlu0 %3385, %v3357
    %v3387 = vpop.permute.xlu0 %3386
    %3388 = vset.pattern.permute.xlu0 0
    %3389 = vperm.xlu0 %3388, %v3358
    %v3390 = vpop.permute.xlu0 %3389
    %v3391 = vlaneseq
    %v3392 = vshrl.u32 %v3391, 7
    %v3393 = vsub.s32 %v1998, %v3392
    %v3394 = vrot.slane %v3369, %v3393
    %v3395 = vlaneseq
    %v3396 = vshrl.u32 %v3395, 7
    %v3397 = vsub.s32 %v2302, %v3396
    %v3398 = vrot.slane %v3372, %v3397
    %v3399 = vsel %vm2307, %v3398, %v3394
    %v3400 = vlaneseq
    %v3401 = vshrl.u32 %v3400, 7
    %v3402 = vsub.s32 %v2309, %v3401
    %v3403 = vrot.slane %v3375, %v3402
    %v3404 = vsel %vm2314, %v3403, %v3399
    %v3405 = vlaneseq
    %v3406 = vshrl.u32 %v3405, 7
    %v3407 = vsub.s32 %v2316, %v3406
    %v3408 = vrot.slane %v3378, %v3407
    %v3409 = vsel %vm2321, %v3408, %v3404
    %v3410 = vlaneseq
    %v3411 = vshrl.u32 %v3410, 7
    %v3412 = vsub.s32 %v1998, %v3411
    %v3413 = vrot.slane %v3381, %v3412
    %v3414 = vlaneseq
    %v3415 = vshrl.u32 %v3414, 7
    %v3416 = vsub.s32 %v2302, %v3415
    %v3417 = vrot.slane %v3384, %v3416
    %v3418 = vsel %vm2307, %v3417, %v3413
    %v3419 = vlaneseq
    %v3420 = vshrl.u32 %v3419, 7
    %v3421 = vsub.s32 %v2309, %v3420
    %v3422 = vrot.slane %v3387, %v3421
    %v3423 = vsel %vm2314, %v3422, %v3418
    %v3424 = vlaneseq
    %v3425 = vshrl.u32 %v3424, 7
    %v3426 = vsub.s32 %v2316, %v3425
    %v3427 = vrot.slane %v3390, %v3426
    %v3428 = vsel %vm2321, %v3427, %v3423
    %v3429 = vsel %vm751, %v3428, %v3409
    %v3430 = vsel %vm297, %v3429, 0
    %3432 = vmatprep.subr.mxu0 0.0
    %3433 = vmatpush1.msra.mxu0 %v1799
    %3434 = vmatprep.subr.mxu0 0.0
    %3435 = vmatpush1.msra.mxu0 %v1800
    %3436 = vmatprep.subr.mxu0 0.0
    %3437 = vmatpush1.msra.mxu0 %v1801
    %3438 = vmatprep.subr.mxu0 0.0
    %3439 = vmatpush1.msra.mxu0 %v1802
    %3440 = vmatprep.subr.mxu0 0.0
    %3441 = vmatpush1.msra.mxu0 0.0
    %3442 = vmatprep.subr.mxu0 0.0
    %3443 = vmatpush1.msra.mxu0 0.0
    %3444 = vmatprep.subr.mxu0 0.0
    %3445 = vmatpush1.msra.mxu0 0.0
    %3446 = vmatprep.subr.mxu0 0.0
    %3447 = vmatpush1.msra.mxu0 0.0
    %3448 = vmatprep.subr.mxu0 0.0
    %3449 = vmatpush1.msra.mxu0 0.0
    %3450 = vmatprep.subr.mxu0 0.0
    %3451 = vmatpush1.msra.mxu0 0.0
    %3452 = vmatprep.subr.mxu0 0.0
    %3453 = vmatpush1.msra.mxu0 0.0
    %3454 = vmatprep.subr.mxu0 0.0
    %3455 = vmatpush1.msra.mxu0 0.0
    %3456 = vmatprep.subr.mxu0 0.0
    %3457 = vmatpush1.msra.mxu0 0.0
    %3458 = vmatprep.subr.mxu0 0.0
    %3459 = vmatpush1.msra.mxu0 0.0
    %3460 = vmatprep.subr.mxu0 0.0
    %3461 = vmatpush1.msra.mxu0 0.0
    %3462 = vmatprep.subr.mxu0 0.0
    %3463 = vmatpush1.msra.mxu0 0.0
    %3464 = vmatprep.subr.mxu0 0.0
    %3465 = vmatpush1.msra.mxu0 0.0
    %3466 = vmatprep.subr.mxu0 0.0
    %3467 = vmatpush1.msra.mxu0 0.0
    %3468 = vmatprep.subr.mxu0 0.0
    %3469 = vmatpush1.msra.mxu0 0.0
    %3470 = vmatprep.subr.mxu0 0.0
    %3471 = vmatpush1.msra.mxu0 0.0
    %3472 = vmatprep.subr.mxu0 0.0
    %3473 = vmatpush1.msra.mxu0 0.0
    %3474 = vmatprep.subr.mxu0 0.0
    %3475 = vmatpush1.msra.mxu0 0.0
    %3476 = vmatprep.subr.mxu0 0.0
    %3477 = vmatpush1.msra.mxu0 0.0
    %3478 = vmatprep.subr.mxu0 0.0
    %3479 = vmatpush1.msra.mxu0 0.0
    %3480 = vmatprep.subr.mxu0 0.0
    %3481 = vmatpush1.msra.mxu0 0.0
    %3482 = vmatprep.subr.mxu0 0.0
    %3483 = vmatpush1.msra.mxu0 0.0
    %3484 = vmatprep.subr.mxu0 0.0
    %3485 = vmatpush1.msra.mxu0 0.0
    %3486 = vmatprep.subr.mxu0 0.0
    %3487 = vmatpush1.msra.mxu0 0.0
    %3488 = vmatprep.subr.mxu0 0.0
    %3489 = vmatpush1.msra.mxu0 0.0
    %3490 = vmatprep.subr.mxu0 0.0
    %3491 = vmatpush1.msra.mxu0 0.0
    %3492 = vmatprep.subr.mxu0 0.0
    %3493 = vmatpush1.msra.mxu0 0.0
    %3494 = vmatprep.subr.mxu0 0.0
    %3495 = vmatpush1.msra.mxu0 0.0
    %3496 = vmatprep.mubr.f32.mxu0 0.0
    %3497 = vmatmul.mubr.f32.gmra.mrb[0].mxu0 %v3430
    %v3498 = vpop.f32.mrb[0].mxu0
    %v3499 = vadd.f32 %v2070, %v3498
    %v3500 = vpop.f32.mrb[0].mxu0
    %3501 = vdwg.mxu0
    %v3503 = vrot.slane %v3499, 3
    %v3504 = vrot.slane %v3499, 4
    %v3507 = vadd.f32 %v1590, %v3503
    %v3508 = vadd.f32 %v1595, %v3504
    %v3509 = vxor.u32 %v3507, 2147483648
    %v3510 = vxor.u32 %v3508, 2147483648
    %v3511 = vmul.f32 %v3509, 1.442695
    %v3512 = vpow.pop %v3511
    %v3513 = vmul.f32 %v3510, 1.442695
    %v3514 = vpow.pop %v3513
    %v3515 = vadd.f32 %v3512, 1.0
    %v3516 = vadd.f32 %v3514, 1.0
    %v3517 = vrcp.pop %v3515
    %v3518 = vmul.f32 1.0, %v3517
    %v3519 = vrcp.pop %v3516
    %v3520 = vmul.f32 1.0, %v3519
    %3521 = vrot.lane.b32.xlu0 %v3503, 96
    %v3522 = vpop.permute.xlu0 %3521
    %3523 = vrot.lane.b32.xlu0 %v3504, 96
    %v3524 = vpop.permute.xlu0 %3523
    %v3527 = vmul.f32 %v3518, %v3522
    %v3528 = vmul.f32 %v3520, %v3524
    %3531 = vrot.lane.b32.xlu0 %v3527, 32
    %v3532 = vpop.permute.xlu0 %3531
    %3533 = vrot.lane.b32.xlu0 %v3528, 32
    %v3534 = vpop.permute.xlu0 %3533
    %v3537 = vadd.f32 %v1590, %v3532
    %v3538 = vadd.f32 %v1595, %v3534
    %v3539 = vtanh.pop %v3537
    %v3540 = vtanh.pop %v3538
    %v3541 = vlaneseq
    %v3542 = vshrl.u32 %v3541, 7
    %v3543 = vsub.s32 5, %v3542
    %v3544 = vrot.slane %v2063, %v3543
    %v3545 = vlaneseq
    %v3546 = vshrl.u32 %v3545, 7
    %v3547 = vsub.s32 5, %v3546
    %v3548 = vrot.slane %v2065, %v3547
    %v3551 = vlaneseq
    %v3552 = vshrl.u32 %v3551, 7
    %v3553 = vsub.s32 5, %v3552
    %v3554 = vrot.slane %v3539, %v3553
    %s3556 = sor.u32 256, 32
    %3557 = vbcast.lane.b32.xlu0 %v3554, %s3556
    %v3558 = vpop.permute.xlu0 %3557
    %s3560 = sor.u32 256, 40
    %3561 = vbcast.lane.b32.xlu0 %v3554, %s3560
    %v3562 = vpop.permute.xlu0 %3561
    %s3564 = sor.u32 256, 48
    %3565 = vbcast.lane.b32.xlu0 %v3554, %s3564
    %v3566 = vpop.permute.xlu0 %3565
    %s3568 = sor.u32 256, 56
    %3569 = vbcast.lane.b32.xlu0 %v3554, %s3568
    %v3570 = vpop.permute.xlu0 %3569
    %v3571 = vlaneseq
    %v3572 = vshrl.u32 %v3571, 7
    %v3573 = vsub.s32 5, %v3572
    %v3574 = vrot.slane %v3540, %v3573
    %s3576 = sor.u32 256, 32
    %3577 = vbcast.lane.b32.xlu0 %v3574, %s3576
    %v3578 = vpop.permute.xlu0 %3577
    %s3580 = sor.u32 256, 40
    %3581 = vbcast.lane.b32.xlu0 %v3574, %s3580
    %v3582 = vpop.permute.xlu0 %3581
    %s3584 = sor.u32 256, 48
    %3585 = vbcast.lane.b32.xlu0 %v3574, %s3584
    %v3586 = vpop.permute.xlu0 %3585
    %s3588 = sor.u32 256, 56
    %3589 = vbcast.lane.b32.xlu0 %v3574, %s3588
    %v3590 = vpop.permute.xlu0 %3589
    %v3599 = vmul.f32 %v3544, %v3558
    %v3600 = vmul.f32 %v3544, %v3562
    %v3601 = vmul.f32 %v3544, %v3566
    %v3602 = vmul.f32 %v3544, %v3570
    %v3603 = vmul.f32 %v3548, %v3578
    %v3604 = vmul.f32 %v3548, %v3582
    %v3605 = vmul.f32 %v3548, %v3586
    %v3606 = vmul.f32 %v3548, %v3590
    %v3607 = vlaneseq
    %v3608 = vshrl.u32 %v3607, 7
    %v3609 = vsub.s32 5, %v3608
    %v3610 = vrot.slane %v2246, %v3609
    %v3611 = vlaneseq
    %v3612 = vshrl.u32 %v3611, 7
    %v3613 = vsub.s32 5, %v3612
    %v3614 = vrot.slane %v2247, %v3613
    %v3615 = vmul.f32 %v3610, %v3351
    %v3616 = vmul.f32 %v3610, %v3352
    %v3617 = vmul.f32 %v3610, %v3353
    %v3618 = vmul.f32 %v3610, %v3354
    %v3619 = vmul.f32 %v3614, %v3355
    %v3620 = vmul.f32 %v3614, %v3356
    %v3621 = vmul.f32 %v3614, %v3357
    %v3622 = vmul.f32 %v3614, %v3358
    %v3623 = vadd.f32 %v3599, %v3615
    %v3624 = vadd.f32 %v3600, %v3616
    %v3625 = vadd.f32 %v3601, %v3617
    %v3626 = vadd.f32 %v3602, %v3618
    %v3627 = vadd.f32 %v3603, %v3619
    %v3628 = vadd.f32 %v3604, %v3620
    %v3629 = vadd.f32 %v3605, %v3621
    %v3630 = vadd.f32 %v3606, %v3622
    %3639 = vset.pattern.permute.xlu0 0
    %3640 = vperm.xlu0 %3639, %v3623
    %v3641 = vpop.permute.xlu0 %3640
    %3642 = vset.pattern.permute.xlu0 0
    %3643 = vperm.xlu0 %3642, %v3624
    %v3644 = vpop.permute.xlu0 %3643
    %3645 = vset.pattern.permute.xlu0 0
    %3646 = vperm.xlu0 %3645, %v3625
    %v3647 = vpop.permute.xlu0 %3646
    %3648 = vset.pattern.permute.xlu0 0
    %3649 = vperm.xlu0 %3648, %v3626
    %v3650 = vpop.permute.xlu0 %3649
    %3651 = vset.pattern.permute.xlu0 0
    %3652 = vperm.xlu0 %3651, %v3627
    %v3653 = vpop.permute.xlu0 %3652
    %3654 = vset.pattern.permute.xlu0 0
    %3655 = vperm.xlu0 %3654, %v3628
    %v3656 = vpop.permute.xlu0 %3655
    %3657 = vset.pattern.permute.xlu0 0
    %3658 = vperm.xlu0 %3657, %v3629
    %v3659 = vpop.permute.xlu0 %3658
    %3660 = vset.pattern.permute.xlu0 0
    %3661 = vperm.xlu0 %3660, %v3630
    %v3662 = vpop.permute.xlu0 %3661
    %v3663 = vlaneseq
    %v3664 = vshrl.u32 %v3663, 7
    %v3665 = vsub.s32 %v1998, %v3664
    %v3666 = vrot.slane %v3641, %v3665
    %v3667 = vlaneseq
    %v3668 = vshrl.u32 %v3667, 7
    %v3669 = vsub.s32 %v2302, %v3668
    %v3670 = vrot.slane %v3644, %v3669
    %v3671 = vsel %vm2307, %v3670, %v3666
    %v3672 = vlaneseq
    %v3673 = vshrl.u32 %v3672, 7
    %v3674 = vsub.s32 %v2309, %v3673
    %v3675 = vrot.slane %v3647, %v3674
    %v3676 = vsel %vm2314, %v3675, %v3671
    %v3677 = vlaneseq
    %v3678 = vshrl.u32 %v3677, 7
    %v3679 = vsub.s32 %v2316, %v3678
    %v3680 = vrot.slane %v3650, %v3679
    %v3681 = vsel %vm2321, %v3680, %v3676
    %v3682 = vlaneseq
    %v3683 = vshrl.u32 %v3682, 7
    %v3684 = vsub.s32 %v1998, %v3683
    %v3685 = vrot.slane %v3653, %v3684
    %v3686 = vlaneseq
    %v3687 = vshrl.u32 %v3686, 7
    %v3688 = vsub.s32 %v2302, %v3687
    %v3689 = vrot.slane %v3656, %v3688
    %v3690 = vsel %vm2307, %v3689, %v3685
    %v3691 = vlaneseq
    %v3692 = vshrl.u32 %v3691, 7
    %v3693 = vsub.s32 %v2309, %v3692
    %v3694 = vrot.slane %v3659, %v3693
    %v3695 = vsel %vm2314, %v3694, %v3690
    %v3696 = vlaneseq
    %v3697 = vshrl.u32 %v3696, 7
    %v3698 = vsub.s32 %v2316, %v3697
    %v3699 = vrot.slane %v3662, %v3698
    %v3700 = vsel %vm2321, %v3699, %v3695
    %v3701 = vsel %vm751, %v3700, %v3681
    %v3702 = vsel %vm297, %v3701, 0
    %3704 = vmatprep.subr.mxu0 0.0
    %3705 = vmatpush1.msra.mxu0 %v1799
    %3706 = vmatprep.subr.mxu0 0.0
    %3707 = vmatpush1.msra.mxu0 %v1800
    %3708 = vmatprep.subr.mxu0 0.0
    %3709 = vmatpush1.msra.mxu0 %v1801
    %3710 = vmatprep.subr.mxu0 0.0
    %3711 = vmatpush1.msra.mxu0 %v1802
    %3712 = vmatprep.subr.mxu0 0.0
    %3713 = vmatpush1.msra.mxu0 0.0
    %3714 = vmatprep.subr.mxu0 0.0
    %3715 = vmatpush1.msra.mxu0 0.0
    %3716 = vmatprep.subr.mxu0 0.0
    %3717 = vmatpush1.msra.mxu0 0.0
    %3718 = vmatprep.subr.mxu0 0.0
    %3719 = vmatpush1.msra.mxu0 0.0
    %3720 = vmatprep.subr.mxu0 0.0
    %3721 = vmatpush1.msra.mxu0 0.0
    %3722 = vmatprep.subr.mxu0 0.0
    %3723 = vmatpush1.msra.mxu0 0.0
    %3724 = vmatprep.subr.mxu0 0.0
    %3725 = vmatpush1.msra.mxu0 0.0
    %3726 = vmatprep.subr.mxu0 0.0
    %3727 = vmatpush1.msra.mxu0 0.0
    %3728 = vmatprep.subr.mxu0 0.0
    %3729 = vmatpush1.msra.mxu0 0.0
    %3730 = vmatprep.subr.mxu0 0.0
    %3731 = vmatpush1.msra.mxu0 0.0
    %3732 = vmatprep.subr.mxu0 0.0
    %3733 = vmatpush1.msra.mxu0 0.0
    %3734 = vmatprep.subr.mxu0 0.0
    %3735 = vmatpush1.msra.mxu0 0.0
    %3736 = vmatprep.subr.mxu0 0.0
    %3737 = vmatpush1.msra.mxu0 0.0
    %3738 = vmatprep.subr.mxu0 0.0
    %3739 = vmatpush1.msra.mxu0 0.0
    %3740 = vmatprep.subr.mxu0 0.0
    %3741 = vmatpush1.msra.mxu0 0.0
    %3742 = vmatprep.subr.mxu0 0.0
    %3743 = vmatpush1.msra.mxu0 0.0
    %3744 = vmatprep.subr.mxu0 0.0
    %3745 = vmatpush1.msra.mxu0 0.0
    %3746 = vmatprep.subr.mxu0 0.0
    %3747 = vmatpush1.msra.mxu0 0.0
    %3748 = vmatprep.subr.mxu0 0.0
    %3749 = vmatpush1.msra.mxu0 0.0
    %3750 = vmatprep.subr.mxu0 0.0
    %3751 = vmatpush1.msra.mxu0 0.0
    %3752 = vmatprep.subr.mxu0 0.0
    %3753 = vmatpush1.msra.mxu0 0.0
    %3754 = vmatprep.subr.mxu0 0.0
    %3755 = vmatpush1.msra.mxu0 0.0
    %3756 = vmatprep.subr.mxu0 0.0
    %3757 = vmatpush1.msra.mxu0 0.0
    %3758 = vmatprep.subr.mxu0 0.0
    %3759 = vmatpush1.msra.mxu0 0.0
    %3760 = vmatprep.subr.mxu0 0.0
    %3761 = vmatpush1.msra.mxu0 0.0
    %3762 = vmatprep.subr.mxu0 0.0
    %3763 = vmatpush1.msra.mxu0 0.0
    %3764 = vmatprep.subr.mxu0 0.0
    %3765 = vmatpush1.msra.mxu0 0.0
    %3766 = vmatprep.subr.mxu0 0.0
    %3767 = vmatpush1.msra.mxu0 0.0
    %3768 = vmatprep.mubr.f32.mxu0 0.0
    %3769 = vmatmul.mubr.f32.gmra.mrb[0].mxu0 %v3702
    %v3770 = vpop.f32.mrb[0].mxu0
    %v3771 = vadd.f32 %v2070, %v3770
    %v3772 = vpop.f32.mrb[0].mxu0
    %3773 = vdwg.mxu0
    %v3775 = vrot.slane %v3771, 2
    %v3776 = vrot.slane %v3771, 3
    %v3779 = vadd.f32 %v1590, %v3775
    %v3780 = vadd.f32 %v1595, %v3776
    %v3781 = vxor.u32 %v3779, 2147483648
    %v3782 = vxor.u32 %v3780, 2147483648
    %v3783 = vmul.f32 %v3781, 1.442695
    %v3784 = vpow.pop %v3783
    %v3785 = vmul.f32 %v3782, 1.442695
    %v3786 = vpow.pop %v3785
    %v3787 = vadd.f32 %v3784, 1.0
    %v3788 = vadd.f32 %v3786, 1.0
    %v3789 = vrcp.pop %v3787
    %v3790 = vmul.f32 1.0, %v3789
    %v3791 = vrcp.pop %v3788
    %v3792 = vmul.f32 1.0, %v3791
    %3793 = vrot.lane.b32.xlu0 %v3775, 96
    %v3794 = vpop.permute.xlu0 %3793
    %3795 = vrot.lane.b32.xlu0 %v3776, 96
    %v3796 = vpop.permute.xlu0 %3795
    %v3799 = vmul.f32 %v3790, %v3794
    %v3800 = vmul.f32 %v3792, %v3796
    %3803 = vrot.lane.b32.xlu0 %v3799, 32
    %v3804 = vpop.permute.xlu0 %3803
    %3805 = vrot.lane.b32.xlu0 %v3800, 32
    %v3806 = vpop.permute.xlu0 %3805
    %v3809 = vadd.f32 %v1590, %v3804
    %v3810 = vadd.f32 %v1595, %v3806
    %v3811 = vtanh.pop %v3809
    %v3812 = vtanh.pop %v3810
    %v3813 = vlaneseq
    %v3814 = vshrl.u32 %v3813, 7
    %v3815 = vsub.s32 6, %v3814
    %v3816 = vrot.slane %v2063, %v3815
    %v3817 = vlaneseq
    %v3818 = vshrl.u32 %v3817, 7
    %v3819 = vsub.s32 6, %v3818
    %v3820 = vrot.slane %v2065, %v3819
    %v3823 = vlaneseq
    %v3824 = vshrl.u32 %v3823, 7
    %v3825 = vsub.s32 6, %v3824
    %v3826 = vrot.slane %v3811, %v3825
    %s3828 = sor.u32 256, 32
    %3829 = vbcast.lane.b32.xlu0 %v3826, %s3828
    %v3830 = vpop.permute.xlu0 %3829
    %s3832 = sor.u32 256, 40
    %3833 = vbcast.lane.b32.xlu0 %v3826, %s3832
    %v3834 = vpop.permute.xlu0 %3833
    %s3836 = sor.u32 256, 48
    %3837 = vbcast.lane.b32.xlu0 %v3826, %s3836
    %v3838 = vpop.permute.xlu0 %3837
    %s3840 = sor.u32 256, 56
    %3841 = vbcast.lane.b32.xlu0 %v3826, %s3840
    %v3842 = vpop.permute.xlu0 %3841
    %v3843 = vlaneseq
    %v3844 = vshrl.u32 %v3843, 7
    %v3845 = vsub.s32 6, %v3844
    %v3846 = vrot.slane %v3812, %v3845
    %s3848 = sor.u32 256, 32
    %3849 = vbcast.lane.b32.xlu0 %v3846, %s3848
    %v3850 = vpop.permute.xlu0 %3849
    %s3852 = sor.u32 256, 40
    %3853 = vbcast.lane.b32.xlu0 %v3846, %s3852
    %v3854 = vpop.permute.xlu0 %3853
    %s3856 = sor.u32 256, 48
    %3857 = vbcast.lane.b32.xlu0 %v3846, %s3856
    %v3858 = vpop.permute.xlu0 %3857
    %s3860 = sor.u32 256, 56
    %3861 = vbcast.lane.b32.xlu0 %v3846, %s3860
    %v3862 = vpop.permute.xlu0 %3861
    %v3871 = vmul.f32 %v3816, %v3830
    %v3872 = vmul.f32 %v3816, %v3834
    %v3873 = vmul.f32 %v3816, %v3838
    %v3874 = vmul.f32 %v3816, %v3842
    %v3875 = vmul.f32 %v3820, %v3850
    %v3876 = vmul.f32 %v3820, %v3854
    %v3877 = vmul.f32 %v3820, %v3858
    %v3878 = vmul.f32 %v3820, %v3862
    %v3879 = vlaneseq
    %v3880 = vshrl.u32 %v3879, 7
    %v3881 = vsub.s32 6, %v3880
    %v3882 = vrot.slane %v2246, %v3881
    %v3883 = vlaneseq
    %v3884 = vshrl.u32 %v3883, 7
    %v3885 = vsub.s32 6, %v3884
    %v3886 = vrot.slane %v2247, %v3885
    %v3887 = vmul.f32 %v3882, %v3623
    %v3888 = vmul.f32 %v3882, %v3624
    %v3889 = vmul.f32 %v3882, %v3625
    %v3890 = vmul.f32 %v3882, %v3626
    %v3891 = vmul.f32 %v3886, %v3627
    %v3892 = vmul.f32 %v3886, %v3628
    %v3893 = vmul.f32 %v3886, %v3629
    %v3894 = vmul.f32 %v3886, %v3630
    %v3895 = vadd.f32 %v3871, %v3887
    %v3896 = vadd.f32 %v3872, %v3888
    %v3897 = vadd.f32 %v3873, %v3889
    %v3898 = vadd.f32 %v3874, %v3890
    %v3899 = vadd.f32 %v3875, %v3891
    %v3900 = vadd.f32 %v3876, %v3892
    %v3901 = vadd.f32 %v3877, %v3893
    %v3902 = vadd.f32 %v3878, %v3894
    %3911 = vset.pattern.permute.xlu0 0
    %3912 = vperm.xlu0 %3911, %v3895
    %v3913 = vpop.permute.xlu0 %3912
    %3914 = vset.pattern.permute.xlu0 0
    %3915 = vperm.xlu0 %3914, %v3896
    %v3916 = vpop.permute.xlu0 %3915
    %3917 = vset.pattern.permute.xlu0 0
    %3918 = vperm.xlu0 %3917, %v3897
    %v3919 = vpop.permute.xlu0 %3918
    %3920 = vset.pattern.permute.xlu0 0
    %3921 = vperm.xlu0 %3920, %v3898
    %v3922 = vpop.permute.xlu0 %3921
    %3923 = vset.pattern.permute.xlu0 0
    %3924 = vperm.xlu0 %3923, %v3899
    %v3925 = vpop.permute.xlu0 %3924
    %3926 = vset.pattern.permute.xlu0 0
    %3927 = vperm.xlu0 %3926, %v3900
    %v3928 = vpop.permute.xlu0 %3927
    %3929 = vset.pattern.permute.xlu0 0
    %3930 = vperm.xlu0 %3929, %v3901
    %v3931 = vpop.permute.xlu0 %3930
    %3932 = vset.pattern.permute.xlu0 0
    %3933 = vperm.xlu0 %3932, %v3902
    %v3934 = vpop.permute.xlu0 %3933
    %v3935 = vlaneseq
    %v3936 = vshrl.u32 %v3935, 7
    %v3937 = vsub.s32 %v1998, %v3936
    %v3938 = vrot.slane %v3913, %v3937
    %v3939 = vlaneseq
    %v3940 = vshrl.u32 %v3939, 7
    %v3941 = vsub.s32 %v2302, %v3940
    %v3942 = vrot.slane %v3916, %v3941
    %v3943 = vsel %vm2307, %v3942, %v3938
    %v3944 = vlaneseq
    %v3945 = vshrl.u32 %v3944, 7
    %v3946 = vsub.s32 %v2309, %v3945
    %v3947 = vrot.slane %v3919, %v3946
    %v3948 = vsel %vm2314, %v3947, %v3943
    %v3949 = vlaneseq
    %v3950 = vshrl.u32 %v3949, 7
    %v3951 = vsub.s32 %v2316, %v3950
    %v3952 = vrot.slane %v3922, %v3951
    %v3953 = vsel %vm2321, %v3952, %v3948
    %v3954 = vlaneseq
    %v3955 = vshrl.u32 %v3954, 7
    %v3956 = vsub.s32 %v1998, %v3955
    %v3957 = vrot.slane %v3925, %v3956
    %v3958 = vlaneseq
    %v3959 = vshrl.u32 %v3958, 7
    %v3960 = vsub.s32 %v2302, %v3959
    %v3961 = vrot.slane %v3928, %v3960
    %v3962 = vsel %vm2307, %v3961, %v3957
    %v3963 = vlaneseq
    %v3964 = vshrl.u32 %v3963, 7
    %v3965 = vsub.s32 %v2309, %v3964
    %v3966 = vrot.slane %v3931, %v3965
    %v3967 = vsel %vm2314, %v3966, %v3962
    %v3968 = vlaneseq
    %v3969 = vshrl.u32 %v3968, 7
    %v3970 = vsub.s32 %v2316, %v3969
    %v3971 = vrot.slane %v3934, %v3970
    %v3972 = vsel %vm2321, %v3971, %v3967
    %v3973 = vsel %vm751, %v3972, %v3953
    %v3974 = vsel %vm297, %v3973, 0
    %3976 = vmatprep.subr.mxu0 0.0
    %3977 = vmatpush1.msra.mxu0 %v1799
    %3978 = vmatprep.subr.mxu0 0.0
    %3979 = vmatpush1.msra.mxu0 %v1800
    %3980 = vmatprep.subr.mxu0 0.0
    %3981 = vmatpush1.msra.mxu0 %v1801
    %3982 = vmatprep.subr.mxu0 0.0
    %3983 = vmatpush1.msra.mxu0 %v1802
    %3984 = vmatprep.subr.mxu0 0.0
    %3985 = vmatpush1.msra.mxu0 0.0
    %3986 = vmatprep.subr.mxu0 0.0
    %3987 = vmatpush1.msra.mxu0 0.0
    %3988 = vmatprep.subr.mxu0 0.0
    %3989 = vmatpush1.msra.mxu0 0.0
    %3990 = vmatprep.subr.mxu0 0.0
    %3991 = vmatpush1.msra.mxu0 0.0
    %3992 = vmatprep.subr.mxu0 0.0
    %3993 = vmatpush1.msra.mxu0 0.0
    %3994 = vmatprep.subr.mxu0 0.0
    %3995 = vmatpush1.msra.mxu0 0.0
    %3996 = vmatprep.subr.mxu0 0.0
    %3997 = vmatpush1.msra.mxu0 0.0
    %3998 = vmatprep.subr.mxu0 0.0
    %3999 = vmatpush1.msra.mxu0 0.0
    %4000 = vmatprep.subr.mxu0 0.0
    %4001 = vmatpush1.msra.mxu0 0.0
    %4002 = vmatprep.subr.mxu0 0.0
    %4003 = vmatpush1.msra.mxu0 0.0
    %4004 = vmatprep.subr.mxu0 0.0
    %4005 = vmatpush1.msra.mxu0 0.0
    %4006 = vmatprep.subr.mxu0 0.0
    %4007 = vmatpush1.msra.mxu0 0.0
    %4008 = vmatprep.subr.mxu0 0.0
    %4009 = vmatpush1.msra.mxu0 0.0
    %4010 = vmatprep.subr.mxu0 0.0
    %4011 = vmatpush1.msra.mxu0 0.0
    %4012 = vmatprep.subr.mxu0 0.0
    %4013 = vmatpush1.msra.mxu0 0.0
    %4014 = vmatprep.subr.mxu0 0.0
    %4015 = vmatpush1.msra.mxu0 0.0
    %4016 = vmatprep.subr.mxu0 0.0
    %4017 = vmatpush1.msra.mxu0 0.0
    %4018 = vmatprep.subr.mxu0 0.0
    %4019 = vmatpush1.msra.mxu0 0.0
    %4020 = vmatprep.subr.mxu0 0.0
    %4021 = vmatpush1.msra.mxu0 0.0
    %4022 = vmatprep.subr.mxu0 0.0
    %4023 = vmatpush1.msra.mxu0 0.0
    %4024 = vmatprep.subr.mxu0 0.0
    %4025 = vmatpush1.msra.mxu0 0.0
    %4026 = vmatprep.subr.mxu0 0.0
    %4027 = vmatpush1.msra.mxu0 0.0
    %4028 = vmatprep.subr.mxu0 0.0
    %4029 = vmatpush1.msra.mxu0 0.0
    %4030 = vmatprep.subr.mxu0 0.0
    %4031 = vmatpush1.msra.mxu0 0.0
    %4032 = vmatprep.subr.mxu0 0.0
    %4033 = vmatpush1.msra.mxu0 0.0
    %4034 = vmatprep.subr.mxu0 0.0
    %4035 = vmatpush1.msra.mxu0 0.0
    %4036 = vmatprep.subr.mxu0 0.0
    %4037 = vmatpush1.msra.mxu0 0.0
    %4038 = vmatprep.subr.mxu0 0.0
    %4039 = vmatpush1.msra.mxu0 0.0
    %4040 = vmatprep.mubr.f32.mxu0 0.0
    %4041 = vmatmul.mubr.f32.gmra.mrb[0].mxu0 %v3974
    %v4042 = vpop.f32.mrb[0].mxu0
    %v4043 = vadd.f32 %v2070, %v4042
    %v4044 = vpop.f32.mrb[0].mxu0
    %4045 = vdwg.mxu0
    %v4047 = vrot.slane %v4043, 1
    %v4048 = vrot.slane %v4043, 2
    %v4051 = vadd.f32 %v1590, %v4047
    %v4052 = vadd.f32 %v1595, %v4048
    %v4053 = vxor.u32 %v4051, 2147483648
    %v4054 = vxor.u32 %v4052, 2147483648
    %v4055 = vmul.f32 %v4053, 1.442695
    %v4056 = vpow.pop %v4055
    %v4057 = vmul.f32 %v4054, 1.442695
    %v4058 = vpow.pop %v4057
    %v4059 = vadd.f32 %v4056, 1.0
    %v4060 = vadd.f32 %v4058, 1.0
    %v4061 = vrcp.pop %v4059
    %v4062 = vmul.f32 1.0, %v4061
    %v4063 = vrcp.pop %v4060
    %v4064 = vmul.f32 1.0, %v4063
    %4065 = vrot.lane.b32.xlu0 %v4047, 96
    %v4066 = vpop.permute.xlu0 %4065
    %4067 = vrot.lane.b32.xlu0 %v4048, 96
    %v4068 = vpop.permute.xlu0 %4067
    %v4071 = vmul.f32 %v4062, %v4066
    %v4072 = vmul.f32 %v4064, %v4068
    %4075 = vrot.lane.b32.xlu0 %v4071, 32
    %v4076 = vpop.permute.xlu0 %4075
    %4077 = vrot.lane.b32.xlu0 %v4072, 32
    %v4078 = vpop.permute.xlu0 %4077
    %v4081 = vadd.f32 %v1590, %v4076
    %v4082 = vadd.f32 %v1595, %v4078
    %v4083 = vtanh.pop %v4081
    %v4084 = vtanh.pop %v4082
    %v4085 = vlaneseq
    %v4086 = vshrl.u32 %v4085, 7
    %v4087 = vsub.s32 7, %v4086
    %v4088 = vrot.slane %v2063, %v4087
    %v4089 = vlaneseq
    %v4090 = vshrl.u32 %v4089, 7
    %v4091 = vsub.s32 7, %v4090
    %v4092 = vrot.slane %v2065, %v4091
    %v4095 = vlaneseq
    %v4096 = vshrl.u32 %v4095, 7
    %v4097 = vsub.s32 7, %v4096
    %v4098 = vrot.slane %v4083, %v4097
    %s4100 = sor.u32 256, 32
    %4101 = vbcast.lane.b32.xlu0 %v4098, %s4100
    %v4102 = vpop.permute.xlu0 %4101
    %s4104 = sor.u32 256, 40
    %4105 = vbcast.lane.b32.xlu0 %v4098, %s4104
    %v4106 = vpop.permute.xlu0 %4105
    %s4108 = sor.u32 256, 48
    %4109 = vbcast.lane.b32.xlu0 %v4098, %s4108
    %v4110 = vpop.permute.xlu0 %4109
    %s4112 = sor.u32 256, 56
    %4113 = vbcast.lane.b32.xlu0 %v4098, %s4112
    %v4114 = vpop.permute.xlu0 %4113
    %v4115 = vlaneseq
    %v4116 = vshrl.u32 %v4115, 7
    %v4117 = vsub.s32 7, %v4116
    %v4118 = vrot.slane %v4084, %v4117
    %s4120 = sor.u32 256, 32
    %4121 = vbcast.lane.b32.xlu0 %v4118, %s4120
    %v4122 = vpop.permute.xlu0 %4121
    %s4124 = sor.u32 256, 40
    %4125 = vbcast.lane.b32.xlu0 %v4118, %s4124
    %v4126 = vpop.permute.xlu0 %4125
    %s4128 = sor.u32 256, 48
    %4129 = vbcast.lane.b32.xlu0 %v4118, %s4128
    %v4130 = vpop.permute.xlu0 %4129
    %s4132 = sor.u32 256, 56
    %4133 = vbcast.lane.b32.xlu0 %v4118, %s4132
    %v4134 = vpop.permute.xlu0 %4133
    %v4143 = vmul.f32 %v4088, %v4102
    %v4144 = vmul.f32 %v4088, %v4106
    %v4145 = vmul.f32 %v4088, %v4110
    %v4146 = vmul.f32 %v4088, %v4114
    %v4147 = vmul.f32 %v4092, %v4122
    %v4148 = vmul.f32 %v4092, %v4126
    %v4149 = vmul.f32 %v4092, %v4130
    %v4150 = vmul.f32 %v4092, %v4134
    %v4151 = vlaneseq
    %v4152 = vshrl.u32 %v4151, 7
    %v4153 = vsub.s32 7, %v4152
    %v4154 = vrot.slane %v2246, %v4153
    %v4155 = vlaneseq
    %v4156 = vshrl.u32 %v4155, 7
    %v4157 = vsub.s32 7, %v4156
    %v4158 = vrot.slane %v2247, %v4157
    %v4159 = vmul.f32 %v4154, %v3895
    %v4160 = vmul.f32 %v4154, %v3896
    %v4161 = vmul.f32 %v4154, %v3897
    %v4162 = vmul.f32 %v4154, %v3898
    %v4163 = vmul.f32 %v4158, %v3899
    %v4164 = vmul.f32 %v4158, %v3900
    %v4165 = vmul.f32 %v4158, %v3901
    %v4166 = vmul.f32 %v4158, %v3902
    %v4167 = vadd.f32 %v4143, %v4159
    %v4168 = vadd.f32 %v4144, %v4160
    %v4169 = vadd.f32 %v4145, %v4161
    %v4170 = vadd.f32 %v4146, %v4162
    %v4171 = vadd.f32 %v4147, %v4163
    %v4172 = vadd.f32 %v4148, %v4164
    %v4173 = vadd.f32 %v4149, %v4165
    %v4174 = vadd.f32 %v4150, %v4166
    %v4175 = vld [vmem:[%s18] sm:$0xff]
    %v4176 = vld [vmem:[%s18 + $0x8] sm:$0xff]
    %v4177 = vld [vmem:[%s18 + $0x10] sm:$0xff]
    %v4178 = vld [vmem:[%s18 + $0x18] sm:$0xff]
    %v4179 = vld [vmem:[#allocation26] sm:$0xff]
    %v4180 = vld [vmem:[#allocation26 + $0x8] sm:$0xff]
    %v4181 = vld [vmem:[#allocation26 + $0x10] sm:$0xff]
    %v4182 = vld [vmem:[#allocation26 + $0x18] sm:$0xff]
    %4191 = vset.pattern.permute.xlu0 0
    %4192 = vperm.xlu0 %4191, %v4167
    %v4193 = vpop.permute.xlu0 %4192
    %4194 = vset.pattern.permute.xlu0 0
    %4195 = vperm.xlu0 %4194, %v4168
    %v4196 = vpop.permute.xlu0 %4195
    %4197 = vset.pattern.permute.xlu0 0
    %4198 = vperm.xlu0 %4197, %v4169
    %v4199 = vpop.permute.xlu0 %4198
    %4200 = vset.pattern.permute.xlu0 0
    %4201 = vperm.xlu0 %4200, %v4170
    %v4202 = vpop.permute.xlu0 %4201
    %4203 = vset.pattern.permute.xlu0 0
    %4204 = vperm.xlu0 %4203, %v4171
    %v4205 = vpop.permute.xlu0 %4204
    %4206 = vset.pattern.permute.xlu0 0
    %4207 = vperm.xlu0 %4206, %v4172
    %v4208 = vpop.permute.xlu0 %4207
    %4209 = vset.pattern.permute.xlu0 0
    %4210 = vperm.xlu0 %4209, %v4173
    %v4211 = vpop.permute.xlu0 %4210
    %4212 = vset.pattern.permute.xlu0 0
    %4213 = vperm.xlu0 %4212, %v4174
    %v4214 = vpop.permute.xlu0 %4213
    %v4215 = vlaneseq
    %v4216 = vshrl.u32 %v4215, 7
    %v4217 = vsub.s32 %v1998, %v4216
    %v4218 = vrot.slane %v4193, %v4217
    %v4219 = vlaneseq
    %v4220 = vshrl.u32 %v4219, 7
    %v4221 = vsub.s32 %v2302, %v4220
    %v4222 = vrot.slane %v4196, %v4221
    %v4223 = vsel %vm2307, %v4222, %v4218
    %v4224 = vlaneseq
    %v4225 = vshrl.u32 %v4224, 7
    %v4226 = vsub.s32 %v2309, %v4225
    %v4227 = vrot.slane %v4199, %v4226
    %v4228 = vsel %vm2314, %v4227, %v4223
    %v4229 = vlaneseq
    %v4230 = vshrl.u32 %v4229, 7
    %v4231 = vsub.s32 %v2316, %v4230
    %v4232 = vrot.slane %v4202, %v4231
    %v4233 = vsel %vm2321, %v4232, %v4228
    %v4234 = vlaneseq
    %v4235 = vshrl.u32 %v4234, 7
    %v4236 = vsub.s32 %v1998, %v4235
    %v4237 = vrot.slane %v4205, %v4236
    %v4238 = vlaneseq
    %v4239 = vshrl.u32 %v4238, 7
    %v4240 = vsub.s32 %v2302, %v4239
    %v4241 = vrot.slane %v4208, %v4240
    %v4242 = vsel %vm2307, %v4241, %v4237
    %v4243 = vlaneseq
    %v4244 = vshrl.u32 %v4243, 7
    %v4245 = vsub.s32 %v2309, %v4244
    %v4246 = vrot.slane %v4211, %v4245
    %v4247 = vsel %vm2314, %v4246, %v4242
    %v4248 = vlaneseq
    %v4249 = vshrl.u32 %v4248, 7
    %v4250 = vsub.s32 %v2316, %v4249
    %v4251 = vrot.slane %v4214, %v4250
    %v4252 = vsel %vm2321, %v4251, %v4247
    %v4253 = vsel %vm751, %v4252, %v4233
    %v4254 = vsel %vm297, %v4253, 0
    %4256 = vmatprep.subr.mxu0 0.0
    %4257 = vmatpush1.msra.mxu0 %v4179
    %4258 = vmatprep.subr.mxu0 0.0
    %4259 = vmatpush1.msra.mxu0 %v4180
    %4260 = vmatprep.subr.mxu0 0.0
    %4261 = vmatpush1.msra.mxu0 %v4181
    %4262 = vmatprep.subr.mxu0 0.0
    %4263 = vmatpush1.msra.mxu0 %v4182
    %4264 = vmatprep.subr.mxu0 0.0
    %4265 = vmatpush1.msra.mxu0 0.0
    %4266 = vmatprep.subr.mxu0 0.0
    %4267 = vmatpush1.msra.mxu0 0.0
    %4268 = vmatprep.subr.mxu0 0.0
    %4269 = vmatpush1.msra.mxu0 0.0
    %4270 = vmatprep.subr.mxu0 0.0
    %4271 = vmatpush1.msra.mxu0 0.0
    %4272 = vmatprep.subr.mxu0 0.0
    %4273 = vmatpush1.msra.mxu0 0.0
    %4274 = vmatprep.subr.mxu0 0.0
    %4275 = vmatpush1.msra.mxu0 0.0
    %4276 = vmatprep.subr.mxu0 0.0
    %4277 = vmatpush1.msra.mxu0 0.0
    %4278 = vmatprep.subr.mxu0 0.0
    %4279 = vmatpush1.msra.mxu0 0.0
    %4280 = vmatprep.subr.mxu0 0.0
    %4281 = vmatpush1.msra.mxu0 0.0
    %4282 = vmatprep.subr.mxu0 0.0
    %4283 = vmatpush1.msra.mxu0 0.0
    %4284 = vmatprep.subr.mxu0 0.0
    %4285 = vmatpush1.msra.mxu0 0.0
    %4286 = vmatprep.subr.mxu0 0.0
    %4287 = vmatpush1.msra.mxu0 0.0
    %4288 = vmatprep.subr.mxu0 0.0
    %4289 = vmatpush1.msra.mxu0 0.0
    %4290 = vmatprep.subr.mxu0 0.0
    %4291 = vmatpush1.msra.mxu0 0.0
    %4292 = vmatprep.subr.mxu0 0.0
    %4293 = vmatpush1.msra.mxu0 0.0
    %4294 = vmatprep.subr.mxu0 0.0
    %4295 = vmatpush1.msra.mxu0 0.0
    %4296 = vmatprep.subr.mxu0 0.0
    %4297 = vmatpush1.msra.mxu0 0.0
    %4298 = vmatprep.subr.mxu0 0.0
    %4299 = vmatpush1.msra.mxu0 0.0
    %4300 = vmatprep.subr.mxu0 0.0
    %4301 = vmatpush1.msra.mxu0 0.0
    %4302 = vmatprep.subr.mxu0 0.0
    %4303 = vmatpush1.msra.mxu0 0.0
    %4304 = vmatprep.subr.mxu0 0.0
    %4305 = vmatpush1.msra.mxu0 0.0
    %4306 = vmatprep.subr.mxu0 0.0
    %4307 = vmatpush1.msra.mxu0 0.0
    %4308 = vmatprep.subr.mxu0 0.0
    %4309 = vmatpush1.msra.mxu0 0.0
    %4310 = vmatprep.subr.mxu0 0.0
    %4311 = vmatpush1.msra.mxu0 0.0
    %4312 = vmatprep.subr.mxu0 0.0
    %4313 = vmatpush1.msra.mxu0 0.0
    %4314 = vmatprep.subr.mxu0 0.0
    %4315 = vmatpush1.msra.mxu0 0.0
    %4316 = vmatprep.subr.mxu0 0.0
    %4317 = vmatpush1.msra.mxu0 0.0
    %4318 = vmatprep.subr.mxu0 0.0
    %4319 = vmatpush1.msra.mxu0 0.0
    %4320 = vmatprep.mubr.f32.mxu0 0.0
    %4321 = vmatmul.mubr.f32.gmra.mrb[0].mxu0 %v4254
    %v4322 = vpop.f32.mrb[0].mxu0
    %v4323 = vadd.f32 0.0, %v4322
    %v4324 = vpop.f32.mrb[0].mxu0
    %4325 = vdwg.mxu0
    %v4328 = vlaneseq
    %v4329 = vshrl.u32 %v4328, 7
    %v4330 = vsub.s32 1, %v4329
    %v4331 = vrot.slane %v1504, %v4330
    %v4332 = vlaneseq
    %v4333 = vshrl.u32 %v4332, 7
    %v4334 = vsub.s32 1, %v4333
    %v4335 = vrot.slane %v1505, %v4334
    %v4336 = vsel %vm751, %v4335, %v4331
    %4337 = vrot.lane.b32.xlu0 %v4336, 32
    %v4338 = vpop.permute.xlu0 %4337
    %v4339 = vsel %vm297, %v4338, 0
    %4341 = vmatprep.subr.mxu0 0.0
    %4342 = vmatpush1.msra.mxu0 %v4175
    %4343 = vmatprep.subr.mxu0 0.0
    %4344 = vmatpush1.msra.mxu0 %v4176
    %4345 = vmatprep.subr.mxu0 0.0
    %4346 = vmatpush1.msra.mxu0 %v4177
    %4347 = vmatprep.subr.mxu0 0.0
    %4348 = vmatpush1.msra.mxu0 %v4178
    %4349 = vmatprep.subr.mxu0 0.0
    %4350 = vmatpush1.msra.mxu0 0.0
    %4351 = vmatprep.subr.mxu0 0.0
    %4352 = vmatpush1.msra.mxu0 0.0
    %4353 = vmatprep.subr.mxu0 0.0
    %4354 = vmatpush1.msra.mxu0 0.0
    %4355 = vmatprep.subr.mxu0 0.0
    %4356 = vmatpush1.msra.mxu0 0.0
    %4357 = vmatprep.subr.mxu0 0.0
    %4358 = vmatpush1.msra.mxu0 0.0
    %4359 = vmatprep.subr.mxu0 0.0
    %4360 = vmatpush1.msra.mxu0 0.0
    %4361 = vmatprep.subr.mxu0 0.0
    %4362 = vmatpush1.msra.mxu0 0.0
    %4363 = vmatprep.subr.mxu0 0.0
    %4364 = vmatpush1.msra.mxu0 0.0
    %4365 = vmatprep.subr.mxu0 0.0
    %4366 = vmatpush1.msra.mxu0 0.0
    %4367 = vmatprep.subr.mxu0 0.0
    %4368 = vmatpush1.msra.mxu0 0.0
    %4369 = vmatprep.subr.mxu0 0.0
    %4370 = vmatpush1.msra.mxu0 0.0
    %4371 = vmatprep.subr.mxu0 0.0
    %4372 = vmatpush1.msra.mxu0 0.0
    %4373 = vmatprep.subr.mxu0 0.0
    %4374 = vmatpush1.msra.mxu0 0.0
    %4375 = vmatprep.subr.mxu0 0.0
    %4376 = vmatpush1.msra.mxu0 0.0
    %4377 = vmatprep.subr.mxu0 0.0
    %4378 = vmatpush1.msra.mxu0 0.0
    %4379 = vmatprep.subr.mxu0 0.0
    %4380 = vmatpush1.msra.mxu0 0.0
    %4381 = vmatprep.subr.mxu0 0.0
    %4382 = vmatpush1.msra.mxu0 0.0
    %4383 = vmatprep.subr.mxu0 0.0
    %4384 = vmatpush1.msra.mxu0 0.0
    %4385 = vmatprep.subr.mxu0 0.0
    %4386 = vmatpush1.msra.mxu0 0.0
    %4387 = vmatprep.subr.mxu0 0.0
    %4388 = vmatpush1.msra.mxu0 0.0
    %4389 = vmatprep.subr.mxu0 0.0
    %4390 = vmatpush1.msra.mxu0 0.0
    %4391 = vmatprep.subr.mxu0 0.0
    %4392 = vmatpush1.msra.mxu0 0.0
    %4393 = vmatprep.subr.mxu0 0.0
    %4394 = vmatpush1.msra.mxu0 0.0
    %4395 = vmatprep.subr.mxu0 0.0
    %4396 = vmatpush1.msra.mxu0 0.0
    %4397 = vmatprep.subr.mxu0 0.0
    %4398 = vmatpush1.msra.mxu0 0.0
    %4399 = vmatprep.subr.mxu0 0.0
    %4400 = vmatpush1.msra.mxu0 0.0
    %4401 = vmatprep.subr.mxu0 0.0
    %4402 = vmatpush1.msra.mxu0 0.0
    %4403 = vmatprep.subr.mxu0 0.0
    %4404 = vmatpush1.msra.mxu0 0.0
    %4405 = vmatprep.mubr.f32.mxu0 0.0
    %4406 = vmatmul.mubr.f32.gmra.mrb[0].mxu0 %v4339
    %v4407 = vpop.f32.mrb[0].mxu0
    %v4408 = vadd.f32 %v4323, %v4407
    %v4409 = vpop.f32.mrb[0].mxu0
    %4410 = vdwg.mxu0
    %v4411 = vld [vmem:[#allocation27] sm:$0xff]
    %v4412 = vld [vmem:[#allocation27 + $0x8] sm:$0xff]
    %v4413 = vld [vmem:[#allocation27 + $0x10] sm:$0xff]
    %v4414 = vld [vmem:[#allocation27 + $0x18] sm:$0xff]
    %4415 = vmatprep.subr.mxu0 0.0
    %4416 = vmatpush1.msra.mxu0 %v4411
    %4417 = vmatprep.subr.mxu0 0.0
    %4418 = vmatpush1.msra.mxu0 %v4412
    %4419 = vmatprep.subr.mxu0 0.0
    %4420 = vmatpush1.msra.mxu0 %v4413
    %4421 = vmatprep.subr.mxu0 0.0
    %4422 = vmatpush1.msra.mxu0 %v4414
    %4423 = vmatprep.subr.mxu0 0.0
    %4424 = vmatpush1.msra.mxu0 0.0
    %4425 = vmatprep.subr.mxu0 0.0
    %4426 = vmatpush1.msra.mxu0 0.0
    %4427 = vmatprep.subr.mxu0 0.0
    %4428 = vmatpush1.msra.mxu0 0.0
    %4429 = vmatprep.subr.mxu0 0.0
    %4430 = vmatpush1.msra.mxu0 0.0
    %4431 = vmatprep.subr.mxu0 0.0
    %4432 = vmatpush1.msra.mxu0 0.0
    %4433 = vmatprep.subr.mxu0 0.0
    %4434 = vmatpush1.msra.mxu0 0.0
    %4435 = vmatprep.subr.mxu0 0.0
    %4436 = vmatpush1.msra.mxu0 0.0
    %4437 = vmatprep.subr.mxu0 0.0
    %4438 = vmatpush1.msra.mxu0 0.0
    %4439 = vmatprep.subr.mxu0 0.0
    %4440 = vmatpush1.msra.mxu0 0.0
    %4441 = vmatprep.subr.mxu0 0.0
    %4442 = vmatpush1.msra.mxu0 0.0
    %4443 = vmatprep.subr.mxu0 0.0
    %4444 = vmatpush1.msra.mxu0 0.0
    %4445 = vmatprep.subr.mxu0 0.0
    %4446 = vmatpush1.msra.mxu0 0.0
    %4447 = vmatprep.subr.mxu0 0.0
    %4448 = vmatpush1.msra.mxu0 0.0
    %4449 = vmatprep.subr.mxu0 0.0
    %4450 = vmatpush1.msra.mxu0 0.0
    %4451 = vmatprep.subr.mxu0 0.0
    %4452 = vmatpush1.msra.mxu0 0.0
    %4453 = vmatprep.subr.mxu0 0.0
    %4454 = vmatpush1.msra.mxu0 0.0
    %4455 = vmatprep.subr.mxu0 0.0
    %4456 = vmatpush1.msra.mxu0 0.0
    %4457 = vmatprep.subr.mxu0 0.0
    %4458 = vmatpush1.msra.mxu0 0.0
    %4459 = vmatprep.subr.mxu0 0.0
    %4460 = vmatpush1.msra.mxu0 0.0
    %4461 = vmatprep.subr.mxu0 0.0
    %4462 = vmatpush1.msra.mxu0 0.0
    %4463 = vmatprep.subr.mxu0 0.0
    %4464 = vmatpush1.msra.mxu0 0.0
    %4465 = vmatprep.subr.mxu0 0.0
    %4466 = vmatpush1.msra.mxu0 0.0
    %4467 = vmatprep.subr.mxu0 0.0
    %4468 = vmatpush1.msra.mxu0 0.0
    %4469 = vmatprep.subr.mxu0 0.0
    %4470 = vmatpush1.msra.mxu0 0.0
    %4471 = vmatprep.subr.mxu0 0.0
    %4472 = vmatpush1.msra.mxu0 0.0
    %4473 = vmatprep.subr.mxu0 0.0
    %4474 = vmatpush1.msra.mxu0 0.0
    %4475 = vmatprep.subr.mxu0 0.0
    %4476 = vmatpush1.msra.mxu0 0.0
    %4477 = vmatprep.subr.mxu0 0.0
    %4478 = vmatpush1.msra.mxu0 0.0
    %4479 = vmatprep.mubr.f32.mxu0 0.0
    %4480 = vmatmul.mubr.f32.gmra.mrb[0].mxu0 %v4339
    %v4481 = vpop.f32.mrb[0].mxu0
    %v4482 = vadd.f32 0.0, %v4481
    %v4483 = vpop.f32.mrb[0].mxu0
    %4484 = vdwg.mxu0
    %v4485 = vadd.f32 %v4408, %v4482
    %v4486 = vld [vmem:[%s21] sm:$0x1]
    %v4488 = vlaneseq
    %v4489 = vshrl.u32 %v4488, 7
    %v4490 = vsub.s32 0, %v4489
    %v4491 = vrot.slane %v4486, %v4490
    %v4493 = vadd.f32 %v4485, %v4491
    %v4494 = vmax.f32 %v4493, 0.0
    %v4497 = vunpack.c.l.s4 1966171168
    %v4498 = vunpack.c.0.s8 %v4497
    %v4499 = vlaneseq
    %v4500 = vshrl.u32 %v4499, 7
    %v4501 = vsub.s32 %v4498, %v4500
    %v4502 = vrot.slane %v4494, %v4501
    %v4503 = vcombine.high %v4502, %v4502
    %v4505 = vunpack.c.l.s4 1966171168
    %v4506 = vunpack.c.0.s8 %v4505
    %v4507 = vlaneseq
    %v4508 = vshrl.u32 %v4507, 7
    %v4509 = vsub.s32 %v4506, %v4508
    %v4510 = vrot.slane %v4502, %v4509
    %v4512 = vunpack.c.l.s4 1966171168
    %v4513 = vunpack.c.0.s8 %v4512
    %v4514 = vlaneseq
    %v4515 = vshrl.u32 %v4514, 7
    %v4516 = vsub.s32 %v4513, %v4515
    %v4517 = vrot.slane %v4503, %v4516
    %v4518 = vlaneseq
    %v4519 = vshrl.u32 %v4518, 7
    %v4520 = vsub.s32 0, %v4519
    %v4521 = vrot.slane %v4510, %v4520
    %v4522 = vlaneseq
    %v4523 = vshrl.u32 %v4522, 7
    %v4524 = vsub.s32 0, %v4523
    %v4525 = vrot.slane %v4517, %v4524
    %v4528 = vmul.f32 %v371, %v4521
    %v4529 = vmul.f32 %v376, %v4525
    %v4530 = vld [vmem:[#allocation14] sm:$0xff]
    %v4531 = vld [vmem:[#allocation14 + $0x8] sm:$0xff]
    %v4532 = vld [vmem:[#allocation14 + $0x10] sm:$0xff]
    %v4533 = vld [vmem:[#allocation14 + $0x18] sm:$0xff]
    %v4535 = vsel %vm297, %v4528, 0
    %v4538 = vsel %vm297, %v4529, 0
    %4540 = vmatprep.subr.mxu0 0.0
    %4541 = vmatpush1.msra.mxu0 %v4530
    %4542 = vmatprep.subr.mxu0 0.0
    %4543 = vmatpush1.msra.mxu0 %v4531
    %4544 = vmatprep.subr.mxu0 0.0
    %4545 = vmatpush1.msra.mxu0 %v4532
    %4546 = vmatprep.subr.mxu0 0.0
    %4547 = vmatpush1.msra.mxu0 %v4533
    %4548 = vmatprep.subr.mxu0 0.0
    %4549 = vmatpush1.msra.mxu0 0.0
    %4550 = vmatprep.subr.mxu0 0.0
    %4551 = vmatpush1.msra.mxu0 0.0
    %4552 = vmatprep.subr.mxu0 0.0
    %4553 = vmatpush1.msra.mxu0 0.0
    %4554 = vmatprep.subr.mxu0 0.0
    %4555 = vmatpush1.msra.mxu0 0.0
    %4556 = vmatprep.subr.mxu0 0.0
    %4557 = vmatpush1.msra.mxu0 0.0
    %4558 = vmatprep.subr.mxu0 0.0
    %4559 = vmatpush1.msra.mxu0 0.0
    %4560 = vmatprep.subr.mxu0 0.0
    %4561 = vmatpush1.msra.mxu0 0.0
    %4562 = vmatprep.subr.mxu0 0.0
    %4563 = vmatpush1.msra.mxu0 0.0
    %4564 = vmatprep.subr.mxu0 0.0
    %4565 = vmatpush1.msra.mxu0 0.0
    %4566 = vmatprep.subr.mxu0 0.0
    %4567 = vmatpush1.msra.mxu0 0.0
    %4568 = vmatprep.subr.mxu0 0.0
    %4569 = vmatpush1.msra.mxu0 0.0
    %4570 = vmatprep.subr.mxu0 0.0
    %4571 = vmatpush1.msra.mxu0 0.0
    %4572 = vmatprep.subr.mxu0 0.0
    %4573 = vmatpush1.msra.mxu0 0.0
    %4574 = vmatprep.subr.mxu0 0.0
    %4575 = vmatpush1.msra.mxu0 0.0
    %4576 = vmatprep.subr.mxu0 0.0
    %4577 = vmatpush1.msra.mxu0 0.0
    %4578 = vmatprep.subr.mxu0 0.0
    %4579 = vmatpush1.msra.mxu0 0.0
    %4580 = vmatprep.subr.mxu0 0.0
    %4581 = vmatpush1.msra.mxu0 0.0
    %4582 = vmatprep.subr.mxu0 0.0
    %4583 = vmatpush1.msra.mxu0 0.0
    %4584 = vmatprep.subr.mxu0 0.0
    %4585 = vmatpush1.msra.mxu0 0.0
    %4586 = vmatprep.subr.mxu0 0.0
    %4587 = vmatpush1.msra.mxu0 0.0
    %4588 = vmatprep.subr.mxu0 0.0
    %4589 = vmatpush1.msra.mxu0 0.0
    %4590 = vmatprep.subr.mxu0 0.0
    %4591 = vmatpush1.msra.mxu0 0.0
    %4592 = vmatprep.subr.mxu0 0.0
    %4593 = vmatpush1.msra.mxu0 0.0
    %4594 = vmatprep.subr.mxu0 0.0
    %4595 = vmatpush1.msra.mxu0 0.0
    %4596 = vmatprep.subr.mxu0 0.0
    %4597 = vmatpush1.msra.mxu0 0.0
    %4598 = vmatprep.subr.mxu0 0.0
    %4599 = vmatpush1.msra.mxu0 0.0
    %4600 = vmatprep.subr.mxu0 0.0
    %4601 = vmatpush1.msra.mxu0 0.0
    %4602 = vmatprep.subr.mxu0 0.0
    %4603 = vmatpush1.msra.mxu0 0.0
    %4604 = vmatprep.mubr.f32.mxu0 0.0
    %4605 = vmatmul.mubr.f32.gmra.mrb[0].mxu0 %v4535
    %v4606 = vpop.f32.mrb[0].mxu0
    %v4607 = vadd.f32 0.0, %v4606
    %v4608 = vpop.f32.mrb[0].mxu0
    %4609 = vmatprep.mubr.f32.mxu0 0.0
    %4610 = vmatmul.mubr.f32.gmra.mrb[0].mxu0 %v4538
    %v4611 = vpop.f32.mrb[0].mxu0
    %v4612 = vadd.f32 0.0, %v4611
    %v4613 = vpop.f32.mrb[0].mxu0
    %4614 = vdwg.mxu0
    %v4615 = vadd.f32 %v1797, %v4607
    %v4616 = vadd.f32 %v1798, %v4612
    %v4617 = vsub.f32 %v371, %v4521
    %v4618 = vsub.f32 %v376, %v4525
    %v4619 = vand.u32 2147483647, %v4617
    %v4620 = vand.u32 2147483647, %v4618
    %v4621 = vld [vmem:[#allocation15] sm:$0xff]
    %v4622 = vld [vmem:[#allocation15 + $0x8] sm:$0xff]
    %v4623 = vld [vmem:[#allocation15 + $0x10] sm:$0xff]
    %v4624 = vld [vmem:[#allocation15 + $0x18] sm:$0xff]
    %v4626 = vsel %vm297, %v4619, 0
    %v4629 = vsel %vm297, %v4620, 0
    %4631 = vmatprep.subr.mxu0 0.0
    %4632 = vmatpush1.msra.mxu0 %v4621
    %4633 = vmatprep.subr.mxu0 0.0
    %4634 = vmatpush1.msra.mxu0 %v4622
    %4635 = vmatprep.subr.mxu0 0.0
    %4636 = vmatpush1.msra.mxu0 %v4623
    %4637 = vmatprep.subr.mxu0 0.0
    %4638 = vmatpush1.msra.mxu0 %v4624
    %4639 = vmatprep.subr.mxu0 0.0
    %4640 = vmatpush1.msra.mxu0 0.0
    %4641 = vmatprep.subr.mxu0 0.0
    %4642 = vmatpush1.msra.mxu0 0.0
    %4643 = vmatprep.subr.mxu0 0.0
    %4644 = vmatpush1.msra.mxu0 0.0
    %4645 = vmatprep.subr.mxu0 0.0
    %4646 = vmatpush1.msra.mxu0 0.0
    %4647 = vmatprep.subr.mxu0 0.0
    %4648 = vmatpush1.msra.mxu0 0.0
    %4649 = vmatprep.subr.mxu0 0.0
    %4650 = vmatpush1.msra.mxu0 0.0
    %4651 = vmatprep.subr.mxu0 0.0
    %4652 = vmatpush1.msra.mxu0 0.0
    %4653 = vmatprep.subr.mxu0 0.0
    %4654 = vmatpush1.msra.mxu0 0.0
    %4655 = vmatprep.subr.mxu0 0.0
    %4656 = vmatpush1.msra.mxu0 0.0
    %4657 = vmatprep.subr.mxu0 0.0
    %4658 = vmatpush1.msra.mxu0 0.0
    %4659 = vmatprep.subr.mxu0 0.0
    %4660 = vmatpush1.msra.mxu0 0.0
    %4661 = vmatprep.subr.mxu0 0.0
    %4662 = vmatpush1.msra.mxu0 0.0
    %4663 = vmatprep.subr.mxu0 0.0
    %4664 = vmatpush1.msra.mxu0 0.0
    %4665 = vmatprep.subr.mxu0 0.0
    %4666 = vmatpush1.msra.mxu0 0.0
    %4667 = vmatprep.subr.mxu0 0.0
    %4668 = vmatpush1.msra.mxu0 0.0
    %4669 = vmatprep.subr.mxu0 0.0
    %4670 = vmatpush1.msra.mxu0 0.0
    %4671 = vmatprep.subr.mxu0 0.0
    %4672 = vmatpush1.msra.mxu0 0.0
    %4673 = vmatprep.subr.mxu0 0.0
    %4674 = vmatpush1.msra.mxu0 0.0
    %4675 = vmatprep.subr.mxu0 0.0
    %4676 = vmatpush1.msra.mxu0 0.0
    %4677 = vmatprep.subr.mxu0 0.0
    %4678 = vmatpush1.msra.mxu0 0.0
    %4679 = vmatprep.subr.mxu0 0.0
    %4680 = vmatpush1.msra.mxu0 0.0
    %4681 = vmatprep.subr.mxu0 0.0
    %4682 = vmatpush1.msra.mxu0 0.0
    %4683 = vmatprep.subr.mxu0 0.0
    %4684 = vmatpush1.msra.mxu0 0.0
    %4685 = vmatprep.subr.mxu0 0.0
    %4686 = vmatpush1.msra.mxu0 0.0
    %4687 = vmatprep.subr.mxu0 0.0
    %4688 = vmatpush1.msra.mxu0 0.0
    %4689 = vmatprep.subr.mxu0 0.0
    %4690 = vmatpush1.msra.mxu0 0.0
    %4691 = vmatprep.subr.mxu0 0.0
    %4692 = vmatpush1.msra.mxu0 0.0
    %4693 = vmatprep.subr.mxu0 0.0
    %4694 = vmatpush1.msra.mxu0 0.0
    %4695 = vmatprep.mubr.f32.mxu0 0.0
    %4696 = vmatmul.mubr.f32.gmra.mrb[0].mxu0 %v4626
    %v4697 = vpop.f32.mrb[0].mxu0
    %v4698 = vadd.f32 0.0, %v4697
    %v4699 = vpop.f32.mrb[0].mxu0
    %4700 = vmatprep.mubr.f32.mxu0 0.0
    %4701 = vmatmul.mubr.f32.gmra.mrb[0].mxu0 %v4629
    %v4702 = vpop.f32.mrb[0].mxu0
    %v4703 = vadd.f32 0.0, %v4702
    %v4704 = vpop.f32.mrb[0].mxu0
    %4705 = vdwg.mxu0
    %v4706 = vadd.f32 %v4615, %v4698
    %v4707 = vadd.f32 %v4616, %v4703
    %v4708 = vtanh.pop %v4706
    %v4709 = vtanh.pop %v4707
    %v4710 = vmul.f32 %v4708, %v1973
    %v4711 = vmul.f32 %v4709, %v1973
    %v4712 = vsel %vm297, %v4710, 0.0
    %4713 = vadd.xlane.f32.xlu0 %v4712
    %v4714 = vpop.xlane.xlu0 %4713
    %v4715 = vsel %vm297, %v4711, 0.0
    %4716 = vadd.xlane.f32.xlu0 %v4715
    %v4717 = vpop.xlane.xlu0 %4716
    %v4718 = vld [vmem:[#allocation2] sm:$0x1]
    %v4720 = vlaneseq
    %v4721 = vshrl.u32 %v4720, 7
    %v4722 = vsub.s32 0, %v4721
    %v4723 = vrot.slane %v4718, %v4722
    %4724 = vset.pattern.permute.xlu0 0
    %4725 = vperm.xlu0 %4724, %v4723
    %v4726 = vpop.permute.xlu0 %4725
    %v4728 = vadd.f32 %v4714, %v4726
    %v4729 = vadd.f32 %v4717, %v4726
    %v4732 = vlaneseq
    %v4733 = vshrl.u32 %v4732, 7
    %v4734 = vsub.s32 %v1998, %v4733
    %v4735 = vrot.slane %v4728, %v4734
    %v4736 = vlaneseq
    %v4737 = vshrl.u32 %v4736, 7
    %v4738 = vsub.s32 %v1998, %v4737
    %v4739 = vrot.slane %v4729, %v4738
    %v4740 = vsel %vm751, %v4739, %v4735
    %v4742 = vsel %vm2009, %v4740, -inf
    %4743 = vmax.xlane.f32.xlu0 %v4742
    %v4744 = vpop.xlane.xlu0 %4743
    %v4746 = vlaneseq
    %v4747 = vshrl.u32 %v4746, 7
    %v4748 = vsub.s32 0, %v4747
    %v4749 = vrot.slane %v4744, %v4748
    %v4750 = vlaneseq
    %v4751 = vshrl.u32 %v4750, 7
    %v4752 = vsub.s32 1, %v4751
    %v4753 = vrot.slane %v4744, %v4752
    %v4756 = vsub.f32 %v4728, %v4749
    %v4757 = vsub.f32 %v4729, %v4753
    %v4758 = vmul.f32 %v4756, 1.442695
    %v4759 = vpow.pop %v4758
    %v4760 = vmul.f32 %v4757, 1.442695
    %v4761 = vpow.pop %v4760
    %4764 = vset.pattern.permute.xlu0 0
    %4765 = vperm.xlu0 %4764, %v4759
    %v4766 = vpop.permute.xlu0 %4765
    %4767 = vset.pattern.permute.xlu0 0
    %4768 = vperm.xlu0 %4767, %v4761
    %v4769 = vpop.permute.xlu0 %4768
    %v4770 = vlaneseq
    %v4771 = vshrl.u32 %v4770, 7
    %v4772 = vsub.s32 %v1998, %v4771
    %v4773 = vrot.slane %v4766, %v4772
    %v4774 = vlaneseq
    %v4775 = vshrl.u32 %v4774, 7
    %v4776 = vsub.s32 %v1998, %v4775
    %v4777 = vrot.slane %v4769, %v4776
    %v4778 = vsel %vm751, %v4777, %v4773
    %v4780 = vsel %vm2009, %v4778, 0.0
    %4781 = vadd.xlane.f32.xlu0 %v4780
    %v4782 = vpop.xlane.xlu0 %4781
    %v4784 = vlaneseq
    %v4785 = vshrl.u32 %v4784, 7
    %v4786 = vsub.s32 0, %v4785
    %v4787 = vrot.slane %v4782, %v4786
    %v4788 = vlaneseq
    %v4789 = vshrl.u32 %v4788, 7
    %v4790 = vsub.s32 1, %v4789
    %v4791 = vrot.slane %v4782, %v4790
    %v4794 = vrcp.pop %v4787
    %v4795 = vmul.f32 %v4759, %v4794
    %v4796 = vrcp.pop %v4791
    %v4797 = vmul.f32 %v4761, %v4796
    %v4798 = vlaneseq
    %v4799 = vshrl.u32 %v4798, 7
    %v4800 = vsub.s32 0, %v4799
    %v4801 = vrot.slane %v4795, %v4800
    %v4802 = vlaneseq
    %v4803 = vshrl.u32 %v4802, 7
    %v4804 = vsub.s32 0, %v4803
    %v4805 = vrot.slane %v4797, %v4804
    %v4806 = vmul.f32 %v4801, %v2197
    %v4807 = vmul.f32 %v4801, %v2201
    %v4808 = vmul.f32 %v4801, %v2205
    %v4809 = vmul.f32 %v4801, %v2209
    %v4810 = vmul.f32 %v4805, %v2217
    %v4811 = vmul.f32 %v4805, %v2221
    %v4812 = vmul.f32 %v4805, %v2225
    %v4813 = vmul.f32 %v4805, %v2229
    %v4814 = vsub.f32 1.0, %v4795
    %v4815 = vsub.f32 1.0, %v4797
    %v4816 = vlaneseq
    %v4817 = vshrl.u32 %v4816, 7
    %v4818 = vsub.s32 0, %v4817
    %v4819 = vrot.slane %v4814, %v4818
    %v4820 = vlaneseq
    %v4821 = vshrl.u32 %v4820, 7
    %v4822 = vsub.s32 0, %v4821
    %v4823 = vrot.slane %v4815, %v4822
    %v4824 = vmul.f32 %v4819, 0.0
    %v4825 = vmul.f32 %v4823, 0.0
    %v4826 = vadd.f32 %v4806, %v4824
    %v4827 = vadd.f32 %v4807, %v4824
    %v4828 = vadd.f32 %v4808, %v4824
    %v4829 = vadd.f32 %v4809, %v4824
    %v4830 = vadd.f32 %v4810, %v4825
    %v4831 = vadd.f32 %v4811, %v4825
    %v4832 = vadd.f32 %v4812, %v4825
    %v4833 = vadd.f32 %v4813, %v4825
    %4842 = vset.pattern.permute.xlu0 0
    %4843 = vperm.xlu0 %4842, %v4826
    %v4844 = vpop.permute.xlu0 %4843
    %4845 = vset.pattern.permute.xlu0 0
    %4846 = vperm.xlu0 %4845, %v4827
    %v4847 = vpop.permute.xlu0 %4846
    %4848 = vset.pattern.permute.xlu0 0
    %4849 = vperm.xlu0 %4848, %v4828
    %v4850 = vpop.permute.xlu0 %4849
    %4851 = vset.pattern.permute.xlu0 0
    %4852 = vperm.xlu0 %4851, %v4829
    %v4853 = vpop.permute.xlu0 %4852
    %4854 = vset.pattern.permute.xlu0 0
    %4855 = vperm.xlu0 %4854, %v4830
    %v4856 = vpop.permute.xlu0 %4855
    %4857 = vset.pattern.permute.xlu0 0
    %4858 = vperm.xlu0 %4857, %v4831
    %v4859 = vpop.permute.xlu0 %4858
    %4860 = vset.pattern.permute.xlu0 0
    %4861 = vperm.xlu0 %4860, %v4832
    %v4862 = vpop.permute.xlu0 %4861
    %4863 = vset.pattern.permute.xlu0 0
    %4864 = vperm.xlu0 %4863, %v4833
    %v4865 = vpop.permute.xlu0 %4864
    %v4866 = vlaneseq
    %v4867 = vshrl.u32 %v4866, 7
    %v4868 = vsub.s32 %v1998, %v4867
    %v4869 = vrot.slane %v4844, %v4868
    %v4870 = vlaneseq
    %v4871 = vshrl.u32 %v4870, 7
    %v4872 = vsub.s32 %v2302, %v4871
    %v4873 = vrot.slane %v4847, %v4872
    %v4874 = vsel %vm2307, %v4873, %v4869
    %v4875 = vlaneseq
    %v4876 = vshrl.u32 %v4875, 7
    %v4877 = vsub.s32 %v2309, %v4876
    %v4878 = vrot.slane %v4850, %v4877
    %v4879 = vsel %vm2314, %v4878, %v4874
    %v4880 = vlaneseq
    %v4881 = vshrl.u32 %v4880, 7
    %v4882 = vsub.s32 %v2316, %v4881
    %v4883 = vrot.slane %v4853, %v4882
    %v4884 = vsel %vm2321, %v4883, %v4879
    %v4885 = vlaneseq
    %v4886 = vshrl.u32 %v4885, 7
    %v4887 = vsub.s32 %v1998, %v4886
    %v4888 = vrot.slane %v4856, %v4887
    %v4889 = vlaneseq
    %v4890 = vshrl.u32 %v4889, 7
    %v4891 = vsub.s32 %v2302, %v4890
    %v4892 = vrot.slane %v4859, %v4891
    %v4893 = vsel %vm2307, %v4892, %v4888
    %v4894 = vlaneseq
    %v4895 = vshrl.u32 %v4894, 7
    %v4896 = vsub.s32 %v2309, %v4895
    %v4897 = vrot.slane %v4862, %v4896
    %v4898 = vsel %vm2314, %v4897, %v4893
    %v4899 = vlaneseq
    %v4900 = vshrl.u32 %v4899, 7
    %v4901 = vsub.s32 %v2316, %v4900
    %v4902 = vrot.slane %v4865, %v4901
    %v4903 = vsel %vm2321, %v4902, %v4898
    %v4904 = vsel %vm751, %v4903, %v4884
    %v4905 = vsel %vm297, %v4904, 0
    %4907 = vmatprep.subr.mxu0 0.0
    %4908 = vmatpush1.msra.mxu0 %v1799
    %4909 = vmatprep.subr.mxu0 0.0
    %4910 = vmatpush1.msra.mxu0 %v1800
    %4911 = vmatprep.subr.mxu0 0.0
    %4912 = vmatpush1.msra.mxu0 %v1801
    %4913 = vmatprep.subr.mxu0 0.0
    %4914 = vmatpush1.msra.mxu0 %v1802
    %4915 = vmatprep.subr.mxu0 0.0
    %4916 = vmatpush1.msra.mxu0 0.0
    %4917 = vmatprep.subr.mxu0 0.0
    %4918 = vmatpush1.msra.mxu0 0.0
    %4919 = vmatprep.subr.mxu0 0.0
    %4920 = vmatpush1.msra.mxu0 0.0
    %4921 = vmatprep.subr.mxu0 0.0
    %4922 = vmatpush1.msra.mxu0 0.0
    %4923 = vmatprep.subr.mxu0 0.0
    %4924 = vmatpush1.msra.mxu0 0.0
    %4925 = vmatprep.subr.mxu0 0.0
    %4926 = vmatpush1.msra.mxu0 0.0
    %4927 = vmatprep.subr.mxu0 0.0
    %4928 = vmatpush1.msra.mxu0 0.0
    %4929 = vmatprep.subr.mxu0 0.0
    %4930 = vmatpush1.msra.mxu0 0.0
    %4931 = vmatprep.subr.mxu0 0.0
    %4932 = vmatpush1.msra.mxu0 0.0
    %4933 = vmatprep.subr.mxu0 0.0
    %4934 = vmatpush1.msra.mxu0 0.0
    %4935 = vmatprep.subr.mxu0 0.0
    %4936 = vmatpush1.msra.mxu0 0.0
    %4937 = vmatprep.subr.mxu0 0.0
    %4938 = vmatpush1.msra.mxu0 0.0
    %4939 = vmatprep.subr.mxu0 0.0
    %4940 = vmatpush1.msra.mxu0 0.0
    %4941 = vmatprep.subr.mxu0 0.0
    %4942 = vmatpush1.msra.mxu0 0.0
    %4943 = vmatprep.subr.mxu0 0.0
    %4944 = vmatpush1.msra.mxu0 0.0
    %4945 = vmatprep.subr.mxu0 0.0
    %4946 = vmatpush1.msra.mxu0 0.0
    %4947 = vmatprep.subr.mxu0 0.0
    %4948 = vmatpush1.msra.mxu0 0.0
    %4949 = vmatprep.subr.mxu0 0.0
    %4950 = vmatpush1.msra.mxu0 0.0
    %4951 = vmatprep.subr.mxu0 0.0
    %4952 = vmatpush1.msra.mxu0 0.0
    %4953 = vmatprep.subr.mxu0 0.0
    %4954 = vmatpush1.msra.mxu0 0.0
    %4955 = vmatprep.subr.mxu0 0.0
    %4956 = vmatpush1.msra.mxu0 0.0
    %4957 = vmatprep.subr.mxu0 0.0
    %4958 = vmatpush1.msra.mxu0 0.0
    %4959 = vmatprep.subr.mxu0 0.0
    %4960 = vmatpush1.msra.mxu0 0.0
    %4961 = vmatprep.subr.mxu0 0.0
    %4962 = vmatpush1.msra.mxu0 0.0
    %4963 = vmatprep.subr.mxu0 0.0
    %4964 = vmatpush1.msra.mxu0 0.0
    %4965 = vmatprep.subr.mxu0 0.0
    %4966 = vmatpush1.msra.mxu0 0.0
    %4967 = vmatprep.subr.mxu0 0.0
    %4968 = vmatpush1.msra.mxu0 0.0
    %4969 = vmatprep.subr.mxu0 0.0
    %4970 = vmatpush1.msra.mxu0 0.0
    %4971 = vmatprep.mubr.f32.mxu0 0.0
    %4972 = vmatmul.mubr.f32.gmra.mrb[0].mxu0 %v4905
    %v4973 = vpop.f32.mrb[0].mxu0
    %v4974 = vadd.f32 %v2070, %v4973
    %v4975 = vpop.f32.mrb[0].mxu0
    %4976 = vdwg.mxu0
    %v4978 = vrot.slane %v4974, 7
    %v4981 = vadd.f32 %v1590, %v4978
    %v4982 = vadd.f32 %v1595, %v4974
    %v4983 = vxor.u32 %v4981, 2147483648
    %v4984 = vxor.u32 %v4982, 2147483648
    %v4985 = vmul.f32 %v4983, 1.442695
    %v4986 = vpow.pop %v4985
    %v4987 = vmul.f32 %v4984, 1.442695
    %v4988 = vpow.pop %v4987
    %v4989 = vadd.f32 %v4986, 1.0
    %v4990 = vadd.f32 %v4988, 1.0
    %v4991 = vrcp.pop %v4989
    %v4992 = vmul.f32 1.0, %v4991
    %v4993 = vrcp.pop %v4990
    %v4994 = vmul.f32 1.0, %v4993
    %4995 = vrot.lane.b32.xlu0 %v4978, 96
    %v4996 = vpop.permute.xlu0 %4995
    %4997 = vrot.lane.b32.xlu0 %v4974, 96
    %v4998 = vpop.permute.xlu0 %4997
    %v5001 = vmul.f32 %v4992, %v4996
    %v5002 = vmul.f32 %v4994, %v4998
    %5005 = vrot.lane.b32.xlu0 %v5001, 32
    %v5006 = vpop.permute.xlu0 %5005
    %5007 = vrot.lane.b32.xlu0 %v5002, 32
    %v5008 = vpop.permute.xlu0 %5007
    %v5011 = vadd.f32 %v1590, %v5006
    %v5012 = vadd.f32 %v1595, %v5008
    %v5013 = vtanh.pop %v5011
    %v5014 = vtanh.pop %v5012
    %v5015 = vlaneseq
    %v5016 = vshrl.u32 %v5015, 7
    %v5017 = vsub.s32 1, %v5016
    %v5018 = vrot.slane %v4795, %v5017
    %v5019 = vlaneseq
    %v5020 = vshrl.u32 %v5019, 7
    %v5021 = vsub.s32 1, %v5020
    %v5022 = vrot.slane %v4797, %v5021
    %v5025 = vlaneseq
    %v5026 = vshrl.u32 %v5025, 7
    %v5027 = vsub.s32 1, %v5026
    %v5028 = vrot.slane %v5013, %v5027
    %s5030 = sor.u32 256, 32
    %5031 = vbcast.lane.b32.xlu0 %v5028, %s5030
    %v5032 = vpop.permute.xlu0 %5031
    %s5034 = sor.u32 256, 40
    %5035 = vbcast.lane.b32.xlu0 %v5028, %s5034
    %v5036 = vpop.permute.xlu0 %5035
    %s5038 = sor.u32 256, 48
    %5039 = vbcast.lane.b32.xlu0 %v5028, %s5038
    %v5040 = vpop.permute.xlu0 %5039
    %s5042 = sor.u32 256, 56
    %5043 = vbcast.lane.b32.xlu0 %v5028, %s5042
    %v5044 = vpop.permute.xlu0 %5043
    %v5045 = vlaneseq
    %v5046 = vshrl.u32 %v5045, 7
    %v5047 = vsub.s32 1, %v5046
    %v5048 = vrot.slane %v5014, %v5047
    %s5050 = sor.u32 256, 32
    %5051 = vbcast.lane.b32.xlu0 %v5048, %s5050
    %v5052 = vpop.permute.xlu0 %5051
    %s5054 = sor.u32 256, 40
    %5055 = vbcast.lane.b32.xlu0 %v5048, %s5054
    %v5056 = vpop.permute.xlu0 %5055
    %s5058 = sor.u32 256, 48
    %5059 = vbcast.lane.b32.xlu0 %v5048, %s5058
    %v5060 = vpop.permute.xlu0 %5059
    %s5062 = sor.u32 256, 56
    %5063 = vbcast.lane.b32.xlu0 %v5048, %s5062
    %v5064 = vpop.permute.xlu0 %5063
    %v5073 = vmul.f32 %v5018, %v5032
    %v5074 = vmul.f32 %v5018, %v5036
    %v5075 = vmul.f32 %v5018, %v5040
    %v5076 = vmul.f32 %v5018, %v5044
    %v5077 = vmul.f32 %v5022, %v5052
    %v5078 = vmul.f32 %v5022, %v5056
    %v5079 = vmul.f32 %v5022, %v5060
    %v5080 = vmul.f32 %v5022, %v5064
    %v5081 = vlaneseq
    %v5082 = vshrl.u32 %v5081, 7
    %v5083 = vsub.s32 1, %v5082
    %v5084 = vrot.slane %v4814, %v5083
    %v5085 = vlaneseq
    %v5086 = vshrl.u32 %v5085, 7
    %v5087 = vsub.s32 1, %v5086
    %v5088 = vrot.slane %v4815, %v5087
    %v5089 = vmul.f32 %v5084, %v4826
    %v5090 = vmul.f32 %v5084, %v4827
    %v5091 = vmul.f32 %v5084, %v4828
    %v5092 = vmul.f32 %v5084, %v4829
    %v5093 = vmul.f32 %v5088, %v4830
    %v5094 = vmul.f32 %v5088, %v4831
    %v5095 = vmul.f32 %v5088, %v4832
    %v5096 = vmul.f32 %v5088, %v4833
    %v5097 = vadd.f32 %v5073, %v5089
    %v5098 = vadd.f32 %v5074, %v5090
    %v5099 = vadd.f32 %v5075, %v5091
    %v5100 = vadd.f32 %v5076, %v5092
    %v5101 = vadd.f32 %v5077, %v5093
    %v5102 = vadd.f32 %v5078, %v5094
    %v5103 = vadd.f32 %v5079, %v5095
    %v5104 = vadd.f32 %v5080, %v5096
    %5113 = vset.pattern.permute.xlu0 0
    %5114 = vperm.xlu0 %5113, %v5097
    %v5115 = vpop.permute.xlu0 %5114
    %5116 = vset.pattern.permute.xlu0 0
    %5117 = vperm.xlu0 %5116, %v5098
    %v5118 = vpop.permute.xlu0 %5117
    %5119 = vset.pattern.permute.xlu0 0
    %5120 = vperm.xlu0 %5119, %v5099
    %v5121 = vpop.permute.xlu0 %5120
    %5122 = vset.pattern.permute.xlu0 0
    %5123 = vperm.xlu0 %5122, %v5100
    %v5124 = vpop.permute.xlu0 %5123
    %5125 = vset.pattern.permute.xlu0 0
    %5126 = vperm.xlu0 %5125, %v5101
    %v5127 = vpop.permute.xlu0 %5126
    %5128 = vset.pattern.permute.xlu0 0
    %5129 = vperm.xlu0 %5128, %v5102
    %v5130 = vpop.permute.xlu0 %5129
    %5131 = vset.pattern.permute.xlu0 0
    %5132 = vperm.xlu0 %5131, %v5103
    %v5133 = vpop.permute.xlu0 %5132
    %5134 = vset.pattern.permute.xlu0 0
    %5135 = vperm.xlu0 %5134, %v5104
    %v5136 = vpop.permute.xlu0 %5135
    %v5137 = vlaneseq
    %v5138 = vshrl.u32 %v5137, 7
    %v5139 = vsub.s32 %v1998, %v5138
    %v5140 = vrot.slane %v5115, %v5139
    %v5141 = vlaneseq
    %v5142 = vshrl.u32 %v5141, 7
    %v5143 = vsub.s32 %v2302, %v5142
    %v5144 = vrot.slane %v5118, %v5143
    %v5145 = vsel %vm2307, %v5144, %v5140
    %v5146 = vlaneseq
    %v5147 = vshrl.u32 %v5146, 7
    %v5148 = vsub.s32 %v2309, %v5147
    %v5149 = vrot.slane %v5121, %v5148
    %v5150 = vsel %vm2314, %v5149, %v5145
    %v5151 = vlaneseq
    %v5152 = vshrl.u32 %v5151, 7
    %v5153 = vsub.s32 %v2316, %v5152
    %v5154 = vrot.slane %v5124, %v5153
    %v5155 = vsel %vm2321, %v5154, %v5150
    %v5156 = vlaneseq
    %v5157 = vshrl.u32 %v5156, 7
    %v5158 = vsub.s32 %v1998, %v5157
    %v5159 = vrot.slane %v5127, %v5158
    %v5160 = vlaneseq
    %v5161 = vshrl.u32 %v5160, 7
    %v5162 = vsub.s32 %v2302, %v5161
    %v5163 = vrot.slane %v5130, %v5162
    %v5164 = vsel %vm2307, %v5163, %v5159
    %v5165 = vlaneseq
    %v5166 = vshrl.u32 %v5165, 7
    %v5167 = vsub.s32 %v2309, %v5166
    %v5168 = vrot.slane %v5133, %v5167
    %v5169 = vsel %vm2314, %v5168, %v5164
    %v5170 = vlaneseq
    %v5171 = vshrl.u32 %v5170, 7
    %v5172 = vsub.s32 %v2316, %v5171
    %v5173 = vrot.slane %v5136, %v5172
    %v5174 = vsel %vm2321, %v5173, %v5169
    %v5175 = vsel %vm751, %v5174, %v5155
    %v5176 = vsel %vm297, %v5175, 0
    %5178 = vmatprep.subr.mxu0 0.0
    %5179 = vmatpush1.msra.mxu0 %v1799
    %5180 = vmatprep.subr.mxu0 0.0
    %5181 = vmatpush1.msra.mxu0 %v1800
    %5182 = vmatprep.subr.mxu0 0.0
    %5183 = vmatpush1.msra.mxu0 %v1801
    %5184 = vmatprep.subr.mxu0 0.0
    %5185 = vmatpush1.msra.mxu0 %v1802
    %5186 = vmatprep.subr.mxu0 0.0
    %5187 = vmatpush1.msra.mxu0 0.0
    %5188 = vmatprep.subr.mxu0 0.0
    %5189 = vmatpush1.msra.mxu0 0.0
    %5190 = vmatprep.subr.mxu0 0.0
    %5191 = vmatpush1.msra.mxu0 0.0
    %5192 = vmatprep.subr.mxu0 0.0
    %5193 = vmatpush1.msra.mxu0 0.0
    %5194 = vmatprep.subr.mxu0 0.0
    %5195 = vmatpush1.msra.mxu0 0.0
    %5196 = vmatprep.subr.mxu0 0.0
    %5197 = vmatpush1.msra.mxu0 0.0
    %5198 = vmatprep.subr.mxu0 0.0
    %5199 = vmatpush1.msra.mxu0 0.0
    %5200 = vmatprep.subr.mxu0 0.0
    %5201 = vmatpush1.msra.mxu0 0.0
    %5202 = vmatprep.subr.mxu0 0.0
    %5203 = vmatpush1.msra.mxu0 0.0
    %5204 = vmatprep.subr.mxu0 0.0
    %5205 = vmatpush1.msra.mxu0 0.0
    %5206 = vmatprep.subr.mxu0 0.0
    %5207 = vmatpush1.msra.mxu0 0.0
    %5208 = vmatprep.subr.mxu0 0.0
    %5209 = vmatpush1.msra.mxu0 0.0
    %5210 = vmatprep.subr.mxu0 0.0
    %5211 = vmatpush1.msra.mxu0 0.0
    %5212 = vmatprep.subr.mxu0 0.0
    %5213 = vmatpush1.msra.mxu0 0.0
    %5214 = vmatprep.subr.mxu0 0.0
    %5215 = vmatpush1.msra.mxu0 0.0
    %5216 = vmatprep.subr.mxu0 0.0
    %5217 = vmatpush1.msra.mxu0 0.0
    %5218 = vmatprep.subr.mxu0 0.0
    %5219 = vmatpush1.msra.mxu0 0.0
    %5220 = vmatprep.subr.mxu0 0.0
    %5221 = vmatpush1.msra.mxu0 0.0
    %5222 = vmatprep.subr.mxu0 0.0
    %5223 = vmatpush1.msra.mxu0 0.0
    %5224 = vmatprep.subr.mxu0 0.0
    %5225 = vmatpush1.msra.mxu0 0.0
    %5226 = vmatprep.subr.mxu0 0.0
    %5227 = vmatpush1.msra.mxu0 0.0
    %5228 = vmatprep.subr.mxu0 0.0
    %5229 = vmatpush1.msra.mxu0 0.0
    %5230 = vmatprep.subr.mxu0 0.0
    %5231 = vmatpush1.msra.mxu0 0.0
    %5232 = vmatprep.subr.mxu0 0.0
    %5233 = vmatpush1.msra.mxu0 0.0
    %5234 = vmatprep.subr.mxu0 0.0
    %5235 = vmatpush1.msra.mxu0 0.0
    %5236 = vmatprep.subr.mxu0 0.0
    %5237 = vmatpush1.msra.mxu0 0.0
    %5238 = vmatprep.subr.mxu0 0.0
    %5239 = vmatpush1.msra.mxu0 0.0
    %5240 = vmatprep.subr.mxu0 0.0
    %5241 = vmatpush1.msra.mxu0 0.0
    %5242 = vmatprep.mubr.f32.mxu0 0.0
    %5243 = vmatmul.mubr.f32.gmra.mrb[0].mxu0 %v5176
    %v5244 = vpop.f32.mrb[0].mxu0
    %v5245 = vadd.f32 %v2070, %v5244
    %v5246 = vpop.f32.mrb[0].mxu0
    %5247 = vdwg.mxu0
    %v5249 = vrot.slane %v5245, 6
    %v5250 = vrot.slane %v5245, 7
    %v5253 = vadd.f32 %v1590, %v5249
    %v5254 = vadd.f32 %v1595, %v5250
    %v5255 = vxor.u32 %v5253, 2147483648
    %v5256 = vxor.u32 %v5254, 2147483648
    %v5257 = vmul.f32 %v5255, 1.442695
    %v5258 = vpow.pop %v5257
    %v5259 = vmul.f32 %v5256, 1.442695
    %v5260 = vpow.pop %v5259
    %v5261 = vadd.f32 %v5258, 1.0
    %v5262 = vadd.f32 %v5260, 1.0
    %v5263 = vrcp.pop %v5261
    %v5264 = vmul.f32 1.0, %v5263
    %v5265 = vrcp.pop %v5262
    %v5266 = vmul.f32 1.0, %v5265
    %5267 = vrot.lane.b32.xlu0 %v5249, 96
    %v5268 = vpop.permute.xlu0 %5267
    %5269 = vrot.lane.b32.xlu0 %v5250, 96
    %v5270 = vpop.permute.xlu0 %5269
    %v5273 = vmul.f32 %v5264, %v5268
    %v5274 = vmul.f32 %v5266, %v5270
    %5277 = vrot.lane.b32.xlu0 %v5273, 32
    %v5278 = vpop.permute.xlu0 %5277
    %5279 = vrot.lane.b32.xlu0 %v5274, 32
    %v5280 = vpop.permute.xlu0 %5279
    %v5283 = vadd.f32 %v1590, %v5278
    %v5284 = vadd.f32 %v1595, %v5280
    %v5285 = vtanh.pop %v5283
    %v5286 = vtanh.pop %v5284
    %v5287 = vlaneseq
    %v5288 = vshrl.u32 %v5287, 7
    %v5289 = vsub.s32 2, %v5288
    %v5290 = vrot.slane %v4795, %v5289
    %v5291 = vlaneseq
    %v5292 = vshrl.u32 %v5291, 7
    %v5293 = vsub.s32 2, %v5292
    %v5294 = vrot.slane %v4797, %v5293
    %v5297 = vlaneseq
    %v5298 = vshrl.u32 %v5297, 7
    %v5299 = vsub.s32 2, %v5298
    %v5300 = vrot.slane %v5285, %v5299
    %s5302 = sor.u32 256, 32
    %5303 = vbcast.lane.b32.xlu0 %v5300, %s5302
    %v5304 = vpop.permute.xlu0 %5303
    %s5306 = sor.u32 256, 40
    %5307 = vbcast.lane.b32.xlu0 %v5300, %s5306
    %v5308 = vpop.permute.xlu0 %5307
    %s5310 = sor.u32 256, 48
    %5311 = vbcast.lane.b32.xlu0 %v5300, %s5310
    %v5312 = vpop.permute.xlu0 %5311
    %s5314 = sor.u32 256, 56
    %5315 = vbcast.lane.b32.xlu0 %v5300, %s5314
    %v5316 = vpop.permute.xlu0 %5315
    %v5317 = vlaneseq
    %v5318 = vshrl.u32 %v5317, 7
    %v5319 = vsub.s32 2, %v5318
    %v5320 = vrot.slane %v5286, %v5319
    %s5322 = sor.u32 256, 32
    %5323 = vbcast.lane.b32.xlu0 %v5320, %s5322
    %v5324 = vpop.permute.xlu0 %5323
    %s5326 = sor.u32 256, 40
    %5327 = vbcast.lane.b32.xlu0 %v5320, %s5326
    %v5328 = vpop.permute.xlu0 %5327
    %s5330 = sor.u32 256, 48
    %5331 = vbcast.lane.b32.xlu0 %v5320, %s5330
    %v5332 = vpop.permute.xlu0 %5331
    %s5334 = sor.u32 256, 56
    %5335 = vbcast.lane.b32.xlu0 %v5320, %s5334
    %v5336 = vpop.permute.xlu0 %5335
    %v5345 = vmul.f32 %v5290, %v5304
    %v5346 = vmul.f32 %v5290, %v5308
    %v5347 = vmul.f32 %v5290, %v5312
    %v5348 = vmul.f32 %v5290, %v5316
    %v5349 = vmul.f32 %v5294, %v5324
    %v5350 = vmul.f32 %v5294, %v5328
    %v5351 = vmul.f32 %v5294, %v5332
    %v5352 = vmul.f32 %v5294, %v5336
    %v5353 = vlaneseq
    %v5354 = vshrl.u32 %v5353, 7
    %v5355 = vsub.s32 2, %v5354
    %v5356 = vrot.slane %v4814, %v5355
    %v5357 = vlaneseq
    %v5358 = vshrl.u32 %v5357, 7
    %v5359 = vsub.s32 2, %v5358
    %v5360 = vrot.slane %v4815, %v5359
    %v5361 = vmul.f32 %v5356, %v5097
    %v5362 = vmul.f32 %v5356, %v5098
    %v5363 = vmul.f32 %v5356, %v5099
    %v5364 = vmul.f32 %v5356, %v5100
    %v5365 = vmul.f32 %v5360, %v5101
    %v5366 = vmul.f32 %v5360, %v5102
    %v5367 = vmul.f32 %v5360, %v5103
    %v5368 = vmul.f32 %v5360, %v5104
    %v5369 = vadd.f32 %v5345, %v5361
    %v5370 = vadd.f32 %v5346, %v5362
    %v5371 = vadd.f32 %v5347, %v5363
    %v5372 = vadd.f32 %v5348, %v5364
    %v5373 = vadd.f32 %v5349, %v5365
    %v5374 = vadd.f32 %v5350, %v5366
    %v5375 = vadd.f32 %v5351, %v5367
    %v5376 = vadd.f32 %v5352, %v5368
    %5385 = vset.pattern.permute.xlu0 0
    %5386 = vperm.xlu0 %5385, %v5369
    %v5387 = vpop.permute.xlu0 %5386
    %5388 = vset.pattern.permute.xlu0 0
    %5389 = vperm.xlu0 %5388, %v5370
    %v5390 = vpop.permute.xlu0 %5389
    %5391 = vset.pattern.permute.xlu0 0
    %5392 = vperm.xlu0 %5391, %v5371
    %v5393 = vpop.permute.xlu0 %5392
    %5394 = vset.pattern.permute.xlu0 0
    %5395 = vperm.xlu0 %5394, %v5372
    %v5396 = vpop.permute.xlu0 %5395
    %5397 = vset.pattern.permute.xlu0 0
    %5398 = vperm.xlu0 %5397, %v5373
    %v5399 = vpop.permute.xlu0 %5398
    %5400 = vset.pattern.permute.xlu0 0
    %5401 = vperm.xlu0 %5400, %v5374
    %v5402 = vpop.permute.xlu0 %5401
    %5403 = vset.pattern.permute.xlu0 0
    %5404 = vperm.xlu0 %5403, %v5375
    %v5405 = vpop.permute.xlu0 %5404
    %5406 = vset.pattern.permute.xlu0 0
    %5407 = vperm.xlu0 %5406, %v5376
    %v5408 = vpop.permute.xlu0 %5407
    %v5409 = vlaneseq
    %v5410 = vshrl.u32 %v5409, 7
    %v5411 = vsub.s32 %v1998, %v5410
    %v5412 = vrot.slane %v5387, %v5411
    %v5413 = vlaneseq
    %v5414 = vshrl.u32 %v5413, 7
    %v5415 = vsub.s32 %v2302, %v5414
    %v5416 = vrot.slane %v5390, %v5415
    %v5417 = vsel %vm2307, %v5416, %v5412
    %v5418 = vlaneseq
    %v5419 = vshrl.u32 %v5418, 7
    %v5420 = vsub.s32 %v2309, %v5419
    %v5421 = vrot.slane %v5393, %v5420
    %v5422 = vsel %vm2314, %v5421, %v5417
    %v5423 = vlaneseq
    %v5424 = vshrl.u32 %v5423, 7
    %v5425 = vsub.s32 %v2316, %v5424
    %v5426 = vrot.slane %v5396, %v5425
    %v5427 = vsel %vm2321, %v5426, %v5422
    %v5428 = vlaneseq
    %v5429 = vshrl.u32 %v5428, 7
    %v5430 = vsub.s32 %v1998, %v5429
    %v5431 = vrot.slane %v5399, %v5430
    %v5432 = vlaneseq
    %v5433 = vshrl.u32 %v5432, 7
    %v5434 = vsub.s32 %v2302, %v5433
    %v5435 = vrot.slane %v5402, %v5434
    %v5436 = vsel %vm2307, %v5435, %v5431
    %v5437 = vlaneseq
    %v5438 = vshrl.u32 %v5437, 7
    %v5439 = vsub.s32 %v2309, %v5438
    %v5440 = vrot.slane %v5405, %v5439
    %v5441 = vsel %vm2314, %v5440, %v5436
    %v5442 = vlaneseq
    %v5443 = vshrl.u32 %v5442, 7
    %v5444 = vsub.s32 %v2316, %v5443
    %v5445 = vrot.slane %v5408, %v5444
    %v5446 = vsel %vm2321, %v5445, %v5441
    %v5447 = vsel %vm751, %v5446, %v5427
    %v5448 = vsel %vm297, %v5447, 0
    %5450 = vmatprep.subr.mxu0 0.0
    %5451 = vmatpush1.msra.mxu0 %v1799
    %5452 = vmatprep.subr.mxu0 0.0
    %5453 = vmatpush1.msra.mxu0 %v1800
    %5454 = vmatprep.subr.mxu0 0.0
    %5455 = vmatpush1.msra.mxu0 %v1801
    %5456 = vmatprep.subr.mxu0 0.0
    %5457 = vmatpush1.msra.mxu0 %v1802
    %5458 = vmatprep.subr.mxu0 0.0
    %5459 = vmatpush1.msra.mxu0 0.0
    %5460 = vmatprep.subr.mxu0 0.0
    %5461 = vmatpush1.msra.mxu0 0.0
    %5462 = vmatprep.subr.mxu0 0.0
    %5463 = vmatpush1.msra.mxu0 0.0
    %5464 = vmatprep.subr.mxu0 0.0
    %5465 = vmatpush1.msra.mxu0 0.0
    %5466 = vmatprep.subr.mxu0 0.0
    %5467 = vmatpush1.msra.mxu0 0.0
    %5468 = vmatprep.subr.mxu0 0.0
    %5469 = vmatpush1.msra.mxu0 0.0
    %5470 = vmatprep.subr.mxu0 0.0
    %5471 = vmatpush1.msra.mxu0 0.0
    %5472 = vmatprep.subr.mxu0 0.0
    %5473 = vmatpush1.msra.mxu0 0.0
    %5474 = vmatprep.subr.mxu0 0.0
    %5475 = vmatpush1.msra.mxu0 0.0
    %5476 = vmatprep.subr.mxu0 0.0
    %5477 = vmatpush1.msra.mxu0 0.0
    %5478 = vmatprep.subr.mxu0 0.0
    %5479 = vmatpush1.msra.mxu0 0.0
    %5480 = vmatprep.subr.mxu0 0.0
    %5481 = vmatpush1.msra.mxu0 0.0
    %5482 = vmatprep.subr.mxu0 0.0
    %5483 = vmatpush1.msra.mxu0 0.0
    %5484 = vmatprep.subr.mxu0 0.0
    %5485 = vmatpush1.msra.mxu0 0.0
    %5486 = vmatprep.subr.mxu0 0.0
    %5487 = vmatpush1.msra.mxu0 0.0
    %5488 = vmatprep.subr.mxu0 0.0
    %5489 = vmatpush1.msra.mxu0 0.0
    %5490 = vmatprep.subr.mxu0 0.0
    %5491 = vmatpush1.msra.mxu0 0.0
    %5492 = vmatprep.subr.mxu0 0.0
    %5493 = vmatpush1.msra.mxu0 0.0
    %5494 = vmatprep.subr.mxu0 0.0
    %5495 = vmatpush1.msra.mxu0 0.0
    %5496 = vmatprep.subr.mxu0 0.0
    %5497 = vmatpush1.msra.mxu0 0.0
    %5498 = vmatprep.subr.mxu0 0.0
    %5499 = vmatpush1.msra.mxu0 0.0
    %5500 = vmatprep.subr.mxu0 0.0
    %5501 = vmatpush1.msra.mxu0 0.0
    %5502 = vmatprep.subr.mxu0 0.0
    %5503 = vmatpush1.msra.mxu0 0.0
    %5504 = vmatprep.subr.mxu0 0.0
    %5505 = vmatpush1.msra.mxu0 0.0
    %5506 = vmatprep.subr.mxu0 0.0
    %5507 = vmatpush1.msra.mxu0 0.0
    %5508 = vmatprep.subr.mxu0 0.0
    %5509 = vmatpush1.msra.mxu0 0.0
    %5510 = vmatprep.subr.mxu0 0.0
    %5511 = vmatpush1.msra.mxu0 0.0
    %5512 = vmatprep.subr.mxu0 0.0
    %5513 = vmatpush1.msra.mxu0 0.0
    %5514 = vmatprep.mubr.f32.mxu0 0.0
    %5515 = vmatmul.mubr.f32.gmra.mrb[0].mxu0 %v5448
    %v5516 = vpop.f32.mrb[0].mxu0
    %v5517 = vadd.f32 %v2070, %v5516
    %v5518 = vpop.f32.mrb[0].mxu0
    %5519 = vdwg.mxu0
    %v5521 = vrot.slane %v5517, 5
    %v5522 = vrot.slane %v5517, 6
    %v5525 = vadd.f32 %v1590, %v5521
    %v5526 = vadd.f32 %v1595, %v5522
    %v5527 = vxor.u32 %v5525, 2147483648
    %v5528 = vxor.u32 %v5526, 2147483648
    %v5529 = vmul.f32 %v5527, 1.442695
    %v5530 = vpow.pop %v5529
    %v5531 = vmul.f32 %v5528, 1.442695
    %v5532 = vpow.pop %v5531
    %v5533 = vadd.f32 %v5530, 1.0
    %v5534 = vadd.f32 %v5532, 1.0
    %v5535 = vrcp.pop %v5533
    %v5536 = vmul.f32 1.0, %v5535
    %v5537 = vrcp.pop %v5534
    %v5538 = vmul.f32 1.0, %v5537
    %5539 = vrot.lane.b32.xlu0 %v5521, 96
    %v5540 = vpop.permute.xlu0 %5539
    %5541 = vrot.lane.b32.xlu0 %v5522, 96
    %v5542 = vpop.permute.xlu0 %5541
    %v5545 = vmul.f32 %v5536, %v5540
    %v5546 = vmul.f32 %v5538, %v5542
    %5549 = vrot.lane.b32.xlu0 %v5545, 32
    %v5550 = vpop.permute.xlu0 %5549
    %5551 = vrot.lane.b32.xlu0 %v5546, 32
    %v5552 = vpop.permute.xlu0 %5551
    %v5555 = vadd.f32 %v1590, %v5550
    %v5556 = vadd.f32 %v1595, %v5552
    %v5557 = vtanh.pop %v5555
    %v5558 = vtanh.pop %v5556
    %v5559 = vlaneseq
    %v5560 = vshrl.u32 %v5559, 7
    %v5561 = vsub.s32 3, %v5560
    %v5562 = vrot.slane %v4795, %v5561
    %v5563 = vlaneseq
    %v5564 = vshrl.u32 %v5563, 7
    %v5565 = vsub.s32 3, %v5564
    %v5566 = vrot.slane %v4797, %v5565
    %v5569 = vlaneseq
    %v5570 = vshrl.u32 %v5569, 7
    %v5571 = vsub.s32 3, %v5570
    %v5572 = vrot.slane %v5557, %v5571
    %s5574 = sor.u32 256, 32
    %5575 = vbcast.lane.b32.xlu0 %v5572, %s5574
    %v5576 = vpop.permute.xlu0 %5575
    %s5578 = sor.u32 256, 40
    %5579 = vbcast.lane.b32.xlu0 %v5572, %s5578
    %v5580 = vpop.permute.xlu0 %5579
    %s5582 = sor.u32 256, 48
    %5583 = vbcast.lane.b32.xlu0 %v5572, %s5582
    %v5584 = vpop.permute.xlu0 %5583
    %s5586 = sor.u32 256, 56
    %5587 = vbcast.lane.b32.xlu0 %v5572, %s5586
    %v5588 = vpop.permute.xlu0 %5587
    %v5589 = vlaneseq
    %v5590 = vshrl.u32 %v5589, 7
    %v5591 = vsub.s32 3, %v5590
    %v5592 = vrot.slane %v5558, %v5591
    %s5594 = sor.u32 256, 32
    %5595 = vbcast.lane.b32.xlu0 %v5592, %s5594
    %v5596 = vpop.permute.xlu0 %5595
    %s5598 = sor.u32 256, 40
    %5599 = vbcast.lane.b32.xlu0 %v5592, %s5598
    %v5600 = vpop.permute.xlu0 %5599
    %s5602 = sor.u32 256, 48
    %5603 = vbcast.lane.b32.xlu0 %v5592, %s5602
    %v5604 = vpop.permute.xlu0 %5603
    %s5606 = sor.u32 256, 56
    %5607 = vbcast.lane.b32.xlu0 %v5592, %s5606
    %v5608 = vpop.permute.xlu0 %5607
    %v5617 = vmul.f32 %v5562, %v5576
    %v5618 = vmul.f32 %v5562, %v5580
    %v5619 = vmul.f32 %v5562, %v5584
    %v5620 = vmul.f32 %v5562, %v5588
    %v5621 = vmul.f32 %v5566, %v5596
    %v5622 = vmul.f32 %v5566, %v5600
    %v5623 = vmul.f32 %v5566, %v5604
    %v5624 = vmul.f32 %v5566, %v5608
    %v5625 = vlaneseq
    %v5626 = vshrl.u32 %v5625, 7
    %v5627 = vsub.s32 3, %v5626
    %v5628 = vrot.slane %v4814, %v5627
    %v5629 = vlaneseq
    %v5630 = vshrl.u32 %v5629, 7
    %v5631 = vsub.s32 3, %v5630
    %v5632 = vrot.slane %v4815, %v5631
    %v5633 = vmul.f32 %v5628, %v5369
    %v5634 = vmul.f32 %v5628, %v5370
    %v5635 = vmul.f32 %v5628, %v5371
    %v5636 = vmul.f32 %v5628, %v5372
    %v5637 = vmul.f32 %v5632, %v5373
    %v5638 = vmul.f32 %v5632, %v5374
    %v5639 = vmul.f32 %v5632, %v5375
    %v5640 = vmul.f32 %v5632, %v5376
    %v5641 = vadd.f32 %v5617, %v5633
    %v5642 = vadd.f32 %v5618, %v5634
    %v5643 = vadd.f32 %v5619, %v5635
    %v5644 = vadd.f32 %v5620, %v5636
    %v5645 = vadd.f32 %v5621, %v5637
    %v5646 = vadd.f32 %v5622, %v5638
    %v5647 = vadd.f32 %v5623, %v5639
    %v5648 = vadd.f32 %v5624, %v5640
    %5657 = vset.pattern.permute.xlu0 0
    %5658 = vperm.xlu0 %5657, %v5641
    %v5659 = vpop.permute.xlu0 %5658
    %5660 = vset.pattern.permute.xlu0 0
    %5661 = vperm.xlu0 %5660, %v5642
    %v5662 = vpop.permute.xlu0 %5661
    %5663 = vset.pattern.permute.xlu0 0
    %5664 = vperm.xlu0 %5663, %v5643
    %v5665 = vpop.permute.xlu0 %5664
    %5666 = vset.pattern.permute.xlu0 0
    %5667 = vperm.xlu0 %5666, %v5644
    %v5668 = vpop.permute.xlu0 %5667
    %5669 = vset.pattern.permute.xlu0 0
    %5670 = vperm.xlu0 %5669, %v5645
    %v5671 = vpop.permute.xlu0 %5670
    %5672 = vset.pattern.permute.xlu0 0
    %5673 = vperm.xlu0 %5672, %v5646
    %v5674 = vpop.permute.xlu0 %5673
    %5675 = vset.pattern.permute.xlu0 0
    %5676 = vperm.xlu0 %5675, %v5647
    %v5677 = vpop.permute.xlu0 %5676
    %5678 = vset.pattern.permute.xlu0 0
    %5679 = vperm.xlu0 %5678, %v5648
    %v5680 = vpop.permute.xlu0 %5679
    %v5681 = vlaneseq
    %v5682 = vshrl.u32 %v5681, 7
    %v5683 = vsub.s32 %v1998, %v5682
    %v5684 = vrot.slane %v5659, %v5683
    %v5685 = vlaneseq
    %v5686 = vshrl.u32 %v5685, 7
    %v5687 = vsub.s32 %v2302, %v5686
    %v5688 = vrot.slane %v5662, %v5687
    %v5689 = vsel %vm2307, %v5688, %v5684
    %v5690 = vlaneseq
    %v5691 = vshrl.u32 %v5690, 7
    %v5692 = vsub.s32 %v2309, %v5691
    %v5693 = vrot.slane %v5665, %v5692
    %v5694 = vsel %vm2314, %v5693, %v5689
    %v5695 = vlaneseq
    %v5696 = vshrl.u32 %v5695, 7
    %v5697 = vsub.s32 %v2316, %v5696
    %v5698 = vrot.slane %v5668, %v5697
    %v5699 = vsel %vm2321, %v5698, %v5694
    %v5700 = vlaneseq
    %v5701 = vshrl.u32 %v5700, 7
    %v5702 = vsub.s32 %v1998, %v5701
    %v5703 = vrot.slane %v5671, %v5702
    %v5704 = vlaneseq
    %v5705 = vshrl.u32 %v5704, 7
    %v5706 = vsub.s32 %v2302, %v5705
    %v5707 = vrot.slane %v5674, %v5706
    %v5708 = vsel %vm2307, %v5707, %v5703
    %v5709 = vlaneseq
    %v5710 = vshrl.u32 %v5709, 7
    %v5711 = vsub.s32 %v2309, %v5710
    %v5712 = vrot.slane %v5677, %v5711
    %v5713 = vsel %vm2314, %v5712, %v5708
    %v5714 = vlaneseq
    %v5715 = vshrl.u32 %v5714, 7
    %v5716 = vsub.s32 %v2316, %v5715
    %v5717 = vrot.slane %v5680, %v5716
    %v5718 = vsel %vm2321, %v5717, %v5713
    %v5719 = vsel %vm751, %v5718, %v5699
    %v5720 = vsel %vm297, %v5719, 0
    %5722 = vmatprep.subr.mxu0 0.0
    %5723 = vmatpush1.msra.mxu0 %v1799
    %5724 = vmatprep.subr.mxu0 0.0
    %5725 = vmatpush1.msra.mxu0 %v1800
    %5726 = vmatprep.subr.mxu0 0.0
    %5727 = vmatpush1.msra.mxu0 %v1801
    %5728 = vmatprep.subr.mxu0 0.0
    %5729 = vmatpush1.msra.mxu0 %v1802
    %5730 = vmatprep.subr.mxu0 0.0
    %5731 = vmatpush1.msra.mxu0 0.0
    %5732 = vmatprep.subr.mxu0 0.0
    %5733 = vmatpush1.msra.mxu0 0.0
    %5734 = vmatprep.subr.mxu0 0.0
    %5735 = vmatpush1.msra.mxu0 0.0
    %5736 = vmatprep.subr.mxu0 0.0
    %5737 = vmatpush1.msra.mxu0 0.0
    %5738 = vmatprep.subr.mxu0 0.0
    %5739 = vmatpush1.msra.mxu0 0.0
    %5740 = vmatprep.subr.mxu0 0.0
    %5741 = vmatpush1.msra.mxu0 0.0
    %5742 = vmatprep.subr.mxu0 0.0
    %5743 = vmatpush1.msra.mxu0 0.0
    %5744 = vmatprep.subr.mxu0 0.0
    %5745 = vmatpush1.msra.mxu0 0.0
    %5746 = vmatprep.subr.mxu0 0.0
    %5747 = vmatpush1.msra.mxu0 0.0
    %5748 = vmatprep.subr.mxu0 0.0
    %5749 = vmatpush1.msra.mxu0 0.0
    %5750 = vmatprep.subr.mxu0 0.0
    %5751 = vmatpush1.msra.mxu0 0.0
    %5752 = vmatprep.subr.mxu0 0.0
    %5753 = vmatpush1.msra.mxu0 0.0
    %5754 = vmatprep.subr.mxu0 0.0
    %5755 = vmatpush1.msra.mxu0 0.0
    %5756 = vmatprep.subr.mxu0 0.0
    %5757 = vmatpush1.msra.mxu0 0.0
    %5758 = vmatprep.subr.mxu0 0.0
    %5759 = vmatpush1.msra.mxu0 0.0
    %5760 = vmatprep.subr.mxu0 0.0
    %5761 = vmatpush1.msra.mxu0 0.0
    %5762 = vmatprep.subr.mxu0 0.0
    %5763 = vmatpush1.msra.mxu0 0.0
    %5764 = vmatprep.subr.mxu0 0.0
    %5765 = vmatpush1.msra.mxu0 0.0
    %5766 = vmatprep.subr.mxu0 0.0
    %5767 = vmatpush1.msra.mxu0 0.0
    %5768 = vmatprep.subr.mxu0 0.0
    %5769 = vmatpush1.msra.mxu0 0.0
    %5770 = vmatprep.subr.mxu0 0.0
    %5771 = vmatpush1.msra.mxu0 0.0
    %5772 = vmatprep.subr.mxu0 0.0
    %5773 = vmatpush1.msra.mxu0 0.0
    %5774 = vmatprep.subr.mxu0 0.0
    %5775 = vmatpush1.msra.mxu0 0.0
    %5776 = vmatprep.subr.mxu0 0.0
    %5777 = vmatpush1.msra.mxu0 0.0
    %5778 = vmatprep.subr.mxu0 0.0
    %5779 = vmatpush1.msra.mxu0 0.0
    %5780 = vmatprep.subr.mxu0 0.0
    %5781 = vmatpush1.msra.mxu0 0.0
    %5782 = vmatprep.subr.mxu0 0.0
    %5783 = vmatpush1.msra.mxu0 0.0
    %5784 = vmatprep.subr.mxu0 0.0
    %5785 = vmatpush1.msra.mxu0 0.0
    %5786 = vmatprep.mubr.f32.mxu0 0.0
    %5787 = vmatmul.mubr.f32.gmra.mrb[0].mxu0 %v5720
    %v5788 = vpop.f32.mrb[0].mxu0
    %v5789 = vadd.f32 %v2070, %v5788
    %v5790 = vpop.f32.mrb[0].mxu0
    %5791 = vdwg.mxu0
    %v5793 = vrot.slane %v5789, 4
    %v5794 = vrot.slane %v5789, 5
    %v5797 = vadd.f32 %v1590, %v5793
    %v5798 = vadd.f32 %v1595, %v5794
    %v5799 = vxor.u32 %v5797, 2147483648
    %v5800 = vxor.u32 %v5798, 2147483648
    %v5801 = vmul.f32 %v5799, 1.442695
    %v5802 = vpow.pop %v5801
    %v5803 = vmul.f32 %v5800, 1.442695
    %v5804 = vpow.pop %v5803
    %v5805 = vadd.f32 %v5802, 1.0
    %v5806 = vadd.f32 %v5804, 1.0
    %v5807 = vrcp.pop %v5805
    %v5808 = vmul.f32 1.0, %v5807
    %v5809 = vrcp.pop %v5806
    %v5810 = vmul.f32 1.0, %v5809
    %5811 = vrot.lane.b32.xlu0 %v5793, 96
    %v5812 = vpop.permute.xlu0 %5811
    %5813 = vrot.lane.b32.xlu0 %v5794, 96
    %v5814 = vpop.permute.xlu0 %5813
    %v5817 = vmul.f32 %v5808, %v5812
    %v5818 = vmul.f32 %v5810, %v5814
    %5821 = vrot.lane.b32.xlu0 %v5817, 32
    %v5822 = vpop.permute.xlu0 %5821
    %5823 = vrot.lane.b32.xlu0 %v5818, 32
    %v5824 = vpop.permute.xlu0 %5823
    %v5827 = vadd.f32 %v1590, %v5822
    %v5828 = vadd.f32 %v1595, %v5824
    %v5829 = vtanh.pop %v5827
    %v5830 = vtanh.pop %v5828
    %v5831 = vlaneseq
    %v5832 = vshrl.u32 %v5831, 7
    %v5833 = vsub.s32 4, %v5832
    %v5834 = vrot.slane %v4795, %v5833
    %v5835 = vlaneseq
    %v5836 = vshrl.u32 %v5835, 7
    %v5837 = vsub.s32 4, %v5836
    %v5838 = vrot.slane %v4797, %v5837
    %v5841 = vlaneseq
    %v5842 = vshrl.u32 %v5841, 7
    %v5843 = vsub.s32 4, %v5842
    %v5844 = vrot.slane %v5829, %v5843
    %s5846 = sor.u32 256, 32
    %5847 = vbcast.lane.b32.xlu0 %v5844, %s5846
    %v5848 = vpop.permute.xlu0 %5847
    %s5850 = sor.u32 256, 40
    %5851 = vbcast.lane.b32.xlu0 %v5844, %s5850
    %v5852 = vpop.permute.xlu0 %5851
    %s5854 = sor.u32 256, 48
    %5855 = vbcast.lane.b32.xlu0 %v5844, %s5854
    %v5856 = vpop.permute.xlu0 %5855
    %s5858 = sor.u32 256, 56
    %5859 = vbcast.lane.b32.xlu0 %v5844, %s5858
    %v5860 = vpop.permute.xlu0 %5859
    %v5861 = vlaneseq
    %v5862 = vshrl.u32 %v5861, 7
    %v5863 = vsub.s32 4, %v5862
    %v5864 = vrot.slane %v5830, %v5863
    %s5866 = sor.u32 256, 32
    %5867 = vbcast.lane.b32.xlu0 %v5864, %s5866
    %v5868 = vpop.permute.xlu0 %5867
    %s5870 = sor.u32 256, 40
    %5871 = vbcast.lane.b32.xlu0 %v5864, %s5870
    %v5872 = vpop.permute.xlu0 %5871
    %s5874 = sor.u32 256, 48
    %5875 = vbcast.lane.b32.xlu0 %v5864, %s5874
    %v5876 = vpop.permute.xlu0 %5875
    %s5878 = sor.u32 256, 56
    %5879 = vbcast.lane.b32.xlu0 %v5864, %s5878
    %v5880 = vpop.permute.xlu0 %5879
    %v5889 = vmul.f32 %v5834, %v5848
    %v5890 = vmul.f32 %v5834, %v5852
    %v5891 = vmul.f32 %v5834, %v5856
    %v5892 = vmul.f32 %v5834, %v5860
    %v5893 = vmul.f32 %v5838, %v5868
    %v5894 = vmul.f32 %v5838, %v5872
    %v5895 = vmul.f32 %v5838, %v5876
    %v5896 = vmul.f32 %v5838, %v5880
    %v5897 = vlaneseq
    %v5898 = vshrl.u32 %v5897, 7
    %v5899 = vsub.s32 4, %v5898
    %v5900 = vrot.slane %v4814, %v5899
    %v5901 = vlaneseq
    %v5902 = vshrl.u32 %v5901, 7
    %v5903 = vsub.s32 4, %v5902
    %v5904 = vrot.slane %v4815, %v5903
    %v5905 = vmul.f32 %v5900, %v5641
    %v5906 = vmul.f32 %v5900, %v5642
    %v5907 = vmul.f32 %v5900, %v5643
    %v5908 = vmul.f32 %v5900, %v5644
    %v5909 = vmul.f32 %v5904, %v5645
    %v5910 = vmul.f32 %v5904, %v5646
    %v5911 = vmul.f32 %v5904, %v5647
    %v5912 = vmul.f32 %v5904, %v5648
    %v5913 = vadd.f32 %v5889, %v5905
    %v5914 = vadd.f32 %v5890, %v5906
    %v5915 = vadd.f32 %v5891, %v5907
    %v5916 = vadd.f32 %v5892, %v5908
    %v5917 = vadd.f32 %v5893, %v5909
    %v5918 = vadd.f32 %v5894, %v5910
    %v5919 = vadd.f32 %v5895, %v5911
    %v5920 = vadd.f32 %v5896, %v5912
    %5929 = vset.pattern.permute.xlu0 0
    %5930 = vperm.xlu0 %5929, %v5913
    %v5931 = vpop.permute.xlu0 %5930
    %5932 = vset.pattern.permute.xlu0 0
    %5933 = vperm.xlu0 %5932, %v5914
    %v5934 = vpop.permute.xlu0 %5933
    %5935 = vset.pattern.permute.xlu0 0
    %5936 = vperm.xlu0 %5935, %v5915
    %v5937 = vpop.permute.xlu0 %5936
    %5938 = vset.pattern.permute.xlu0 0
    %5939 = vperm.xlu0 %5938, %v5916
    %v5940 = vpop.permute.xlu0 %5939
    %5941 = vset.pattern.permute.xlu0 0
    %5942 = vperm.xlu0 %5941, %v5917
    %v5943 = vpop.permute.xlu0 %5942
    %5944 = vset.pattern.permute.xlu0 0
    %5945 = vperm.xlu0 %5944, %v5918
    %v5946 = vpop.permute.xlu0 %5945
    %5947 = vset.pattern.permute.xlu0 0
    %5948 = vperm.xlu0 %5947, %v5919
    %v5949 = vpop.permute.xlu0 %5948
    %5950 = vset.pattern.permute.xlu0 0
    %5951 = vperm.xlu0 %5950, %v5920
    %v5952 = vpop.permute.xlu0 %5951
    %v5953 = vlaneseq
    %v5954 = vshrl.u32 %v5953, 7
    %v5955 = vsub.s32 %v1998, %v5954
    %v5956 = vrot.slane %v5931, %v5955
    %v5957 = vlaneseq
    %v5958 = vshrl.u32 %v5957, 7
    %v5959 = vsub.s32 %v2302, %v5958
    %v5960 = vrot.slane %v5934, %v5959
    %v5961 = vsel %vm2307, %v5960, %v5956
    %v5962 = vlaneseq
    %v5963 = vshrl.u32 %v5962, 7
    %v5964 = vsub.s32 %v2309, %v5963
    %v5965 = vrot.slane %v5937, %v5964
    %v5966 = vsel %vm2314, %v5965, %v5961
    %v5967 = vlaneseq
    %v5968 = vshrl.u32 %v5967, 7
    %v5969 = vsub.s32 %v2316, %v5968
    %v5970 = vrot.slane %v5940, %v5969
    %v5971 = vsel %vm2321, %v5970, %v5966
    %v5972 = vlaneseq
    %v5973 = vshrl.u32 %v5972, 7
    %v5974 = vsub.s32 %v1998, %v5973
    %v5975 = vrot.slane %v5943, %v5974
    %v5976 = vlaneseq
    %v5977 = vshrl.u32 %v5976, 7
    %v5978 = vsub.s32 %v2302, %v5977
    %v5979 = vrot.slane %v5946, %v5978
    %v5980 = vsel %vm2307, %v5979, %v5975
    %v5981 = vlaneseq
    %v5982 = vshrl.u32 %v5981, 7
    %v5983 = vsub.s32 %v2309, %v5982
    %v5984 = vrot.slane %v5949, %v5983
    %v5985 = vsel %vm2314, %v5984, %v5980
    %v5986 = vlaneseq
    %v5987 = vshrl.u32 %v5986, 7
    %v5988 = vsub.s32 %v2316, %v5987
    %v5989 = vrot.slane %v5952, %v5988
    %v5990 = vsel %vm2321, %v5989, %v5985
    %v5991 = vsel %vm751, %v5990, %v5971
    %v5992 = vsel %vm297, %v5991, 0
    %5994 = vmatprep.subr.mxu0 0.0
    %5995 = vmatpush1.msra.mxu0 %v1799
    %5996 = vmatprep.subr.mxu0 0.0
    %5997 = vmatpush1.msra.mxu0 %v1800
    %5998 = vmatprep.subr.mxu0 0.0
    %5999 = vmatpush1.msra.mxu0 %v1801
    %6000 = vmatprep.subr.mxu0 0.0
    %6001 = vmatpush1.msra.mxu0 %v1802
    %6002 = vmatprep.subr.mxu0 0.0
    %6003 = vmatpush1.msra.mxu0 0.0
    %6004 = vmatprep.subr.mxu0 0.0
    %6005 = vmatpush1.msra.mxu0 0.0
    %6006 = vmatprep.subr.mxu0 0.0
    %6007 = vmatpush1.msra.mxu0 0.0
    %6008 = vmatprep.subr.mxu0 0.0
    %6009 = vmatpush1.msra.mxu0 0.0
    %6010 = vmatprep.subr.mxu0 0.0
    %6011 = vmatpush1.msra.mxu0 0.0
    %6012 = vmatprep.subr.mxu0 0.0
    %6013 = vmatpush1.msra.mxu0 0.0
    %6014 = vmatprep.subr.mxu0 0.0
    %6015 = vmatpush1.msra.mxu0 0.0
    %6016 = vmatprep.subr.mxu0 0.0
    %6017 = vmatpush1.msra.mxu0 0.0
    %6018 = vmatprep.subr.mxu0 0.0
    %6019 = vmatpush1.msra.mxu0 0.0
    %6020 = vmatprep.subr.mxu0 0.0
    %6021 = vmatpush1.msra.mxu0 0.0
    %6022 = vmatprep.subr.mxu0 0.0
    %6023 = vmatpush1.msra.mxu0 0.0
    %6024 = vmatprep.subr.mxu0 0.0
    %6025 = vmatpush1.msra.mxu0 0.0
    %6026 = vmatprep.subr.mxu0 0.0
    %6027 = vmatpush1.msra.mxu0 0.0
    %6028 = vmatprep.subr.mxu0 0.0
    %6029 = vmatpush1.msra.mxu0 0.0
    %6030 = vmatprep.subr.mxu0 0.0
    %6031 = vmatpush1.msra.mxu0 0.0
    %6032 = vmatprep.subr.mxu0 0.0
    %6033 = vmatpush1.msra.mxu0 0.0
    %6034 = vmatprep.subr.mxu0 0.0
    %6035 = vmatpush1.msra.mxu0 0.0
    %6036 = vmatprep.subr.mxu0 0.0
    %6037 = vmatpush1.msra.mxu0 0.0
    %6038 = vmatprep.subr.mxu0 0.0
    %6039 = vmatpush1.msra.mxu0 0.0
    %6040 = vmatprep.subr.mxu0 0.0
    %6041 = vmatpush1.msra.mxu0 0.0
    %6042 = vmatprep.subr.mxu0 0.0
    %6043 = vmatpush1.msra.mxu0 0.0
    %6044 = vmatprep.subr.mxu0 0.0
    %6045 = vmatpush1.msra.mxu0 0.0
    %6046 = vmatprep.subr.mxu0 0.0
    %6047 = vmatpush1.msra.mxu0 0.0
    %6048 = vmatprep.subr.mxu0 0.0
    %6049 = vmatpush1.msra.mxu0 0.0
    %6050 = vmatprep.subr.mxu0 0.0
    %6051 = vmatpush1.msra.mxu0 0.0
    %6052 = vmatprep.subr.mxu0 0.0
    %6053 = vmatpush1.msra.mxu0 0.0
    %6054 = vmatprep.subr.mxu0 0.0
    %6055 = vmatpush1.msra.mxu0 0.0
    %6056 = vmatprep.subr.mxu0 0.0
    %6057 = vmatpush1.msra.mxu0 0.0
    %6058 = vmatprep.mubr.f32.mxu0 0.0
    %6059 = vmatmul.mubr.f32.gmra.mrb[0].mxu0 %v5992
    %v6060 = vpop.f32.mrb[0].mxu0
    %v6061 = vadd.f32 %v2070, %v6060
    %v6062 = vpop.f32.mrb[0].mxu0
    %6063 = vdwg.mxu0
    %v6065 = vrot.slane %v6061, 3
    %v6066 = vrot.slane %v6061, 4
    %v6069 = vadd.f32 %v1590, %v6065
    %v6070 = vadd.f32 %v1595, %v6066
    %v6071 = vxor.u32 %v6069, 2147483648
    %v6072 = vxor.u32 %v6070, 2147483648
    %v6073 = vmul.f32 %v6071, 1.442695
    %v6074 = vpow.pop %v6073
    %v6075 = vmul.f32 %v6072, 1.442695
    %v6076 = vpow.pop %v6075
    %v6077 = vadd.f32 %v6074, 1.0
    %v6078 = vadd.f32 %v6076, 1.0
    %v6079 = vrcp.pop %v6077
    %v6080 = vmul.f32 1.0, %v6079
    %v6081 = vrcp.pop %v6078
    %v6082 = vmul.f32 1.0, %v6081
    %6083 = vrot.lane.b32.xlu0 %v6065, 96
    %v6084 = vpop.permute.xlu0 %6083
    %6085 = vrot.lane.b32.xlu0 %v6066, 96
    %v6086 = vpop.permute.xlu0 %6085
    %v6089 = vmul.f32 %v6080, %v6084
    %v6090 = vmul.f32 %v6082, %v6086
    %6093 = vrot.lane.b32.xlu0 %v6089, 32
    %v6094 = vpop.permute.xlu0 %6093
    %6095 = vrot.lane.b32.xlu0 %v6090, 32
    %v6096 = vpop.permute.xlu0 %6095
    %v6099 = vadd.f32 %v1590, %v6094
    %v6100 = vadd.f32 %v1595, %v6096
    %v6101 = vtanh.pop %v6099
    %v6102 = vtanh.pop %v6100
    %v6103 = vlaneseq
    %v6104 = vshrl.u32 %v6103, 7
    %v6105 = vsub.s32 5, %v6104
    %v6106 = vrot.slane %v4795, %v6105
    %v6107 = vlaneseq
    %v6108 = vshrl.u32 %v6107, 7
    %v6109 = vsub.s32 5, %v6108
    %v6110 = vrot.slane %v4797, %v6109
    %v6113 = vlaneseq
    %v6114 = vshrl.u32 %v6113, 7
    %v6115 = vsub.s32 5, %v6114
    %v6116 = vrot.slane %v6101, %v6115
    %s6118 = sor.u32 256, 32
    %6119 = vbcast.lane.b32.xlu0 %v6116, %s6118
    %v6120 = vpop.permute.xlu0 %6119
    %s6122 = sor.u32 256, 40
    %6123 = vbcast.lane.b32.xlu0 %v6116, %s6122
    %v6124 = vpop.permute.xlu0 %6123
    %s6126 = sor.u32 256, 48
    %6127 = vbcast.lane.b32.xlu0 %v6116, %s6126
    %v6128 = vpop.permute.xlu0 %6127
    %s6130 = sor.u32 256, 56
    %6131 = vbcast.lane.b32.xlu0 %v6116, %s6130
    %v6132 = vpop.permute.xlu0 %6131
    %v6133 = vlaneseq
    %v6134 = vshrl.u32 %v6133, 7
    %v6135 = vsub.s32 5, %v6134
    %v6136 = vrot.slane %v6102, %v6135
    %s6138 = sor.u32 256, 32
    %6139 = vbcast.lane.b32.xlu0 %v6136, %s6138
    %v6140 = vpop.permute.xlu0 %6139
    %s6142 = sor.u32 256, 40
    %6143 = vbcast.lane.b32.xlu0 %v6136, %s6142
    %v6144 = vpop.permute.xlu0 %6143
    %s6146 = sor.u32 256, 48
    %6147 = vbcast.lane.b32.xlu0 %v6136, %s6146
    %v6148 = vpop.permute.xlu0 %6147
    %s6150 = sor.u32 256, 56
    %6151 = vbcast.lane.b32.xlu0 %v6136, %s6150
    %v6152 = vpop.permute.xlu0 %6151
    %v6161 = vmul.f32 %v6106, %v6120
    %v6162 = vmul.f32 %v6106, %v6124
    %v6163 = vmul.f32 %v6106, %v6128
    %v6164 = vmul.f32 %v6106, %v6132
    %v6165 = vmul.f32 %v6110, %v6140
    %v6166 = vmul.f32 %v6110, %v6144
    %v6167 = vmul.f32 %v6110, %v6148
    %v6168 = vmul.f32 %v6110, %v6152
    %v6169 = vlaneseq
    %v6170 = vshrl.u32 %v6169, 7
    %v6171 = vsub.s32 5, %v6170
    %v6172 = vrot.slane %v4814, %v6171
    %v6173 = vlaneseq
    %v6174 = vshrl.u32 %v6173, 7
    %v6175 = vsub.s32 5, %v6174
    %v6176 = vrot.slane %v4815, %v6175
    %v6177 = vmul.f32 %v6172, %v5913
    %v6178 = vmul.f32 %v6172, %v5914
    %v6179 = vmul.f32 %v6172, %v5915
    %v6180 = vmul.f32 %v6172, %v5916
    %v6181 = vmul.f32 %v6176, %v5917
    %v6182 = vmul.f32 %v6176, %v5918
    %v6183 = vmul.f32 %v6176, %v5919
    %v6184 = vmul.f32 %v6176, %v5920
    %v6185 = vadd.f32 %v6161, %v6177
    %v6186 = vadd.f32 %v6162, %v6178
    %v6187 = vadd.f32 %v6163, %v6179
    %v6188 = vadd.f32 %v6164, %v6180
    %v6189 = vadd.f32 %v6165, %v6181
    %v6190 = vadd.f32 %v6166, %v6182
    %v6191 = vadd.f32 %v6167, %v6183
    %v6192 = vadd.f32 %v6168, %v6184
    %6201 = vset.pattern.permute.xlu0 0
    %6202 = vperm.xlu0 %6201, %v6185
    %v6203 = vpop.permute.xlu0 %6202
    %6204 = vset.pattern.permute.xlu0 0
    %6205 = vperm.xlu0 %6204, %v6186
    %v6206 = vpop.permute.xlu0 %6205
    %6207 = vset.pattern.permute.xlu0 0
    %6208 = vperm.xlu0 %6207, %v6187
    %v6209 = vpop.permute.xlu0 %6208
    %6210 = vset.pattern.permute.xlu0 0
    %6211 = vperm.xlu0 %6210, %v6188
    %v6212 = vpop.permute.xlu0 %6211
    %6213 = vset.pattern.permute.xlu0 0
    %6214 = vperm.xlu0 %6213, %v6189
    %v6215 = vpop.permute.xlu0 %6214
    %6216 = vset.pattern.permute.xlu0 0
    %6217 = vperm.xlu0 %6216, %v6190
    %v6218 = vpop.permute.xlu0 %6217
    %6219 = vset.pattern.permute.xlu0 0
    %6220 = vperm.xlu0 %6219, %v6191
    %v6221 = vpop.permute.xlu0 %6220
    %6222 = vset.pattern.permute.xlu0 0
    %6223 = vperm.xlu0 %6222, %v6192
    %v6224 = vpop.permute.xlu0 %6223
    %v6225 = vlaneseq
    %v6226 = vshrl.u32 %v6225, 7
    %v6227 = vsub.s32 %v1998, %v6226
    %v6228 = vrot.slane %v6203, %v6227
    %v6229 = vlaneseq
    %v6230 = vshrl.u32 %v6229, 7
    %v6231 = vsub.s32 %v2302, %v6230
    %v6232 = vrot.slane %v6206, %v6231
    %v6233 = vsel %vm2307, %v6232, %v6228
    %v6234 = vlaneseq
    %v6235 = vshrl.u32 %v6234, 7
    %v6236 = vsub.s32 %v2309, %v6235
    %v6237 = vrot.slane %v6209, %v6236
    %v6238 = vsel %vm2314, %v6237, %v6233
    %v6239 = vlaneseq
    %v6240 = vshrl.u32 %v6239, 7
    %v6241 = vsub.s32 %v2316, %v6240
    %v6242 = vrot.slane %v6212, %v6241
    %v6243 = vsel %vm2321, %v6242, %v6238
    %v6244 = vlaneseq
    %v6245 = vshrl.u32 %v6244, 7
    %v6246 = vsub.s32 %v1998, %v6245
    %v6247 = vrot.slane %v6215, %v6246
    %v6248 = vlaneseq
    %v6249 = vshrl.u32 %v6248, 7
    %v6250 = vsub.s32 %v2302, %v6249
    %v6251 = vrot.slane %v6218, %v6250
    %v6252 = vsel %vm2307, %v6251, %v6247
    %v6253 = vlaneseq
    %v6254 = vshrl.u32 %v6253, 7
    %v6255 = vsub.s32 %v2309, %v6254
    %v6256 = vrot.slane %v6221, %v6255
    %v6257 = vsel %vm2314, %v6256, %v6252
    %v6258 = vlaneseq
    %v6259 = vshrl.u32 %v6258, 7
    %v6260 = vsub.s32 %v2316, %v6259
    %v6261 = vrot.slane %v6224, %v6260
    %v6262 = vsel %vm2321, %v6261, %v6257
    %v6263 = vsel %vm751, %v6262, %v6243
    %v6264 = vsel %vm297, %v6263, 0
    %6266 = vmatprep.subr.mxu0 0.0
    %6267 = vmatpush1.msra.mxu0 %v1799
    %6268 = vmatprep.subr.mxu0 0.0
    %6269 = vmatpush1.msra.mxu0 %v1800
    %6270 = vmatprep.subr.mxu0 0.0
    %6271 = vmatpush1.msra.mxu0 %v1801
    %6272 = vmatprep.subr.mxu0 0.0
    %6273 = vmatpush1.msra.mxu0 %v1802
    %6274 = vmatprep.subr.mxu0 0.0
    %6275 = vmatpush1.msra.mxu0 0.0
    %6276 = vmatprep.subr.mxu0 0.0
    %6277 = vmatpush1.msra.mxu0 0.0
    %6278 = vmatprep.subr.mxu0 0.0
    %6279 = vmatpush1.msra.mxu0 0.0
    %6280 = vmatprep.subr.mxu0 0.0
    %6281 = vmatpush1.msra.mxu0 0.0
    %6282 = vmatprep.subr.mxu0 0.0
    %6283 = vmatpush1.msra.mxu0 0.0
    %6284 = vmatprep.subr.mxu0 0.0
    %6285 = vmatpush1.msra.mxu0 0.0
    %6286 = vmatprep.subr.mxu0 0.0
    %6287 = vmatpush1.msra.mxu0 0.0
    %6288 = vmatprep.subr.mxu0 0.0
    %6289 = vmatpush1.msra.mxu0 0.0
    %6290 = vmatprep.subr.mxu0 0.0
    %6291 = vmatpush1.msra.mxu0 0.0
    %6292 = vmatprep.subr.mxu0 0.0
    %6293 = vmatpush1.msra.mxu0 0.0
    %6294 = vmatprep.subr.mxu0 0.0
    %6295 = vmatpush1.msra.mxu0 0.0
    %6296 = vmatprep.subr.mxu0 0.0
    %6297 = vmatpush1.msra.mxu0 0.0
    %6298 = vmatprep.subr.mxu0 0.0
    %6299 = vmatpush1.msra.mxu0 0.0
    %6300 = vmatprep.subr.mxu0 0.0
    %6301 = vmatpush1.msra.mxu0 0.0
    %6302 = vmatprep.subr.mxu0 0.0
    %6303 = vmatpush1.msra.mxu0 0.0
    %6304 = vmatprep.subr.mxu0 0.0
    %6305 = vmatpush1.msra.mxu0 0.0
    %6306 = vmatprep.subr.mxu0 0.0
    %6307 = vmatpush1.msra.mxu0 0.0
    %6308 = vmatprep.subr.mxu0 0.0
    %6309 = vmatpush1.msra.mxu0 0.0
    %6310 = vmatprep.subr.mxu0 0.0
    %6311 = vmatpush1.msra.mxu0 0.0
    %6312 = vmatprep.subr.mxu0 0.0
    %6313 = vmatpush1.msra.mxu0 0.0
    %6314 = vmatprep.subr.mxu0 0.0
    %6315 = vmatpush1.msra.mxu0 0.0
    %6316 = vmatprep.subr.mxu0 0.0
    %6317 = vmatpush1.msra.mxu0 0.0
    %6318 = vmatprep.subr.mxu0 0.0
    %6319 = vmatpush1.msra.mxu0 0.0
    %6320 = vmatprep.subr.mxu0 0.0
    %6321 = vmatpush1.msra.mxu0 0.0
    %6322 = vmatprep.subr.mxu0 0.0
    %6323 = vmatpush1.msra.mxu0 0.0
    %6324 = vmatprep.subr.mxu0 0.0
    %6325 = vmatpush1.msra.mxu0 0.0
    %6326 = vmatprep.subr.mxu0 0.0
    %6327 = vmatpush1.msra.mxu0 0.0
    %6328 = vmatprep.subr.mxu0 0.0
    %6329 = vmatpush1.msra.mxu0 0.0
    %6330 = vmatprep.mubr.f32.mxu0 0.0
    %6331 = vmatmul.mubr.f32.gmra.mrb[0].mxu0 %v6264
    %v6332 = vpop.f32.mrb[0].mxu0
    %v6333 = vadd.f32 %v2070, %v6332
    %v6334 = vpop.f32.mrb[0].mxu0
    %6335 = vdwg.mxu0
    %v6337 = vrot.slane %v6333, 2
    %v6338 = vrot.slane %v6333, 3
    %v6341 = vadd.f32 %v1590, %v6337
    %v6342 = vadd.f32 %v1595, %v6338
    %v6343 = vxor.u32 %v6341, 2147483648
    %v6344 = vxor.u32 %v6342, 2147483648
    %v6345 = vmul.f32 %v6343, 1.442695
    %v6346 = vpow.pop %v6345
    %v6347 = vmul.f32 %v6344, 1.442695
    %v6348 = vpow.pop %v6347
    %v6349 = vadd.f32 %v6346, 1.0
    %v6350 = vadd.f32 %v6348, 1.0
    %v6351 = vrcp.pop %v6349
    %v6352 = vmul.f32 1.0, %v6351
    %v6353 = vrcp.pop %v6350
    %v6354 = vmul.f32 1.0, %v6353
    %6355 = vrot.lane.b32.xlu0 %v6337, 96
    %v6356 = vpop.permute.xlu0 %6355
    %6357 = vrot.lane.b32.xlu0 %v6338, 96
    %v6358 = vpop.permute.xlu0 %6357
    %v6361 = vmul.f32 %v6352, %v6356
    %v6362 = vmul.f32 %v6354, %v6358
    %6365 = vrot.lane.b32.xlu0 %v6361, 32
    %v6366 = vpop.permute.xlu0 %6365
    %6367 = vrot.lane.b32.xlu0 %v6362, 32
    %v6368 = vpop.permute.xlu0 %6367
    %v6371 = vadd.f32 %v1590, %v6366
    %v6372 = vadd.f32 %v1595, %v6368
    %v6373 = vtanh.pop %v6371
    %v6374 = vtanh.pop %v6372
    %v6375 = vlaneseq
    %v6376 = vshrl.u32 %v6375, 7
    %v6377 = vsub.s32 6, %v6376
    %v6378 = vrot.slane %v4795, %v6377
    %v6379 = vlaneseq
    %v6380 = vshrl.u32 %v6379, 7
    %v6381 = vsub.s32 6, %v6380
    %v6382 = vrot.slane %v4797, %v6381
    %v6385 = vlaneseq
    %v6386 = vshrl.u32 %v6385, 7
    %v6387 = vsub.s32 6, %v6386
    %v6388 = vrot.slane %v6373, %v6387
    %s6390 = sor.u32 256, 32
    %6391 = vbcast.lane.b32.xlu0 %v6388, %s6390
    %v6392 = vpop.permute.xlu0 %6391
    %s6394 = sor.u32 256, 40
    %6395 = vbcast.lane.b32.xlu0 %v6388, %s6394
    %v6396 = vpop.permute.xlu0 %6395
    %s6398 = sor.u32 256, 48
    %6399 = vbcast.lane.b32.xlu0 %v6388, %s6398
    %v6400 = vpop.permute.xlu0 %6399
    %s6402 = sor.u32 256, 56
    %6403 = vbcast.lane.b32.xlu0 %v6388, %s6402
    %v6404 = vpop.permute.xlu0 %6403
    %v6405 = vlaneseq
    %v6406 = vshrl.u32 %v6405, 7
    %v6407 = vsub.s32 6, %v6406
    %v6408 = vrot.slane %v6374, %v6407
    %s6410 = sor.u32 256, 32
    %6411 = vbcast.lane.b32.xlu0 %v6408, %s6410
    %v6412 = vpop.permute.xlu0 %6411
    %s6414 = sor.u32 256, 40
    %6415 = vbcast.lane.b32.xlu0 %v6408, %s6414
    %v6416 = vpop.permute.xlu0 %6415
    %s6418 = sor.u32 256, 48
    %6419 = vbcast.lane.b32.xlu0 %v6408, %s6418
    %v6420 = vpop.permute.xlu0 %6419
    %s6422 = sor.u32 256, 56
    %6423 = vbcast.lane.b32.xlu0 %v6408, %s6422
    %v6424 = vpop.permute.xlu0 %6423
    %v6433 = vmul.f32 %v6378, %v6392
    %v6434 = vmul.f32 %v6378, %v6396
    %v6435 = vmul.f32 %v6378, %v6400
    %v6436 = vmul.f32 %v6378, %v6404
    %v6437 = vmul.f32 %v6382, %v6412
    %v6438 = vmul.f32 %v6382, %v6416
    %v6439 = vmul.f32 %v6382, %v6420
    %v6440 = vmul.f32 %v6382, %v6424
    %v6441 = vlaneseq
    %v6442 = vshrl.u32 %v6441, 7
    %v6443 = vsub.s32 6, %v6442
    %v6444 = vrot.slane %v4814, %v6443
    %v6445 = vlaneseq
    %v6446 = vshrl.u32 %v6445, 7
    %v6447 = vsub.s32 6, %v6446
    %v6448 = vrot.slane %v4815, %v6447
    %v6449 = vmul.f32 %v6444, %v6185
    %v6450 = vmul.f32 %v6444, %v6186
    %v6451 = vmul.f32 %v6444, %v6187
    %v6452 = vmul.f32 %v6444, %v6188
    %v6453 = vmul.f32 %v6448, %v6189
    %v6454 = vmul.f32 %v6448, %v6190
    %v6455 = vmul.f32 %v6448, %v6191
    %v6456 = vmul.f32 %v6448, %v6192
    %v6457 = vadd.f32 %v6433, %v6449
    %v6458 = vadd.f32 %v6434, %v6450
    %v6459 = vadd.f32 %v6435, %v6451
    %v6460 = vadd.f32 %v6436, %v6452
    %v6461 = vadd.f32 %v6437, %v6453
    %v6462 = vadd.f32 %v6438, %v6454
    %v6463 = vadd.f32 %v6439, %v6455
    %v6464 = vadd.f32 %v6440, %v6456
    %6473 = vset.pattern.permute.xlu0 0
    %6474 = vperm.xlu0 %6473, %v6457
    %v6475 = vpop.permute.xlu0 %6474
    %6476 = vset.pattern.permute.xlu0 0
    %6477 = vperm.xlu0 %6476, %v6458
    %v6478 = vpop.permute.xlu0 %6477
    %6479 = vset.pattern.permute.xlu0 0
    %6480 = vperm.xlu0 %6479, %v6459
    %v6481 = vpop.permute.xlu0 %6480
    %6482 = vset.pattern.permute.xlu0 0
    %6483 = vperm.xlu0 %6482, %v6460
    %v6484 = vpop.permute.xlu0 %6483
    %6485 = vset.pattern.permute.xlu0 0
    %6486 = vperm.xlu0 %6485, %v6461
    %v6487 = vpop.permute.xlu0 %6486
    %6488 = vset.pattern.permute.xlu0 0
    %6489 = vperm.xlu0 %6488, %v6462
    %v6490 = vpop.permute.xlu0 %6489
    %6491 = vset.pattern.permute.xlu0 0
    %6492 = vperm.xlu0 %6491, %v6463
    %v6493 = vpop.permute.xlu0 %6492
    %6494 = vset.pattern.permute.xlu0 0
    %6495 = vperm.xlu0 %6494, %v6464
    %v6496 = vpop.permute.xlu0 %6495
    %v6497 = vlaneseq
    %v6498 = vshrl.u32 %v6497, 7
    %v6499 = vsub.s32 %v1998, %v6498
    %v6500 = vrot.slane %v6475, %v6499
    %v6501 = vlaneseq
    %v6502 = vshrl.u32 %v6501, 7
    %v6503 = vsub.s32 %v2302, %v6502
    %v6504 = vrot.slane %v6478, %v6503
    %v6505 = vsel %vm2307, %v6504, %v6500
    %v6506 = vlaneseq
    %v6507 = vshrl.u32 %v6506, 7
    %v6508 = vsub.s32 %v2309, %v6507
    %v6509 = vrot.slane %v6481, %v6508
    %v6510 = vsel %vm2314, %v6509, %v6505
    %v6511 = vlaneseq
    %v6512 = vshrl.u32 %v6511, 7
    %v6513 = vsub.s32 %v2316, %v6512
    %v6514 = vrot.slane %v6484, %v6513
    %v6515 = vsel %vm2321, %v6514, %v6510
    %v6516 = vlaneseq
    %v6517 = vshrl.u32 %v6516, 7
    %v6518 = vsub.s32 %v1998, %v6517
    %v6519 = vrot.slane %v6487, %v6518
    %v6520 = vlaneseq
    %v6521 = vshrl.u32 %v6520, 7
    %v6522 = vsub.s32 %v2302, %v6521
    %v6523 = vrot.slane %v6490, %v6522
    %v6524 = vsel %vm2307, %v6523, %v6519
    %v6525 = vlaneseq
    %v6526 = vshrl.u32 %v6525, 7
    %v6527 = vsub.s32 %v2309, %v6526
    %v6528 = vrot.slane %v6493, %v6527
    %v6529 = vsel %vm2314, %v6528, %v6524
    %v6530 = vlaneseq
    %v6531 = vshrl.u32 %v6530, 7
    %v6532 = vsub.s32 %v2316, %v6531
    %v6533 = vrot.slane %v6496, %v6532
    %v6534 = vsel %vm2321, %v6533, %v6529
    %v6535 = vsel %vm751, %v6534, %v6515
    %v6536 = vsel %vm297, %v6535, 0
    %6538 = vmatprep.subr.mxu0 0.0
    %6539 = vmatpush1.msra.mxu0 %v1799
    %6540 = vmatprep.subr.mxu0 0.0
    %6541 = vmatpush1.msra.mxu0 %v1800
    %6542 = vmatprep.subr.mxu0 0.0
    %6543 = vmatpush1.msra.mxu0 %v1801
    %6544 = vmatprep.subr.mxu0 0.0
    %6545 = vmatpush1.msra.mxu0 %v1802
    %6546 = vmatprep.subr.mxu0 0.0
    %6547 = vmatpush1.msra.mxu0 0.0
    %6548 = vmatprep.subr.mxu0 0.0
    %6549 = vmatpush1.msra.mxu0 0.0
    %6550 = vmatprep.subr.mxu0 0.0
    %6551 = vmatpush1.msra.mxu0 0.0
    %6552 = vmatprep.subr.mxu0 0.0
    %6553 = vmatpush1.msra.mxu0 0.0
    %6554 = vmatprep.subr.mxu0 0.0
    %6555 = vmatpush1.msra.mxu0 0.0
    %6556 = vmatprep.subr.mxu0 0.0
    %6557 = vmatpush1.msra.mxu0 0.0
    %6558 = vmatprep.subr.mxu0 0.0
    %6559 = vmatpush1.msra.mxu0 0.0
    %6560 = vmatprep.subr.mxu0 0.0
    %6561 = vmatpush1.msra.mxu0 0.0
    %6562 = vmatprep.subr.mxu0 0.0
    %6563 = vmatpush1.msra.mxu0 0.0
    %6564 = vmatprep.subr.mxu0 0.0
    %6565 = vmatpush1.msra.mxu0 0.0
    %6566 = vmatprep.subr.mxu0 0.0
    %6567 = vmatpush1.msra.mxu0 0.0
    %6568 = vmatprep.subr.mxu0 0.0
    %6569 = vmatpush1.msra.mxu0 0.0
    %6570 = vmatprep.subr.mxu0 0.0
    %6571 = vmatpush1.msra.mxu0 0.0
    %6572 = vmatprep.subr.mxu0 0.0
    %6573 = vmatpush1.msra.mxu0 0.0
    %6574 = vmatprep.subr.mxu0 0.0
    %6575 = vmatpush1.msra.mxu0 0.0
    %6576 = vmatprep.subr.mxu0 0.0
    %6577 = vmatpush1.msra.mxu0 0.0
    %6578 = vmatprep.subr.mxu0 0.0
    %6579 = vmatpush1.msra.mxu0 0.0
    %6580 = vmatprep.subr.mxu0 0.0
    %6581 = vmatpush1.msra.mxu0 0.0
    %6582 = vmatprep.subr.mxu0 0.0
    %6583 = vmatpush1.msra.mxu0 0.0
    %6584 = vmatprep.subr.mxu0 0.0
    %6585 = vmatpush1.msra.mxu0 0.0
    %6586 = vmatprep.subr.mxu0 0.0
    %6587 = vmatpush1.msra.mxu0 0.0
    %6588 = vmatprep.subr.mxu0 0.0
    %6589 = vmatpush1.msra.mxu0 0.0
    %6590 = vmatprep.subr.mxu0 0.0
    %6591 = vmatpush1.msra.mxu0 0.0
    %6592 = vmatprep.subr.mxu0 0.0
    %6593 = vmatpush1.msra.mxu0 0.0
    %6594 = vmatprep.subr.mxu0 0.0
    %6595 = vmatpush1.msra.mxu0 0.0
    %6596 = vmatprep.subr.mxu0 0.0
    %6597 = vmatpush1.msra.mxu0 0.0
    %6598 = vmatprep.subr.mxu0 0.0
    %6599 = vmatpush1.msra.mxu0 0.0
    %6600 = vmatprep.subr.mxu0 0.0
    %6601 = vmatpush1.msra.mxu0 0.0
    %6602 = vmatprep.mubr.f32.mxu0 0.0
    %6603 = vmatmul.mubr.f32.gmra.mrb[0].mxu0 %v6536
    %v6604 = vpop.f32.mrb[0].mxu0
    %v6605 = vadd.f32 %v2070, %v6604
    %v6606 = vpop.f32.mrb[0].mxu0
    %6607 = vdwg.mxu0
    %v6609 = vrot.slane %v6605, 1
    %v6610 = vrot.slane %v6605, 2
    %v6613 = vadd.f32 %v1590, %v6609
    %v6614 = vadd.f32 %v1595, %v6610
    %v6615 = vxor.u32 %v6613, 2147483648
    %v6616 = vxor.u32 %v6614, 2147483648
    %v6617 = vmul.f32 %v6615, 1.442695
    %v6618 = vpow.pop %v6617
    %v6619 = vmul.f32 %v6616, 1.442695
    %v6620 = vpow.pop %v6619
    %v6621 = vadd.f32 %v6618, 1.0
    %v6622 = vadd.f32 %v6620, 1.0
    %v6623 = vrcp.pop %v6621
    %v6624 = vmul.f32 1.0, %v6623
    %v6625 = vrcp.pop %v6622
    %v6626 = vmul.f32 1.0, %v6625
    %6627 = vrot.lane.b32.xlu0 %v6609, 96
    %v6628 = vpop.permute.xlu0 %6627
    %6629 = vrot.lane.b32.xlu0 %v6610, 96
    %v6630 = vpop.permute.xlu0 %6629
    %v6633 = vmul.f32 %v6624, %v6628
    %v6634 = vmul.f32 %v6626, %v6630
    %6637 = vrot.lane.b32.xlu0 %v6633, 32
    %v6638 = vpop.permute.xlu0 %6637
    %6639 = vrot.lane.b32.xlu0 %v6634, 32
    %v6640 = vpop.permute.xlu0 %6639
    %v6643 = vadd.f32 %v1590, %v6638
    %v6644 = vadd.f32 %v1595, %v6640
    %v6645 = vtanh.pop %v6643
    %v6646 = vtanh.pop %v6644
    %v6647 = vlaneseq
    %v6648 = vshrl.u32 %v6647, 7
    %v6649 = vsub.s32 7, %v6648
    %v6650 = vrot.slane %v4795, %v6649
    %v6651 = vlaneseq
    %v6652 = vshrl.u32 %v6651, 7
    %v6653 = vsub.s32 7, %v6652
    %v6654 = vrot.slane %v4797, %v6653
    %v6657 = vlaneseq
    %v6658 = vshrl.u32 %v6657, 7
    %v6659 = vsub.s32 7, %v6658
    %v6660 = vrot.slane %v6645, %v6659
    %s6662 = sor.u32 256, 32
    %6663 = vbcast.lane.b32.xlu0 %v6660, %s6662
    %v6664 = vpop.permute.xlu0 %6663
    %s6666 = sor.u32 256, 40
    %6667 = vbcast.lane.b32.xlu0 %v6660, %s6666
    %v6668 = vpop.permute.xlu0 %6667
    %s6670 = sor.u32 256, 48
    %6671 = vbcast.lane.b32.xlu0 %v6660, %s6670
    %v6672 = vpop.permute.xlu0 %6671
    %s6674 = sor.u32 256, 56
    %6675 = vbcast.lane.b32.xlu0 %v6660, %s6674
    %v6676 = vpop.permute.xlu0 %6675
    %v6677 = vlaneseq
    %v6678 = vshrl.u32 %v6677, 7
    %v6679 = vsub.s32 7, %v6678
    %v6680 = vrot.slane %v6646, %v6679
    %s6682 = sor.u32 256, 32
    %6683 = vbcast.lane.b32.xlu0 %v6680, %s6682
    %v6684 = vpop.permute.xlu0 %6683
    %s6686 = sor.u32 256, 40
    %6687 = vbcast.lane.b32.xlu0 %v6680, %s6686
    %v6688 = vpop.permute.xlu0 %6687
    %s6690 = sor.u32 256, 48
    %6691 = vbcast.lane.b32.xlu0 %v6680, %s6690
    %v6692 = vpop.permute.xlu0 %6691
    %s6694 = sor.u32 256, 56
    %6695 = vbcast.lane.b32.xlu0 %v6680, %s6694
    %v6696 = vpop.permute.xlu0 %6695
    %v6705 = vmul.f32 %v6650, %v6664
    %v6706 = vmul.f32 %v6650, %v6668
    %v6707 = vmul.f32 %v6650, %v6672
    %v6708 = vmul.f32 %v6650, %v6676
    %v6709 = vmul.f32 %v6654, %v6684
    %v6710 = vmul.f32 %v6654, %v6688
    %v6711 = vmul.f32 %v6654, %v6692
    %v6712 = vmul.f32 %v6654, %v6696
    %v6713 = vlaneseq
    %v6714 = vshrl.u32 %v6713, 7
    %v6715 = vsub.s32 7, %v6714
    %v6716 = vrot.slane %v4814, %v6715
    %v6717 = vlaneseq
    %v6718 = vshrl.u32 %v6717, 7
    %v6719 = vsub.s32 7, %v6718
    %v6720 = vrot.slane %v4815, %v6719
    %v6721 = vmul.f32 %v6716, %v6457
    %v6722 = vmul.f32 %v6716, %v6458
    %v6723 = vmul.f32 %v6716, %v6459
    %v6724 = vmul.f32 %v6716, %v6460
    %v6725 = vmul.f32 %v6720, %v6461
    %v6726 = vmul.f32 %v6720, %v6462
    %v6727 = vmul.f32 %v6720, %v6463
    %v6728 = vmul.f32 %v6720, %v6464
    %v6729 = vadd.f32 %v6705, %v6721
    %v6730 = vadd.f32 %v6706, %v6722
    %v6731 = vadd.f32 %v6707, %v6723
    %v6732 = vadd.f32 %v6708, %v6724
    %v6733 = vadd.f32 %v6709, %v6725
    %v6734 = vadd.f32 %v6710, %v6726
    %v6735 = vadd.f32 %v6711, %v6727
    %v6736 = vadd.f32 %v6712, %v6728
    %v6737 = vld [vmem:[%s18] sm:$0xff]
    %v6738 = vld [vmem:[%s18 + $0x8] sm:$0xff]
    %v6739 = vld [vmem:[%s18 + $0x10] sm:$0xff]
    %v6740 = vld [vmem:[%s18 + $0x18] sm:$0xff]
    %v6741 = vld [vmem:[#allocation26] sm:$0xff]
    %v6742 = vld [vmem:[#allocation26 + $0x8] sm:$0xff]
    %v6743 = vld [vmem:[#allocation26 + $0x10] sm:$0xff]
    %v6744 = vld [vmem:[#allocation26 + $0x18] sm:$0xff]
    %6753 = vset.pattern.permute.xlu0 0
    %6754 = vperm.xlu0 %6753, %v6729
    %v6755 = vpop.permute.xlu0 %6754
    %6756 = vset.pattern.permute.xlu0 0
    %6757 = vperm.xlu0 %6756, %v6730
    %v6758 = vpop.permute.xlu0 %6757
    %6759 = vset.pattern.permute.xlu0 0
    %6760 = vperm.xlu0 %6759, %v6731
    %v6761 = vpop.permute.xlu0 %6760
    %6762 = vset.pattern.permute.xlu0 0
    %6763 = vperm.xlu0 %6762, %v6732
    %v6764 = vpop.permute.xlu0 %6763
    %6765 = vset.pattern.permute.xlu0 0
    %6766 = vperm.xlu0 %6765, %v6733
    %v6767 = vpop.permute.xlu0 %6766
    %6768 = vset.pattern.permute.xlu0 0
    %6769 = vperm.xlu0 %6768, %v6734
    %v6770 = vpop.permute.xlu0 %6769
    %6771 = vset.pattern.permute.xlu0 0
    %6772 = vperm.xlu0 %6771, %v6735
    %v6773 = vpop.permute.xlu0 %6772
    %6774 = vset.pattern.permute.xlu0 0
    %6775 = vperm.xlu0 %6774, %v6736
    %v6776 = vpop.permute.xlu0 %6775
    %v6777 = vlaneseq
    %v6778 = vshrl.u32 %v6777, 7
    %v6779 = vsub.s32 %v1998, %v6778
    %v6780 = vrot.slane %v6755, %v6779
    %v6781 = vlaneseq
    %v6782 = vshrl.u32 %v6781, 7
    %v6783 = vsub.s32 %v2302, %v6782
    %v6784 = vrot.slane %v6758, %v6783
    %v6785 = vsel %vm2307, %v6784, %v6780
    %v6786 = vlaneseq
    %v6787 = vshrl.u32 %v6786, 7
    %v6788 = vsub.s32 %v2309, %v6787
    %v6789 = vrot.slane %v6761, %v6788
    %v6790 = vsel %vm2314, %v6789, %v6785
    %v6791 = vlaneseq
    %v6792 = vshrl.u32 %v6791, 7
    %v6793 = vsub.s32 %v2316, %v6792
    %v6794 = vrot.slane %v6764, %v6793
    %v6795 = vsel %vm2321, %v6794, %v6790
    %v6796 = vlaneseq
    %v6797 = vshrl.u32 %v6796, 7
    %v6798 = vsub.s32 %v1998, %v6797
    %v6799 = vrot.slane %v6767, %v6798
    %v6800 = vlaneseq
    %v6801 = vshrl.u32 %v6800, 7
    %v6802 = vsub.s32 %v2302, %v6801
    %v6803 = vrot.slane %v6770, %v6802
    %v6804 = vsel %vm2307, %v6803, %v6799
    %v6805 = vlaneseq
    %v6806 = vshrl.u32 %v6805, 7
    %v6807 = vsub.s32 %v2309, %v6806
    %v6808 = vrot.slane %v6773, %v6807
    %v6809 = vsel %vm2314, %v6808, %v6804
    %v6810 = vlaneseq
    %v6811 = vshrl.u32 %v6810, 7
    %v6812 = vsub.s32 %v2316, %v6811
    %v6813 = vrot.slane %v6776, %v6812
    %v6814 = vsel %vm2321, %v6813, %v6809
    %v6815 = vsel %vm751, %v6814, %v6795
    %v6816 = vsel %vm297, %v6815, 0
    %6818 = vmatprep.subr.mxu0 0.0
    %6819 = vmatpush1.msra.mxu0 %v6741
    %6820 = vmatprep.subr.mxu0 0.0
    %6821 = vmatpush1.msra.mxu0 %v6742
    %6822 = vmatprep.subr.mxu0 0.0
    %6823 = vmatpush1.msra.mxu0 %v6743
    %6824 = vmatprep.subr.mxu0 0.0
    %6825 = vmatpush1.msra.mxu0 %v6744
    %6826 = vmatprep.subr.mxu0 0.0
    %6827 = vmatpush1.msra.mxu0 0.0
    %6828 = vmatprep.subr.mxu0 0.0
    %6829 = vmatpush1.msra.mxu0 0.0
    %6830 = vmatprep.subr.mxu0 0.0
    %6831 = vmatpush1.msra.mxu0 0.0
    %6832 = vmatprep.subr.mxu0 0.0
    %6833 = vmatpush1.msra.mxu0 0.0
    %6834 = vmatprep.subr.mxu0 0.0
    %6835 = vmatpush1.msra.mxu0 0.0
    %6836 = vmatprep.subr.mxu0 0.0
    %6837 = vmatpush1.msra.mxu0 0.0
    %6838 = vmatprep.subr.mxu0 0.0
    %6839 = vmatpush1.msra.mxu0 0.0
    %6840 = vmatprep.subr.mxu0 0.0
    %6841 = vmatpush1.msra.mxu0 0.0
    %6842 = vmatprep.subr.mxu0 0.0
    %6843 = vmatpush1.msra.mxu0 0.0
    %6844 = vmatprep.subr.mxu0 0.0
    %6845 = vmatpush1.msra.mxu0 0.0
    %6846 = vmatprep.subr.mxu0 0.0
    %6847 = vmatpush1.msra.mxu0 0.0
    %6848 = vmatprep.subr.mxu0 0.0
    %6849 = vmatpush1.msra.mxu0 0.0
    %6850 = vmatprep.subr.mxu0 0.0
    %6851 = vmatpush1.msra.mxu0 0.0
    %6852 = vmatprep.subr.mxu0 0.0
    %6853 = vmatpush1.msra.mxu0 0.0
    %6854 = vmatprep.subr.mxu0 0.0
    %6855 = vmatpush1.msra.mxu0 0.0
    %6856 = vmatprep.subr.mxu0 0.0
    %6857 = vmatpush1.msra.mxu0 0.0
    %6858 = vmatprep.subr.mxu0 0.0
    %6859 = vmatpush1.msra.mxu0 0.0
    %6860 = vmatprep.subr.mxu0 0.0
    %6861 = vmatpush1.msra.mxu0 0.0
    %6862 = vmatprep.subr.mxu0 0.0
    %6863 = vmatpush1.msra.mxu0 0.0
    %6864 = vmatprep.subr.mxu0 0.0
    %6865 = vmatpush1.msra.mxu0 0.0
    %6866 = vmatprep.subr.mxu0 0.0
    %6867 = vmatpush1.msra.mxu0 0.0
    %6868 = vmatprep.subr.mxu0 0.0
    %6869 = vmatpush1.msra.mxu0 0.0
    %6870 = vmatprep.subr.mxu0 0.0
    %6871 = vmatpush1.msra.mxu0 0.0
    %6872 = vmatprep.subr.mxu0 0.0
    %6873 = vmatpush1.msra.mxu0 0.0
    %6874 = vmatprep.subr.mxu0 0.0
    %6875 = vmatpush1.msra.mxu0 0.0
    %6876 = vmatprep.subr.mxu0 0.0
    %6877 = vmatpush1.msra.mxu0 0.0
    %6878 = vmatprep.subr.mxu0 0.0
    %6879 = vmatpush1.msra.mxu0 0.0
    %6880 = vmatprep.subr.mxu0 0.0
    %6881 = vmatpush1.msra.mxu0 0.0
    %6882 = vmatprep.mubr.f32.mxu0 0.0
    %6883 = vmatmul.mubr.f32.gmra.mrb[0].mxu0 %v6816
    %v6884 = vpop.f32.mrb[0].mxu0
    %v6885 = vadd.f32 0.0, %v6884
    %v6886 = vpop.f32.mrb[0].mxu0
    %6887 = vdwg.mxu0
    %v6888 = vsel %vm297, %v4494, 0
    %6890 = vmatprep.subr.mxu0 0.0
    %6891 = vmatpush1.msra.mxu0 %v6737
    %6892 = vmatprep.subr.mxu0 0.0
    %6893 = vmatpush1.msra.mxu0 %v6738
    %6894 = vmatprep.subr.mxu0 0.0
    %6895 = vmatpush1.msra.mxu0 %v6739
    %6896 = vmatprep.subr.mxu0 0.0
    %6897 = vmatpush1.msra.mxu0 %v6740
    %6898 = vmatprep.subr.mxu0 0.0
    %6899 = vmatpush1.msra.mxu0 0.0
    %6900 = vmatprep.subr.mxu0 0.0
    %6901 = vmatpush1.msra.mxu0 0.0
    %6902 = vmatprep.subr.mxu0 0.0
    %6903 = vmatpush1.msra.mxu0 0.0
    %6904 = vmatprep.subr.mxu0 0.0
    %6905 = vmatpush1.msra.mxu0 0.0
    %6906 = vmatprep.subr.mxu0 0.0
    %6907 = vmatpush1.msra.mxu0 0.0
    %6908 = vmatprep.subr.mxu0 0.0
    %6909 = vmatpush1.msra.mxu0 0.0
    %6910 = vmatprep.subr.mxu0 0.0
    %6911 = vmatpush1.msra.mxu0 0.0
    %6912 = vmatprep.subr.mxu0 0.0
    %6913 = vmatpush1.msra.mxu0 0.0
    %6914 = vmatprep.subr.mxu0 0.0
    %6915 = vmatpush1.msra.mxu0 0.0
    %6916 = vmatprep.subr.mxu0 0.0
    %6917 = vmatpush1.msra.mxu0 0.0
    %6918 = vmatprep.subr.mxu0 0.0
    %6919 = vmatpush1.msra.mxu0 0.0
    %6920 = vmatprep.subr.mxu0 0.0
    %6921 = vmatpush1.msra.mxu0 0.0
    %6922 = vmatprep.subr.mxu0 0.0
    %6923 = vmatpush1.msra.mxu0 0.0
    %6924 = vmatprep.subr.mxu0 0.0
    %6925 = vmatpush1.msra.mxu0 0.0
    %6926 = vmatprep.subr.mxu0 0.0
    %6927 = vmatpush1.msra.mxu0 0.0
    %6928 = vmatprep.subr.mxu0 0.0
    %6929 = vmatpush1.msra.mxu0 0.0
    %6930 = vmatprep.subr.mxu0 0.0
    %6931 = vmatpush1.msra.mxu0 0.0
    %6932 = vmatprep.subr.mxu0 0.0
    %6933 = vmatpush1.msra.mxu0 0.0
    %6934 = vmatprep.subr.mxu0 0.0
    %6935 = vmatpush1.msra.mxu0 0.0
    %6936 = vmatprep.subr.mxu0 0.0
    %6937 = vmatpush1.msra.mxu0 0.0
    %6938 = vmatprep.subr.mxu0 0.0
    %6939 = vmatpush1.msra.mxu0 0.0
    %6940 = vmatprep.subr.mxu0 0.0
    %6941 = vmatpush1.msra.mxu0 0.0
    %6942 = vmatprep.subr.mxu0 0.0
    %6943 = vmatpush1.msra.mxu0 0.0
    %6944 = vmatprep.subr.mxu0 0.0
    %6945 = vmatpush1.msra.mxu0 0.0
    %6946 = vmatprep.subr.mxu0 0.0
    %6947 = vmatpush1.msra.mxu0 0.0
    %6948 = vmatprep.subr.mxu0 0.0
    %6949 = vmatpush1.msra.mxu0 0.0
    %6950 = vmatprep.subr.mxu0 0.0
    %6951 = vmatpush1.msra.mxu0 0.0
    %6952 = vmatprep.subr.mxu0 0.0
    %6953 = vmatpush1.msra.mxu0 0.0
    %6954 = vmatprep.mubr.f32.mxu0 0.0
    %6955 = vmatmul.mubr.f32.gmra.mrb[0].mxu0 %v6888
    %v6956 = vpop.f32.mrb[0].mxu0
    %v6957 = vadd.f32 %v6885, %v6956
    %v6958 = vpop.f32.mrb[0].mxu0
    %6959 = vdwg.mxu0
    %v6960 = vld [vmem:[#allocation27] sm:$0xff]
    %v6961 = vld [vmem:[#allocation27 + $0x8] sm:$0xff]
    %v6962 = vld [vmem:[#allocation27 + $0x10] sm:$0xff]
    %v6963 = vld [vmem:[#allocation27 + $0x18] sm:$0xff]
    %6964 = vmatprep.subr.mxu0 0.0
    %6965 = vmatpush1.msra.mxu0 %v6960
    %6966 = vmatprep.subr.mxu0 0.0
    %6967 = vmatpush1.msra.mxu0 %v6961
    %6968 = vmatprep.subr.mxu0 0.0
    %6969 = vmatpush1.msra.mxu0 %v6962
    %6970 = vmatprep.subr.mxu0 0.0
    %6971 = vmatpush1.msra.mxu0 %v6963
    %6972 = vmatprep.subr.mxu0 0.0
    %6973 = vmatpush1.msra.mxu0 0.0
    %6974 = vmatprep.subr.mxu0 0.0
    %6975 = vmatpush1.msra.mxu0 0.0
    %6976 = vmatprep.subr.mxu0 0.0
    %6977 = vmatpush1.msra.mxu0 0.0
    %6978 = vmatprep.subr.mxu0 0.0
    %6979 = vmatpush1.msra.mxu0 0.0
    %6980 = vmatprep.subr.mxu0 0.0
    %6981 = vmatpush1.msra.mxu0 0.0
    %6982 = vmatprep.subr.mxu0 0.0
    %6983 = vmatpush1.msra.mxu0 0.0
    %6984 = vmatprep.subr.mxu0 0.0
    %6985 = vmatpush1.msra.mxu0 0.0
    %6986 = vmatprep.subr.mxu0 0.0
    %6987 = vmatpush1.msra.mxu0 0.0
    %6988 = vmatprep.subr.mxu0 0.0
    %6989 = vmatpush1.msra.mxu0 0.0
    %6990 = vmatprep.subr.mxu0 0.0
    %6991 = vmatpush1.msra.mxu0 0.0
    %6992 = vmatprep.subr.mxu0 0.0
    %6993 = vmatpush1.msra.mxu0 0.0
    %6994 = vmatprep.subr.mxu0 0.0
    %6995 = vmatpush1.msra.mxu0 0.0
    %6996 = vmatprep.subr.mxu0 0.0
    %6997 = vmatpush1.msra.mxu0 0.0
    %6998 = vmatprep.subr.mxu0 0.0
    %6999 = vmatpush1.msra.mxu0 0.0
    %7000 = vmatprep.subr.mxu0 0.0
    %7001 = vmatpush1.msra.mxu0 0.0
    %7002 = vmatprep.subr.mxu0 0.0
    %7003 = vmatpush1.msra.mxu0 0.0
    %7004 = vmatprep.subr.mxu0 0.0
    %7005 = vmatpush1.msra.mxu0 0.0
    %7006 = vmatprep.subr.mxu0 0.0
    %7007 = vmatpush1.msra.mxu0 0.0
    %7008 = vmatprep.subr.mxu0 0.0
    %7009 = vmatpush1.msra.mxu0 0.0
    %7010 = vmatprep.subr.mxu0 0.0
    %7011 = vmatpush1.msra.mxu0 0.0
    %7012 = vmatprep.subr.mxu0 0.0
    %7013 = vmatpush1.msra.mxu0 0.0
    %7014 = vmatprep.subr.mxu0 0.0
    %7015 = vmatpush1.msra.mxu0 0.0
    %7016 = vmatprep.subr.mxu0 0.0
    %7017 = vmatpush1.msra.mxu0 0.0
    %7018 = vmatprep.subr.mxu0 0.0
    %7019 = vmatpush1.msra.mxu0 0.0
    %7020 = vmatprep.subr.mxu0 0.0
    %7021 = vmatpush1.msra.mxu0 0.0
    %7022 = vmatprep.subr.mxu0 0.0
    %7023 = vmatpush1.msra.mxu0 0.0
    %7024 = vmatprep.subr.mxu0 0.0
    %7025 = vmatpush1.msra.mxu0 0.0
    %7026 = vmatprep.subr.mxu0 0.0
    %7027 = vmatpush1.msra.mxu0 0.0
    %7028 = vmatprep.mubr.f32.mxu0 0.0
    %7029 = vmatmul.mubr.f32.gmra.mrb[0].mxu0 %v4339
    %v7030 = vpop.f32.mrb[0].mxu0
    %v7031 = vadd.f32 0.0, %v7030
    %v7032 = vpop.f32.mrb[0].mxu0
    %7033 = vdwg.mxu0
    %v7034 = vadd.f32 %v6957, %v7031
    %v7035 = vld [vmem:[%s21] sm:$0x1]
    %v7037 = vlaneseq
    %v7038 = vshrl.u32 %v7037, 7
    %v7039 = vsub.s32 0, %v7038
    %v7040 = vrot.slane %v7035, %v7039
    %v7042 = vadd.f32 %v7034, %v7040
    %v7043 = vmax.f32 %v7042, 0.0
    %v7045 = vadd.s32 %v1998, 4294967264
    %v7046 = vlaneseq
    %v7047 = vshrl.u32 %v7046, 7
    %v7048 = vsub.s32 %v7045, %v7047
    %v7049 = vrot.slane %v5115, %v7048
    %v7050 = vadd.s32 %v1998, 4294967256
    %v7051 = vlaneseq
    %v7052 = vshrl.u32 %v7051, 7
    %v7053 = vsub.s32 %v7050, %v7052
    %v7054 = vrot.slane %v5118, %v7053
    %vm7055 = vcmask 392512
    %v7056 = vsel %vm7055, %v7054, %v7049
    %v7057 = vadd.s32 %v1998, 4294967248
    %v7058 = vlaneseq
    %v7059 = vshrl.u32 %v7058, 7
    %v7060 = vsub.s32 %v7057, %v7059
    %v7061 = vrot.slane %v5121, %v7060
    %vm7062 = vcmask 458112
    %v7063 = vsel %vm7062, %v7061, %v7056
    %v7064 = vadd.s32 %v1998, 4294967240
    %v7065 = vlaneseq
    %v7066 = vshrl.u32 %v7065, 7
    %v7067 = vsub.s32 %v7064, %v7066
    %v7068 = vrot.slane %v5124, %v7067
    %vm7069 = vcmask 523712
    %v7070 = vsel %vm7069, %v7068, %v7063
    %v7071 = vlaneseq
    %v7072 = vshrl.u32 %v7071, 7
    %v7073 = vsub.s32 %v7045, %v7072
    %v7074 = vrot.slane %v5127, %v7073
    %v7075 = vlaneseq
    %v7076 = vshrl.u32 %v7075, 7
    %v7077 = vsub.s32 %v7050, %v7076
    %v7078 = vrot.slane %v5130, %v7077
    %v7079 = vsel %vm7055, %v7078, %v7074
    %v7080 = vlaneseq
    %v7081 = vshrl.u32 %v7080, 7
    %v7082 = vsub.s32 %v7057, %v7081
    %v7083 = vrot.slane %v5133, %v7082
    %v7084 = vsel %vm7062, %v7083, %v7079
    %v7085 = vlaneseq
    %v7086 = vshrl.u32 %v7085, 7
    %v7087 = vsub.s32 %v7064, %v7086
    %v7088 = vrot.slane %v5136, %v7087
    %v7089 = vsel %vm7069, %v7088, %v7084
    %v7090 = vsel %vm751, %v7089, %v7070
    %v7092 = vadd.s32 %v1998, 4294967232
    %v7093 = vlaneseq
    %v7094 = vshrl.u32 %v7093, 7
    %v7095 = vsub.s32 %v7092, %v7094
    %v7096 = vrot.slane %v5387, %v7095
    %v7097 = vadd.s32 %v1998, 4294967224
    %v7098 = vlaneseq
    %v7099 = vshrl.u32 %v7098, 7
    %v7100 = vsub.s32 %v7097, %v7099
    %v7101 = vrot.slane %v5390, %v7100
    %vm7102 = vcmask 654912
    %v7103 = vsel %vm7102, %v7101, %v7096
    %v7104 = vadd.s32 %v1998, 4294967216
    %v7105 = vlaneseq
    %v7106 = vshrl.u32 %v7105, 7
    %v7107 = vsub.s32 %v7104, %v7106
    %v7108 = vrot.slane %v5393, %v7107
    %vm7109 = vcmask 720512
    %v7110 = vsel %vm7109, %v7108, %v7103
    %v7111 = vadd.s32 %v1998, 4294967208
    %v7112 = vlaneseq
    %v7113 = vshrl.u32 %v7112, 7
    %v7114 = vsub.s32 %v7111, %v7113
    %v7115 = vrot.slane %v5396, %v7114
    %vm7116 = vcmask 786112
    %v7117 = vsel %vm7116, %v7115, %v7110
    %v7118 = vlaneseq
    %v7119 = vshrl.u32 %v7118, 7
    %v7120 = vsub.s32 %v7092, %v7119
    %v7121 = vrot.slane %v5399, %v7120
    %v7122 = vlaneseq
    %v7123 = vshrl.u32 %v7122, 7
    %v7124 = vsub.s32 %v7097, %v7123
    %v7125 = vrot.slane %v5402, %v7124
    %v7126 = vsel %vm7102, %v7125, %v7121
    %v7127 = vlaneseq
    %v7128 = vshrl.u32 %v7127, 7
    %v7129 = vsub.s32 %v7104, %v7128
    %v7130 = vrot.slane %v5405, %v7129
    %v7131 = vsel %vm7109, %v7130, %v7126
    %v7132 = vlaneseq
    %v7133 = vshrl.u32 %v7132, 7
    %v7134 = vsub.s32 %v7111, %v7133
    %v7135 = vrot.slane %v5408, %v7134
    %v7136 = vsel %vm7116, %v7135, %v7131
    %v7137 = vsel %vm751, %v7136, %v7117
    %v7139 = vadd.s32 %v1998, 4294967200
    %v7140 = vlaneseq
    %v7141 = vshrl.u32 %v7140, 7
    %v7142 = vsub.s32 %v7139, %v7141
    %v7143 = vrot.slane %v5659, %v7142
    %v7144 = vadd.s32 %v1998, 4294967192
    %v7145 = vlaneseq
    %v7146 = vshrl.u32 %v7145, 7
    %v7147 = vsub.s32 %v7144, %v7146
    %v7148 = vrot.slane %v5662, %v7147
    %vm7149 = vcmask 917312
    %v7150 = vsel %vm7149, %v7148, %v7143
    %v7151 = vadd.s32 %v1998, 4294967184
    %v7152 = vlaneseq
    %v7153 = vshrl.u32 %v7152, 7
    %v7154 = vsub.s32 %v7151, %v7153
    %v7155 = vrot.slane %v5665, %v7154
    %vm7156 = vcmask 982912
    %v7157 = vsel %vm7156, %v7155, %v7150
    %v7158 = vadd.s32 %v1998, 4294967176
    %v7159 = vlaneseq
    %v7160 = vshrl.u32 %v7159, 7
    %v7161 = vsub.s32 %v7158, %v7160
    %v7162 = vrot.slane %v5668, %v7161
    %vm7163 = vcmask 1048512
    %v7164 = vsel %vm7163, %v7162, %v7157
    %v7165 = vlaneseq
    %v7166 = vshrl.u32 %v7165, 7
    %v7167 = vsub.s32 %v7139, %v7166
    %v7168 = vrot.slane %v5671, %v7167
    %v7169 = vlaneseq
    %v7170 = vshrl.u32 %v7169, 7
    %v7171 = vsub.s32 %v7144, %v7170
    %v7172 = vrot.slane %v5674, %v7171
    %v7173 = vsel %vm7149, %v7172, %v7168
    %v7174 = vlaneseq
    %v7175 = vshrl.u32 %v7174, 7
    %v7176 = vsub.s32 %v7151, %v7175
    %v7177 = vrot.slane %v5677, %v7176
    %v7178 = vsel %vm7156, %v7177, %v7173
    %v7179 = vlaneseq
    %v7180 = vshrl.u32 %v7179, 7
    %v7181 = vsub.s32 %v7158, %v7180
    %v7182 = vrot.slane %v5680, %v7181
    %v7183 = vsel %vm7163, %v7182, %v7178
    %v7184 = vsel %vm751, %v7183, %v7164
    %v7187 = vlaneseq
    %v7188 = vshrl.u32 %v7187, 7
    %v7189 = vsub.s32 %v7045, %v7188
    %v7190 = vrot.slane %v6203, %v7189
    %v7191 = vlaneseq
    %v7192 = vshrl.u32 %v7191, 7
    %v7193 = vsub.s32 %v7050, %v7192
    %v7194 = vrot.slane %v6206, %v7193
    %v7195 = vsel %vm7055, %v7194, %v7190
    %v7196 = vlaneseq
    %v7197 = vshrl.u32 %v7196, 7
    %v7198 = vsub.s32 %v7057, %v7197
    %v7199 = vrot.slane %v6209, %v7198
    %v7200 = vsel %vm7062, %v7199, %v7195
    %v7201 = vlaneseq
    %v7202 = vshrl.u32 %v7201, 7
    %v7203 = vsub.s32 %v7064, %v7202
    %v7204 = vrot.slane %v6212, %v7203
    %v7205 = vsel %vm7069, %v7204, %v7200
    %v7206 = vlaneseq
    %v7207 = vshrl.u32 %v7206, 7
    %v7208 = vsub.s32 %v7045, %v7207
    %v7209 = vrot.slane %v6215, %v7208
    %v7210 = vlaneseq
    %v7211 = vshrl.u32 %v7210, 7
    %v7212 = vsub.s32 %v7050, %v7211
    %v7213 = vrot.slane %v6218, %v7212
    %v7214 = vsel %vm7055, %v7213, %v7209
    %v7215 = vlaneseq
    %v7216 = vshrl.u32 %v7215, 7
    %v7217 = vsub.s32 %v7057, %v7216
    %v7218 = vrot.slane %v6221, %v7217
    %v7219 = vsel %vm7062, %v7218, %v7214
    %v7220 = vlaneseq
    %v7221 = vshrl.u32 %v7220, 7
    %v7222 = vsub.s32 %v7064, %v7221
    %v7223 = vrot.slane %v6224, %v7222
    %v7224 = vsel %vm7069, %v7223, %v7219
    %v7225 = vsel %vm751, %v7224, %v7205
    %v7227 = vlaneseq
    %v7228 = vshrl.u32 %v7227, 7
    %v7229 = vsub.s32 %v7092, %v7228
    %v7230 = vrot.slane %v6475, %v7229
    %v7231 = vlaneseq
    %v7232 = vshrl.u32 %v7231, 7
    %v7233 = vsub.s32 %v7097, %v7232
    %v7234 = vrot.slane %v6478, %v7233
    %v7235 = vsel %vm7102, %v7234, %v7230
    %v7236 = vlaneseq
    %v7237 = vshrl.u32 %v7236, 7
    %v7238 = vsub.s32 %v7104, %v7237
    %v7239 = vrot.slane %v6481, %v7238
    %v7240 = vsel %vm7109, %v7239, %v7235
    %v7241 = vlaneseq
    %v7242 = vshrl.u32 %v7241, 7
    %v7243 = vsub.s32 %v7111, %v7242
    %v7244 = vrot.slane %v6484, %v7243
    %v7245 = vsel %vm7116, %v7244, %v7240
    %v7246 = vlaneseq
    %v7247 = vshrl.u32 %v7246, 7
    %v7248 = vsub.s32 %v7092, %v7247
    %v7249 = vrot.slane %v6487, %v7248
    %v7250 = vlaneseq
    %v7251 = vshrl.u32 %v7250, 7
    %v7252 = vsub.s32 %v7097, %v7251
    %v7253 = vrot.slane %v6490, %v7252
    %v7254 = vsel %vm7102, %v7253, %v7249
    %v7255 = vlaneseq
    %v7256 = vshrl.u32 %v7255, 7
    %v7257 = vsub.s32 %v7104, %v7256
    %v7258 = vrot.slane %v6493, %v7257
    %v7259 = vsel %vm7109, %v7258, %v7254
    %v7260 = vlaneseq
    %v7261 = vshrl.u32 %v7260, 7
    %v7262 = vsub.s32 %v7111, %v7261
    %v7263 = vrot.slane %v6496, %v7262
    %v7264 = vsel %vm7116, %v7263, %v7259
    %v7265 = vsel %vm751, %v7264, %v7245
    %v7267 = vlaneseq
    %v7268 = vshrl.u32 %v7267, 7
    %v7269 = vsub.s32 %v7139, %v7268
    %v7270 = vrot.slane %v6755, %v7269
    %v7271 = vlaneseq
    %v7272 = vshrl.u32 %v7271, 7
    %v7273 = vsub.s32 %v7144, %v7272
    %v7274 = vrot.slane %v6758, %v7273
    %v7275 = vsel %vm7149, %v7274, %v7270
    %v7276 = vlaneseq
    %v7277 = vshrl.u32 %v7276, 7
    %v7278 = vsub.s32 %v7151, %v7277
    %v7279 = vrot.slane %v6761, %v7278
    %v7280 = vsel %vm7156, %v7279, %v7275
    %v7281 = vlaneseq
    %v7282 = vshrl.u32 %v7281, 7
    %v7283 = vsub.s32 %v7158, %v7282
    %v7284 = vrot.slane %v6764, %v7283
    %v7285 = vsel %vm7163, %v7284, %v7280
    %v7286 = vlaneseq
    %v7287 = vshrl.u32 %v7286, 7
    %v7288 = vsub.s32 %v7139, %v7287
    %v7289 = vrot.slane %v6767, %v7288
    %v7290 = vlaneseq
    %v7291 = vshrl.u32 %v7290, 7
    %v7292 = vsub.s32 %v7144, %v7291
    %v7293 = vrot.slane %v6770, %v7292
    %v7294 = vsel %vm7149, %v7293, %v7289
    %v7295 = vlaneseq
    %v7296 = vshrl.u32 %v7295, 7
    %v7297 = vsub.s32 %v7151, %v7296
    %v7298 = vrot.slane %v6773, %v7297
    %v7299 = vsel %vm7156, %v7298, %v7294
    %v7300 = vlaneseq
    %v7301 = vshrl.u32 %v7300, 7
    %v7302 = vsub.s32 %v7158, %v7301
    %v7303 = vrot.slane %v6776, %v7302
    %v7304 = vsel %vm7163, %v7303, %v7299
    %v7305 = vsel %vm751, %v7304, %v7285
    %v7307 = vsel %vm297, %v4904, %v7090
    %vm7308 = vcmask 523264
    %v7309 = vsel %vm7308, %v7307, %v7137
    %vm7310 = vcmask 785408
    %v7311 = vsel %vm7310, %v7309, %v7184
    %v7312 = vsel %vm297, %v5991, %v7225
    %v7313 = vsel %vm7308, %v7312, %v7265
    %v7314 = vsel %vm7310, %v7313, %v7305
    %v7317 = vcombine.low %v7311, %v7314
    %v7319 = vunpack.c.l.s4 1983009808
    %v7320 = vunpack.c.0.s8 %v7319
    %v7321 = vlaneseq
    %v7322 = vshrl.u32 %v7321, 7
    %v7323 = vsub.s32 %v7320, %v7322
    %v7324 = vrot.slane %v7317, %v7323
    %7326 = vst [vmem:[#allocation30] sm:$0xf] %v7324
    %vm7327 = vcmask 254976
    %7328 = vst.msk [vmem:[#allocation29] sm:$0x3] %vm7327, %v7043
    // Predicated region
    $region154: #{tpu_custom_call.1} parent=1 // pred_check
      _
    $region155: #{tpu_custom_call.1} parent=1 // pred_check_branch
      %7330 = sbr.rel (0) target = $region157
    $region156: #{tpu_custom_call.1} parent=1 // pred_region
      %s7332 = ssub.s32 32, 32
      %7333 = vsyncadd [#allocation5], %s7332
      %s7335 = sshll.u32 [#allocation29], 4
      %s7336 = int_to_ptr.vmem [resolvable:$true] %s7335
      %7338 = dma.vmem_to_hbm [thread:$0]  %s7336, 32, %s22, [#allocation5]
    $region157: #{tpu_custom_call.1} parent=1 // pred_fallthru
      _
    // Predicated region
    $region158: #{tpu_custom_call.1} parent=1 // pred_check
      _
    $region159: #{tpu_custom_call.1} parent=1 // pred_check_branch
      %7340 = sbr.rel (0) target = $region161
    $region160: #{tpu_custom_call.1} parent=1 // pred_region
      %s7342 = ssub.s32 64, 64
      %7343 = vsyncadd [#allocation31], %s7342
      %s7345 = sshll.u32 [#allocation30], 4
      %s7346 = int_to_ptr.vmem [resolvable:$true] %s7345
      %7348 = dma.vmem_to_hbm [thread:$0]  %s7346, 64, %s23, [#allocation31]
    $region161: #{tpu_custom_call.1} parent=1 // pred_fallthru
      _
    // Predicated region
    $region162: #{tpu_custom_call.1} parent=1 // pred_check
      _
    $region163: #{tpu_custom_call.1} parent=1 // pred_check_branch
      %7350 = sbr.rel (0) target = $region165
    $region164: #{tpu_custom_call.1} parent=1 // pred_region
      %7351 = dma.done [#allocation5], 32
    $region165: #{tpu_custom_call.1} parent=1 // pred_fallthru
      _
    // Predicated region
    $region166: #{tpu_custom_call.1} parent=1 // pred_check
      _
    $region167: #{tpu_custom_call.1} parent=1 // pred_check_branch
      %7353 = sbr.rel (0) target = $region169
    $region168: #{tpu_custom_call.1} parent=1 // pred_region
      %7354 = dma.done [#allocation31], 64
    $region169: #{tpu_custom_call.1} parent=1 // pred_fallthru
      _
    %7355 = vsyncpa [#allocation4], 1
    %7356 = vsyncpa [#allocation7], 1
    %7357 = vsyncpa [#allocation10], 1
    %7358 = vsyncpa [#allocation13], 1
    %7359 = vsyncpa [#allocation16], 1
    %7360 = vsyncpa [#allocation19], 1
    %7361 = vsyncpa [#allocation22], 1
    %7362 = vsyncpa [#allocation25], 1
    %7363 = vsyncpa [#allocation28], 1
    %7364 = vsyncpa [#allocation5], 1
    %7365 = vsyncpa [#allocation31], 1

</llo_original>
